<compile_context>
chip_gen: v7x
topology: tpu7x:2x2x1
jax: 0.10.0
libtpu: 0.0.40
codegen_flags: <defaults>
</compile_context>

<pallas_src>
import functools

import jax
import jax.numpy as jnp
from jax.experimental import pallas as pl
from jax.experimental.pallas import tpu as pltpu


def _round_up(v, m):
    return (v + m - 1) // m * m


def _pick_row_tile(OH, OW, B, target_rows=256, min_steps=4):
    """Output rows per grid step: big tiles (amortize ~0.35us/step) but keep
    >= min_steps total grid steps so v7x's two TensorCores each get >= 2
    pipelined steps.  th always divides OH; th*OW is 8-aligned (or th == OH)."""
    divs = [d for d in range(1, OH + 1) if OH % d == 0]
    ok = [d for d in divs if (d * OW) % 8 == 0 or d == OH]
    cands = [d for d in ok if d * OW <= target_rows]
    th = max(cands) if cands else min(ok)
    smaller = sorted(d for d in ok if d < th)
    while B * (OH // th) < min_steps and smaller:
        th = smaller.pop()
    return th


# ----------------------------------------------------------------------------
# Fused kernel: im2col + Gaussian kerv + inference BN [+ residual] [+ ReLU],
# with an optional fused 1x1 projection-shortcut branch (second output).
# Grid = (batch, row-tile); the padded NHWC image of the current batch is
# resident in VMEM for all row tiles of that batch.
# ----------------------------------------------------------------------------
def _fused_kerv_kernel(gam_ref, x_ref, w_ref, ngwsq_ref, bn_ref, *rest,
                       kh, kw, stride, th, ow, relu, has_residual,
                       has_shortcut):
    i = 0
    if has_shortcut:
        wsc_ref, ngwsq_sc_ref, bnsc_ref = rest[i:i + 3]
        i += 3
    if has_residual:
        res_ref = rest[i]
        i += 1
    o_ref = rest[i]
    if has_shortcut:
        osc_ref = rest[i + 1]

    tm = th * ow
    c_in = x_ref.shape[-1]
    r = pl.program_id(1)                       # row-tile index within the batch
    row0 = r * (th * stride)
    gamma = gam_ref[0]
    center = (kh // 2) * kw + (kw // 2)

    xw = None       # accumulates 2*gamma*<patch, w>   (2*gamma folded into w_ref)
    x_sq = None     # accumulates ||patch||^2
    sc_win = None
    sc_sq = None
    # Fused im2col: kh*kw shifted (th, OW, C) windows of the resident padded
    # image; one small MXU dot per tap.  No unfold matrix in HBM.
    for t in range(kh * kw):
        ki, kj = t // kw, t % kw
        if stride == 1:
            win = x_ref[pl.ds(row0 + ki, th), pl.ds(kj, ow), :]
        else:
            win = x_ref[pl.ds(row0 + ki, th, stride=stride),
                        pl.ds(kj, ow, stride=stride), :]
        win = win.reshape(tm, c_in)                                  # (TM, C)
        part = jnp.dot(win, w_ref[t], preferred_element_type=jnp.float32)
        sq = jnp.sum(win * win, axis=1, keepdims=True)
        xw = part if xw is None else xw + part
        x_sq = sq if x_sq is None else x_sq + sq
        if has_shortcut and t == center:
            sc_win, sc_sq = win, sq

    # arg = -gamma * ||x - w||^2, clamped <= 0 to guard the expansion's
    # cancellation noise (gamma >= 0 for GaussianKernel(0.05)).
    arg = jnp.minimum(xw - gamma * x_sq + ngwsq_ref[...], 0.0)
    y = jnp.exp(arg) * bn_ref[:, 0:1] + bn_ref[:, 1:2]   # fused inference BN
    if has_residual:
        y = y + res_ref[...]
    if relu:
        y = jnp.maximum(y, 0.0)
    o_ref[...] = y                                        # lane-dense store

    if has_shortcut:
        # 1x1 projection shortcut: its unfold patch is exactly the centre tap
        # of the 3x3 patch already in VMEM, so the whole shortcut branch rides
        # along for one extra small dot + epilogue (no second pallas_call, no
        # second read of the input).
        g_sc = gam_ref[1]
        xw_sc = jnp.dot(sc_win, wsc_ref[...],
                        preferred_element_type=jnp.float32)
        arg_sc = jnp.minimum(xw_sc - g_sc * sc_sq + ngwsq_sc_ref[...], 0.0)
        osc_ref[...] = jnp.exp(arg_sc) * bnsc_ref[:, 0:1] + bnsc_ref[:, 1:2]


def fused_kerv_conv_bn(x, weight, kgamma, bn, *, stride, padding, relu,
                       residual=None, shortcut=None, eps=1e-5,
                       target_rows=256):
    """KernelConv2d(GaussianKernel) + folded inference BatchNorm
    [+ residual add] [+ ReLU], im2col fused into the kernel.

    x: (B, C, H, W) NCHW.  Returns (out, sc_out_or_None, OH, OW) where out /
    sc_out are (B, L, O_pad) matrices in the same memory layout as PyTorch's
    (B, L, O) kernel response (columns >= O carry finite garbage)."""
    B, C, H, W = x.shape
    O, Cw, kh, kw = weight.shape
    assert C == Cw
    T = kh * kw
    OH = (H + 2 * padding - (kh - 1) - 1) // stride + 1
    OW = (W + 2 * padding - (kw - 1) - 1) // stride + 1
    L = OH * OW
    if L % O != 0:
        raise NotImplementedError(
            "fused BN path requires OH*OW % out_channels == 0")
    O_pad = _round_up(O, 128)

    # The only activation DMA'd into the kernel: zero-padded NHWC image.
    xp = jnp.pad(jnp.transpose(x, (0, 2, 3, 1)),
                 ((0, 0), (padding, padding), (padding, padding), (0, 0)))
    Hp, Wp = H + 2 * padding, W + 2 * padding

    def prep(w, gamma, bnp):
        o_, c_, a_, b_ = w.shape
        t_ = a_ * b_
        g = jnp.asarray(gamma, jnp.float32)
        # Raw reinterpretation (`w.view(1, 1, -1, w.size(0))`): (K, O),
        # K ordered (c, kh, kw) like F.unfold.
        w2 = w.reshape(c_ * t_, o_).astype(jnp.float32)
        # Tap-major (T, C, O_pad), 2*gamma folded in so the in-kernel dot
        # already yields 2*gamma*<x, w>.
        w_taps = (2.0 * g) * jnp.transpose(w2.reshape(c_, t_, o_), (1, 0, 2))
        w_taps = jnp.pad(w_taps, ((0, 0), (0, 0), (0, O_pad - o_)))
        ngwsq = jnp.pad(-g * jnp.sum(w2 * w2, axis=0, keepdims=True),
                        ((0, 0), (0, O_pad - o_)))
        gm, bt, mean, var = bnp
        scale = gm * jax.lax.rsqrt(var + eps)
        offset = bt - mean * scale
        # `.view(B,-1,h,w)` maps matrix element (l, o) to BN channel
        # (l*O + o)//L = l // (L//O) when O | L -> tiny per-row table.
        c_of_l = jnp.arange(L, dtype=jnp.int32) // (L // o_)
        bn_rows = jnp.stack([scale[c_of_l], offset[c_of_l]],
                            axis=1).astype(jnp.float32)
        return g, w_taps, ngwsq, bn_rows

    g_main, w_taps, ngwsq, bn_rows = prep(weight, kgamma, bn)

    th = _pick_row_tile(OH, OW, B, target_rows=target_rows)
    TM = th * OW
    R = OH // th

    has_shortcut = shortcut is not None
    has_residual = residual is not None

    inputs = [None, xp, w_taps, ngwsq, bn_rows]          # [0] = SMEM gammas
    in_specs = [
        pl.BlockSpec(memory_space=pltpu.MemorySpace.SMEM),            # gammas
        # Whole padded image of the current batch, resident across row tiles.
        pl.BlockSpec((None, Hp, Wp, C), lambda b, r: (b, 0, 0, 0)),
        pl.BlockSpec((T, C, O_pad), lambda b, r: (0, 0, 0)),          # weights
        pl.BlockSpec((1, O_pad), lambda b, r: (0, 0)),                # -g*||w||^2
        pl.BlockSpec((TM, 2), lambda b, r: (r, 0)),                   # BN rows
    ]
    g_sc = jnp.float32(0.0)
    if has_shortcut:
        sc_w, sc_gamma, sc_bn = shortcut
        assert sc_w.shape[1] == C and sc_w.shape[2] == 1 and sc_w.shape[3] == 1
        assert padding == kh // 2 == kw // 2     # centre tap == 1x1 input pixel
        g_sc, wsc_taps, ngwsq_sc, bnsc_rows = prep(sc_w, sc_gamma, sc_bn)
        inputs += [wsc_taps[0], ngwsq_sc, bnsc_rows]
        in_specs += [pl.BlockSpec((C, O_pad), lambda b, r: (0, 0)),
                     pl.BlockSpec((1, O_pad), lambda b, r: (0, 0)),
                     pl.BlockSpec((TM, 2), lambda b, r: (r, 0))]
    if has_residual:
        assert residual.shape == (B, L, O_pad)
        inputs.append(residual)
        in_specs.append(pl.BlockSpec((None, TM, O_pad), lambda b, r: (b, r, 0)))

    inputs[0] = jnp.stack([g_main, jnp.asarray(g_sc, jnp.float32)])

    main_shape = jax.ShapeDtypeStruct((B, L, O_pad), jnp.float32)
    main_spec = pl.BlockSpec((None, TM, O_pad), lambda b, r: (b, r, 0))
    if has_shortcut:
        out_shape = (main_shape, jax.ShapeDtypeStruct((B, L, O_pad), jnp.float32))
        out_specs = (main_spec,
                     pl.BlockSpec((None, TM, O_pad), lambda b, r: (b, r, 0)))
    else:
        out_shape = main_shape
        out_specs = main_spec

    kernel = functools.partial(
        _fused_kerv_kernel, kh=kh, kw=kw, stride=stride, th=th, ow=OW,
        relu=relu, has_residual=has_residual, has_shortcut=has_shortcut)

    # VMEM footprint per step is well under the scoped default at these shapes
    # (image + resident weights + a few (TM, 128) tiles), so no
    # vmem_limit_bytes override is needed.
    out = pl.pallas_call(
        kernel,
        out_shape=out_shape,
        grid=(B, R),
        in_specs=in_specs,
        out_specs=out_specs,
        compiler_params=pltpu.CompilerParams(
            dimension_semantics=("parallel", "parallel")),
    )(*inputs)
    if has_shortcut:
        return out[0], out[1], OH, OW
    return out, None, OH, OW


# ----------------------------------------------------------------------------
# BasicBlock forward: two fused pallas_calls total.
# ----------------------------------------------------------------------------
def basic_block_forward(x, params, *, stride, eps=1e-5):
    B = x.shape[0]
    planes = params["conv1_w"].shape[0]

    shortcut = None
    if "sc_w" in params:
        shortcut = (params["sc_w"], params["sc_kgamma"], params["bn_sc"])

    # conv1 -> bn1 -> relu, with the 1x1 projection shortcut (kerv + bn_sc)
    # fused into the same pallas_call as a second output.
    out1, res, OH, OW = fused_kerv_conv_bn(
        x, params["conv1_w"], params["conv1_kgamma"], params["bn1"],
        stride=stride, padding=1, relu=True, shortcut=shortcut, eps=eps)
    L = OH * OW
    O_pad = out1.shape[-1]

    if res is None:
        # Identity shortcut: PyTorch adds x in the *scrambled* layout, which is
        # exactly x.reshape(B, L, O); pad once to the lane-dense width (the
        # zero columns add 0 to the already-garbage padded output columns).
        assert x.shape[1] == planes and x.shape[2] == OH and x.shape[3] == OW
        res = jnp.pad(x.reshape(B, L, planes),
                      ((0, 0), (0, 0), (0, O_pad - planes)))

    # `.view(B, -1, h, w)` scramble: raw reinterpretation of the (B, L, O)
    # response.  This small slice+reshape (+ NHWC transpose inside the next
    # call) is the only inter-conv relayout; the residual is passed padded,
    # with no slice/re-pad round trip.
    out1_nchw = out1[..., :planes].reshape(B, planes, OH, OW)

    # conv2 -> bn2 -> += shortcut -> relu, all in one pallas_call.
    out2, _, OH2, OW2 = fused_kerv_conv_bn(
        out1_nchw, params["conv2_w"], params["conv2_kgamma"], params["bn2"],
        stride=1, padding=1, relu=True, residual=res, eps=eps)
    return out2[..., :planes].reshape(B, planes, OH2, OW2)     # slice once


def init_params(key, in_planes, planes, stride):
    keys = jax.random.split(key, 8)

    def bn_params(k, c):
        k1, k2, k3, k4 = jax.random.split(k, 4)
        gamma = 1.0 + 0.1 * jax.random.normal(k1, (c,), jnp.float32)
        beta = 0.1 * jax.random.normal(k2, (c,), jnp.float32)
        mean = 0.1 * jax.random.normal(k3, (c,), jnp.float32)
        var = jax.random.uniform(k4, (c,), jnp.float32, 0.5, 1.5)
        return (gamma, beta, mean, var)

    params = {
        "conv1_w": 0.2 * jax.random.normal(keys[0], (planes, in_planes, 3, 3),
                                           jnp.float32),
        "conv1_kgamma": jnp.float32(0.05),   # GaussianKernel gamma parameter
        "bn1": bn_params(keys[1], planes),
        "conv2_w": 0.2 * jax.random.normal(keys[2], (planes, planes, 3, 3),
                                           jnp.float32),
        "conv2_kgamma": jnp.float32(0.05),
        "bn2": bn_params(keys[3], planes),
    }
    if stride != 1 or in_planes != planes:
        params["sc_w"] = 0.2 * jax.random.normal(
            keys[4], (planes, in_planes, 1, 1), jnp.float32)
        params["sc_kgamma"] = jnp.float32(0.05)
        params["bn_sc"] = bn_params(keys[5], planes)
    return params


# ----------------------------------------------------------------------------
# Pure-JAX reference (literal translation of the PyTorch forward) for checking.
# ----------------------------------------------------------------------------
def _kerv_conv2d_ref(x, weight, gamma, stride, padding):
    B, C, H, W = x.shape
    O, _, kh, kw = weight.shape
    OH = (H + 2 * padding - (kh - 1) - 1) // stride + 1
    OW = (W + 2 * padding - (kw - 1) - 1) // stride + 1
    xp = jnp.pad(x, ((0, 0), (0, 0), (padding, padding), (padding, padding)))
    cols = []
    for c in range(C):
        for ki in range(kh):
            for kj in range(kw):
                cols.append(xp[:, c,
                               ki:ki + stride * (OH - 1) + 1:stride,
                               kj:kj + stride * (OW - 1) + 1:stride
                               ].reshape(B, OH * OW))
    x_unf = jnp.stack(cols, axis=1)                      # F.unfold: (B, K, L)
    w2 = weight.reshape(C * kh * kw, O)                  # w.view(1, 1, -1, O)
    diff = jnp.transpose(x_unf, (0, 2, 1))[:, :, :, None] - w2[None, None]
    t = jnp.exp(-gamma * jnp.sum(diff * diff, axis=2))   # (B, L, O)
    return t.reshape(B, O, OH, OW)                       # .view(B, -1, h, w)


def _bn_ref(y, bnp, eps=1e-5):
    g, b, m, v = bnp
    inv = (g / jnp.sqrt(v + eps))[None, :, None, None]
    return (y - m[None, :, None, None]) * inv + b[None, :, None, None]


def basic_block_ref(x, params, *, stride, eps=1e-5):
    out = jnp.maximum(
        _bn_ref(_kerv_conv2d_ref(x, params["conv1_w"], params["conv1_kgamma"],
                                 stride, 1), params["bn1"], eps), 0.0)
    out = _bn_ref(_kerv_conv2d_ref(out, params["conv2_w"],
                                   params["conv2_kgamma"], 1, 1),
                  params["bn2"], eps)
    if "sc_w" in params:
        sc = _bn_ref(_kerv_conv2d_ref(x, params["sc_w"], params["sc_kgamma"],
                                      stride, 0), params["bn_sc"], eps)
    else:
        sc = x
    return jnp.maximum(out + sc, 0.0)


if __name__ == "__main__":
    key = jax.random.PRNGKey(0)
    kx, kp, kx2, kp2 = jax.random.split(key, 4)

    # Config 1: projection shortcut (in_planes != planes), fused into conv1.
    B, in_planes, planes, H, W, stride = 2, 4, 8, 16, 16, 1
    x = jax.random.normal(kx, (B, in_planes, H, W), jnp.float32)
    params = init_params(kp, in_planes, planes, stride)
    fwd = jax.jit(functools.partial(basic_block_forward, stride=stride))
    out = jax.block_until_ready(fwd(x, params))

    OH = (H + 2 - 2 - 1) // stride + 1
    OW = (W + 2 - 2 - 1) // stride + 1
    assert out.shape == (B, planes, OH, OW), out.shape
    assert bool(jnp.all(jnp.isfinite(out)))
    assert bool(jnp.all(out >= 0.0))          # final ReLU
    ref = basic_block_ref(x, params, stride=stride)
    err = float(jnp.max(jnp.abs(out - ref)))
    assert err < 3e-3, f"mismatch vs reference: {err}"

    # Config 2: identity shortcut (in_planes == planes, stride == 1).
    x2 = jax.random.normal(kx2, (B, planes, H, W), jnp.float32)
    params2 = init_params(kp2, planes, planes, 1)
    out2 = jax.block_until_ready(basic_block_forward(x2, params2, stride=1))
    assert out2.shape == (B, planes, H, W), out2.shape
    assert bool(jnp.all(jnp.isfinite(out2)))
    assert bool(jnp.all(out2 >= 0.0))
    ref2 = basic_block_ref(x2, params2, stride=1)
    err2 = float(jnp.max(jnp.abs(out2 - ref2)))
    assert err2 < 3e-3, f"mismatch vs reference: {err2}"

    print("KERNEL_OK")
</pallas_src>

<mosaic_0001>
module attributes {stable_mosaic.version = 11 : i64} {
  func.func @_fused_kerv_kernel(%arg0: i32, %arg1: i32, %arg2: memref<2xf32, #tpu.memory_space<smem>>, %arg3: memref<1x18x18x4xf32, #tpu.memory_space<vmem>>, %arg4: memref<9x4x128xf32, #tpu.memory_space<vmem>>, %arg5: memref<1x128xf32, #tpu.memory_space<vmem>>, %arg6: memref<128x2xf32, #tpu.memory_space<vmem>>, %arg7: memref<4x128xf32, #tpu.memory_space<vmem>>, %arg8: memref<1x128xf32, #tpu.memory_space<vmem>>, %arg9: memref<128x2xf32, #tpu.memory_space<vmem>>, %arg10: memref<1x128x128xf32, #tpu.memory_space<vmem>>, %arg11: memref<1x128x128xf32, #tpu.memory_space<vmem>>) attributes {dimension_semantics = [#tpu.dimension_semantics<parallel>, #tpu.dimension_semantics<parallel>], iteration_bounds = array<i64: 2, 2>, scalar_prefetch = 0 : i64, scratch_operands = 0 : i64, tpu.core_type = #tpu.core_type<tc>, window_params = [{transform_indices = @transform_0, window_bounds = array<i64: 2>}, {transform_indices = @transform_1, window_bounds = array<i64: 1, 18, 18, 4>}, {pipeline_mode = #tpu.pipeline_mode<synchronous>, transform_indices = @transform_2, window_bounds = array<i64: 9, 4, 128>}, {pipeline_mode = #tpu.pipeline_mode<synchronous>, transform_indices = @transform_3, window_bounds = array<i64: 1, 128>}, {transform_indices = @transform_4, window_bounds = array<i64: 128, 2>}, {pipeline_mode = #tpu.pipeline_mode<synchronous>, transform_indices = @transform_5, window_bounds = array<i64: 4, 128>}, {pipeline_mode = #tpu.pipeline_mode<synchronous>, transform_indices = @transform_6, window_bounds = array<i64: 1, 128>}, {transform_indices = @transform_7, window_bounds = array<i64: 128, 2>}, {transform_indices = @transform_8, window_bounds = array<i64: 1, 128, 128>}, {transform_indices = @transform_9, window_bounds = array<i64: 1, 128, 128>}]} {
    %c8_i32 = arith.constant 8 : i32
    %0 = arith.muli %arg1, %c8_i32 : i32
    %c0 = arith.constant 0 : index
    %1 = memref.load %arg2[%c0] : memref<2xf32, #tpu.memory_space<smem>>
    %c0_i32 = arith.constant 0 : i32
    %2 = arith.addi %0, %c0_i32 : i32
    %c0_0 = arith.constant 0 : index
    %3 = arith.index_cast %2 : i32 to index
    %c0_1 = arith.constant 0 : index
    %c0_2 = arith.constant 0 : index
    %4 = vector.load %arg3[%c0_0, %3, %c0_1, %c0_2] : memref<1x18x18x4xf32, #tpu.memory_space<vmem>>, vector<1x8x16x4xf32>
    %5 = vector.shape_cast %4 : vector<1x8x16x4xf32> to vector<8x16x4xf32>
    %6 = vector.shape_cast %5 : vector<8x16x4xf32> to vector<128x4xf32>
    %c0_3 = arith.constant 0 : index
    %c0_4 = arith.constant 0 : index
    %c0_5 = arith.constant 0 : index
    %7 = vector.load %arg4[%c0_3, %c0_4, %c0_5] : memref<9x4x128xf32, #tpu.memory_space<vmem>>, vector<1x4x128xf32>
    %8 = vector.shape_cast %7 : vector<1x4x128xf32> to vector<4x128xf32>
    %cst = arith.constant dense<0.000000e+00> : vector<128x128xf32>
    %9 = tpu.matmul %6, %8, %cst {dimension_numbers = #tpu.dot_dimension_numbers<[1], [0], [0], [1], [0, 0, 1, 1], [], []>} : vector<128x4xf32>, vector<4x128xf32>, vector<128x128xf32> -> vector<128x128xf32>
    %10 = arith.mulf %6, %6 : vector<128x4xf32>
    %cst_6 = arith.constant dense<0.000000e+00> : vector<128xf32>
    %11 = vector.multi_reduction <add>, %10, %cst_6 [1] : vector<128x4xf32> to vector<128xf32>
    %12 = vector.shape_cast %11 : vector<128xf32> to vector<128x1xf32>
    %c0_i32_7 = arith.constant 0 : i32
    %13 = arith.addi %0, %c0_i32_7 : i32
    %c0_8 = arith.constant 0 : index
    %14 = arith.index_cast %13 : i32 to index
    %c1 = arith.constant 1 : index
    %c0_9 = arith.constant 0 : index
    %15 = vector.load %arg3[%c0_8, %14, %c1, %c0_9] : memref<1x18x18x4xf32, #tpu.memory_space<vmem>>, vector<1x8x16x4xf32>
    %16 = vector.shape_cast %15 : vector<1x8x16x4xf32> to vector<8x16x4xf32>
    %17 = vector.shape_cast %16 : vector<8x16x4xf32> to vector<128x4xf32>
    %c1_10 = arith.constant 1 : index
    %c0_11 = arith.constant 0 : index
    %c0_12 = arith.constant 0 : index
    %18 = vector.load %arg4[%c1_10, %c0_11, %c0_12] : memref<9x4x128xf32, #tpu.memory_space<vmem>>, vector<1x4x128xf32>
    %19 = vector.shape_cast %18 : vector<1x4x128xf32> to vector<4x128xf32>
    %cst_13 = arith.constant dense<0.000000e+00> : vector<128x128xf32>
    %20 = tpu.matmul %17, %19, %cst_13 {dimension_numbers = #tpu.dot_dimension_numbers<[1], [0], [0], [1], [0, 0, 1, 1], [], []>} : vector<128x4xf32>, vector<4x128xf32>, vector<128x128xf32> -> vector<128x128xf32>
    %21 = arith.mulf %17, %17 : vector<128x4xf32>
    %cst_14 = arith.constant dense<0.000000e+00> : vector<128xf32>
    %22 = vector.multi_reduction <add>, %21, %cst_14 [1] : vector<128x4xf32> to vector<128xf32>
    %23 = vector.shape_cast %22 : vector<128xf32> to vector<128x1xf32>
    %24 = arith.addf %9, %20 : vector<128x128xf32>
    %25 = arith.addf %12, %23 : vector<128x1xf32>
    %c0_i32_15 = arith.constant 0 : i32
    %26 = arith.addi %0, %c0_i32_15 : i32
    %c0_16 = arith.constant 0 : index
    %27 = arith.index_cast %26 : i32 to index
    %c2 = arith.constant 2 : index
    %c0_17 = arith.constant 0 : index
    %28 = vector.load %arg3[%c0_16, %27, %c2, %c0_17] : memref<1x18x18x4xf32, #tpu.memory_space<vmem>>, vector<1x8x16x4xf32>
    %29 = vector.shape_cast %28 : vector<1x8x16x4xf32> to vector<8x16x4xf32>
    %30 = vector.shape_cast %29 : vector<8x16x4xf32> to vector<128x4xf32>
    %c2_18 = arith.constant 2 : index
    %c0_19 = arith.constant 0 : index
    %c0_20 = arith.constant 0 : index
    %31 = vector.load %arg4[%c2_18, %c0_19, %c0_20] : memref<9x4x128xf32, #tpu.memory_space<vmem>>, vector<1x4x128xf32>
    %32 = vector.shape_cast %31 : vector<1x4x128xf32> to vector<4x128xf32>
    %cst_21 = arith.constant dense<0.000000e+00> : vector<128x128xf32>
    %33 = tpu.matmul %30, %32, %cst_21 {dimension_numbers = #tpu.dot_dimension_numbers<[1], [0], [0], [1], [0, 0, 1, 1], [], []>} : vector<128x4xf32>, vector<4x128xf32>, vector<128x128xf32> -> vector<128x128xf32>
    %34 = arith.mulf %30, %30 : vector<128x4xf32>
    %cst_22 = arith.constant dense<0.000000e+00> : vector<128xf32>
    %35 = vector.multi_reduction <add>, %34, %cst_22 [1] : vector<128x4xf32> to vector<128xf32>
    %36 = vector.shape_cast %35 : vector<128xf32> to vector<128x1xf32>
    %37 = arith.addf %24, %33 : vector<128x128xf32>
    %38 = arith.addf %25, %36 : vector<128x1xf32>
    %c1_i32 = arith.constant 1 : i32
    %39 = arith.addi %0, %c1_i32 : i32
    %c0_23 = arith.constant 0 : index
    %40 = arith.index_cast %39 : i32 to index
    %c0_24 = arith.constant 0 : index
    %c0_25 = arith.constant 0 : index
    %41 = vector.load %arg3[%c0_23, %40, %c0_24, %c0_25] : memref<1x18x18x4xf32, #tpu.memory_space<vmem>>, vector<1x8x16x4xf32>
    %42 = vector.shape_cast %41 : vector<1x8x16x4xf32> to vector<8x16x4xf32>
    %43 = vector.shape_cast %42 : vector<8x16x4xf32> to vector<128x4xf32>
    %c3 = arith.constant 3 : index
    %c0_26 = arith.constant 0 : index
    %c0_27 = arith.constant 0 : index
    %44 = vector.load %arg4[%c3, %c0_26, %c0_27] : memref<9x4x128xf32, #tpu.memory_space<vmem>>, vector<1x4x128xf32>
    %45 = vector.shape_cast %44 : vector<1x4x128xf32> to vector<4x128xf32>
    %cst_28 = arith.constant dense<0.000000e+00> : vector<128x128xf32>
    %46 = tpu.matmul %43, %45, %cst_28 {dimension_numbers = #tpu.dot_dimension_numbers<[1], [0], [0], [1], [0, 0, 1, 1], [], []>} : vector<128x4xf32>, vector<4x128xf32>, vector<128x128xf32> -> vector<128x128xf32>
    %47 = arith.mulf %43, %43 : vector<128x4xf32>
    %cst_29 = arith.constant dense<0.000000e+00> : vector<128xf32>
    %48 = vector.multi_reduction <add>, %47, %cst_29 [1] : vector<128x4xf32> to vector<128xf32>
    %49 = vector.shape_cast %48 : vector<128xf32> to vector<128x1xf32>
    %50 = arith.addf %37, %46 : vector<128x128xf32>
    %51 = arith.addf %38, %49 : vector<128x1xf32>
    %c1_i32_30 = arith.constant 1 : i32
    %52 = arith.addi %0, %c1_i32_30 : i32
    %c0_31 = arith.constant 0 : index
    %53 = arith.index_cast %52 : i32 to index
    %c1_32 = arith.constant 1 : index
    %c0_33 = arith.constant 0 : index
    %54 = vector.load %arg3[%c0_31, %53, %c1_32, %c0_33] : memref<1x18x18x4xf32, #tpu.memory_space<vmem>>, vector<1x8x16x4xf32>
    %55 = vector.shape_cast %54 : vector<1x8x16x4xf32> to vector<8x16x4xf32>
    %56 = vector.shape_cast %55 : vector<8x16x4xf32> to vector<128x4xf32>
    %c4 = arith.constant 4 : index
    %c0_34 = arith.constant 0 : index
    %c0_35 = arith.constant 0 : index
    %57 = vector.load %arg4[%c4, %c0_34, %c0_35] : memref<9x4x128xf32, #tpu.memory_space<vmem>>, vector<1x4x128xf32>
    %58 = vector.shape_cast %57 : vector<1x4x128xf32> to vector<4x128xf32>
    %cst_36 = arith.constant dense<0.000000e+00> : vector<128x128xf32>
    %59 = tpu.matmul %56, %58, %cst_36 {dimension_numbers = #tpu.dot_dimension_numbers<[1], [0], [0], [1], [0, 0, 1, 1], [], []>} : vector<128x4xf32>, vector<4x128xf32>, vector<128x128xf32> -> vector<128x128xf32>
    %60 = arith.mulf %56, %56 : vector<128x4xf32>
    %cst_37 = arith.constant dense<0.000000e+00> : vector<128xf32>
    %61 = vector.multi_reduction <add>, %60, %cst_37 [1] : vector<128x4xf32> to vector<128xf32>
    %62 = vector.shape_cast %61 : vector<128xf32> to vector<128x1xf32>
    %63 = arith.addf %50, %59 : vector<128x128xf32>
    %64 = arith.addf %51, %62 : vector<128x1xf32>
    %c1_i32_38 = arith.constant 1 : i32
    %65 = arith.addi %0, %c1_i32_38 : i32
    %c0_39 = arith.constant 0 : index
    %66 = arith.index_cast %65 : i32 to index
    %c2_40 = arith.constant 2 : index
    %c0_41 = arith.constant 0 : index
    %67 = vector.load %arg3[%c0_39, %66, %c2_40, %c0_41] : memref<1x18x18x4xf32, #tpu.memory_space<vmem>>, vector<1x8x16x4xf32>
    %68 = vector.shape_cast %67 : vector<1x8x16x4xf32> to vector<8x16x4xf32>
    %69 = vector.shape_cast %68 : vector<8x16x4xf32> to vector<128x4xf32>
    %c5 = arith.constant 5 : index
    %c0_42 = arith.constant 0 : index
    %c0_43 = arith.constant 0 : index
    %70 = vector.load %arg4[%c5, %c0_42, %c0_43] : memref<9x4x128xf32, #tpu.memory_space<vmem>>, vector<1x4x128xf32>
    %71 = vector.shape_cast %70 : vector<1x4x128xf32> to vector<4x128xf32>
    %cst_44 = arith.constant dense<0.000000e+00> : vector<128x128xf32>
    %72 = tpu.matmul %69, %71, %cst_44 {dimension_numbers = #tpu.dot_dimension_numbers<[1], [0], [0], [1], [0, 0, 1, 1], [], []>} : vector<128x4xf32>, vector<4x128xf32>, vector<128x128xf32> -> vector<128x128xf32>
    %73 = arith.mulf %69, %69 : vector<128x4xf32>
    %cst_45 = arith.constant dense<0.000000e+00> : vector<128xf32>
    %74 = vector.multi_reduction <add>, %73, %cst_45 [1] : vector<128x4xf32> to vector<128xf32>
    %75 = vector.shape_cast %74 : vector<128xf32> to vector<128x1xf32>
    %76 = arith.addf %63, %72 : vector<128x128xf32>
    %77 = arith.addf %64, %75 : vector<128x1xf32>
    %c2_i32 = arith.constant 2 : i32
    %78 = arith.addi %0, %c2_i32 : i32
    %c0_46 = arith.constant 0 : index
    %79 = arith.index_cast %78 : i32 to index
    %c0_47 = arith.constant 0 : index
    %c0_48 = arith.constant 0 : index
    %80 = vector.load %arg3[%c0_46, %79, %c0_47, %c0_48] : memref<1x18x18x4xf32, #tpu.memory_space<vmem>>, vector<1x8x16x4xf32>
    %81 = vector.shape_cast %80 : vector<1x8x16x4xf32> to vector<8x16x4xf32>
    %82 = vector.shape_cast %81 : vector<8x16x4xf32> to vector<128x4xf32>
    %c6 = arith.constant 6 : index
    %c0_49 = arith.constant 0 : index
    %c0_50 = arith.constant 0 : index
    %83 = vector.load %arg4[%c6, %c0_49, %c0_50] : memref<9x4x128xf32, #tpu.memory_space<vmem>>, vector<1x4x128xf32>
    %84 = vector.shape_cast %83 : vector<1x4x128xf32> to vector<4x128xf32>
    %cst_51 = arith.constant dense<0.000000e+00> : vector<128x128xf32>
    %85 = tpu.matmul %82, %84, %cst_51 {dimension_numbers = #tpu.dot_dimension_numbers<[1], [0], [0], [1], [0, 0, 1, 1], [], []>} : vector<128x4xf32>, vector<4x128xf32>, vector<128x128xf32> -> vector<128x128xf32>
    %86 = arith.mulf %82, %82 : vector<128x4xf32>
    %cst_52 = arith.constant dense<0.000000e+00> : vector<128xf32>
    %87 = vector.multi_reduction <add>, %86, %cst_52 [1] : vector<128x4xf32> to vector<128xf32>
    %88 = vector.shape_cast %87 : vector<128xf32> to vector<128x1xf32>
    %89 = arith.addf %76, %85 : vector<128x128xf32>
    %90 = arith.addf %77, %88 : vector<128x1xf32>
    %c2_i32_53 = arith.constant 2 : i32
    %91 = arith.addi %0, %c2_i32_53 : i32
    %c0_54 = arith.constant 0 : index
    %92 = arith.index_cast %91 : i32 to index
    %c1_55 = arith.constant 1 : index
    %c0_56 = arith.constant 0 : index
    %93 = vector.load %arg3[%c0_54, %92, %c1_55, %c0_56] : memref<1x18x18x4xf32, #tpu.memory_space<vmem>>, vector<1x8x16x4xf32>
    %94 = vector.shape_cast %93 : vector<1x8x16x4xf32> to vector<8x16x4xf32>
    %95 = vector.shape_cast %94 : vector<8x16x4xf32> to vector<128x4xf32>
    %c7 = arith.constant 7 : index
    %c0_57 = arith.constant 0 : index
    %c0_58 = arith.constant 0 : index
    %96 = vector.load %arg4[%c7, %c0_57, %c0_58] : memref<9x4x128xf32, #tpu.memory_space<vmem>>, vector<1x4x128xf32>
    %97 = vector.shape_cast %96 : vector<1x4x128xf32> to vector<4x128xf32>
    %cst_59 = arith.constant dense<0.000000e+00> : vector<128x128xf32>
    %98 = tpu.matmul %95, %97, %cst_59 {dimension_numbers = #tpu.dot_dimension_numbers<[1], [0], [0], [1], [0, 0, 1, 1], [], []>} : vector<128x4xf32>, vector<4x128xf32>, vector<128x128xf32> -> vector<128x128xf32>
    %99 = arith.mulf %95, %95 : vector<128x4xf32>
    %cst_60 = arith.constant dense<0.000000e+00> : vector<128xf32>
    %100 = vector.multi_reduction <add>, %99, %cst_60 [1] : vector<128x4xf32> to vector<128xf32>
    %101 = vector.shape_cast %100 : vector<128xf32> to vector<128x1xf32>
    %102 = arith.addf %89, %98 : vector<128x128xf32>
    %103 = arith.addf %90, %101 : vector<128x1xf32>
    %c2_i32_61 = arith.constant 2 : i32
    %104 = arith.addi %0, %c2_i32_61 : i32
    %c0_62 = arith.constant 0 : index
    %105 = arith.index_cast %104 : i32 to index
    %c2_63 = arith.constant 2 : index
    %c0_64 = arith.constant 0 : index
    %106 = vector.load %arg3[%c0_62, %105, %c2_63, %c0_64] : memref<1x18x18x4xf32, #tpu.memory_space<vmem>>, vector<1x8x16x4xf32>
    %107 = vector.shape_cast %106 : vector<1x8x16x4xf32> to vector<8x16x4xf32>
    %108 = vector.shape_cast %107 : vector<8x16x4xf32> to vector<128x4xf32>
    %c8 = arith.constant 8 : index
    %c0_65 = arith.constant 0 : index
    %c0_66 = arith.constant 0 : index
    %109 = vector.load %arg4[%c8, %c0_65, %c0_66] : memref<9x4x128xf32, #tpu.memory_space<vmem>>, vector<1x4x128xf32>
    %110 = vector.shape_cast %109 : vector<1x4x128xf32> to vector<4x128xf32>
    %cst_67 = arith.constant dense<0.000000e+00> : vector<128x128xf32>
    %111 = tpu.matmul %108, %110, %cst_67 {dimension_numbers = #tpu.dot_dimension_numbers<[1], [0], [0], [1], [0, 0, 1, 1], [], []>} : vector<128x4xf32>, vector<4x128xf32>, vector<128x128xf32> -> vector<128x128xf32>
    %112 = arith.mulf %108, %108 : vector<128x4xf32>
    %cst_68 = arith.constant dense<0.000000e+00> : vector<128xf32>
    %113 = vector.multi_reduction <add>, %112, %cst_68 [1] : vector<128x4xf32> to vector<128xf32>
    %114 = vector.shape_cast %113 : vector<128xf32> to vector<128x1xf32>
    %115 = arith.addf %102, %111 : vector<128x128xf32>
    %116 = arith.addf %103, %114 : vector<128x1xf32>
    %117 = vector.broadcast %1 : f32 to vector<128x1xf32>
    %118 = arith.mulf %117, %116 : vector<128x1xf32>
    %119 = vector.broadcast %118 : vector<128x1xf32> to vector<128x128xf32>
    %120 = arith.subf %115, %119 : vector<128x128xf32>
    %c0_69 = arith.constant 0 : index
    %c0_70 = arith.constant 0 : index
    %121 = vector.load %arg5[%c0_69, %c0_70] : memref<1x128xf32, #tpu.memory_space<vmem>>, vector<1x128xf32>
    %122 = vector.broadcast %121 : vector<1x128xf32> to vector<128x128xf32>
    %123 = arith.addf %120, %122 : vector<128x128xf32>
    %cst_71 = arith.constant 0.000000e+00 : f32
    %124 = vector.broadcast %cst_71 : f32 to vector<128x128xf32>
    %125 = arith.minimumf %123, %124 : vector<128x128xf32>
    %126 = math.exp %125 : vector<128x128xf32>
    %c0_72 = arith.constant 0 : index
    %c0_73 = arith.constant 0 : index
    %127 = vector.load %arg6[%c0_72, %c0_73] : memref<128x2xf32, #tpu.memory_space<vmem>>, vector<128x1xf32>
    %128 = vector.broadcast %127 : vector<128x1xf32> to vector<128x128xf32>
    %129 = arith.mulf %126, %128 : vector<128x128xf32>
    %c0_74 = arith.constant 0 : index
    %c1_75 = arith.constant 1 : index
    %130 = vector.load %arg6[%c0_74, %c1_75] : memref<128x2xf32, #tpu.memory_space<vmem>>, vector<128x1xf32>
    %131 = vector.broadcast %130 : vector<128x1xf32> to vector<128x128xf32>
    %132 = arith.addf %129, %131 : vector<128x128xf32>
    %cst_76 = arith.constant 0.000000e+00 : f32
    %133 = vector.broadcast %cst_76 : f32 to vector<128x128xf32>
    %134 = arith.maximumf %132, %133 : vector<128x128xf32>
    %c0_77 = arith.constant 0 : index
    %c0_78 = arith.constant 0 : index
    %c0_79 = arith.constant 0 : index
    %135 = vector.load %arg10[%c0_77, %c0_78, %c0_79] : memref<1x128x128xf32, #tpu.memory_space<vmem>>, vector<1x128x128xf32>
    %136 = vector.shape_cast %135 : vector<1x128x128xf32> to vector<128x128xf32>
    %137 = vector.shape_cast %134 : vector<128x128xf32> to vector<1x128x128xf32>
    tpu.vector_store %arg10[%c0_77, %c0_78, %c0_79], %137 {strides = array<i32>} : memref<1x128x128xf32, #tpu.memory_space<vmem>>, vector<1x128x128xf32>,
    %c1_80 = arith.constant 1 : index
    %138 = memref.load %arg2[%c1_80] : memref<2xf32, #tpu.memory_space<smem>>
    %c0_81 = arith.constant 0 : index
    %c0_82 = arith.constant 0 : index
    %139 = vector.load %arg7[%c0_81, %c0_82] : memref<4x128xf32, #tpu.memory_space<vmem>>, vector<4x128xf32>
    %cst_83 = arith.constant dense<0.000000e+00> : vector<128x128xf32>
    %140 = tpu.matmul %56, %139, %cst_83 {dimension_numbers = #tpu.dot_dimension_numbers<[1], [0], [0], [1], [0, 0, 1, 1], [], []>} : vector<128x4xf32>, vector<4x128xf32>, vector<128x128xf32> -> vector<128x128xf32>
    %141 = vector.broadcast %138 : f32 to vector<128x1xf32>
    %142 = arith.mulf %141, %62 : vector<128x1xf32>
    %143 = vector.broadcast %142 : vector<128x1xf32> to vector<128x128xf32>
    %144 = arith.subf %140, %143 : vector<128x128xf32>
    %c0_84 = arith.constant 0 : index
    %c0_85 = arith.constant 0 : index
    %145 = vector.load %arg8[%c0_84, %c0_85] : memref<1x128xf32, #tpu.memory_space<vmem>>, vector<1x128xf32>
    %146 = vector.broadcast %145 : vector<1x128xf32> to vector<128x128xf32>
    %147 = arith.addf %144, %146 : vector<128x128xf32>
    %cst_86 = arith.constant 0.000000e+00 : f32
    %148 = vector.broadcast %cst_86 : f32 to vector<128x128xf32>
    %149 = arith.minimumf %147, %148 : vector<128x128xf32>
    %150 = math.exp %149 : vector<128x128xf32>
    %c0_87 = arith.constant 0 : index
    %c0_88 = arith.constant 0 : index
    %151 = vector.load %arg9[%c0_87, %c0_88] : memref<128x2xf32, #tpu.memory_space<vmem>>, vector<128x1xf32>
    %152 = vector.broadcast %151 : vector<128x1xf32> to vector<128x128xf32>
    %153 = arith.mulf %150, %152 : vector<128x128xf32>
    %c0_89 = arith.constant 0 : index
    %c1_90 = arith.constant 1 : index
    %154 = vector.load %arg9[%c0_89, %c1_90] : memref<128x2xf32, #tpu.memory_space<vmem>>, vector<128x1xf32>
    %155 = vector.broadcast %154 : vector<128x1xf32> to vector<128x128xf32>
    %156 = arith.addf %153, %155 : vector<128x128xf32>
    %c0_91 = arith.constant 0 : index
    %c0_92 = arith.constant 0 : index
    %c0_93 = arith.constant 0 : index
    %157 = vector.load %arg11[%c0_91, %c0_92, %c0_93] : memref<1x128x128xf32, #tpu.memory_space<vmem>>, vector<1x128x128xf32>
    %158 = vector.shape_cast %157 : vector<1x128x128xf32> to vector<128x128xf32>
    %159 = vector.shape_cast %156 : vector<128x128xf32> to vector<1x128x128xf32>
    tpu.vector_store %arg11[%c0_91, %c0_92, %c0_93], %159 {strides = array<i32>} : memref<1x128x128xf32, #tpu.memory_space<vmem>>, vector<1x128x128xf32>,
    return
  }
  func.func @transform_0(%arg0: i32, %arg1: i32) -> i32 {
    %c0_i32 = arith.constant 0 : i32
    %c0_i32_0 = arith.constant 0 : i32
    return %c0_i32 : i32
  }
  func.func @transform_1(%arg0: i32, %arg1: i32) -> (i32, i32, i32, i32) {
    %c0_i32 = arith.constant 0 : i32
    %c0_i32_0 = arith.constant 0 : i32
    %c0_i32_1 = arith.constant 0 : i32
    %c0_i32_2 = arith.constant 0 : i32
    return %arg0, %c0_i32, %c0_i32_0, %c0_i32_1 : i32, i32, i32, i32
  }
  func.func @transform_2(%arg0: i32, %arg1: i32) -> (i32, i32, i32) {
    %c0_i32 = arith.constant 0 : i32
    %c0_i32_0 = arith.constant 0 : i32
    %c0_i32_1 = arith.constant 0 : i32
    %c0_i32_2 = arith.constant 0 : i32
    return %c0_i32, %c0_i32_0, %c0_i32_1 : i32, i32, i32
  }
  func.func @transform_3(%arg0: i32, %arg1: i32) -> (i32, i32) {
    %c0_i32 = arith.constant 0 : i32
    %c0_i32_0 = arith.constant 0 : i32
    %c0_i32_1 = arith.constant 0 : i32
    return %c0_i32, %c0_i32_0 : i32, i32
  }
  func.func @transform_4(%arg0: i32, %arg1: i32) -> (i32, i32) {
    %c0_i32 = arith.constant 0 : i32
    %c0_i32_0 = arith.constant 0 : i32
    return %arg1, %c0_i32 : i32, i32
  }
  func.func @transform_5(%arg0: i32, %arg1: i32) -> (i32, i32) {
    %c0_i32 = arith.constant 0 : i32
    %c0_i32_0 = arith.constant 0 : i32
    %c0_i32_1 = arith.constant 0 : i32
    return %c0_i32, %c0_i32_0 : i32, i32
  }
  func.func @transform_6(%arg0: i32, %arg1: i32) -> (i32, i32) {
    %c0_i32 = arith.constant 0 : i32
    %c0_i32_0 = arith.constant 0 : i32
    %c0_i32_1 = arith.constant 0 : i32
    return %c0_i32, %c0_i32_0 : i32, i32
  }
  func.func @transform_7(%arg0: i32, %arg1: i32) -> (i32, i32) {
    %c0_i32 = arith.constant 0 : i32
    %c0_i32_0 = arith.constant 0 : i32
    return %arg1, %c0_i32 : i32, i32
  }
  func.func @transform_8(%arg0: i32, %arg1: i32) -> (i32, i32, i32) {
    %c0_i32 = arith.constant 0 : i32
    %c0_i32_0 = arith.constant 0 : i32
    return %arg0, %arg1, %c0_i32 : i32, i32, i32
  }
  func.func @transform_9(%arg0: i32, %arg1: i32) -> (i32, i32, i32) {
    %c0_i32 = arith.constant 0 : i32
    %c0_i32_0 = arith.constant 0 : i32
    return %arg0, %arg1, %c0_i32 : i32, i32, i32
  }
}

module attributes {stable_mosaic.version = 11 : i64} {
  func.func @_fused_kerv_kernel(%arg0: i32, %arg1: i32, %arg2: memref<2xf32, #tpu.memory_space<smem>>, %arg3: memref<1x18x18x8xf32, #tpu.memory_space<vmem>>, %arg4: memref<9x8x128xf32, #tpu.memory_space<vmem>>, %arg5: memref<1x128xf32, #tpu.memory_space<vmem>>, %arg6: memref<128x2xf32, #tpu.memory_space<vmem>>, %arg7: memref<1x128x128xf32, #tpu.memory_space<vmem>>, %arg8: memref<1x128x128xf32, #tpu.memory_space<vmem>>) attributes {dimension_semantics = [#tpu.dimension_semantics<parallel>, #tpu.dimension_semantics<parallel>], iteration_bounds = array<i64: 2, 2>, scalar_prefetch = 0 : i64, scratch_operands = 0 : i64, tpu.core_type = #tpu.core_type<tc>, window_params = [{transform_indices = @transform_0, window_bounds = array<i64: 2>}, {transform_indices = @transform_1, window_bounds = array<i64: 1, 18, 18, 8>}, {pipeline_mode = #tpu.pipeline_mode<synchronous>, transform_indices = @transform_2, window_bounds = array<i64: 9, 8, 128>}, {pipeline_mode = #tpu.pipeline_mode<synchronous>, transform_indices = @transform_3, window_bounds = array<i64: 1, 128>}, {transform_indices = @transform_4, window_bounds = array<i64: 128, 2>}, {transform_indices = @transform_5, window_bounds = array<i64: 1, 128, 128>}, {transform_indices = @transform_6, window_bounds = array<i64: 1, 128, 128>}]} {
    %c8_i32 = arith.constant 8 : i32
    %0 = arith.muli %arg1, %c8_i32 : i32
    %c0 = arith.constant 0 : index
    %1 = memref.load %arg2[%c0] : memref<2xf32, #tpu.memory_space<smem>>
    %c0_i32 = arith.constant 0 : i32
    %2 = arith.addi %0, %c0_i32 : i32
    %c0_0 = arith.constant 0 : index
    %3 = arith.index_cast %2 : i32 to index
    %c0_1 = arith.constant 0 : index
    %c0_2 = arith.constant 0 : index
    %4 = vector.load %arg3[%c0_0, %3, %c0_1, %c0_2] : memref<1x18x18x8xf32, #tpu.memory_space<vmem>>, vector<1x8x16x8xf32>
    %5 = vector.shape_cast %4 : vector<1x8x16x8xf32> to vector<8x16x8xf32>
    %6 = vector.shape_cast %5 : vector<8x16x8xf32> to vector<128x8xf32>
    %c0_3 = arith.constant 0 : index
    %c0_4 = arith.constant 0 : index
    %c0_5 = arith.constant 0 : index
    %7 = vector.load %arg4[%c0_3, %c0_4, %c0_5] : memref<9x8x128xf32, #tpu.memory_space<vmem>>, vector<1x8x128xf32>
    %8 = vector.shape_cast %7 : vector<1x8x128xf32> to vector<8x128xf32>
    %cst = arith.constant dense<0.000000e+00> : vector<128x128xf32>
    %9 = tpu.matmul %6, %8, %cst {dimension_numbers = #tpu.dot_dimension_numbers<[1], [0], [0], [1], [0, 0, 1, 1], [], []>} : vector<128x8xf32>, vector<8x128xf32>, vector<128x128xf32> -> vector<128x128xf32>
    %10 = arith.mulf %6, %6 : vector<128x8xf32>
    %cst_6 = arith.constant dense<0.000000e+00> : vector<128xf32>
    %11 = vector.multi_reduction <add>, %10, %cst_6 [1] : vector<128x8xf32> to vector<128xf32>
    %12 = vector.shape_cast %11 : vector<128xf32> to vector<128x1xf32>
    %c0_i32_7 = arith.constant 0 : i32
    %13 = arith.addi %0, %c0_i32_7 : i32
    %c0_8 = arith.constant 0 : index
    %14 = arith.index_cast %13 : i32 to index
    %c1 = arith.constant 1 : index
    %c0_9 = arith.constant 0 : index
    %15 = vector.load %arg3[%c0_8, %14, %c1, %c0_9] : memref<1x18x18x8xf32, #tpu.memory_space<vmem>>, vector<1x8x16x8xf32>
    %16 = vector.shape_cast %15 : vector<1x8x16x8xf32> to vector<8x16x8xf32>
    %17 = vector.shape_cast %16 : vector<8x16x8xf32> to vector<128x8xf32>
    %c1_10 = arith.constant 1 : index
    %c0_11 = arith.constant 0 : index
    %c0_12 = arith.constant 0 : index
    %18 = vector.load %arg4[%c1_10, %c0_11, %c0_12] : memref<9x8x128xf32, #tpu.memory_space<vmem>>, vector<1x8x128xf32>
    %19 = vector.shape_cast %18 : vector<1x8x128xf32> to vector<8x128xf32>
    %cst_13 = arith.constant dense<0.000000e+00> : vector<128x128xf32>
    %20 = tpu.matmul %17, %19, %cst_13 {dimension_numbers = #tpu.dot_dimension_numbers<[1], [0], [0], [1], [0, 0, 1, 1], [], []>} : vector<128x8xf32>, vector<8x128xf32>, vector<128x128xf32> -> vector<128x128xf32>
    %21 = arith.mulf %17, %17 : vector<128x8xf32>
    %cst_14 = arith.constant dense<0.000000e+00> : vector<128xf32>
    %22 = vector.multi_reduction <add>, %21, %cst_14 [1] : vector<128x8xf32> to vector<128xf32>
    %23 = vector.shape_cast %22 : vector<128xf32> to vector<128x1xf32>
    %24 = arith.addf %9, %20 : vector<128x128xf32>
    %25 = arith.addf %12, %23 : vector<128x1xf32>
    %c0_i32_15 = arith.constant 0 : i32
    %26 = arith.addi %0, %c0_i32_15 : i32
    %c0_16 = arith.constant 0 : index
    %27 = arith.index_cast %26 : i32 to index
    %c2 = arith.constant 2 : index
    %c0_17 = arith.constant 0 : index
    %28 = vector.load %arg3[%c0_16, %27, %c2, %c0_17] : memref<1x18x18x8xf32, #tpu.memory_space<vmem>>, vector<1x8x16x8xf32>
    %29 = vector.shape_cast %28 : vector<1x8x16x8xf32> to vector<8x16x8xf32>
    %30 = vector.shape_cast %29 : vector<8x16x8xf32> to vector<128x8xf32>
    %c2_18 = arith.constant 2 : index
    %c0_19 = arith.constant 0 : index
    %c0_20 = arith.constant 0 : index
    %31 = vector.load %arg4[%c2_18, %c0_19, %c0_20] : memref<9x8x128xf32, #tpu.memory_space<vmem>>, vector<1x8x128xf32>
    %32 = vector.shape_cast %31 : vector<1x8x128xf32> to vector<8x128xf32>
    %cst_21 = arith.constant dense<0.000000e+00> : vector<128x128xf32>
    %33 = tpu.matmul %30, %32, %cst_21 {dimension_numbers = #tpu.dot_dimension_numbers<[1], [0], [0], [1], [0, 0, 1, 1], [], []>} : vector<128x8xf32>, vector<8x128xf32>, vector<128x128xf32> -> vector<128x128xf32>
    %34 = arith.mulf %30, %30 : vector<128x8xf32>
    %cst_22 = arith.constant dense<0.000000e+00> : vector<128xf32>
    %35 = vector.multi_reduction <add>, %34, %cst_22 [1] : vector<128x8xf32> to vector<128xf32>
    %36 = vector.shape_cast %35 : vector<128xf32> to vector<128x1xf32>
    %37 = arith.addf %24, %33 : vector<128x128xf32>
    %38 = arith.addf %25, %36 : vector<128x1xf32>
    %c1_i32 = arith.constant 1 : i32
    %39 = arith.addi %0, %c1_i32 : i32
    %c0_23 = arith.constant 0 : index
    %40 = arith.index_cast %39 : i32 to index
    %c0_24 = arith.constant 0 : index
    %c0_25 = arith.constant 0 : index
    %41 = vector.load %arg3[%c0_23, %40, %c0_24, %c0_25] : memref<1x18x18x8xf32, #tpu.memory_space<vmem>>, vector<1x8x16x8xf32>
    %42 = vector.shape_cast %41 : vector<1x8x16x8xf32> to vector<8x16x8xf32>
    %43 = vector.shape_cast %42 : vector<8x16x8xf32> to vector<128x8xf32>
    %c3 = arith.constant 3 : index
    %c0_26 = arith.constant 0 : index
    %c0_27 = arith.constant 0 : index
    %44 = vector.load %arg4[%c3, %c0_26, %c0_27] : memref<9x8x128xf32, #tpu.memory_space<vmem>>, vector<1x8x128xf32>
    %45 = vector.shape_cast %44 : vector<1x8x128xf32> to vector<8x128xf32>
    %cst_28 = arith.constant dense<0.000000e+00> : vector<128x128xf32>
    %46 = tpu.matmul %43, %45, %cst_28 {dimension_numbers = #tpu.dot_dimension_numbers<[1], [0], [0], [1], [0, 0, 1, 1], [], []>} : vector<128x8xf32>, vector<8x128xf32>, vector<128x128xf32> -> vector<128x128xf32>
    %47 = arith.mulf %43, %43 : vector<128x8xf32>
    %cst_29 = arith.constant dense<0.000000e+00> : vector<128xf32>
    %48 = vector.multi_reduction <add>, %47, %cst_29 [1] : vector<128x8xf32> to vector<128xf32>
    %49 = vector.shape_cast %48 : vector<128xf32> to vector<128x1xf32>
    %50 = arith.addf %37, %46 : vector<128x128xf32>
    %51 = arith.addf %38, %49 : vector<128x1xf32>
    %c1_i32_30 = arith.constant 1 : i32
    %52 = arith.addi %0, %c1_i32_30 : i32
    %c0_31 = arith.constant 0 : index
    %53 = arith.index_cast %52 : i32 to index
    %c1_32 = arith.constant 1 : index
    %c0_33 = arith.constant 0 : index
    %54 = vector.load %arg3[%c0_31, %53, %c1_32, %c0_33] : memref<1x18x18x8xf32, #tpu.memory_space<vmem>>, vector<1x8x16x8xf32>
    %55 = vector.shape_cast %54 : vector<1x8x16x8xf32> to vector<8x16x8xf32>
    %56 = vector.shape_cast %55 : vector<8x16x8xf32> to vector<128x8xf32>
    %c4 = arith.constant 4 : index
    %c0_34 = arith.constant 0 : index
    %c0_35 = arith.constant 0 : index
    %57 = vector.load %arg4[%c4, %c0_34, %c0_35] : memref<9x8x128xf32, #tpu.memory_space<vmem>>, vector<1x8x128xf32>
    %58 = vector.shape_cast %57 : vector<1x8x128xf32> to vector<8x128xf32>
    %cst_36 = arith.constant dense<0.000000e+00> : vector<128x128xf32>
    %59 = tpu.matmul %56, %58, %cst_36 {dimension_numbers = #tpu.dot_dimension_numbers<[1], [0], [0], [1], [0, 0, 1, 1], [], []>} : vector<128x8xf32>, vector<8x128xf32>, vector<128x128xf32> -> vector<128x128xf32>
    %60 = arith.mulf %56, %56 : vector<128x8xf32>
    %cst_37 = arith.constant dense<0.000000e+00> : vector<128xf32>
    %61 = vector.multi_reduction <add>, %60, %cst_37 [1] : vector<128x8xf32> to vector<128xf32>
    %62 = vector.shape_cast %61 : vector<128xf32> to vector<128x1xf32>
    %63 = arith.addf %50, %59 : vector<128x128xf32>
    %64 = arith.addf %51, %62 : vector<128x1xf32>
    %c1_i32_38 = arith.constant 1 : i32
    %65 = arith.addi %0, %c1_i32_38 : i32
    %c0_39 = arith.constant 0 : index
    %66 = arith.index_cast %65 : i32 to index
    %c2_40 = arith.constant 2 : index
    %c0_41 = arith.constant 0 : index
    %67 = vector.load %arg3[%c0_39, %66, %c2_40, %c0_41] : memref<1x18x18x8xf32, #tpu.memory_space<vmem>>, vector<1x8x16x8xf32>
    %68 = vector.shape_cast %67 : vector<1x8x16x8xf32> to vector<8x16x8xf32>
    %69 = vector.shape_cast %68 : vector<8x16x8xf32> to vector<128x8xf32>
    %c5 = arith.constant 5 : index
    %c0_42 = arith.constant 0 : index
    %c0_43 = arith.constant 0 : index
    %70 = vector.load %arg4[%c5, %c0_42, %c0_43] : memref<9x8x128xf32, #tpu.memory_space<vmem>>, vector<1x8x128xf32>
    %71 = vector.shape_cast %70 : vector<1x8x128xf32> to vector<8x128xf32>
    %cst_44 = arith.constant dense<0.000000e+00> : vector<128x128xf32>
    %72 = tpu.matmul %69, %71, %cst_44 {dimension_numbers = #tpu.dot_dimension_numbers<[1], [0], [0], [1], [0, 0, 1, 1], [], []>} : vector<128x8xf32>, vector<8x128xf32>, vector<128x128xf32> -> vector<128x128xf32>
    %73 = arith.mulf %69, %69 : vector<128x8xf32>
    %cst_45 = arith.constant dense<0.000000e+00> : vector<128xf32>
    %74 = vector.multi_reduction <add>, %73, %cst_45 [1] : vector<128x8xf32> to vector<128xf32>
    %75 = vector.shape_cast %74 : vector<128xf32> to vector<128x1xf32>
    %76 = arith.addf %63, %72 : vector<128x128xf32>
    %77 = arith.addf %64, %75 : vector<128x1xf32>
    %c2_i32 = arith.constant 2 : i32
    %78 = arith.addi %0, %c2_i32 : i32
    %c0_46 = arith.constant 0 : index
    %79 = arith.index_cast %78 : i32 to index
    %c0_47 = arith.constant 0 : index
    %c0_48 = arith.constant 0 : index
    %80 = vector.load %arg3[%c0_46, %79, %c0_47, %c0_48] : memref<1x18x18x8xf32, #tpu.memory_space<vmem>>, vector<1x8x16x8xf32>
    %81 = vector.shape_cast %80 : vector<1x8x16x8xf32> to vector<8x16x8xf32>
    %82 = vector.shape_cast %81 : vector<8x16x8xf32> to vector<128x8xf32>
    %c6 = arith.constant 6 : index
    %c0_49 = arith.constant 0 : index
    %c0_50 = arith.constant 0 : index
    %83 = vector.load %arg4[%c6, %c0_49, %c0_50] : memref<9x8x128xf32, #tpu.memory_space<vmem>>, vector<1x8x128xf32>
    %84 = vector.shape_cast %83 : vector<1x8x128xf32> to vector<8x128xf32>
    %cst_51 = arith.constant dense<0.000000e+00> : vector<128x128xf32>
    %85 = tpu.matmul %82, %84, %cst_51 {dimension_numbers = #tpu.dot_dimension_numbers<[1], [0], [0], [1], [0, 0, 1, 1], [], []>} : vector<128x8xf32>, vector<8x128xf32>, vector<128x128xf32> -> vector<128x128xf32>
    %86 = arith.mulf %82, %82 : vector<128x8xf32>
    %cst_52 = arith.constant dense<0.000000e+00> : vector<128xf32>
    %87 = vector.multi_reduction <add>, %86, %cst_52 [1] : vector<128x8xf32> to vector<128xf32>
    %88 = vector.shape_cast %87 : vector<128xf32> to vector<128x1xf32>
    %89 = arith.addf %76, %85 : vector<128x128xf32>
    %90 = arith.addf %77, %88 : vector<128x1xf32>
    %c2_i32_53 = arith.constant 2 : i32
    %91 = arith.addi %0, %c2_i32_53 : i32
    %c0_54 = arith.constant 0 : index
    %92 = arith.index_cast %91 : i32 to index
    %c1_55 = arith.constant 1 : index
    %c0_56 = arith.constant 0 : index
    %93 = vector.load %arg3[%c0_54, %92, %c1_55, %c0_56] : memref<1x18x18x8xf32, #tpu.memory_space<vmem>>, vector<1x8x16x8xf32>
    %94 = vector.shape_cast %93 : vector<1x8x16x8xf32> to vector<8x16x8xf32>
    %95 = vector.shape_cast %94 : vector<8x16x8xf32> to vector<128x8xf32>
    %c7 = arith.constant 7 : index
    %c0_57 = arith.constant 0 : index
    %c0_58 = arith.constant 0 : index
    %96 = vector.load %arg4[%c7, %c0_57, %c0_58] : memref<9x8x128xf32, #tpu.memory_space<vmem>>, vector<1x8x128xf32>
    %97 = vector.shape_cast %96 : vector<1x8x128xf32> to vector<8x128xf32>
    %cst_59 = arith.constant dense<0.000000e+00> : vector<128x128xf32>
    %98 = tpu.matmul %95, %97, %cst_59 {dimension_numbers = #tpu.dot_dimension_numbers<[1], [0], [0], [1], [0, 0, 1, 1], [], []>} : vector<128x8xf32>, vector<8x128xf32>, vector<128x128xf32> -> vector<128x128xf32>
    %99 = arith.mulf %95, %95 : vector<128x8xf32>
    %cst_60 = arith.constant dense<0.000000e+00> : vector<128xf32>
    %100 = vector.multi_reduction <add>, %99, %cst_60 [1] : vector<128x8xf32> to vector<128xf32>
    %101 = vector.shape_cast %100 : vector<128xf32> to vector<128x1xf32>
    %102 = arith.addf %89, %98 : vector<128x128xf32>
    %103 = arith.addf %90, %101 : vector<128x1xf32>
    %c2_i32_61 = arith.constant 2 : i32
    %104 = arith.addi %0, %c2_i32_61 : i32
    %c0_62 = arith.constant 0 : index
    %105 = arith.index_cast %104 : i32 to index
    %c2_63 = arith.constant 2 : index
    %c0_64 = arith.constant 0 : index
    %106 = vector.load %arg3[%c0_62, %105, %c2_63, %c0_64] : memref<1x18x18x8xf32, #tpu.memory_space<vmem>>, vector<1x8x16x8xf32>
    %107 = vector.shape_cast %106 : vector<1x8x16x8xf32> to vector<8x16x8xf32>
    %108 = vector.shape_cast %107 : vector<8x16x8xf32> to vector<128x8xf32>
    %c8 = arith.constant 8 : index
    %c0_65 = arith.constant 0 : index
    %c0_66 = arith.constant 0 : index
    %109 = vector.load %arg4[%c8, %c0_65, %c0_66] : memref<9x8x128xf32, #tpu.memory_space<vmem>>, vector<1x8x128xf32>
    %110 = vector.shape_cast %109 : vector<1x8x128xf32> to vector<8x128xf32>
    %cst_67 = arith.constant dense<0.000000e+00> : vector<128x128xf32>
    %111 = tpu.matmul %108, %110, %cst_67 {dimension_numbers = #tpu.dot_dimension_numbers<[1], [0], [0], [1], [0, 0, 1, 1], [], []>} : vector<128x8xf32>, vector<8x128xf32>, vector<128x128xf32> -> vector<128x128xf32>
    %112 = arith.mulf %108, %108 : vector<128x8xf32>
    %cst_68 = arith.constant dense<0.000000e+00> : vector<128xf32>
    %113 = vector.multi_reduction <add>, %112, %cst_68 [1] : vector<128x8xf32> to vector<128xf32>
    %114 = vector.shape_cast %113 : vector<128xf32> to vector<128x1xf32>
    %115 = arith.addf %102, %111 : vector<128x128xf32>
    %116 = arith.addf %103, %114 : vector<128x1xf32>
    %117 = vector.broadcast %1 : f32 to vector<128x1xf32>
    %118 = arith.mulf %117, %116 : vector<128x1xf32>
    %119 = vector.broadcast %118 : vector<128x1xf32> to vector<128x128xf32>
    %120 = arith.subf %115, %119 : vector<128x128xf32>
    %c0_69 = arith.constant 0 : index
    %c0_70 = arith.constant 0 : index
    %121 = vector.load %arg5[%c0_69, %c0_70] : memref<1x128xf32, #tpu.memory_space<vmem>>, vector<1x128xf32>
    %122 = vector.broadcast %121 : vector<1x128xf32> to vector<128x128xf32>
    %123 = arith.addf %120, %122 : vector<128x128xf32>
    %cst_71 = arith.constant 0.000000e+00 : f32
    %124 = vector.broadcast %cst_71 : f32 to vector<128x128xf32>
    %125 = arith.minimumf %123, %124 : vector<128x128xf32>
    %126 = math.exp %125 : vector<128x128xf32>
    %c0_72 = arith.constant 0 : index
    %c0_73 = arith.constant 0 : index
    %127 = vector.load %arg6[%c0_72, %c0_73] : memref<128x2xf32, #tpu.memory_space<vmem>>, vector<128x1xf32>
    %128 = vector.broadcast %127 : vector<128x1xf32> to vector<128x128xf32>
    %129 = arith.mulf %126, %128 : vector<128x128xf32>
    %c0_74 = arith.constant 0 : index
    %c1_75 = arith.constant 1 : index
    %130 = vector.load %arg6[%c0_74, %c1_75] : memref<128x2xf32, #tpu.memory_space<vmem>>, vector<128x1xf32>
    %131 = vector.broadcast %130 : vector<128x1xf32> to vector<128x128xf32>
    %132 = arith.addf %129, %131 : vector<128x128xf32>
    %c0_76 = arith.constant 0 : index
    %c0_77 = arith.constant 0 : index
    %c0_78 = arith.constant 0 : index
    %133 = vector.load %arg7[%c0_76, %c0_77, %c0_78] : memref<1x128x128xf32, #tpu.memory_space<vmem>>, vector<1x128x128xf32>
    %134 = vector.shape_cast %133 : vector<1x128x128xf32> to vector<128x128xf32>
    %135 = arith.addf %132, %134 : vector<128x128xf32>
    %cst_79 = arith.constant 0.000000e+00 : f32
    %136 = vector.broadcast %cst_79 : f32 to vector<128x128xf32>
    %137 = arith.maximumf %135, %136 : vector<128x128xf32>
    %c0_80 = arith.constant 0 : index
    %c0_81 = arith.constant 0 : index
    %c0_82 = arith.constant 0 : index
    %138 = vector.load %arg8[%c0_80, %c0_81, %c0_82] : memref<1x128x128xf32, #tpu.memory_space<vmem>>, vector<1x128x128xf32>
    %139 = vector.shape_cast %138 : vector<1x128x128xf32> to vector<128x128xf32>
    %140 = vector.shape_cast %137 : vector<128x128xf32> to vector<1x128x128xf32>
    tpu.vector_store %arg8[%c0_80, %c0_81, %c0_82], %140 {strides = array<i32>} : memref<1x128x128xf32, #tpu.memory_space<vmem>>, vector<1x128x128xf32>,
    return
  }
  func.func @transform_0(%arg0: i32, %arg1: i32) -> i32 {
    %c0_i32 = arith.constant 0 : i32
    %c0_i32_0 = arith.constant 0 : i32
    return %c0_i32 : i32
  }
  func.func @transform_1(%arg0: i32, %arg1: i32) -> (i32, i32, i32, i32) {
    %c0_i32 = arith.constant 0 : i32
    %c0_i32_0 = arith.constant 0 : i32
    %c0_i32_1 = arith.constant 0 : i32
    %c0_i32_2 = arith.constant 0 : i32
    return %arg0, %c0_i32, %c0_i32_0, %c0_i32_1 : i32, i32, i32, i32
  }
  func.func @transform_2(%arg0: i32, %arg1: i32) -> (i32, i32, i32) {
    %c0_i32 = arith.constant 0 : i32
    %c0_i32_0 = arith.constant 0 : i32
    %c0_i32_1 = arith.constant 0 : i32
    %c0_i32_2 = arith.constant 0 : i32
    return %c0_i32, %c0_i32_0, %c0_i32_1 : i32, i32, i32
  }
  func.func @transform_3(%arg0: i32, %arg1: i32) -> (i32, i32) {
    %c0_i32 = arith.constant 0 : i32
    %c0_i32_0 = arith.constant 0 : i32
    %c0_i32_1 = arith.constant 0 : i32
    return %c0_i32, %c0_i32_0 : i32, i32
  }
  func.func @transform_4(%arg0: i32, %arg1: i32) -> (i32, i32) {
    %c0_i32 = arith.constant 0 : i32
    %c0_i32_0 = arith.constant 0 : i32
    return %arg1, %c0_i32 : i32, i32
  }
  func.func @transform_5(%arg0: i32, %arg1: i32) -> (i32, i32, i32) {
    %c0_i32 = arith.constant 0 : i32
    %c0_i32_0 = arith.constant 0 : i32
    return %arg0, %arg1, %c0_i32 : i32, i32, i32
  }
  func.func @transform_6(%arg0: i32, %arg1: i32) -> (i32, i32, i32) {
    %c0_i32 = arith.constant 0 : i32
    %c0_i32_0 = arith.constant 0 : i32
    return %arg0, %arg1, %c0_i32 : i32, i32, i32
  }
}

</mosaic_0001>

<llo_original>
// kernel: basic_block_forward.2
$region0: #{basic_block_forward.2}
  #allocation0 [shape = 'u32[]', space=smem, size = 0x4, offset = 0x4, fixed_abs, tag = 'smem constant byte address 0x4 - core index']
  #allocation1 [shape = 'u32[144,128]{1,0:T(1,128)}', space=vmem, size = 0x12000, scoped, tag = 'internal scratch']
  %s0 = inlined_call_operand.vmem [shape: f32[2], index: 0, kind: input, shape index: {}]
  %s1 = inlined_call_operand.vmem [shape: f32[2,18,18,4], index: 1, kind: input, shape index: {}]
  %s2 = inlined_call_operand.vmem [shape: f32[9,4,128], index: 2, kind: input, shape index: {}]
  %s3 = inlined_call_operand.vmem [shape: f32[1,128], index: 3, kind: input, shape index: {}]
  %s4 = inlined_call_operand.vmem [shape: f32[256,2], index: 4, kind: input, shape index: {}]
  %s5 = inlined_call_operand.vmem [shape: f32[4,128], index: 5, kind: input, shape index: {}]
  %s6 = inlined_call_operand.vmem [shape: f32[1,128], index: 6, kind: input, shape index: {}]
  %s7 = inlined_call_operand.vmem [shape: f32[256,2], index: 7, kind: input, shape index: {}]
  %s8 = inlined_call_operand.vmem [shape: f32[2,256,128], index: 8, kind: output, shape index: {0}]
  %s9 = inlined_call_operand.vmem [shape: f32[2,256,128], index: 9, kind: output, shape index: {1}]
  %10 = xla_tuple %s8, %s9
  %s11 = sld [smem:[#allocation0]]
  $region77: #{basic_block_forward.2} parent=0
    _
  %s13 = ssub.s32 1, %s11
  %s14 = scalar_select 0, %s13, %s11
  $region1: #{basic_block_forward.2} parent=0
    #allocation2 [shape = 'u8[512]{0}', space=smem, size = 0x200, scoped, tag = 'input window, operand 0, single buffered']
    #allocation3 [shape = 's32[2]{0}', space=sflag, size = 0x8, scoped, tag = 'scoped memory for basic_block_forward.2']
    %15 = vsyncpa [#allocation3], 0
    loop: start=0, step=1, limit=6
    $region2: #{basic_block_forward.2} parent=1 // loop_pre_header
      _
    $region3: #{basic_block_forward.2} parent=1 // loop_header
      %s17 = sphi 0, %s21
      %p18 = scmp.ge.s32.totalorder %s17, 6
      %s24 = sphi 0, %s36
      %s25 = sphi 0, %s32
      %s26 = sphi 0, %s24
      %s27 = sphi 0, %s25
      %s28 = sphi 0, %s26
      %s29 = sphi 0, %s27
      %s37 = sphi 0, %s37
      %s39 = sphi 0, %s37
      %s40 = sphi 0, %s39
      %s54 = sphi 0, %s40
      %s60 = sphi 0, %s62
      %s63 = sphi 0, %s60
      %s64 = sphi 0, %s63
      %s80 = sphi 0, %s64
      %s84 = sphi 0, %s84
      %s86 = sphi 0, %s84
      %s87 = sphi 0, %s86
      %s101 = sphi 0, %s87
      %s105 = sphi 0, %s105
      %s107 = sphi 0, %s105
      %s108 = sphi 0, %s107
      %s122 = sphi 0, %s108
      %s128 = sphi 0, %s130
      %s131 = sphi 0, %s128
      %s132 = sphi 0, %s131
      %s148 = sphi 0, %s132
      %s152 = sphi 0, %s152
      %s154 = sphi 0, %s152
      %s155 = sphi 0, %s154
      %s169 = sphi 0, %s155
      %s173 = sphi 0, %s173
      %s175 = sphi 0, %s173
      %s176 = sphi 0, %s175
      %s190 = sphi 0, %s176
      %s196 = sphi 0, %s198
      %s199 = sphi 0, %s196
      %s200 = sphi 0, %s199
      %s216 = sphi 0, %s200
      %s224 = sphi 0, %s226
      %s227 = sphi 0, %s224
      %s228 = sphi 0, %s227
      %s244 = sphi 0, %s228
      %s252 = sphi 0, %s254
      %s255 = sphi 0, %s252
      %s256 = sphi 0, %s255
      %s272 = sphi 0, %s256
    $region4: #{basic_block_forward.2} parent=1 // loop_header_branch
      %20 = sbr.rel (%p18) target = $region8
    $region5: #{basic_block_forward.2} parent=1 // loop_body
      %s22 = ssub.s32 %s17, 1
      %s23 = ssub.s32 %s17, 2
      %s30 = sadd.s32 1, %s25
      %p31 = scmp.ge.s32.totalorder %s30, 2
      %s32 = scalar_select %p31, 0, %s30
      %s33 = sadd.s32 1, %s24
      %s34 = scalar_select %p31, %s33, %s24
      %p35 = scmp.ge.s32.totalorder %s34, 2
      %s36 = scalar_select %p35, 0, %s34
      %s38 = sadd.s32 %s37, 1
      %p41 = scmp.eq.s32.totalorder %s17, 3
      %p42 = scmp.ne.s32.totalorder %s37, %s39
      %p43 = scmp.eq.s32.totalorder %s17, 0
      %p44 = por %p42, %p43
      %p45 = scmp.ne.s32.totalorder %s37, %s39
      %p46 = scmp.eq.s32.totalorder %s22, 3
      %p47 = por %p45, %p46
      %p48 = scmp.ne.s32.totalorder %s39, %s40
      %p49 = scmp.eq.s32.totalorder %s22, 0
      %p50 = por %p48, %p49
      %p51 = scmp.ne.s32.totalorder %s39, %s40
      %p52 = scmp.eq.s32.totalorder %s23, 3
      %p53 = por %p51, %p52
      %p55 = scmp.ne.s32.totalorder %s40, %s54
      %p56 = scmp.eq.s32.totalorder %s23, 0
      %p57 = por %p55, %p56
      %s58 = ssub.s32 %s24, %s36
      %p59 = scmp.eq.s32.totalorder %s58, 0
      %s61 = sadd.s32 %s60, 1
      %s62 = scalar_select %p59, %s60, %s61
      %p65 = pneg %p59
      %p66 = scmp.eq.s32.totalorder %s17, 3
      %p67 = por %p65, %p66
      %p68 = scmp.ne.s32.totalorder %s60, %s63
      %p69 = scmp.eq.s32.totalorder %s17, 0
      %p70 = por %p68, %p69
      %p71 = scmp.ne.s32.totalorder %s60, %s63
      %p72 = scmp.eq.s32.totalorder %s22, 3
      %p73 = por %p71, %p72
      %p74 = scmp.ne.s32.totalorder %s63, %s64
      %p75 = scmp.eq.s32.totalorder %s22, 0
      %p76 = por %p74, %p75
      %p77 = scmp.ne.s32.totalorder %s63, %s64
      %p78 = scmp.eq.s32.totalorder %s23, 3
      %p79 = por %p77, %p78
      %p81 = scmp.ne.s32.totalorder %s64, %s80
      %p82 = scmp.eq.s32.totalorder %s23, 0
      %p83 = por %p81, %p82
      %s85 = sadd.s32 %s84, 1
      %p88 = scmp.eq.s32.totalorder %s17, 3
      %p89 = scmp.ne.s32.totalorder %s84, %s86
      %p90 = scmp.eq.s32.totalorder %s17, 0
      %p91 = por %p89, %p90
      %p92 = scmp.ne.s32.totalorder %s84, %s86
      %p93 = scmp.eq.s32.totalorder %s22, 3
      %p94 = por %p92, %p93
      %p95 = scmp.ne.s32.totalorder %s86, %s87
      %p96 = scmp.eq.s32.totalorder %s22, 0
      %p97 = por %p95, %p96
      %p98 = scmp.ne.s32.totalorder %s86, %s87
      %p99 = scmp.eq.s32.totalorder %s23, 3
      %p100 = por %p98, %p99
      %p102 = scmp.ne.s32.totalorder %s87, %s101
      %p103 = scmp.eq.s32.totalorder %s23, 0
      %p104 = por %p102, %p103
      %s106 = sadd.s32 %s105, 1
      %p109 = scmp.eq.s32.totalorder %s17, 3
      %p110 = scmp.ne.s32.totalorder %s105, %s107
      %p111 = scmp.eq.s32.totalorder %s17, 0
      %p112 = por %p110, %p111
      %p113 = scmp.ne.s32.totalorder %s105, %s107
      %p114 = scmp.eq.s32.totalorder %s22, 3
      %p115 = por %p113, %p114
      %p116 = scmp.ne.s32.totalorder %s107, %s108
      %p117 = scmp.eq.s32.totalorder %s22, 0
      %p118 = por %p116, %p117
      %p119 = scmp.ne.s32.totalorder %s107, %s108
      %p120 = scmp.eq.s32.totalorder %s23, 3
      %p121 = por %p119, %p120
      %p123 = scmp.ne.s32.totalorder %s108, %s122
      %p124 = scmp.eq.s32.totalorder %s23, 0
      %p125 = por %p123, %p124
      %s126 = ssub.s32 %s25, %s32
      %p127 = scmp.eq.s32.totalorder %s126, 0
      %s129 = sadd.s32 %s128, 1
      %s130 = scalar_select %p127, %s128, %s129
      %p133 = pneg %p127
      %p134 = scmp.eq.s32.totalorder %s17, 3
      %p135 = por %p133, %p134
      %p136 = scmp.ne.s32.totalorder %s128, %s131
      %p137 = scmp.eq.s32.totalorder %s17, 0
      %p138 = por %p136, %p137
      %p139 = scmp.ne.s32.totalorder %s128, %s131
      %p140 = scmp.eq.s32.totalorder %s22, 3
      %p141 = por %p139, %p140
      %p142 = scmp.ne.s32.totalorder %s131, %s132
      %p143 = scmp.eq.s32.totalorder %s22, 0
      %p144 = por %p142, %p143
      %p145 = scmp.ne.s32.totalorder %s131, %s132
      %p146 = scmp.eq.s32.totalorder %s23, 3
      %p147 = por %p145, %p146
      %p149 = scmp.ne.s32.totalorder %s132, %s148
      %p150 = scmp.eq.s32.totalorder %s23, 0
      %p151 = por %p149, %p150
      %s153 = sadd.s32 %s152, 1
      %p156 = scmp.eq.s32.totalorder %s17, 3
      %p157 = scmp.ne.s32.totalorder %s152, %s154
      %p158 = scmp.eq.s32.totalorder %s17, 0
      %p159 = por %p157, %p158
      %p160 = scmp.ne.s32.totalorder %s152, %s154
      %p161 = scmp.eq.s32.totalorder %s22, 3
      %p162 = por %p160, %p161
      %p163 = scmp.ne.s32.totalorder %s154, %s155
      %p164 = scmp.eq.s32.totalorder %s22, 0
      %p165 = por %p163, %p164
      %p166 = scmp.ne.s32.totalorder %s154, %s155
      %p167 = scmp.eq.s32.totalorder %s23, 3
      %p168 = por %p166, %p167
      %p170 = scmp.ne.s32.totalorder %s155, %s169
      %p171 = scmp.eq.s32.totalorder %s23, 0
      %p172 = por %p170, %p171
      %s174 = sadd.s32 %s173, 1
      %p177 = scmp.eq.s32.totalorder %s17, 3
      %p178 = scmp.ne.s32.totalorder %s173, %s175
      %p179 = scmp.eq.s32.totalorder %s17, 0
      %p180 = por %p178, %p179
      %p181 = scmp.ne.s32.totalorder %s173, %s175
      %p182 = scmp.eq.s32.totalorder %s22, 3
      %p183 = por %p181, %p182
      %p184 = scmp.ne.s32.totalorder %s175, %s176
      %p185 = scmp.eq.s32.totalorder %s22, 0
      %p186 = por %p184, %p185
      %p187 = scmp.ne.s32.totalorder %s175, %s176
      %p188 = scmp.eq.s32.totalorder %s23, 3
      %p189 = por %p187, %p188
      %p191 = scmp.ne.s32.totalorder %s176, %s190
      %p192 = scmp.eq.s32.totalorder %s23, 0
      %p193 = por %p191, %p192
      %s194 = ssub.s32 %s25, %s32
      %p195 = scmp.eq.s32.totalorder %s194, 0
      %s197 = sadd.s32 %s196, 1
      %s198 = scalar_select %p195, %s196, %s197
      %p201 = pneg %p195
      %p202 = scmp.eq.s32.totalorder %s17, 3
      %p203 = por %p201, %p202
      %p204 = scmp.ne.s32.totalorder %s196, %s199
      %p205 = scmp.eq.s32.totalorder %s17, 0
      %p206 = por %p204, %p205
      %p207 = scmp.ne.s32.totalorder %s196, %s199
      %p208 = scmp.eq.s32.totalorder %s22, 3
      %p209 = por %p207, %p208
      %p210 = scmp.ne.s32.totalorder %s199, %s200
      %p211 = scmp.eq.s32.totalorder %s22, 0
      %p212 = por %p210, %p211
      %p213 = scmp.ne.s32.totalorder %s199, %s200
      %p214 = scmp.eq.s32.totalorder %s23, 3
      %p215 = por %p213, %p214
      %p217 = scmp.ne.s32.totalorder %s200, %s216
      %p218 = scmp.eq.s32.totalorder %s23, 0
      %p219 = por %p217, %p218
      %s220 = ssub.s32 %s24, %s36
      %s221 = ssub.s32 %s25, %s32
      %s222 = sor.u32 %s220, %s221
      %p223 = scmp.eq.s32.totalorder %s222, 0
      %s225 = sadd.s32 %s224, 1
      %s226 = scalar_select %p223, %s224, %s225
      %p229 = pneg %p223
      %p230 = scmp.eq.s32.totalorder %s17, 3
      %p231 = por %p229, %p230
      %p232 = scmp.ne.s32.totalorder %s224, %s227
      %p233 = scmp.eq.s32.totalorder %s17, 0
      %p234 = por %p232, %p233
      %p235 = scmp.ne.s32.totalorder %s224, %s227
      %p236 = scmp.eq.s32.totalorder %s22, 3
      %p237 = por %p235, %p236
      %p238 = scmp.ne.s32.totalorder %s227, %s228
      %p239 = scmp.eq.s32.totalorder %s22, 0
      %p240 = por %p238, %p239
      %p241 = scmp.ne.s32.totalorder %s227, %s228
      %p242 = scmp.eq.s32.totalorder %s23, 3
      %p243 = por %p241, %p242
      %p245 = scmp.ne.s32.totalorder %s228, %s244
      %p246 = scmp.eq.s32.totalorder %s23, 0
      %p247 = por %p245, %p246
      %s248 = ssub.s32 %s24, %s36
      %s249 = ssub.s32 %s25, %s32
      %s250 = sor.u32 %s248, %s249
      %p251 = scmp.eq.s32.totalorder %s250, 0
      %s253 = sadd.s32 %s252, 1
      %s254 = scalar_select %p251, %s252, %s253
      %p257 = pneg %p251
      %p258 = scmp.eq.s32.totalorder %s17, 3
      %p259 = por %p257, %p258
      %p260 = scmp.ne.s32.totalorder %s252, %s255
      %p261 = scmp.eq.s32.totalorder %s17, 0
      %p262 = por %p260, %p261
      %p263 = scmp.ne.s32.totalorder %s252, %s255
      %p264 = scmp.eq.s32.totalorder %s22, 3
      %p265 = por %p263, %p264
      %p266 = scmp.ne.s32.totalorder %s255, %s256
      %p267 = scmp.eq.s32.totalorder %s22, 0
      %p268 = por %p266, %p267
      %p269 = scmp.ne.s32.totalorder %s255, %s256
      %p270 = scmp.eq.s32.totalorder %s23, 3
      %p271 = por %p269, %p270
      %p273 = scmp.ne.s32.totalorder %s256, %s272
      %p274 = scmp.eq.s32.totalorder %s23, 0
      %p275 = por %p273, %p274
      %p276 = scmp.le.s32.totalorder 1, %s17
      %p277 = scmp.lt.s32.totalorder %s17, 5
      %p278 = pnand %p276, %p277
      %p279 = pneg %p278
      // Predicated region
      $region9: #{basic_block_forward.2} parent=5 // pred_check
        _
      $region10: #{basic_block_forward.2} parent=5 // pred_check_branch
        %281 = sbr.rel (%p278) target = $region12
      $region11: #{basic_block_forward.2} parent=5 // pred_region
        %s282 = ssub.s32 %s17, 1
        // Predicated region
        $region13: #{basic_block_forward.2} parent=11 // pred_check
          %p283 = pneg %p50
        $region14: #{basic_block_forward.2} parent=11 // pred_check_branch
          %285 = sbr.rel (%p283) target = $region16
        $region15: #{basic_block_forward.2} parent=11 // pred_region
          %s287 = ssub.s32 16, 16
          %288 = vsyncadd [#allocation3], %s287
          %s290 = sshll.u32 %s0, 4
          %s291 = int_to_ptr.vmem [resolvable:$true] %s290
          %293 = dma.vmem_to_smem %s291, 16, [#allocation2], [#allocation3]
        $region16: #{basic_block_forward.2} parent=11 // pred_fallthru
          _
        // Predicated region
        $region17: #{basic_block_forward.2} parent=11 // pred_check
          %p294 = pneg %p97
        $region18: #{basic_block_forward.2} parent=11 // pred_check_branch
          %296 = sbr.rel (%p294) target = $region20
        $region19: #{basic_block_forward.2} parent=11 // pred_region
          _
        $region20: #{basic_block_forward.2} parent=11 // pred_fallthru
          _
        // Predicated region
        $region21: #{basic_block_forward.2} parent=11 // pred_check
          %p297 = pneg %p118
        $region22: #{basic_block_forward.2} parent=11 // pred_check_branch
          %299 = sbr.rel (%p297) target = $region24
        $region23: #{basic_block_forward.2} parent=11 // pred_region
          _
        $region24: #{basic_block_forward.2} parent=11 // pred_fallthru
          _
        // Predicated region
        $region25: #{basic_block_forward.2} parent=11 // pred_check
          %p300 = pneg %p165
        $region26: #{basic_block_forward.2} parent=11 // pred_check_branch
          %302 = sbr.rel (%p300) target = $region28
        $region27: #{basic_block_forward.2} parent=11 // pred_region
          _
        $region28: #{basic_block_forward.2} parent=11 // pred_fallthru
          _
        // Predicated region
        $region29: #{basic_block_forward.2} parent=11 // pred_check
          %p303 = pneg %p186
        $region30: #{basic_block_forward.2} parent=11 // pred_check_branch
          %305 = sbr.rel (%p303) target = $region32
        $region31: #{basic_block_forward.2} parent=11 // pred_region
          _
        $region32: #{basic_block_forward.2} parent=11 // pred_fallthru
          _
      $region12: #{basic_block_forward.2} parent=5 // pred_fallthru
        _
      %p306 = scmp.lt.s32.totalorder %s17, 4
      // Predicated region
      $region33: #{basic_block_forward.2} parent=5 // pred_check
        %p307 = pneg %p306
      $region34: #{basic_block_forward.2} parent=5 // pred_check_branch
        %309 = sbr.rel (%p307) target = $region36
      $region35: #{basic_block_forward.2} parent=5 // pred_region
        // Predicated region
        $region37: #{basic_block_forward.2} parent=35 // pred_check
          %p310 = pneg %p70
        $region38: #{basic_block_forward.2} parent=35 // pred_check_branch
          %312 = sbr.rel (%p310) target = $region40
        $region39: #{basic_block_forward.2} parent=35 // pred_region
          %p313 = scmp.lt.s32.totalorder %s24, 1
          %s314 = scalar_select %p313, %s24, 1
          %s315 = smul.addr %s314, 54
          %s316 = smul.addr %s315, 8
          %s317 = scalar_lea.vmem %s1, %s316
        $region40: #{basic_block_forward.2} parent=35 // pred_fallthru
          _
        // Predicated region
        $region41: #{basic_block_forward.2} parent=35 // pred_check
          %p318 = pneg %p138
        $region42: #{basic_block_forward.2} parent=35 // pred_check_branch
          %320 = sbr.rel (%p318) target = $region44
        $region43: #{basic_block_forward.2} parent=35 // pred_region
          %s321 = smul.u32 16, %s25
          %p322 = scmp.lt.s32.totalorder %s321, 31
          %s323 = scalar_select %p322, %s321, 31
          %s324 = smul.addr %s323, 8
          %s325 = scalar_lea.vmem %s4, %s324
          %s326 = smul.u32 16, %s25
        $region44: #{basic_block_forward.2} parent=35 // pred_fallthru
          _
        // Predicated region
        $region45: #{basic_block_forward.2} parent=35 // pred_check
          %p327 = pneg %p206
        $region46: #{basic_block_forward.2} parent=35 // pred_check_branch
          %329 = sbr.rel (%p327) target = $region48
        $region47: #{basic_block_forward.2} parent=35 // pred_region
          %s330 = smul.u32 16, %s25
          %p331 = scmp.lt.s32.totalorder %s330, 31
          %s332 = scalar_select %p331, %s330, 31
          %s333 = smul.addr %s332, 8
          %s334 = scalar_lea.vmem %s7, %s333
          %s335 = smul.u32 16, %s25
        $region48: #{basic_block_forward.2} parent=35 // pred_fallthru
          _
      $region36: #{basic_block_forward.2} parent=5 // pred_fallthru
        _
      %p336 = scmp.le.s32.totalorder 1, %s17
      %p337 = scmp.lt.s32.totalorder %s17, 5
      %p338 = pnand %p336, %p337
      %p339 = pneg %p338
      // Predicated region
      $region49: #{basic_block_forward.2} parent=5 // pred_check
        _
      $region50: #{basic_block_forward.2} parent=5 // pred_check_branch
        %341 = sbr.rel (%p338) target = $region52
      $region51: #{basic_block_forward.2} parent=5 // pred_region
        %s342 = ssub.s32 %s17, 1
        // Predicated region
        $region53: #{basic_block_forward.2} parent=51 // pred_check
          %p343 = pneg %p50
        $region54: #{basic_block_forward.2} parent=51 // pred_check_branch
          %345 = sbr.rel (%p343) target = $region56
        $region55: #{basic_block_forward.2} parent=51 // pred_region
          %346 = dma.done [#allocation3], 16
        $region56: #{basic_block_forward.2} parent=51 // pred_fallthru
          _
        %347 = sfence
        %p348 = pneg %p50
        %p349 = pneg %p47
        %p350 = scmp.lt.s32.totalorder %s26, 1
        %s351 = scalar_select %p350, %s26, 1
        %s352 = smul.addr %s351, 54
        %s353 = smul.addr %s352, 8
        %s354 = scalar_lea.vmem %s1, %s353
        %p355 = pneg %p76
        %p356 = pneg %p73
        %p357 = pneg %p97
        %p358 = pneg %p94
        %p359 = pneg %p118
        %p360 = pneg %p115
        %s361 = smul.u32 16, %s27
        %p362 = scmp.lt.s32.totalorder %s361, 31
        %s363 = scalar_select %p362, %s361, 31
        %s364 = smul.addr %s363, 8
        %s365 = scalar_lea.vmem %s4, %s364
        %p366 = pneg %p144
        %p367 = pneg %p141
        %p368 = pneg %p165
        %p369 = pneg %p162
        %p370 = pneg %p186
        %p371 = pneg %p183
        %s372 = smul.u32 16, %s27
        %p373 = scmp.lt.s32.totalorder %s372, 31
        %s374 = scalar_select %p373, %s372, 31
        %s375 = smul.addr %s374, 8
        %s376 = scalar_lea.vmem %s7, %s375
        %p377 = pneg %p212
        %p378 = pneg %p209
        %p379 = pneg %p240
        %p380 = pneg %p237
        %s381 = smul.u32 16, %s27
        %p382 = scmp.lt.s32.totalorder %s26, 1
        %s383 = scalar_select %p382, %s26, 1
        %p384 = scmp.lt.s32.totalorder %s381, 31
        %s385 = scalar_select %p384, %s381, 31
        %s386 = smul.addr %s383, 32
        %s387 = sadd.s32 %s385, %s386
        %s388 = smul.addr %s387, 8
        %s389 = scalar_lea.vmem %s8, %s388
        %p390 = pneg %p268
        %p391 = pneg %p265
        %s392 = smul.u32 16, %s27
        %p393 = scmp.lt.s32.totalorder %s26, 1
        %s394 = scalar_select %p393, %s26, 1
        %p395 = scmp.lt.s32.totalorder %s392, 31
        %s396 = scalar_select %p395, %s392, 31
        %s397 = smul.addr %s394, 32
        %s398 = sadd.s32 %s396, %s397
        %s399 = smul.addr %s398, 8
        %s400 = scalar_lea.vmem %s9, %s399
        %p401 = scmp.lt.s32.totalorder %s26, 1
        %s402 = scalar_select %p401, %s26, 1
        %s403 = smul.addr %s402, 54
        %s404 = smul.addr %s403, 8
        %s405 = scalar_lea.vmem %s1, %s404
        %s406 = smul.u32 16, %s27
        %p407 = scmp.lt.s32.totalorder %s406, 31
        %s408 = scalar_select %p407, %s406, 31
        %s409 = smul.addr %s408, 8
        %s410 = scalar_lea.vmem %s4, %s409
        %s411 = smul.u32 16, %s27
        %s412 = smul.u32 16, %s27
        %p413 = scmp.lt.s32.totalorder %s412, 31
        %s414 = scalar_select %p413, %s412, 31
        %s415 = smul.addr %s414, 8
        %s416 = scalar_lea.vmem %s7, %s415
        %s417 = smul.u32 16, %s27
        %s418 = smul.u32 16, %s27
        %p419 = scmp.lt.s32.totalorder %s26, 1
        %s420 = scalar_select %p419, %s26, 1
        %p421 = scmp.lt.s32.totalorder %s418, 31
        %s422 = scalar_select %p421, %s418, 31
        %s423 = smul.addr %s420, 32
        %s424 = sadd.s32 %s422, %s423
        %s425 = smul.addr %s424, 8
        %s426 = scalar_lea.vmem %s8, %s425
        %s427 = smul.u32 16, %s27
        %s428 = smul.u32 16, %s27
        %p429 = scmp.lt.s32.totalorder %s26, 1
        %s430 = scalar_select %p429, %s26, 1
        %p431 = scmp.lt.s32.totalorder %s428, 31
        %s432 = scalar_select %p431, %s428, 31
        %s433 = smul.addr %s430, 32
        %s434 = sadd.s32 %s432, %s433
        %s435 = smul.addr %s434, 8
        %s436 = scalar_lea.vmem %s9, %s435
        %s437 = smul.u32 16, %s27
        %s438 = smul.u32 %s27, 8
        %s439 = sld [smem:[#allocation2]]
        %s440 = smul.u32 %s438, 24
        %s441 = scalar_lea.vmem %s405, %s440
        %v442 = vld [vmem:[%s441] sm:$0xff]
        %v443 = vld [vmem:[%s441 + $0x8] sm:$0xff]
        %v444 = vld [vmem:[%s441 + $0x18] sm:$0xff]
        %v445 = vld [vmem:[%s441 + $0x20] sm:$0xff]
        %v446 = vld [vmem:[%s441 + $0x30] sm:$0xff]
        %v447 = vld [vmem:[%s441 + $0x38] sm:$0xff]
        %v448 = vld [vmem:[%s441 + $0x48] sm:$0xff]
        %v449 = vld [vmem:[%s441 + $0x50] sm:$0xff]
        %v450 = vld [vmem:[%s441 + $0x60] sm:$0xff]
        %v451 = vld [vmem:[%s441 + $0x68] sm:$0xff]
        %v452 = vld [vmem:[%s441 + $0x78] sm:$0xff]
        %v453 = vld [vmem:[%s441 + $0x80] sm:$0xff]
        %v454 = vld [vmem:[%s441 + $0x90] sm:$0xff]
        %v455 = vld [vmem:[%s441 + $0x98] sm:$0xff]
        %v456 = vld [vmem:[%s441 + $0xa8] sm:$0xff]
        %v457 = vld [vmem:[%s441 + $0xb0] sm:$0xff]
        %v458 = vld [vmem:[%s2] sm:$0xf]
        %v459 = vmul.f32 %v442, %v442
        %v460 = vmul.f32 %v443, %v443
        %v461 = vmul.f32 %v444, %v444
        %v462 = vmul.f32 %v445, %v445
        %v463 = vmul.f32 %v446, %v446
        %v464 = vmul.f32 %v447, %v447
        %v465 = vmul.f32 %v448, %v448
        %v466 = vmul.f32 %v449, %v449
        %v467 = vmul.f32 %v450, %v450
        %v468 = vmul.f32 %v451, %v451
        %v469 = vmul.f32 %v452, %v452
        %v470 = vmul.f32 %v453, %v453
        %v471 = vmul.f32 %v454, %v454
        %v472 = vmul.f32 %v455, %v455
        %v473 = vmul.f32 %v456, %v456
        %v474 = vmul.f32 %v457, %v457
        %vm475 = vcmask 31744
        %v476 = vsel %vm475, %v459, 0.0
        %477 = vadd.xlane.f32.xlu0 %v476
        %v478 = vpop.xlane.xlu0 %477
        %v479 = vsel %vm475, %v460, 0.0
        %480 = vadd.xlane.f32.xlu0 %v479
        %v481 = vpop.xlane.xlu0 %480
        %v482 = vsel %vm475, %v461, 0.0
        %483 = vadd.xlane.f32.xlu0 %v482
        %v484 = vpop.xlane.xlu0 %483
        %v485 = vsel %vm475, %v462, 0.0
        %486 = vadd.xlane.f32.xlu0 %v485
        %v487 = vpop.xlane.xlu0 %486
        %v488 = vsel %vm475, %v463, 0.0
        %489 = vadd.xlane.f32.xlu0 %v488
        %v490 = vpop.xlane.xlu0 %489
        %v491 = vsel %vm475, %v464, 0.0
        %492 = vadd.xlane.f32.xlu0 %v491
        %v493 = vpop.xlane.xlu0 %492
        %v494 = vsel %vm475, %v465, 0.0
        %495 = vadd.xlane.f32.xlu0 %v494
        %v496 = vpop.xlane.xlu0 %495
        %v497 = vsel %vm475, %v466, 0.0
        %498 = vadd.xlane.f32.xlu0 %v497
        %v499 = vpop.xlane.xlu0 %498
        %v500 = vsel %vm475, %v467, 0.0
        %501 = vadd.xlane.f32.xlu0 %v500
        %v502 = vpop.xlane.xlu0 %501
        %v503 = vsel %vm475, %v468, 0.0
        %504 = vadd.xlane.f32.xlu0 %v503
        %v505 = vpop.xlane.xlu0 %504
        %v506 = vsel %vm475, %v469, 0.0
        %507 = vadd.xlane.f32.xlu0 %v506
        %v508 = vpop.xlane.xlu0 %507
        %v509 = vsel %vm475, %v470, 0.0
        %510 = vadd.xlane.f32.xlu0 %v509
        %v511 = vpop.xlane.xlu0 %510
        %v512 = vsel %vm475, %v471, 0.0
        %513 = vadd.xlane.f32.xlu0 %v512
        %v514 = vpop.xlane.xlu0 %513
        %v515 = vsel %vm475, %v472, 0.0
        %516 = vadd.xlane.f32.xlu0 %v515
        %v517 = vpop.xlane.xlu0 %516
        %v518 = vsel %vm475, %v473, 0.0
        %519 = vadd.xlane.f32.xlu0 %v518
        %v520 = vpop.xlane.xlu0 %519
        %v521 = vsel %vm475, %v474, 0.0
        %522 = vadd.xlane.f32.xlu0 %v521
        %v523 = vpop.xlane.xlu0 %522
        %v524 = vld [vmem:[%s441 + $0x1] sm:$0xff]
        %v525 = vld [vmem:[%s441 + $0x9] sm:$0xff]
        %v526 = vld [vmem:[%s441 + $0x19] sm:$0xff]
        %v527 = vld [vmem:[%s441 + $0x21] sm:$0xff]
        %v528 = vld [vmem:[%s441 + $0x31] sm:$0xff]
        %v529 = vld [vmem:[%s441 + $0x39] sm:$0xff]
        %v530 = vld [vmem:[%s441 + $0x49] sm:$0xff]
        %v531 = vld [vmem:[%s441 + $0x51] sm:$0xff]
        %v532 = vld [vmem:[%s441 + $0x61] sm:$0xff]
        %v533 = vld [vmem:[%s441 + $0x69] sm:$0xff]
        %v534 = vld [vmem:[%s441 + $0x79] sm:$0xff]
        %v535 = vld [vmem:[%s441 + $0x81] sm:$0xff]
        %v536 = vld [vmem:[%s441 + $0x91] sm:$0xff]
        %v537 = vld [vmem:[%s441 + $0x99] sm:$0xff]
        %v538 = vld [vmem:[%s441 + $0xa9] sm:$0xff]
        %v539 = vld [vmem:[%s441 + $0xb1] sm:$0xff]
        %s540 = scalar_lea.vmem %s2, 4
        %v541 = vld [vmem:[%s540] sm:$0xf]
        %v543 = vsel %vm475, %v524, 0
        %v546 = vsel %vm475, %v525, 0
        %v549 = vsel %vm475, %v526, 0
        %v552 = vsel %vm475, %v527, 0
        %v555 = vsel %vm475, %v528, 0
        %v558 = vsel %vm475, %v529, 0
        %v561 = vsel %vm475, %v530, 0
        %v564 = vsel %vm475, %v531, 0
        %v567 = vsel %vm475, %v532, 0
        %v570 = vsel %vm475, %v533, 0
        %v573 = vsel %vm475, %v534, 0
        %v576 = vsel %vm475, %v535, 0
        %v579 = vsel %vm475, %v536, 0
        %v582 = vsel %vm475, %v537, 0
        %v585 = vsel %vm475, %v538, 0
        %v588 = vsel %vm475, %v539, 0
        %vm590 = vcmask 1043456
        %v592 = vsel %vm590, %v541, 0
        %594 = vmatprep.subr.mxu0 0.0
        %595 = vmatpush1.msra.mxu0 %v592
        %596 = vmatprep.subr.mxu0 0.0
        %597 = vmatpush1.msra.mxu0 0.0
        %598 = vmatprep.subr.mxu0 0.0
        %599 = vmatpush1.msra.mxu0 0.0
        %600 = vmatprep.subr.mxu0 0.0
        %601 = vmatpush1.msra.mxu0 0.0
        %602 = vmatprep.subr.mxu0 0.0
        %603 = vmatpush1.msra.mxu0 0.0
        %604 = vmatprep.subr.mxu0 0.0
        %605 = vmatpush1.msra.mxu0 0.0
        %606 = vmatprep.subr.mxu0 0.0
        %607 = vmatpush1.msra.mxu0 0.0
        %608 = vmatprep.subr.mxu0 0.0
        %609 = vmatpush1.msra.mxu0 0.0
        %610 = vmatprep.subr.mxu0 0.0
        %611 = vmatpush1.msra.mxu0 0.0
        %612 = vmatprep.subr.mxu0 0.0
        %613 = vmatpush1.msra.mxu0 0.0
        %614 = vmatprep.subr.mxu0 0.0
        %615 = vmatpush1.msra.mxu0 0.0
        %616 = vmatprep.subr.mxu0 0.0
        %617 = vmatpush1.msra.mxu0 0.0
        %618 = vmatprep.subr.mxu0 0.0
        %619 = vmatpush1.msra.mxu0 0.0
        %620 = vmatprep.subr.mxu0 0.0
        %621 = vmatpush1.msra.mxu0 0.0
        %622 = vmatprep.subr.mxu0 0.0
        %623 = vmatpush1.msra.mxu0 0.0
        %624 = vmatprep.subr.mxu0 0.0
        %625 = vmatpush1.msra.mxu0 0.0
        %626 = vmatprep.subr.mxu0 0.0
        %627 = vmatpush1.msra.mxu0 0.0
        %628 = vmatprep.subr.mxu0 0.0
        %629 = vmatpush1.msra.mxu0 0.0
        %630 = vmatprep.subr.mxu0 0.0
        %631 = vmatpush1.msra.mxu0 0.0
        %632 = vmatprep.subr.mxu0 0.0
        %633 = vmatpush1.msra.mxu0 0.0
        %634 = vmatprep.subr.mxu0 0.0
        %635 = vmatpush1.msra.mxu0 0.0
        %636 = vmatprep.subr.mxu0 0.0
        %637 = vmatpush1.msra.mxu0 0.0
        %638 = vmatprep.subr.mxu0 0.0
        %639 = vmatpush1.msra.mxu0 0.0
        %640 = vmatprep.subr.mxu0 0.0
        %641 = vmatpush1.msra.mxu0 0.0
        %642 = vmatprep.subr.mxu0 0.0
        %643 = vmatpush1.msra.mxu0 0.0
        %644 = vmatprep.subr.mxu0 0.0
        %645 = vmatpush1.msra.mxu0 0.0
        %646 = vmatprep.subr.mxu0 0.0
        %647 = vmatpush1.msra.mxu0 0.0
        %648 = vmatprep.subr.mxu0 0.0
        %649 = vmatpush1.msra.mxu0 0.0
        %650 = vmatprep.subr.mxu0 0.0
        %651 = vmatpush1.msra.mxu0 0.0
        %652 = vmatprep.subr.mxu0 0.0
        %653 = vmatpush1.msra.mxu0 0.0
        %654 = vmatprep.subr.mxu0 0.0
        %655 = vmatpush1.msra.mxu0 0.0
        %656 = vmatprep.subr.mxu0 0.0
        %657 = vmatpush1.msra.mxu0 0.0
        %658 = vmatprep.mubr.f32.mxu0 0.0
        %659 = vmatmul.mubr.f32.gmra.mrb[0].mxu0 %v543
        %v660 = vpop.f32.mrb[0].mxu0
        %v661 = vadd.f32 0.0, %v660
        %v662 = vpop.f32.mrb[0].mxu0
        %663 = vmatprep.mubr.f32.mxu0 0.0
        %664 = vmatmul.mubr.f32.gmra.mrb[0].mxu0 %v546
        %v665 = vpop.f32.mrb[0].mxu0
        %v666 = vadd.f32 0.0, %v665
        %v667 = vpop.f32.mrb[0].mxu0
        %668 = vmatprep.mubr.f32.mxu0 0.0
        %669 = vmatmul.mubr.f32.gmra.mrb[0].mxu0 %v549
        %v670 = vpop.f32.mrb[0].mxu0
        %v671 = vadd.f32 0.0, %v670
        %v672 = vpop.f32.mrb[0].mxu0
        %673 = vmatprep.mubr.f32.mxu0 0.0
        %674 = vmatmul.mubr.f32.gmra.mrb[0].mxu0 %v552
        %v675 = vpop.f32.mrb[0].mxu0
        %v676 = vadd.f32 0.0, %v675
        %v677 = vpop.f32.mrb[0].mxu0
        %678 = vmatprep.mubr.f32.mxu0 0.0
        %679 = vmatmul.mubr.f32.gmra.mrb[0].mxu0 %v555
        %v680 = vpop.f32.mrb[0].mxu0
        %v681 = vadd.f32 0.0, %v680
        %v682 = vpop.f32.mrb[0].mxu0
        %683 = vmatprep.mubr.f32.mxu0 0.0
        %684 = vmatmul.mubr.f32.gmra.mrb[0].mxu0 %v558
        %v685 = vpop.f32.mrb[0].mxu0
        %v686 = vadd.f32 0.0, %v685
        %v687 = vpop.f32.mrb[0].mxu0
        %688 = vmatprep.mubr.f32.mxu0 0.0
        %689 = vmatmul.mubr.f32.gmra.mrb[0].mxu0 %v561
        %v690 = vpop.f32.mrb[0].mxu0
        %v691 = vadd.f32 0.0, %v690
        %v692 = vpop.f32.mrb[0].mxu0
        %693 = vmatprep.mubr.f32.mxu0 0.0
        %694 = vmatmul.mubr.f32.gmra.mrb[0].mxu0 %v564
        %v695 = vpop.f32.mrb[0].mxu0
        %v696 = vadd.f32 0.0, %v695
        %v697 = vpop.f32.mrb[0].mxu0
        %698 = vmatprep.mubr.f32.mxu0 0.0
        %699 = vmatmul.mubr.f32.gmra.mrb[0].mxu0 %v567
        %v700 = vpop.f32.mrb[0].mxu0
        %v701 = vadd.f32 0.0, %v700
        %v702 = vpop.f32.mrb[0].mxu0
        %703 = vmatprep.mubr.f32.mxu0 0.0
        %704 = vmatmul.mubr.f32.gmra.mrb[0].mxu0 %v570
        %v705 = vpop.f32.mrb[0].mxu0
        %v706 = vadd.f32 0.0, %v705
        %v707 = vpop.f32.mrb[0].mxu0
        %708 = vmatprep.mubr.f32.mxu0 0.0
        %709 = vmatmul.mubr.f32.gmra.mrb[0].mxu0 %v573
        %v710 = vpop.f32.mrb[0].mxu0
        %v711 = vadd.f32 0.0, %v710
        %v712 = vpop.f32.mrb[0].mxu0
        %713 = vmatprep.mubr.f32.mxu0 0.0
        %714 = vmatmul.mubr.f32.gmra.mrb[0].mxu0 %v576
        %v715 = vpop.f32.mrb[0].mxu0
        %v716 = vadd.f32 0.0, %v715
        %v717 = vpop.f32.mrb[0].mxu0
        %718 = vmatprep.mubr.f32.mxu0 0.0
        %719 = vmatmul.mubr.f32.gmra.mrb[0].mxu0 %v579
        %v720 = vpop.f32.mrb[0].mxu0
        %v721 = vadd.f32 0.0, %v720
        %v722 = vpop.f32.mrb[0].mxu0
        %723 = vmatprep.mubr.f32.mxu0 0.0
        %724 = vmatmul.mubr.f32.gmra.mrb[0].mxu0 %v582
        %v725 = vpop.f32.mrb[0].mxu0
        %v726 = vadd.f32 0.0, %v725
        %v727 = vpop.f32.mrb[0].mxu0
        %728 = vmatprep.mubr.f32.mxu0 0.0
        %729 = vmatmul.mubr.f32.gmra.mrb[0].mxu0 %v585
        %v730 = vpop.f32.mrb[0].mxu0
        %v731 = vadd.f32 0.0, %v730
        %v732 = vpop.f32.mrb[0].mxu0
        %733 = vmatprep.mubr.f32.mxu0 0.0
        %734 = vmatmul.mubr.f32.gmra.mrb[0].mxu0 %v588
        %v735 = vpop.f32.mrb[0].mxu0
        %v736 = vadd.f32 0.0, %v735
        %v737 = vpop.f32.mrb[0].mxu0
        %738 = vdwg.mxu0
        %v739 = vmul.f32 %v524, %v524
        %v740 = vmul.f32 %v525, %v525
        %v741 = vmul.f32 %v526, %v526
        %v742 = vmul.f32 %v527, %v527
        %v743 = vmul.f32 %v528, %v528
        %v744 = vmul.f32 %v529, %v529
        %v745 = vmul.f32 %v530, %v530
        %v746 = vmul.f32 %v531, %v531
        %v747 = vmul.f32 %v532, %v532
        %v748 = vmul.f32 %v533, %v533
        %v749 = vmul.f32 %v534, %v534
        %v750 = vmul.f32 %v535, %v535
        %v751 = vmul.f32 %v536, %v536
        %v752 = vmul.f32 %v537, %v537
        %v753 = vmul.f32 %v538, %v538
        %v754 = vmul.f32 %v539, %v539
        %v755 = vsel %vm475, %v739, 0.0
        %756 = vadd.xlane.f32.xlu0 %v755
        %v757 = vpop.xlane.xlu0 %756
        %v758 = vsel %vm475, %v740, 0.0
        %759 = vadd.xlane.f32.xlu0 %v758
        %v760 = vpop.xlane.xlu0 %759
        %v761 = vsel %vm475, %v741, 0.0
        %762 = vadd.xlane.f32.xlu0 %v761
        %v763 = vpop.xlane.xlu0 %762
        %v764 = vsel %vm475, %v742, 0.0
        %765 = vadd.xlane.f32.xlu0 %v764
        %v766 = vpop.xlane.xlu0 %765
        %v767 = vsel %vm475, %v743, 0.0
        %768 = vadd.xlane.f32.xlu0 %v767
        %v769 = vpop.xlane.xlu0 %768
        %v770 = vsel %vm475, %v744, 0.0
        %771 = vadd.xlane.f32.xlu0 %v770
        %v772 = vpop.xlane.xlu0 %771
        %v773 = vsel %vm475, %v745, 0.0
        %774 = vadd.xlane.f32.xlu0 %v773
        %v775 = vpop.xlane.xlu0 %774
        %v776 = vsel %vm475, %v746, 0.0
        %777 = vadd.xlane.f32.xlu0 %v776
        %v778 = vpop.xlane.xlu0 %777
        %v779 = vsel %vm475, %v747, 0.0
        %780 = vadd.xlane.f32.xlu0 %v779
        %v781 = vpop.xlane.xlu0 %780
        %v782 = vsel %vm475, %v748, 0.0
        %783 = vadd.xlane.f32.xlu0 %v782
        %v784 = vpop.xlane.xlu0 %783
        %v785 = vsel %vm475, %v749, 0.0
        %786 = vadd.xlane.f32.xlu0 %v785
        %v787 = vpop.xlane.xlu0 %786
        %v788 = vsel %vm475, %v750, 0.0
        %789 = vadd.xlane.f32.xlu0 %v788
        %v790 = vpop.xlane.xlu0 %789
        %v791 = vsel %vm475, %v751, 0.0
        %792 = vadd.xlane.f32.xlu0 %v791
        %v793 = vpop.xlane.xlu0 %792
        %v794 = vsel %vm475, %v752, 0.0
        %795 = vadd.xlane.f32.xlu0 %v794
        %v796 = vpop.xlane.xlu0 %795
        %v797 = vsel %vm475, %v753, 0.0
        %798 = vadd.xlane.f32.xlu0 %v797
        %v799 = vpop.xlane.xlu0 %798
        %v800 = vsel %vm475, %v754, 0.0
        %801 = vadd.xlane.f32.xlu0 %v800
        %v802 = vpop.xlane.xlu0 %801
        %v804 = vsel %vm475, %v442, 0
        %v807 = vsel %vm475, %v443, 0
        %v810 = vsel %vm475, %v444, 0
        %v813 = vsel %vm475, %v445, 0
        %v816 = vsel %vm475, %v446, 0
        %v819 = vsel %vm475, %v447, 0
        %v822 = vsel %vm475, %v448, 0
        %v825 = vsel %vm475, %v449, 0
        %v828 = vsel %vm475, %v450, 0
        %v831 = vsel %vm475, %v451, 0
        %v834 = vsel %vm475, %v452, 0
        %v837 = vsel %vm475, %v453, 0
        %v840 = vsel %vm475, %v454, 0
        %v843 = vsel %vm475, %v455, 0
        %v846 = vsel %vm475, %v456, 0
        %v849 = vsel %vm475, %v457, 0
        %v852 = vsel %vm590, %v458, 0
        %854 = vmatprep.subr.mxu0 0.0
        %855 = vmatpush1.msra.mxu0 %v852
        %856 = vmatprep.subr.mxu0 0.0
        %857 = vmatpush1.msra.mxu0 0.0
        %858 = vmatprep.subr.mxu0 0.0
        %859 = vmatpush1.msra.mxu0 0.0
        %860 = vmatprep.subr.mxu0 0.0
        %861 = vmatpush1.msra.mxu0 0.0
        %862 = vmatprep.subr.mxu0 0.0
        %863 = vmatpush1.msra.mxu0 0.0
        %864 = vmatprep.subr.mxu0 0.0
        %865 = vmatpush1.msra.mxu0 0.0
        %866 = vmatprep.subr.mxu0 0.0
        %867 = vmatpush1.msra.mxu0 0.0
        %868 = vmatprep.subr.mxu0 0.0
        %869 = vmatpush1.msra.mxu0 0.0
        %870 = vmatprep.subr.mxu0 0.0
        %871 = vmatpush1.msra.mxu0 0.0
        %872 = vmatprep.subr.mxu0 0.0
        %873 = vmatpush1.msra.mxu0 0.0
        %874 = vmatprep.subr.mxu0 0.0
        %875 = vmatpush1.msra.mxu0 0.0
        %876 = vmatprep.subr.mxu0 0.0
        %877 = vmatpush1.msra.mxu0 0.0
        %878 = vmatprep.subr.mxu0 0.0
        %879 = vmatpush1.msra.mxu0 0.0
        %880 = vmatprep.subr.mxu0 0.0
        %881 = vmatpush1.msra.mxu0 0.0
        %882 = vmatprep.subr.mxu0 0.0
        %883 = vmatpush1.msra.mxu0 0.0
        %884 = vmatprep.subr.mxu0 0.0
        %885 = vmatpush1.msra.mxu0 0.0
        %886 = vmatprep.subr.mxu0 0.0
        %887 = vmatpush1.msra.mxu0 0.0
        %888 = vmatprep.subr.mxu0 0.0
        %889 = vmatpush1.msra.mxu0 0.0
        %890 = vmatprep.subr.mxu0 0.0
        %891 = vmatpush1.msra.mxu0 0.0
        %892 = vmatprep.subr.mxu0 0.0
        %893 = vmatpush1.msra.mxu0 0.0
        %894 = vmatprep.subr.mxu0 0.0
        %895 = vmatpush1.msra.mxu0 0.0
        %896 = vmatprep.subr.mxu0 0.0
        %897 = vmatpush1.msra.mxu0 0.0
        %898 = vmatprep.subr.mxu0 0.0
        %899 = vmatpush1.msra.mxu0 0.0
        %900 = vmatprep.subr.mxu0 0.0
        %901 = vmatpush1.msra.mxu0 0.0
        %902 = vmatprep.subr.mxu0 0.0
        %903 = vmatpush1.msra.mxu0 0.0
        %904 = vmatprep.subr.mxu0 0.0
        %905 = vmatpush1.msra.mxu0 0.0
        %906 = vmatprep.subr.mxu0 0.0
        %907 = vmatpush1.msra.mxu0 0.0
        %908 = vmatprep.subr.mxu0 0.0
        %909 = vmatpush1.msra.mxu0 0.0
        %910 = vmatprep.subr.mxu0 0.0
        %911 = vmatpush1.msra.mxu0 0.0
        %912 = vmatprep.subr.mxu0 0.0
        %913 = vmatpush1.msra.mxu0 0.0
        %914 = vmatprep.subr.mxu0 0.0
        %915 = vmatpush1.msra.mxu0 0.0
        %916 = vmatprep.subr.mxu0 0.0
        %917 = vmatpush1.msra.mxu0 0.0
        %918 = vmatprep.mubr.f32.mxu0 0.0
        %919 = vmatmul.mubr.f32.gmra.mrb[0].mxu0 %v804
        %v920 = vpop.f32.mrb[0].mxu0
        %v921 = vadd.f32 %v661, %v920
        %v922 = vpop.f32.mrb[0].mxu0
        %923 = vmatprep.mubr.f32.mxu0 0.0
        %924 = vmatmul.mubr.f32.gmra.mrb[0].mxu0 %v807
        %v925 = vpop.f32.mrb[0].mxu0
        %v926 = vadd.f32 %v666, %v925
        %v927 = vpop.f32.mrb[0].mxu0
        %928 = vmatprep.mubr.f32.mxu0 0.0
        %929 = vmatmul.mubr.f32.gmra.mrb[0].mxu0 %v810
        %v930 = vpop.f32.mrb[0].mxu0
        %v931 = vadd.f32 %v671, %v930
        %v932 = vpop.f32.mrb[0].mxu0
        %933 = vmatprep.mubr.f32.mxu0 0.0
        %934 = vmatmul.mubr.f32.gmra.mrb[0].mxu0 %v813
        %v935 = vpop.f32.mrb[0].mxu0
        %v936 = vadd.f32 %v676, %v935
        %v937 = vpop.f32.mrb[0].mxu0
        %938 = vmatprep.mubr.f32.mxu0 0.0
        %939 = vmatmul.mubr.f32.gmra.mrb[0].mxu0 %v816
        %v940 = vpop.f32.mrb[0].mxu0
        %v941 = vadd.f32 %v681, %v940
        %v942 = vpop.f32.mrb[0].mxu0
        %943 = vmatprep.mubr.f32.mxu0 0.0
        %944 = vmatmul.mubr.f32.gmra.mrb[0].mxu0 %v819
        %v945 = vpop.f32.mrb[0].mxu0
        %v946 = vadd.f32 %v686, %v945
        %v947 = vpop.f32.mrb[0].mxu0
        %948 = vmatprep.mubr.f32.mxu0 0.0
        %949 = vmatmul.mubr.f32.gmra.mrb[0].mxu0 %v822
        %v950 = vpop.f32.mrb[0].mxu0
        %v951 = vadd.f32 %v691, %v950
        %v952 = vpop.f32.mrb[0].mxu0
        %953 = vmatprep.mubr.f32.mxu0 0.0
        %954 = vmatmul.mubr.f32.gmra.mrb[0].mxu0 %v825
        %v955 = vpop.f32.mrb[0].mxu0
        %v956 = vadd.f32 %v696, %v955
        %v957 = vpop.f32.mrb[0].mxu0
        %958 = vmatprep.mubr.f32.mxu0 0.0
        %959 = vmatmul.mubr.f32.gmra.mrb[0].mxu0 %v828
        %v960 = vpop.f32.mrb[0].mxu0
        %v961 = vadd.f32 %v701, %v960
        %v962 = vpop.f32.mrb[0].mxu0
        %963 = vmatprep.mubr.f32.mxu0 0.0
        %964 = vmatmul.mubr.f32.gmra.mrb[0].mxu0 %v831
        %v965 = vpop.f32.mrb[0].mxu0
        %v966 = vadd.f32 %v706, %v965
        %v967 = vpop.f32.mrb[0].mxu0
        %968 = vmatprep.mubr.f32.mxu0 0.0
        %969 = vmatmul.mubr.f32.gmra.mrb[0].mxu0 %v834
        %v970 = vpop.f32.mrb[0].mxu0
        %v971 = vadd.f32 %v711, %v970
        %v972 = vpop.f32.mrb[0].mxu0
        %973 = vmatprep.mubr.f32.mxu0 0.0
        %974 = vmatmul.mubr.f32.gmra.mrb[0].mxu0 %v837
        %v975 = vpop.f32.mrb[0].mxu0
        %v976 = vadd.f32 %v716, %v975
        %v977 = vpop.f32.mrb[0].mxu0
        %978 = vmatprep.mubr.f32.mxu0 0.0
        %979 = vmatmul.mubr.f32.gmra.mrb[0].mxu0 %v840
        %v980 = vpop.f32.mrb[0].mxu0
        %v981 = vadd.f32 %v721, %v980
        %v982 = vpop.f32.mrb[0].mxu0
        %983 = vmatprep.mubr.f32.mxu0 0.0
        %984 = vmatmul.mubr.f32.gmra.mrb[0].mxu0 %v843
        %v985 = vpop.f32.mrb[0].mxu0
        %v986 = vadd.f32 %v726, %v985
        %v987 = vpop.f32.mrb[0].mxu0
        %988 = vmatprep.mubr.f32.mxu0 0.0
        %989 = vmatmul.mubr.f32.gmra.mrb[0].mxu0 %v846
        %v990 = vpop.f32.mrb[0].mxu0
        %v991 = vadd.f32 %v731, %v990
        %v992 = vpop.f32.mrb[0].mxu0
        %993 = vmatprep.mubr.f32.mxu0 0.0
        %994 = vmatmul.mubr.f32.gmra.mrb[0].mxu0 %v849
        %v995 = vpop.f32.mrb[0].mxu0
        %v996 = vadd.f32 %v736, %v995
        %v997 = vpop.f32.mrb[0].mxu0
        %998 = vdwg.mxu0
        %v999 = vadd.f32 %v478, %v757
        %v1000 = vadd.f32 %v481, %v760
        %v1001 = vadd.f32 %v484, %v763
        %v1002 = vadd.f32 %v487, %v766
        %v1003 = vadd.f32 %v490, %v769
        %v1004 = vadd.f32 %v493, %v772
        %v1005 = vadd.f32 %v496, %v775
        %v1006 = vadd.f32 %v499, %v778
        %v1007 = vadd.f32 %v502, %v781
        %v1008 = vadd.f32 %v505, %v784
        %v1009 = vadd.f32 %v508, %v787
        %v1010 = vadd.f32 %v511, %v790
        %v1011 = vadd.f32 %v514, %v793
        %v1012 = vadd.f32 %v517, %v796
        %v1013 = vadd.f32 %v520, %v799
        %v1014 = vadd.f32 %v523, %v802
        %v1015 = vld [vmem:[%s441 + $0x2] sm:$0xff]
        %v1016 = vld [vmem:[%s441 + $0xa] sm:$0xff]
        %v1017 = vld [vmem:[%s441 + $0x1a] sm:$0xff]
        %v1018 = vld [vmem:[%s441 + $0x22] sm:$0xff]
        %v1019 = vld [vmem:[%s441 + $0x32] sm:$0xff]
        %v1020 = vld [vmem:[%s441 + $0x3a] sm:$0xff]
        %v1021 = vld [vmem:[%s441 + $0x4a] sm:$0xff]
        %v1022 = vld [vmem:[%s441 + $0x52] sm:$0xff]
        %v1023 = vld [vmem:[%s441 + $0x62] sm:$0xff]
        %v1024 = vld [vmem:[%s441 + $0x6a] sm:$0xff]
        %v1025 = vld [vmem:[%s441 + $0x7a] sm:$0xff]
        %v1026 = vld [vmem:[%s441 + $0x82] sm:$0xff]
        %v1027 = vld [vmem:[%s441 + $0x92] sm:$0xff]
        %v1028 = vld [vmem:[%s441 + $0x9a] sm:$0xff]
        %v1029 = vld [vmem:[%s441 + $0xaa] sm:$0xff]
        %v1030 = vld [vmem:[%s441 + $0xb2] sm:$0xff]
        %s1031 = scalar_lea.vmem %s2, 8
        %v1032 = vld [vmem:[%s1031] sm:$0xf]
        %v1034 = vsel %vm475, %v1015, 0
        %v1037 = vsel %vm475, %v1016, 0
        %v1040 = vsel %vm475, %v1017, 0
        %v1043 = vsel %vm475, %v1018, 0
        %v1046 = vsel %vm475, %v1019, 0
        %v1049 = vsel %vm475, %v1020, 0
        %v1052 = vsel %vm475, %v1021, 0
        %v1055 = vsel %vm475, %v1022, 0
        %v1058 = vsel %vm475, %v1023, 0
        %v1061 = vsel %vm475, %v1024, 0
        %v1064 = vsel %vm475, %v1025, 0
        %v1067 = vsel %vm475, %v1026, 0
        %v1070 = vsel %vm475, %v1027, 0
        %v1073 = vsel %vm475, %v1028, 0
        %v1076 = vsel %vm475, %v1029, 0
        %v1079 = vsel %vm475, %v1030, 0
        %v1082 = vsel %vm590, %v1032, 0
        %1084 = vmatprep.subr.mxu0 0.0
        %1085 = vmatpush1.msra.mxu0 %v1082
        %1086 = vmatprep.subr.mxu0 0.0
        %1087 = vmatpush1.msra.mxu0 0.0
        %1088 = vmatprep.subr.mxu0 0.0
        %1089 = vmatpush1.msra.mxu0 0.0
        %1090 = vmatprep.subr.mxu0 0.0
        %1091 = vmatpush1.msra.mxu0 0.0
        %1092 = vmatprep.subr.mxu0 0.0
        %1093 = vmatpush1.msra.mxu0 0.0
        %1094 = vmatprep.subr.mxu0 0.0
        %1095 = vmatpush1.msra.mxu0 0.0
        %1096 = vmatprep.subr.mxu0 0.0
        %1097 = vmatpush1.msra.mxu0 0.0
        %1098 = vmatprep.subr.mxu0 0.0
        %1099 = vmatpush1.msra.mxu0 0.0
        %1100 = vmatprep.subr.mxu0 0.0
        %1101 = vmatpush1.msra.mxu0 0.0
        %1102 = vmatprep.subr.mxu0 0.0
        %1103 = vmatpush1.msra.mxu0 0.0
        %1104 = vmatprep.subr.mxu0 0.0
        %1105 = vmatpush1.msra.mxu0 0.0
        %1106 = vmatprep.subr.mxu0 0.0
        %1107 = vmatpush1.msra.mxu0 0.0
        %1108 = vmatprep.subr.mxu0 0.0
        %1109 = vmatpush1.msra.mxu0 0.0
        %1110 = vmatprep.subr.mxu0 0.0
        %1111 = vmatpush1.msra.mxu0 0.0
        %1112 = vmatprep.subr.mxu0 0.0
        %1113 = vmatpush1.msra.mxu0 0.0
        %1114 = vmatprep.subr.mxu0 0.0
        %1115 = vmatpush1.msra.mxu0 0.0
        %1116 = vmatprep.subr.mxu0 0.0
        %1117 = vmatpush1.msra.mxu0 0.0
        %1118 = vmatprep.subr.mxu0 0.0
        %1119 = vmatpush1.msra.mxu0 0.0
        %1120 = vmatprep.subr.mxu0 0.0
        %1121 = vmatpush1.msra.mxu0 0.0
        %1122 = vmatprep.subr.mxu0 0.0
        %1123 = vmatpush1.msra.mxu0 0.0
        %1124 = vmatprep.subr.mxu0 0.0
        %1125 = vmatpush1.msra.mxu0 0.0
        %1126 = vmatprep.subr.mxu0 0.0
        %1127 = vmatpush1.msra.mxu0 0.0
        %1128 = vmatprep.subr.mxu0 0.0
        %1129 = vmatpush1.msra.mxu0 0.0
        %1130 = vmatprep.subr.mxu0 0.0
        %1131 = vmatpush1.msra.mxu0 0.0
        %1132 = vmatprep.subr.mxu0 0.0
        %1133 = vmatpush1.msra.mxu0 0.0
        %1134 = vmatprep.subr.mxu0 0.0
        %1135 = vmatpush1.msra.mxu0 0.0
        %1136 = vmatprep.subr.mxu0 0.0
        %1137 = vmatpush1.msra.mxu0 0.0
        %1138 = vmatprep.subr.mxu0 0.0
        %1139 = vmatpush1.msra.mxu0 0.0
        %1140 = vmatprep.subr.mxu0 0.0
        %1141 = vmatpush1.msra.mxu0 0.0
        %1142 = vmatprep.subr.mxu0 0.0
        %1143 = vmatpush1.msra.mxu0 0.0
        %1144 = vmatprep.subr.mxu0 0.0
        %1145 = vmatpush1.msra.mxu0 0.0
        %1146 = vmatprep.subr.mxu0 0.0
        %1147 = vmatpush1.msra.mxu0 0.0
        %1148 = vmatprep.mubr.f32.mxu0 0.0
        %1149 = vmatmul.mubr.f32.gmra.mrb[0].mxu0 %v1034
        %v1150 = vpop.f32.mrb[0].mxu0
        %v1151 = vadd.f32 0.0, %v1150
        %v1152 = vpop.f32.mrb[0].mxu0
        %1153 = vmatprep.mubr.f32.mxu0 0.0
        %1154 = vmatmul.mubr.f32.gmra.mrb[0].mxu0 %v1037
        %v1155 = vpop.f32.mrb[0].mxu0
        %v1156 = vadd.f32 0.0, %v1155
        %v1157 = vpop.f32.mrb[0].mxu0
        %1158 = vmatprep.mubr.f32.mxu0 0.0
        %1159 = vmatmul.mubr.f32.gmra.mrb[0].mxu0 %v1040
        %v1160 = vpop.f32.mrb[0].mxu0
        %v1161 = vadd.f32 0.0, %v1160
        %v1162 = vpop.f32.mrb[0].mxu0
        %1163 = vmatprep.mubr.f32.mxu0 0.0
        %1164 = vmatmul.mubr.f32.gmra.mrb[0].mxu0 %v1043
        %v1165 = vpop.f32.mrb[0].mxu0
        %v1166 = vadd.f32 0.0, %v1165
        %v1167 = vpop.f32.mrb[0].mxu0
        %1168 = vmatprep.mubr.f32.mxu0 0.0
        %1169 = vmatmul.mubr.f32.gmra.mrb[0].mxu0 %v1046
        %v1170 = vpop.f32.mrb[0].mxu0
        %v1171 = vadd.f32 0.0, %v1170
        %v1172 = vpop.f32.mrb[0].mxu0
        %1173 = vmatprep.mubr.f32.mxu0 0.0
        %1174 = vmatmul.mubr.f32.gmra.mrb[0].mxu0 %v1049
        %v1175 = vpop.f32.mrb[0].mxu0
        %v1176 = vadd.f32 0.0, %v1175
        %v1177 = vpop.f32.mrb[0].mxu0
        %1178 = vmatprep.mubr.f32.mxu0 0.0
        %1179 = vmatmul.mubr.f32.gmra.mrb[0].mxu0 %v1052
        %v1180 = vpop.f32.mrb[0].mxu0
        %v1181 = vadd.f32 0.0, %v1180
        %v1182 = vpop.f32.mrb[0].mxu0
        %1183 = vmatprep.mubr.f32.mxu0 0.0
        %1184 = vmatmul.mubr.f32.gmra.mrb[0].mxu0 %v1055
        %v1185 = vpop.f32.mrb[0].mxu0
        %v1186 = vadd.f32 0.0, %v1185
        %v1187 = vpop.f32.mrb[0].mxu0
        %1188 = vmatprep.mubr.f32.mxu0 0.0
        %1189 = vmatmul.mubr.f32.gmra.mrb[0].mxu0 %v1058
        %v1190 = vpop.f32.mrb[0].mxu0
        %v1191 = vadd.f32 0.0, %v1190
        %v1192 = vpop.f32.mrb[0].mxu0
        %1193 = vmatprep.mubr.f32.mxu0 0.0
        %1194 = vmatmul.mubr.f32.gmra.mrb[0].mxu0 %v1061
        %v1195 = vpop.f32.mrb[0].mxu0
        %v1196 = vadd.f32 0.0, %v1195
        %v1197 = vpop.f32.mrb[0].mxu0
        %1198 = vmatprep.mubr.f32.mxu0 0.0
        %1199 = vmatmul.mubr.f32.gmra.mrb[0].mxu0 %v1064
        %v1200 = vpop.f32.mrb[0].mxu0
        %v1201 = vadd.f32 0.0, %v1200
        %v1202 = vpop.f32.mrb[0].mxu0
        %1203 = vmatprep.mubr.f32.mxu0 0.0
        %1204 = vmatmul.mubr.f32.gmra.mrb[0].mxu0 %v1067
        %v1205 = vpop.f32.mrb[0].mxu0
        %v1206 = vadd.f32 0.0, %v1205
        %v1207 = vpop.f32.mrb[0].mxu0
        %1208 = vmatprep.mubr.f32.mxu0 0.0
        %1209 = vmatmul.mubr.f32.gmra.mrb[0].mxu0 %v1070
        %v1210 = vpop.f32.mrb[0].mxu0
        %v1211 = vadd.f32 0.0, %v1210
        %v1212 = vpop.f32.mrb[0].mxu0
        %1213 = vmatprep.mubr.f32.mxu0 0.0
        %1214 = vmatmul.mubr.f32.gmra.mrb[0].mxu0 %v1073
        %v1215 = vpop.f32.mrb[0].mxu0
        %v1216 = vadd.f32 0.0, %v1215
        %v1217 = vpop.f32.mrb[0].mxu0
        %1218 = vmatprep.mubr.f32.mxu0 0.0
        %1219 = vmatmul.mubr.f32.gmra.mrb[0].mxu0 %v1076
        %v1220 = vpop.f32.mrb[0].mxu0
        %v1221 = vadd.f32 0.0, %v1220
        %v1222 = vpop.f32.mrb[0].mxu0
        %1223 = vmatprep.mubr.f32.mxu0 0.0
        %1224 = vmatmul.mubr.f32.gmra.mrb[0].mxu0 %v1079
        %v1225 = vpop.f32.mrb[0].mxu0
        %v1226 = vadd.f32 0.0, %v1225
        %v1227 = vpop.f32.mrb[0].mxu0
        %1228 = vdwg.mxu0
        %v1229 = vmul.f32 %v1015, %v1015
        %v1230 = vmul.f32 %v1016, %v1016
        %v1231 = vmul.f32 %v1017, %v1017
        %v1232 = vmul.f32 %v1018, %v1018
        %v1233 = vmul.f32 %v1019, %v1019
        %v1234 = vmul.f32 %v1020, %v1020
        %v1235 = vmul.f32 %v1021, %v1021
        %v1236 = vmul.f32 %v1022, %v1022
        %v1237 = vmul.f32 %v1023, %v1023
        %v1238 = vmul.f32 %v1024, %v1024
        %v1239 = vmul.f32 %v1025, %v1025
        %v1240 = vmul.f32 %v1026, %v1026
        %v1241 = vmul.f32 %v1027, %v1027
        %v1242 = vmul.f32 %v1028, %v1028
        %v1243 = vmul.f32 %v1029, %v1029
        %v1244 = vmul.f32 %v1030, %v1030
        %v1245 = vsel %vm475, %v1229, 0.0
        %1246 = vadd.xlane.f32.xlu0 %v1245
        %v1247 = vpop.xlane.xlu0 %1246
        %v1248 = vsel %vm475, %v1230, 0.0
        %1249 = vadd.xlane.f32.xlu0 %v1248
        %v1250 = vpop.xlane.xlu0 %1249
        %v1251 = vsel %vm475, %v1231, 0.0
        %1252 = vadd.xlane.f32.xlu0 %v1251
        %v1253 = vpop.xlane.xlu0 %1252
        %v1254 = vsel %vm475, %v1232, 0.0
        %1255 = vadd.xlane.f32.xlu0 %v1254
        %v1256 = vpop.xlane.xlu0 %1255
        %v1257 = vsel %vm475, %v1233, 0.0
        %1258 = vadd.xlane.f32.xlu0 %v1257
        %v1259 = vpop.xlane.xlu0 %1258
        %v1260 = vsel %vm475, %v1234, 0.0
        %1261 = vadd.xlane.f32.xlu0 %v1260
        %v1262 = vpop.xlane.xlu0 %1261
        %v1263 = vsel %vm475, %v1235, 0.0
        %1264 = vadd.xlane.f32.xlu0 %v1263
        %v1265 = vpop.xlane.xlu0 %1264
        %v1266 = vsel %vm475, %v1236, 0.0
        %1267 = vadd.xlane.f32.xlu0 %v1266
        %v1268 = vpop.xlane.xlu0 %1267
        %v1269 = vsel %vm475, %v1237, 0.0
        %1270 = vadd.xlane.f32.xlu0 %v1269
        %v1271 = vpop.xlane.xlu0 %1270
        %v1272 = vsel %vm475, %v1238, 0.0
        %1273 = vadd.xlane.f32.xlu0 %v1272
        %v1274 = vpop.xlane.xlu0 %1273
        %v1275 = vsel %vm475, %v1239, 0.0
        %1276 = vadd.xlane.f32.xlu0 %v1275
        %v1277 = vpop.xlane.xlu0 %1276
        %v1278 = vsel %vm475, %v1240, 0.0
        %1279 = vadd.xlane.f32.xlu0 %v1278
        %v1280 = vpop.xlane.xlu0 %1279
        %v1281 = vsel %vm475, %v1241, 0.0
        %1282 = vadd.xlane.f32.xlu0 %v1281
        %v1283 = vpop.xlane.xlu0 %1282
        %v1284 = vsel %vm475, %v1242, 0.0
        %1285 = vadd.xlane.f32.xlu0 %v1284
        %v1286 = vpop.xlane.xlu0 %1285
        %v1287 = vsel %vm475, %v1243, 0.0
        %1288 = vadd.xlane.f32.xlu0 %v1287
        %v1289 = vpop.xlane.xlu0 %1288
        %v1290 = vsel %vm475, %v1244, 0.0
        %1291 = vadd.xlane.f32.xlu0 %v1290
        %v1292 = vpop.xlane.xlu0 %1291
        %v1293 = vadd.f32 %v921, %v1151
        %v1294 = vadd.f32 %v926, %v1156
        %v1295 = vadd.f32 %v931, %v1161
        %v1296 = vadd.f32 %v936, %v1166
        %v1297 = vadd.f32 %v941, %v1171
        %v1298 = vadd.f32 %v946, %v1176
        %v1299 = vadd.f32 %v951, %v1181
        %v1300 = vadd.f32 %v956, %v1186
        %v1301 = vadd.f32 %v961, %v1191
        %v1302 = vadd.f32 %v966, %v1196
        %v1303 = vadd.f32 %v971, %v1201
        %v1304 = vadd.f32 %v976, %v1206
        %v1305 = vadd.f32 %v981, %v1211
        %v1306 = vadd.f32 %v986, %v1216
        %v1307 = vadd.f32 %v991, %v1221
        %v1308 = vadd.f32 %v996, %v1226
        %v1309 = vadd.f32 %v999, %v1247
        %v1310 = vadd.f32 %v1000, %v1250
        %v1311 = vadd.f32 %v1001, %v1253
        %v1312 = vadd.f32 %v1002, %v1256
        %v1313 = vadd.f32 %v1003, %v1259
        %v1314 = vadd.f32 %v1004, %v1262
        %v1315 = vadd.f32 %v1005, %v1265
        %v1316 = vadd.f32 %v1006, %v1268
        %v1317 = vadd.f32 %v1007, %v1271
        %v1318 = vadd.f32 %v1008, %v1274
        %v1319 = vadd.f32 %v1009, %v1277
        %v1320 = vadd.f32 %v1010, %v1280
        %v1321 = vadd.f32 %v1011, %v1283
        %v1322 = vadd.f32 %v1012, %v1286
        %v1323 = vadd.f32 %v1013, %v1289
        %v1324 = vadd.f32 %v1014, %v1292
        %s1325 = sadd.s32 %s438, 1
        %s1326 = smul.u32 %s1325, 24
        %s1327 = scalar_lea.vmem %s405, %s1326
        %v1328 = vld [vmem:[%s1327] sm:$0xff]
        %v1329 = vld [vmem:[%s1327 + $0x8] sm:$0xff]
        %v1330 = vld [vmem:[%s1327 + $0x18] sm:$0xff]
        %v1331 = vld [vmem:[%s1327 + $0x20] sm:$0xff]
        %v1332 = vld [vmem:[%s1327 + $0x30] sm:$0xff]
        %v1333 = vld [vmem:[%s1327 + $0x38] sm:$0xff]
        %v1334 = vld [vmem:[%s1327 + $0x48] sm:$0xff]
        %v1335 = vld [vmem:[%s1327 + $0x50] sm:$0xff]
        %v1336 = vld [vmem:[%s1327 + $0x60] sm:$0xff]
        %v1337 = vld [vmem:[%s1327 + $0x68] sm:$0xff]
        %v1338 = vld [vmem:[%s1327 + $0x78] sm:$0xff]
        %v1339 = vld [vmem:[%s1327 + $0x80] sm:$0xff]
        %v1340 = vld [vmem:[%s1327 + $0x90] sm:$0xff]
        %v1341 = vld [vmem:[%s1327 + $0x98] sm:$0xff]
        %v1342 = vld [vmem:[%s1327 + $0xa8] sm:$0xff]
        %v1343 = vld [vmem:[%s1327 + $0xb0] sm:$0xff]
        %s1344 = scalar_lea.vmem %s2, 12
        %v1345 = vld [vmem:[%s1344] sm:$0xf]
        %v1347 = vsel %vm475, %v1328, 0
        %v1350 = vsel %vm475, %v1329, 0
        %v1353 = vsel %vm475, %v1330, 0
        %v1356 = vsel %vm475, %v1331, 0
        %v1359 = vsel %vm475, %v1332, 0
        %v1362 = vsel %vm475, %v1333, 0
        %v1365 = vsel %vm475, %v1334, 0
        %v1368 = vsel %vm475, %v1335, 0
        %v1371 = vsel %vm475, %v1336, 0
        %v1374 = vsel %vm475, %v1337, 0
        %v1377 = vsel %vm475, %v1338, 0
        %v1380 = vsel %vm475, %v1339, 0
        %v1383 = vsel %vm475, %v1340, 0
        %v1386 = vsel %vm475, %v1341, 0
        %v1389 = vsel %vm475, %v1342, 0
        %v1392 = vsel %vm475, %v1343, 0
        %v1395 = vsel %vm590, %v1345, 0
        %1397 = vmatprep.subr.mxu0 0.0
        %1398 = vmatpush1.msra.mxu0 %v1395
        %1399 = vmatprep.subr.mxu0 0.0
        %1400 = vmatpush1.msra.mxu0 0.0
        %1401 = vmatprep.subr.mxu0 0.0
        %1402 = vmatpush1.msra.mxu0 0.0
        %1403 = vmatprep.subr.mxu0 0.0
        %1404 = vmatpush1.msra.mxu0 0.0
        %1405 = vmatprep.subr.mxu0 0.0
        %1406 = vmatpush1.msra.mxu0 0.0
        %1407 = vmatprep.subr.mxu0 0.0
        %1408 = vmatpush1.msra.mxu0 0.0
        %1409 = vmatprep.subr.mxu0 0.0
        %1410 = vmatpush1.msra.mxu0 0.0
        %1411 = vmatprep.subr.mxu0 0.0
        %1412 = vmatpush1.msra.mxu0 0.0
        %1413 = vmatprep.subr.mxu0 0.0
        %1414 = vmatpush1.msra.mxu0 0.0
        %1415 = vmatprep.subr.mxu0 0.0
        %1416 = vmatpush1.msra.mxu0 0.0
        %1417 = vmatprep.subr.mxu0 0.0
        %1418 = vmatpush1.msra.mxu0 0.0
        %1419 = vmatprep.subr.mxu0 0.0
        %1420 = vmatpush1.msra.mxu0 0.0
        %1421 = vmatprep.subr.mxu0 0.0
        %1422 = vmatpush1.msra.mxu0 0.0
        %1423 = vmatprep.subr.mxu0 0.0
        %1424 = vmatpush1.msra.mxu0 0.0
        %1425 = vmatprep.subr.mxu0 0.0
        %1426 = vmatpush1.msra.mxu0 0.0
        %1427 = vmatprep.subr.mxu0 0.0
        %1428 = vmatpush1.msra.mxu0 0.0
        %1429 = vmatprep.subr.mxu0 0.0
        %1430 = vmatpush1.msra.mxu0 0.0
        %1431 = vmatprep.subr.mxu0 0.0
        %1432 = vmatpush1.msra.mxu0 0.0
        %1433 = vmatprep.subr.mxu0 0.0
        %1434 = vmatpush1.msra.mxu0 0.0
        %1435 = vmatprep.subr.mxu0 0.0
        %1436 = vmatpush1.msra.mxu0 0.0
        %1437 = vmatprep.subr.mxu0 0.0
        %1438 = vmatpush1.msra.mxu0 0.0
        %1439 = vmatprep.subr.mxu0 0.0
        %1440 = vmatpush1.msra.mxu0 0.0
        %1441 = vmatprep.subr.mxu0 0.0
        %1442 = vmatpush1.msra.mxu0 0.0
        %1443 = vmatprep.subr.mxu0 0.0
        %1444 = vmatpush1.msra.mxu0 0.0
        %1445 = vmatprep.subr.mxu0 0.0
        %1446 = vmatpush1.msra.mxu0 0.0
        %1447 = vmatprep.subr.mxu0 0.0
        %1448 = vmatpush1.msra.mxu0 0.0
        %1449 = vmatprep.subr.mxu0 0.0
        %1450 = vmatpush1.msra.mxu0 0.0
        %1451 = vmatprep.subr.mxu0 0.0
        %1452 = vmatpush1.msra.mxu0 0.0
        %1453 = vmatprep.subr.mxu0 0.0
        %1454 = vmatpush1.msra.mxu0 0.0
        %1455 = vmatprep.subr.mxu0 0.0
        %1456 = vmatpush1.msra.mxu0 0.0
        %1457 = vmatprep.subr.mxu0 0.0
        %1458 = vmatpush1.msra.mxu0 0.0
        %1459 = vmatprep.subr.mxu0 0.0
        %1460 = vmatpush1.msra.mxu0 0.0
        %1461 = vmatprep.mubr.f32.mxu0 0.0
        %1462 = vmatmul.mubr.f32.gmra.mrb[0].mxu0 %v1347
        %v1463 = vpop.f32.mrb[0].mxu0
        %v1464 = vadd.f32 0.0, %v1463
        %v1465 = vpop.f32.mrb[0].mxu0
        %1466 = vmatprep.mubr.f32.mxu0 0.0
        %1467 = vmatmul.mubr.f32.gmra.mrb[0].mxu0 %v1350
        %v1468 = vpop.f32.mrb[0].mxu0
        %v1469 = vadd.f32 0.0, %v1468
        %v1470 = vpop.f32.mrb[0].mxu0
        %1471 = vmatprep.mubr.f32.mxu0 0.0
        %1472 = vmatmul.mubr.f32.gmra.mrb[0].mxu0 %v1353
        %v1473 = vpop.f32.mrb[0].mxu0
        %v1474 = vadd.f32 0.0, %v1473
        %v1475 = vpop.f32.mrb[0].mxu0
        %1476 = vmatprep.mubr.f32.mxu0 0.0
        %1477 = vmatmul.mubr.f32.gmra.mrb[0].mxu0 %v1356
        %v1478 = vpop.f32.mrb[0].mxu0
        %v1479 = vadd.f32 0.0, %v1478
        %v1480 = vpop.f32.mrb[0].mxu0
        %1481 = vmatprep.mubr.f32.mxu0 0.0
        %1482 = vmatmul.mubr.f32.gmra.mrb[0].mxu0 %v1359
        %v1483 = vpop.f32.mrb[0].mxu0
        %v1484 = vadd.f32 0.0, %v1483
        %v1485 = vpop.f32.mrb[0].mxu0
        %1486 = vmatprep.mubr.f32.mxu0 0.0
        %1487 = vmatmul.mubr.f32.gmra.mrb[0].mxu0 %v1362
        %v1488 = vpop.f32.mrb[0].mxu0
        %v1489 = vadd.f32 0.0, %v1488
        %v1490 = vpop.f32.mrb[0].mxu0
        %1491 = vmatprep.mubr.f32.mxu0 0.0
        %1492 = vmatmul.mubr.f32.gmra.mrb[0].mxu0 %v1365
        %v1493 = vpop.f32.mrb[0].mxu0
        %v1494 = vadd.f32 0.0, %v1493
        %v1495 = vpop.f32.mrb[0].mxu0
        %1496 = vmatprep.mubr.f32.mxu0 0.0
        %1497 = vmatmul.mubr.f32.gmra.mrb[0].mxu0 %v1368
        %v1498 = vpop.f32.mrb[0].mxu0
        %v1499 = vadd.f32 0.0, %v1498
        %v1500 = vpop.f32.mrb[0].mxu0
        %1501 = vmatprep.mubr.f32.mxu0 0.0
        %1502 = vmatmul.mubr.f32.gmra.mrb[0].mxu0 %v1371
        %v1503 = vpop.f32.mrb[0].mxu0
        %v1504 = vadd.f32 0.0, %v1503
        %v1505 = vpop.f32.mrb[0].mxu0
        %1506 = vmatprep.mubr.f32.mxu0 0.0
        %1507 = vmatmul.mubr.f32.gmra.mrb[0].mxu0 %v1374
        %v1508 = vpop.f32.mrb[0].mxu0
        %v1509 = vadd.f32 0.0, %v1508
        %v1510 = vpop.f32.mrb[0].mxu0
        %1511 = vmatprep.mubr.f32.mxu0 0.0
        %1512 = vmatmul.mubr.f32.gmra.mrb[0].mxu0 %v1377
        %v1513 = vpop.f32.mrb[0].mxu0
        %v1514 = vadd.f32 0.0, %v1513
        %v1515 = vpop.f32.mrb[0].mxu0
        %1516 = vmatprep.mubr.f32.mxu0 0.0
        %1517 = vmatmul.mubr.f32.gmra.mrb[0].mxu0 %v1380
        %v1518 = vpop.f32.mrb[0].mxu0
        %v1519 = vadd.f32 0.0, %v1518
        %v1520 = vpop.f32.mrb[0].mxu0
        %1521 = vmatprep.mubr.f32.mxu0 0.0
        %1522 = vmatmul.mubr.f32.gmra.mrb[0].mxu0 %v1383
        %v1523 = vpop.f32.mrb[0].mxu0
        %v1524 = vadd.f32 0.0, %v1523
        %v1525 = vpop.f32.mrb[0].mxu0
        %1526 = vmatprep.mubr.f32.mxu0 0.0
        %1527 = vmatmul.mubr.f32.gmra.mrb[0].mxu0 %v1386
        %v1528 = vpop.f32.mrb[0].mxu0
        %v1529 = vadd.f32 0.0, %v1528
        %v1530 = vpop.f32.mrb[0].mxu0
        %1531 = vmatprep.mubr.f32.mxu0 0.0
        %1532 = vmatmul.mubr.f32.gmra.mrb[0].mxu0 %v1389
        %v1533 = vpop.f32.mrb[0].mxu0
        %v1534 = vadd.f32 0.0, %v1533
        %v1535 = vpop.f32.mrb[0].mxu0
        %1536 = vmatprep.mubr.f32.mxu0 0.0
        %1537 = vmatmul.mubr.f32.gmra.mrb[0].mxu0 %v1392
        %v1538 = vpop.f32.mrb[0].mxu0
        %v1539 = vadd.f32 0.0, %v1538
        %v1540 = vpop.f32.mrb[0].mxu0
        %1541 = vdwg.mxu0
        %v1542 = vmul.f32 %v1328, %v1328
        %v1543 = vmul.f32 %v1329, %v1329
        %v1544 = vmul.f32 %v1330, %v1330
        %v1545 = vmul.f32 %v1331, %v1331
        %v1546 = vmul.f32 %v1332, %v1332
        %v1547 = vmul.f32 %v1333, %v1333
        %v1548 = vmul.f32 %v1334, %v1334
        %v1549 = vmul.f32 %v1335, %v1335
        %v1550 = vmul.f32 %v1336, %v1336
        %v1551 = vmul.f32 %v1337, %v1337
        %v1552 = vmul.f32 %v1338, %v1338
        %v1553 = vmul.f32 %v1339, %v1339
        %v1554 = vmul.f32 %v1340, %v1340
        %v1555 = vmul.f32 %v1341, %v1341
        %v1556 = vmul.f32 %v1342, %v1342
        %v1557 = vmul.f32 %v1343, %v1343
        %v1558 = vsel %vm475, %v1542, 0.0
        %1559 = vadd.xlane.f32.xlu0 %v1558
        %v1560 = vpop.xlane.xlu0 %1559
        %v1561 = vsel %vm475, %v1543, 0.0
        %1562 = vadd.xlane.f32.xlu0 %v1561
        %v1563 = vpop.xlane.xlu0 %1562
        %v1564 = vsel %vm475, %v1544, 0.0
        %1565 = vadd.xlane.f32.xlu0 %v1564
        %v1566 = vpop.xlane.xlu0 %1565
        %v1567 = vsel %vm475, %v1545, 0.0
        %1568 = vadd.xlane.f32.xlu0 %v1567
        %v1569 = vpop.xlane.xlu0 %1568
        %v1570 = vsel %vm475, %v1546, 0.0
        %1571 = vadd.xlane.f32.xlu0 %v1570
        %v1572 = vpop.xlane.xlu0 %1571
        %v1573 = vsel %vm475, %v1547, 0.0
        %1574 = vadd.xlane.f32.xlu0 %v1573
        %v1575 = vpop.xlane.xlu0 %1574
        %v1576 = vsel %vm475, %v1548, 0.0
        %1577 = vadd.xlane.f32.xlu0 %v1576
        %v1578 = vpop.xlane.xlu0 %1577
        %v1579 = vsel %vm475, %v1549, 0.0
        %1580 = vadd.xlane.f32.xlu0 %v1579
        %v1581 = vpop.xlane.xlu0 %1580
        %v1582 = vsel %vm475, %v1550, 0.0
        %1583 = vadd.xlane.f32.xlu0 %v1582
        %v1584 = vpop.xlane.xlu0 %1583
        %v1585 = vsel %vm475, %v1551, 0.0
        %1586 = vadd.xlane.f32.xlu0 %v1585
        %v1587 = vpop.xlane.xlu0 %1586
        %v1588 = vsel %vm475, %v1552, 0.0
        %1589 = vadd.xlane.f32.xlu0 %v1588
        %v1590 = vpop.xlane.xlu0 %1589
        %v1591 = vsel %vm475, %v1553, 0.0
        %1592 = vadd.xlane.f32.xlu0 %v1591
        %v1593 = vpop.xlane.xlu0 %1592
        %v1594 = vsel %vm475, %v1554, 0.0
        %1595 = vadd.xlane.f32.xlu0 %v1594
        %v1596 = vpop.xlane.xlu0 %1595
        %v1597 = vsel %vm475, %v1555, 0.0
        %1598 = vadd.xlane.f32.xlu0 %v1597
        %v1599 = vpop.xlane.xlu0 %1598
        %v1600 = vsel %vm475, %v1556, 0.0
        %1601 = vadd.xlane.f32.xlu0 %v1600
        %v1602 = vpop.xlane.xlu0 %1601
        %v1603 = vsel %vm475, %v1557, 0.0
        %1604 = vadd.xlane.f32.xlu0 %v1603
        %v1605 = vpop.xlane.xlu0 %1604
        %v1606 = vadd.f32 %v1293, %v1464
        %v1607 = vadd.f32 %v1294, %v1469
        %v1608 = vadd.f32 %v1295, %v1474
        %v1609 = vadd.f32 %v1296, %v1479
        %v1610 = vadd.f32 %v1297, %v1484
        %v1611 = vadd.f32 %v1298, %v1489
        %v1612 = vadd.f32 %v1299, %v1494
        %v1613 = vadd.f32 %v1300, %v1499
        %v1614 = vadd.f32 %v1301, %v1504
        %v1615 = vadd.f32 %v1302, %v1509
        %v1616 = vadd.f32 %v1303, %v1514
        %v1617 = vadd.f32 %v1304, %v1519
        %v1618 = vadd.f32 %v1305, %v1524
        %v1619 = vadd.f32 %v1306, %v1529
        %v1620 = vadd.f32 %v1307, %v1534
        %v1621 = vadd.f32 %v1308, %v1539
        %v1622 = vadd.f32 %v1309, %v1560
        %v1623 = vadd.f32 %v1310, %v1563
        %v1624 = vadd.f32 %v1311, %v1566
        %v1625 = vadd.f32 %v1312, %v1569
        %v1626 = vadd.f32 %v1313, %v1572
        %v1627 = vadd.f32 %v1314, %v1575
        %v1628 = vadd.f32 %v1315, %v1578
        %v1629 = vadd.f32 %v1316, %v1581
        %v1630 = vadd.f32 %v1317, %v1584
        %v1631 = vadd.f32 %v1318, %v1587
        %v1632 = vadd.f32 %v1319, %v1590
        %v1633 = vadd.f32 %v1320, %v1593
        %v1634 = vadd.f32 %v1321, %v1596
        %v1635 = vadd.f32 %v1322, %v1599
        %v1636 = vadd.f32 %v1323, %v1602
        %v1637 = vadd.f32 %v1324, %v1605
        %v1638 = vld [vmem:[%s1327 + $0x1] sm:$0xff]
        %v1639 = vld [vmem:[%s1327 + $0x9] sm:$0xff]
        %v1640 = vld [vmem:[%s1327 + $0x19] sm:$0xff]
        %v1641 = vld [vmem:[%s1327 + $0x21] sm:$0xff]
        %v1642 = vld [vmem:[%s1327 + $0x31] sm:$0xff]
        %v1643 = vld [vmem:[%s1327 + $0x39] sm:$0xff]
        %v1644 = vld [vmem:[%s1327 + $0x49] sm:$0xff]
        %v1645 = vld [vmem:[%s1327 + $0x51] sm:$0xff]
        %v1646 = vld [vmem:[%s1327 + $0x61] sm:$0xff]
        %v1647 = vld [vmem:[%s1327 + $0x69] sm:$0xff]
        %v1648 = vld [vmem:[%s1327 + $0x79] sm:$0xff]
        %v1649 = vld [vmem:[%s1327 + $0x81] sm:$0xff]
        %v1650 = vld [vmem:[%s1327 + $0x91] sm:$0xff]
        %v1651 = vld [vmem:[%s1327 + $0x99] sm:$0xff]
        %v1652 = vld [vmem:[%s1327 + $0xa9] sm:$0xff]
        %v1653 = vld [vmem:[%s1327 + $0xb1] sm:$0xff]
        %s1654 = scalar_lea.vmem %s2, 16
        %v1655 = vld [vmem:[%s1654] sm:$0xf]
        %v1657 = vsel %vm475, %v1638, 0
        %v1660 = vsel %vm475, %v1639, 0
        %v1663 = vsel %vm475, %v1640, 0
        %v1666 = vsel %vm475, %v1641, 0
        %v1669 = vsel %vm475, %v1642, 0
        %v1672 = vsel %vm475, %v1643, 0
        %v1675 = vsel %vm475, %v1644, 0
        %v1678 = vsel %vm475, %v1645, 0
        %v1681 = vsel %vm475, %v1646, 0
        %v1684 = vsel %vm475, %v1647, 0
        %v1687 = vsel %vm475, %v1648, 0
        %v1690 = vsel %vm475, %v1649, 0
        %v1693 = vsel %vm475, %v1650, 0
        %v1696 = vsel %vm475, %v1651, 0
        %v1699 = vsel %vm475, %v1652, 0
        %v1702 = vsel %vm475, %v1653, 0
        %v1705 = vsel %vm590, %v1655, 0
        %1707 = vmatprep.subr.mxu0 0.0
        %1708 = vmatpush1.msra.mxu0 %v1705
        %1709 = vmatprep.subr.mxu0 0.0
        %1710 = vmatpush1.msra.mxu0 0.0
        %1711 = vmatprep.subr.mxu0 0.0
        %1712 = vmatpush1.msra.mxu0 0.0
        %1713 = vmatprep.subr.mxu0 0.0
        %1714 = vmatpush1.msra.mxu0 0.0
        %1715 = vmatprep.subr.mxu0 0.0
        %1716 = vmatpush1.msra.mxu0 0.0
        %1717 = vmatprep.subr.mxu0 0.0
        %1718 = vmatpush1.msra.mxu0 0.0
        %1719 = vmatprep.subr.mxu0 0.0
        %1720 = vmatpush1.msra.mxu0 0.0
        %1721 = vmatprep.subr.mxu0 0.0
        %1722 = vmatpush1.msra.mxu0 0.0
        %1723 = vmatprep.subr.mxu0 0.0
        %1724 = vmatpush1.msra.mxu0 0.0
        %1725 = vmatprep.subr.mxu0 0.0
        %1726 = vmatpush1.msra.mxu0 0.0
        %1727 = vmatprep.subr.mxu0 0.0
        %1728 = vmatpush1.msra.mxu0 0.0
        %1729 = vmatprep.subr.mxu0 0.0
        %1730 = vmatpush1.msra.mxu0 0.0
        %1731 = vmatprep.subr.mxu0 0.0
        %1732 = vmatpush1.msra.mxu0 0.0
        %1733 = vmatprep.subr.mxu0 0.0
        %1734 = vmatpush1.msra.mxu0 0.0
        %1735 = vmatprep.subr.mxu0 0.0
        %1736 = vmatpush1.msra.mxu0 0.0
        %1737 = vmatprep.subr.mxu0 0.0
        %1738 = vmatpush1.msra.mxu0 0.0
        %1739 = vmatprep.subr.mxu0 0.0
        %1740 = vmatpush1.msra.mxu0 0.0
        %1741 = vmatprep.subr.mxu0 0.0
        %1742 = vmatpush1.msra.mxu0 0.0
        %1743 = vmatprep.subr.mxu0 0.0
        %1744 = vmatpush1.msra.mxu0 0.0
        %1745 = vmatprep.subr.mxu0 0.0
        %1746 = vmatpush1.msra.mxu0 0.0
        %1747 = vmatprep.subr.mxu0 0.0
        %1748 = vmatpush1.msra.mxu0 0.0
        %1749 = vmatprep.subr.mxu0 0.0
        %1750 = vmatpush1.msra.mxu0 0.0
        %1751 = vmatprep.subr.mxu0 0.0
        %1752 = vmatpush1.msra.mxu0 0.0
        %1753 = vmatprep.subr.mxu0 0.0
        %1754 = vmatpush1.msra.mxu0 0.0
        %1755 = vmatprep.subr.mxu0 0.0
        %1756 = vmatpush1.msra.mxu0 0.0
        %1757 = vmatprep.subr.mxu0 0.0
        %1758 = vmatpush1.msra.mxu0 0.0
        %1759 = vmatprep.subr.mxu0 0.0
        %1760 = vmatpush1.msra.mxu0 0.0
        %1761 = vmatprep.subr.mxu0 0.0
        %1762 = vmatpush1.msra.mxu0 0.0
        %1763 = vmatprep.subr.mxu0 0.0
        %1764 = vmatpush1.msra.mxu0 0.0
        %1765 = vmatprep.subr.mxu0 0.0
        %1766 = vmatpush1.msra.mxu0 0.0
        %1767 = vmatprep.subr.mxu0 0.0
        %1768 = vmatpush1.msra.mxu0 0.0
        %1769 = vmatprep.subr.mxu0 0.0
        %1770 = vmatpush1.msra.mxu0 0.0
        %1771 = vmatprep.mubr.f32.mxu0 0.0
        %1772 = vmatmul.mubr.f32.gmra.mrb[0].mxu0 %v1657
        %v1773 = vpop.f32.mrb[0].mxu0
        %v1774 = vadd.f32 0.0, %v1773
        %v1775 = vpop.f32.mrb[0].mxu0
        %1776 = vmatprep.mubr.f32.mxu0 0.0
        %1777 = vmatmul.mubr.f32.gmra.mrb[0].mxu0 %v1660
        %v1778 = vpop.f32.mrb[0].mxu0
        %v1779 = vadd.f32 0.0, %v1778
        %v1780 = vpop.f32.mrb[0].mxu0
        %1781 = vmatprep.mubr.f32.mxu0 0.0
        %1782 = vmatmul.mubr.f32.gmra.mrb[0].mxu0 %v1663
        %v1783 = vpop.f32.mrb[0].mxu0
        %v1784 = vadd.f32 0.0, %v1783
        %v1785 = vpop.f32.mrb[0].mxu0
        %1786 = vmatprep.mubr.f32.mxu0 0.0
        %1787 = vmatmul.mubr.f32.gmra.mrb[0].mxu0 %v1666
        %v1788 = vpop.f32.mrb[0].mxu0
        %v1789 = vadd.f32 0.0, %v1788
        %v1790 = vpop.f32.mrb[0].mxu0
        %1791 = vmatprep.mubr.f32.mxu0 0.0
        %1792 = vmatmul.mubr.f32.gmra.mrb[0].mxu0 %v1669
        %v1793 = vpop.f32.mrb[0].mxu0
        %v1794 = vadd.f32 0.0, %v1793
        %v1795 = vpop.f32.mrb[0].mxu0
        %1796 = vmatprep.mubr.f32.mxu0 0.0
        %1797 = vmatmul.mubr.f32.gmra.mrb[0].mxu0 %v1672
        %v1798 = vpop.f32.mrb[0].mxu0
        %v1799 = vadd.f32 0.0, %v1798
        %v1800 = vpop.f32.mrb[0].mxu0
        %1801 = vmatprep.mubr.f32.mxu0 0.0
        %1802 = vmatmul.mubr.f32.gmra.mrb[0].mxu0 %v1675
        %v1803 = vpop.f32.mrb[0].mxu0
        %v1804 = vadd.f32 0.0, %v1803
        %v1805 = vpop.f32.mrb[0].mxu0
        %1806 = vmatprep.mubr.f32.mxu0 0.0
        %1807 = vmatmul.mubr.f32.gmra.mrb[0].mxu0 %v1678
        %v1808 = vpop.f32.mrb[0].mxu0
        %v1809 = vadd.f32 0.0, %v1808
        %v1810 = vpop.f32.mrb[0].mxu0
        %1811 = vmatprep.mubr.f32.mxu0 0.0
        %1812 = vmatmul.mubr.f32.gmra.mrb[0].mxu0 %v1681
        %v1813 = vpop.f32.mrb[0].mxu0
        %v1814 = vadd.f32 0.0, %v1813
        %v1815 = vpop.f32.mrb[0].mxu0
        %1816 = vmatprep.mubr.f32.mxu0 0.0
        %1817 = vmatmul.mubr.f32.gmra.mrb[0].mxu0 %v1684
        %v1818 = vpop.f32.mrb[0].mxu0
        %v1819 = vadd.f32 0.0, %v1818
        %v1820 = vpop.f32.mrb[0].mxu0
        %1821 = vmatprep.mubr.f32.mxu0 0.0
        %1822 = vmatmul.mubr.f32.gmra.mrb[0].mxu0 %v1687
        %v1823 = vpop.f32.mrb[0].mxu0
        %v1824 = vadd.f32 0.0, %v1823
        %v1825 = vpop.f32.mrb[0].mxu0
        %1826 = vmatprep.mubr.f32.mxu0 0.0
        %1827 = vmatmul.mubr.f32.gmra.mrb[0].mxu0 %v1690
        %v1828 = vpop.f32.mrb[0].mxu0
        %v1829 = vadd.f32 0.0, %v1828
        %v1830 = vpop.f32.mrb[0].mxu0
        %1831 = vmatprep.mubr.f32.mxu0 0.0
        %1832 = vmatmul.mubr.f32.gmra.mrb[0].mxu0 %v1693
        %v1833 = vpop.f32.mrb[0].mxu0
        %v1834 = vadd.f32 0.0, %v1833
        %v1835 = vpop.f32.mrb[0].mxu0
        %1836 = vmatprep.mubr.f32.mxu0 0.0
        %1837 = vmatmul.mubr.f32.gmra.mrb[0].mxu0 %v1696
        %v1838 = vpop.f32.mrb[0].mxu0
        %v1839 = vadd.f32 0.0, %v1838
        %v1840 = vpop.f32.mrb[0].mxu0
        %1841 = vmatprep.mubr.f32.mxu0 0.0
        %1842 = vmatmul.mubr.f32.gmra.mrb[0].mxu0 %v1699
        %v1843 = vpop.f32.mrb[0].mxu0
        %v1844 = vadd.f32 0.0, %v1843
        %v1845 = vpop.f32.mrb[0].mxu0
        %1846 = vmatprep.mubr.f32.mxu0 0.0
        %1847 = vmatmul.mubr.f32.gmra.mrb[0].mxu0 %v1702
        %v1848 = vpop.f32.mrb[0].mxu0
        %v1849 = vadd.f32 0.0, %v1848
        %v1850 = vpop.f32.mrb[0].mxu0
        %1851 = vdwg.mxu0
        %v1852 = vmul.f32 %v1638, %v1638
        %v1853 = vmul.f32 %v1639, %v1639
        %v1854 = vmul.f32 %v1640, %v1640
        %v1855 = vmul.f32 %v1641, %v1641
        %v1856 = vmul.f32 %v1642, %v1642
        %v1857 = vmul.f32 %v1643, %v1643
        %v1858 = vmul.f32 %v1644, %v1644
        %v1859 = vmul.f32 %v1645, %v1645
        %v1860 = vmul.f32 %v1646, %v1646
        %v1861 = vmul.f32 %v1647, %v1647
        %v1862 = vmul.f32 %v1648, %v1648
        %v1863 = vmul.f32 %v1649, %v1649
        %v1864 = vmul.f32 %v1650, %v1650
        %v1865 = vmul.f32 %v1651, %v1651
        %v1866 = vmul.f32 %v1652, %v1652
        %v1867 = vmul.f32 %v1653, %v1653
        %v1868 = vsel %vm475, %v1852, 0.0
        %1869 = vadd.xlane.f32.xlu0 %v1868
        %v1870 = vpop.xlane.xlu0 %1869
        %v1871 = vsel %vm475, %v1853, 0.0
        %1872 = vadd.xlane.f32.xlu0 %v1871
        %v1873 = vpop.xlane.xlu0 %1872
        %v1874 = vsel %vm475, %v1854, 0.0
        %1875 = vadd.xlane.f32.xlu0 %v1874
        %v1876 = vpop.xlane.xlu0 %1875
        %v1877 = vsel %vm475, %v1855, 0.0
        %1878 = vadd.xlane.f32.xlu0 %v1877
        %v1879 = vpop.xlane.xlu0 %1878
        %v1880 = vsel %vm475, %v1856, 0.0
        %1881 = vadd.xlane.f32.xlu0 %v1880
        %v1882 = vpop.xlane.xlu0 %1881
        %v1883 = vsel %vm475, %v1857, 0.0
        %1884 = vadd.xlane.f32.xlu0 %v1883
        %v1885 = vpop.xlane.xlu0 %1884
        %v1886 = vsel %vm475, %v1858, 0.0
        %1887 = vadd.xlane.f32.xlu0 %v1886
        %v1888 = vpop.xlane.xlu0 %1887
        %v1889 = vsel %vm475, %v1859, 0.0
        %1890 = vadd.xlane.f32.xlu0 %v1889
        %v1891 = vpop.xlane.xlu0 %1890
        %v1892 = vsel %vm475, %v1860, 0.0
        %1893 = vadd.xlane.f32.xlu0 %v1892
        %v1894 = vpop.xlane.xlu0 %1893
        %v1895 = vsel %vm475, %v1861, 0.0
        %1896 = vadd.xlane.f32.xlu0 %v1895
        %v1897 = vpop.xlane.xlu0 %1896
        %v1898 = vsel %vm475, %v1862, 0.0
        %1899 = vadd.xlane.f32.xlu0 %v1898
        %v1900 = vpop.xlane.xlu0 %1899
        %v1901 = vsel %vm475, %v1863, 0.0
        %1902 = vadd.xlane.f32.xlu0 %v1901
        %v1903 = vpop.xlane.xlu0 %1902
        %v1904 = vsel %vm475, %v1864, 0.0
        %1905 = vadd.xlane.f32.xlu0 %v1904
        %v1906 = vpop.xlane.xlu0 %1905
        %v1907 = vsel %vm475, %v1865, 0.0
        %1908 = vadd.xlane.f32.xlu0 %v1907
        %v1909 = vpop.xlane.xlu0 %1908
        %v1910 = vsel %vm475, %v1866, 0.0
        %1911 = vadd.xlane.f32.xlu0 %v1910
        %v1912 = vpop.xlane.xlu0 %1911
        %v1913 = vsel %vm475, %v1867, 0.0
        %1914 = vadd.xlane.f32.xlu0 %v1913
        %v1915 = vpop.xlane.xlu0 %1914
        %v1916 = vadd.f32 %v1606, %v1774
        %v1917 = vadd.f32 %v1607, %v1779
        %v1918 = vadd.f32 %v1608, %v1784
        %v1919 = vadd.f32 %v1609, %v1789
        %v1920 = vadd.f32 %v1610, %v1794
        %v1921 = vadd.f32 %v1611, %v1799
        %v1922 = vadd.f32 %v1612, %v1804
        %v1923 = vadd.f32 %v1613, %v1809
        %v1924 = vadd.f32 %v1614, %v1814
        %v1925 = vadd.f32 %v1615, %v1819
        %v1926 = vadd.f32 %v1616, %v1824
        %v1927 = vadd.f32 %v1617, %v1829
        %v1928 = vadd.f32 %v1618, %v1834
        %v1929 = vadd.f32 %v1619, %v1839
        %v1930 = vadd.f32 %v1620, %v1844
        %v1931 = vadd.f32 %v1621, %v1849
        %v1932 = vadd.f32 %v1622, %v1870
        %v1933 = vadd.f32 %v1623, %v1873
        %v1934 = vadd.f32 %v1624, %v1876
        %v1935 = vadd.f32 %v1625, %v1879
        %v1936 = vadd.f32 %v1626, %v1882
        %v1937 = vadd.f32 %v1627, %v1885
        %v1938 = vadd.f32 %v1628, %v1888
        %v1939 = vadd.f32 %v1629, %v1891
        %v1940 = vadd.f32 %v1630, %v1894
        %v1941 = vadd.f32 %v1631, %v1897
        %v1942 = vadd.f32 %v1632, %v1900
        %v1943 = vadd.f32 %v1633, %v1903
        %v1944 = vadd.f32 %v1634, %v1906
        %v1945 = vadd.f32 %v1635, %v1909
        %v1946 = vadd.f32 %v1636, %v1912
        %v1947 = vadd.f32 %v1637, %v1915
        %v1948 = vld [vmem:[%s1327 + $0x2] sm:$0xff]
        %v1949 = vld [vmem:[%s1327 + $0xa] sm:$0xff]
        %v1950 = vld [vmem:[%s1327 + $0x1a] sm:$0xff]
        %v1951 = vld [vmem:[%s1327 + $0x22] sm:$0xff]
        %v1952 = vld [vmem:[%s1327 + $0x32] sm:$0xff]
        %v1953 = vld [vmem:[%s1327 + $0x3a] sm:$0xff]
        %v1954 = vld [vmem:[%s1327 + $0x4a] sm:$0xff]
        %v1955 = vld [vmem:[%s1327 + $0x52] sm:$0xff]
        %v1956 = vld [vmem:[%s1327 + $0x62] sm:$0xff]
        %v1957 = vld [vmem:[%s1327 + $0x6a] sm:$0xff]
        %v1958 = vld [vmem:[%s1327 + $0x7a] sm:$0xff]
        %v1959 = vld [vmem:[%s1327 + $0x82] sm:$0xff]
        %v1960 = vld [vmem:[%s1327 + $0x92] sm:$0xff]
        %v1961 = vld [vmem:[%s1327 + $0x9a] sm:$0xff]
        %v1962 = vld [vmem:[%s1327 + $0xaa] sm:$0xff]
        %v1963 = vld [vmem:[%s1327 + $0xb2] sm:$0xff]
        %s1964 = scalar_lea.vmem %s2, 20
        %v1965 = vld [vmem:[%s1964] sm:$0xf]
        %v1967 = vsel %vm475, %v1948, 0
        %v1970 = vsel %vm475, %v1949, 0
        %v1973 = vsel %vm475, %v1950, 0
        %v1976 = vsel %vm475, %v1951, 0
        %v1979 = vsel %vm475, %v1952, 0
        %v1982 = vsel %vm475, %v1953, 0
        %v1985 = vsel %vm475, %v1954, 0
        %v1988 = vsel %vm475, %v1955, 0
        %v1991 = vsel %vm475, %v1956, 0
        %v1994 = vsel %vm475, %v1957, 0
        %v1997 = vsel %vm475, %v1958, 0
        %v2000 = vsel %vm475, %v1959, 0
        %v2003 = vsel %vm475, %v1960, 0
        %v2006 = vsel %vm475, %v1961, 0
        %v2009 = vsel %vm475, %v1962, 0
        %v2012 = vsel %vm475, %v1963, 0
        %v2015 = vsel %vm590, %v1965, 0
        %2017 = vmatprep.subr.mxu0 0.0
        %2018 = vmatpush1.msra.mxu0 %v2015
        %2019 = vmatprep.subr.mxu0 0.0
        %2020 = vmatpush1.msra.mxu0 0.0
        %2021 = vmatprep.subr.mxu0 0.0
        %2022 = vmatpush1.msra.mxu0 0.0
        %2023 = vmatprep.subr.mxu0 0.0
        %2024 = vmatpush1.msra.mxu0 0.0
        %2025 = vmatprep.subr.mxu0 0.0
        %2026 = vmatpush1.msra.mxu0 0.0
        %2027 = vmatprep.subr.mxu0 0.0
        %2028 = vmatpush1.msra.mxu0 0.0
        %2029 = vmatprep.subr.mxu0 0.0
        %2030 = vmatpush1.msra.mxu0 0.0
        %2031 = vmatprep.subr.mxu0 0.0
        %2032 = vmatpush1.msra.mxu0 0.0
        %2033 = vmatprep.subr.mxu0 0.0
        %2034 = vmatpush1.msra.mxu0 0.0
        %2035 = vmatprep.subr.mxu0 0.0
        %2036 = vmatpush1.msra.mxu0 0.0
        %2037 = vmatprep.subr.mxu0 0.0
        %2038 = vmatpush1.msra.mxu0 0.0
        %2039 = vmatprep.subr.mxu0 0.0
        %2040 = vmatpush1.msra.mxu0 0.0
        %2041 = vmatprep.subr.mxu0 0.0
        %2042 = vmatpush1.msra.mxu0 0.0
        %2043 = vmatprep.subr.mxu0 0.0
        %2044 = vmatpush1.msra.mxu0 0.0
        %2045 = vmatprep.subr.mxu0 0.0
        %2046 = vmatpush1.msra.mxu0 0.0
        %2047 = vmatprep.subr.mxu0 0.0
        %2048 = vmatpush1.msra.mxu0 0.0
        %2049 = vmatprep.subr.mxu0 0.0
        %2050 = vmatpush1.msra.mxu0 0.0
        %2051 = vmatprep.subr.mxu0 0.0
        %2052 = vmatpush1.msra.mxu0 0.0
        %2053 = vmatprep.subr.mxu0 0.0
        %2054 = vmatpush1.msra.mxu0 0.0
        %2055 = vmatprep.subr.mxu0 0.0
        %2056 = vmatpush1.msra.mxu0 0.0
        %2057 = vmatprep.subr.mxu0 0.0
        %2058 = vmatpush1.msra.mxu0 0.0
        %2059 = vmatprep.subr.mxu0 0.0
        %2060 = vmatpush1.msra.mxu0 0.0
        %2061 = vmatprep.subr.mxu0 0.0
        %2062 = vmatpush1.msra.mxu0 0.0
        %2063 = vmatprep.subr.mxu0 0.0
        %2064 = vmatpush1.msra.mxu0 0.0
        %2065 = vmatprep.subr.mxu0 0.0
        %2066 = vmatpush1.msra.mxu0 0.0
        %2067 = vmatprep.subr.mxu0 0.0
        %2068 = vmatpush1.msra.mxu0 0.0
        %2069 = vmatprep.subr.mxu0 0.0
        %2070 = vmatpush1.msra.mxu0 0.0
        %2071 = vmatprep.subr.mxu0 0.0
        %2072 = vmatpush1.msra.mxu0 0.0
        %2073 = vmatprep.subr.mxu0 0.0
        %2074 = vmatpush1.msra.mxu0 0.0
        %2075 = vmatprep.subr.mxu0 0.0
        %2076 = vmatpush1.msra.mxu0 0.0
        %2077 = vmatprep.subr.mxu0 0.0
        %2078 = vmatpush1.msra.mxu0 0.0
        %2079 = vmatprep.subr.mxu0 0.0
        %2080 = vmatpush1.msra.mxu0 0.0
        %2081 = vmatprep.mubr.f32.mxu0 0.0
        %2082 = vmatmul.mubr.f32.gmra.mrb[0].mxu0 %v1967
        %v2083 = vpop.f32.mrb[0].mxu0
        %v2084 = vadd.f32 0.0, %v2083
        %v2085 = vpop.f32.mrb[0].mxu0
        %2086 = vmatprep.mubr.f32.mxu0 0.0
        %2087 = vmatmul.mubr.f32.gmra.mrb[0].mxu0 %v1970
        %v2088 = vpop.f32.mrb[0].mxu0
        %v2089 = vadd.f32 0.0, %v2088
        %v2090 = vpop.f32.mrb[0].mxu0
        %2091 = vmatprep.mubr.f32.mxu0 0.0
        %2092 = vmatmul.mubr.f32.gmra.mrb[0].mxu0 %v1973
        %v2093 = vpop.f32.mrb[0].mxu0
        %v2094 = vadd.f32 0.0, %v2093
        %v2095 = vpop.f32.mrb[0].mxu0
        %2096 = vmatprep.mubr.f32.mxu0 0.0
        %2097 = vmatmul.mubr.f32.gmra.mrb[0].mxu0 %v1976
        %v2098 = vpop.f32.mrb[0].mxu0
        %v2099 = vadd.f32 0.0, %v2098
        %v2100 = vpop.f32.mrb[0].mxu0
        %2101 = vmatprep.mubr.f32.mxu0 0.0
        %2102 = vmatmul.mubr.f32.gmra.mrb[0].mxu0 %v1979
        %v2103 = vpop.f32.mrb[0].mxu0
        %v2104 = vadd.f32 0.0, %v2103
        %v2105 = vpop.f32.mrb[0].mxu0
        %2106 = vmatprep.mubr.f32.mxu0 0.0
        %2107 = vmatmul.mubr.f32.gmra.mrb[0].mxu0 %v1982
        %v2108 = vpop.f32.mrb[0].mxu0
        %v2109 = vadd.f32 0.0, %v2108
        %v2110 = vpop.f32.mrb[0].mxu0
        %2111 = vmatprep.mubr.f32.mxu0 0.0
        %2112 = vmatmul.mubr.f32.gmra.mrb[0].mxu0 %v1985
        %v2113 = vpop.f32.mrb[0].mxu0
        %v2114 = vadd.f32 0.0, %v2113
        %v2115 = vpop.f32.mrb[0].mxu0
        %2116 = vmatprep.mubr.f32.mxu0 0.0
        %2117 = vmatmul.mubr.f32.gmra.mrb[0].mxu0 %v1988
        %v2118 = vpop.f32.mrb[0].mxu0
        %v2119 = vadd.f32 0.0, %v2118
        %v2120 = vpop.f32.mrb[0].mxu0
        %2121 = vmatprep.mubr.f32.mxu0 0.0
        %2122 = vmatmul.mubr.f32.gmra.mrb[0].mxu0 %v1991
        %v2123 = vpop.f32.mrb[0].mxu0
        %v2124 = vadd.f32 0.0, %v2123
        %v2125 = vpop.f32.mrb[0].mxu0
        %2126 = vmatprep.mubr.f32.mxu0 0.0
        %2127 = vmatmul.mubr.f32.gmra.mrb[0].mxu0 %v1994
        %v2128 = vpop.f32.mrb[0].mxu0
        %v2129 = vadd.f32 0.0, %v2128
        %v2130 = vpop.f32.mrb[0].mxu0
        %2131 = vmatprep.mubr.f32.mxu0 0.0
        %2132 = vmatmul.mubr.f32.gmra.mrb[0].mxu0 %v1997
        %v2133 = vpop.f32.mrb[0].mxu0
        %v2134 = vadd.f32 0.0, %v2133
        %v2135 = vpop.f32.mrb[0].mxu0
        %2136 = vmatprep.mubr.f32.mxu0 0.0
        %2137 = vmatmul.mubr.f32.gmra.mrb[0].mxu0 %v2000
        %v2138 = vpop.f32.mrb[0].mxu0
        %v2139 = vadd.f32 0.0, %v2138
        %v2140 = vpop.f32.mrb[0].mxu0
        %2141 = vmatprep.mubr.f32.mxu0 0.0
        %2142 = vmatmul.mubr.f32.gmra.mrb[0].mxu0 %v2003
        %v2143 = vpop.f32.mrb[0].mxu0
        %v2144 = vadd.f32 0.0, %v2143
        %v2145 = vpop.f32.mrb[0].mxu0
        %2146 = vmatprep.mubr.f32.mxu0 0.0
        %2147 = vmatmul.mubr.f32.gmra.mrb[0].mxu0 %v2006
        %v2148 = vpop.f32.mrb[0].mxu0
        %v2149 = vadd.f32 0.0, %v2148
        %v2150 = vpop.f32.mrb[0].mxu0
        %2151 = vmatprep.mubr.f32.mxu0 0.0
        %2152 = vmatmul.mubr.f32.gmra.mrb[0].mxu0 %v2009
        %v2153 = vpop.f32.mrb[0].mxu0
        %v2154 = vadd.f32 0.0, %v2153
        %v2155 = vpop.f32.mrb[0].mxu0
        %2156 = vmatprep.mubr.f32.mxu0 0.0
        %2157 = vmatmul.mubr.f32.gmra.mrb[0].mxu0 %v2012
        %v2158 = vpop.f32.mrb[0].mxu0
        %v2159 = vadd.f32 0.0, %v2158
        %v2160 = vpop.f32.mrb[0].mxu0
        %2161 = vdwg.mxu0
        %v2162 = vmul.f32 %v1948, %v1948
        %v2163 = vmul.f32 %v1949, %v1949
        %v2164 = vmul.f32 %v1950, %v1950
        %v2165 = vmul.f32 %v1951, %v1951
        %v2166 = vmul.f32 %v1952, %v1952
        %v2167 = vmul.f32 %v1953, %v1953
        %v2168 = vmul.f32 %v1954, %v1954
        %v2169 = vmul.f32 %v1955, %v1955
        %v2170 = vmul.f32 %v1956, %v1956
        %v2171 = vmul.f32 %v1957, %v1957
        %v2172 = vmul.f32 %v1958, %v1958
        %v2173 = vmul.f32 %v1959, %v1959
        %v2174 = vmul.f32 %v1960, %v1960
        %v2175 = vmul.f32 %v1961, %v1961
        %v2176 = vmul.f32 %v1962, %v1962
        %v2177 = vmul.f32 %v1963, %v1963
        %v2178 = vsel %vm475, %v2162, 0.0
        %2179 = vadd.xlane.f32.xlu0 %v2178
        %v2180 = vpop.xlane.xlu0 %2179
        %v2181 = vsel %vm475, %v2163, 0.0
        %2182 = vadd.xlane.f32.xlu0 %v2181
        %v2183 = vpop.xlane.xlu0 %2182
        %v2184 = vsel %vm475, %v2164, 0.0
        %2185 = vadd.xlane.f32.xlu0 %v2184
        %v2186 = vpop.xlane.xlu0 %2185
        %v2187 = vsel %vm475, %v2165, 0.0
        %2188 = vadd.xlane.f32.xlu0 %v2187
        %v2189 = vpop.xlane.xlu0 %2188
        %v2190 = vsel %vm475, %v2166, 0.0
        %2191 = vadd.xlane.f32.xlu0 %v2190
        %v2192 = vpop.xlane.xlu0 %2191
        %v2193 = vsel %vm475, %v2167, 0.0
        %2194 = vadd.xlane.f32.xlu0 %v2193
        %v2195 = vpop.xlane.xlu0 %2194
        %v2196 = vsel %vm475, %v2168, 0.0
        %2197 = vadd.xlane.f32.xlu0 %v2196
        %v2198 = vpop.xlane.xlu0 %2197
        %v2199 = vsel %vm475, %v2169, 0.0
        %2200 = vadd.xlane.f32.xlu0 %v2199
        %v2201 = vpop.xlane.xlu0 %2200
        %v2202 = vsel %vm475, %v2170, 0.0
        %2203 = vadd.xlane.f32.xlu0 %v2202
        %v2204 = vpop.xlane.xlu0 %2203
        %v2205 = vsel %vm475, %v2171, 0.0
        %2206 = vadd.xlane.f32.xlu0 %v2205
        %v2207 = vpop.xlane.xlu0 %2206
        %v2208 = vsel %vm475, %v2172, 0.0
        %2209 = vadd.xlane.f32.xlu0 %v2208
        %v2210 = vpop.xlane.xlu0 %2209
        %v2211 = vsel %vm475, %v2173, 0.0
        %2212 = vadd.xlane.f32.xlu0 %v2211
        %v2213 = vpop.xlane.xlu0 %2212
        %v2214 = vsel %vm475, %v2174, 0.0
        %2215 = vadd.xlane.f32.xlu0 %v2214
        %v2216 = vpop.xlane.xlu0 %2215
        %v2217 = vsel %vm475, %v2175, 0.0
        %2218 = vadd.xlane.f32.xlu0 %v2217
        %v2219 = vpop.xlane.xlu0 %2218
        %v2220 = vsel %vm475, %v2176, 0.0
        %2221 = vadd.xlane.f32.xlu0 %v2220
        %v2222 = vpop.xlane.xlu0 %2221
        %v2223 = vsel %vm475, %v2177, 0.0
        %2224 = vadd.xlane.f32.xlu0 %v2223
        %v2225 = vpop.xlane.xlu0 %2224
        %v2226 = vadd.f32 %v1916, %v2084
        %v2227 = vadd.f32 %v1917, %v2089
        %v2228 = vadd.f32 %v1918, %v2094
        %v2229 = vadd.f32 %v1919, %v2099
        %v2230 = vadd.f32 %v1920, %v2104
        %v2231 = vadd.f32 %v1921, %v2109
        %v2232 = vadd.f32 %v1922, %v2114
        %v2233 = vadd.f32 %v1923, %v2119
        %v2234 = vadd.f32 %v1924, %v2124
        %v2235 = vadd.f32 %v1925, %v2129
        %v2236 = vadd.f32 %v1926, %v2134
        %v2237 = vadd.f32 %v1927, %v2139
        %v2238 = vadd.f32 %v1928, %v2144
        %v2239 = vadd.f32 %v1929, %v2149
        %v2240 = vadd.f32 %v1930, %v2154
        %v2241 = vadd.f32 %v1931, %v2159
        %v2242 = vadd.f32 %v1932, %v2180
        %v2243 = vadd.f32 %v1933, %v2183
        %v2244 = vadd.f32 %v1934, %v2186
        %v2245 = vadd.f32 %v1935, %v2189
        %v2246 = vadd.f32 %v1936, %v2192
        %v2247 = vadd.f32 %v1937, %v2195
        %v2248 = vadd.f32 %v1938, %v2198
        %v2249 = vadd.f32 %v1939, %v2201
        %v2250 = vadd.f32 %v1940, %v2204
        %v2251 = vadd.f32 %v1941, %v2207
        %v2252 = vadd.f32 %v1942, %v2210
        %v2253 = vadd.f32 %v1943, %v2213
        %v2254 = vadd.f32 %v1944, %v2216
        %v2255 = vadd.f32 %v1945, %v2219
        %v2256 = vadd.f32 %v1946, %v2222
        %v2257 = vadd.f32 %v1947, %v2225
        %s2258 = sadd.s32 %s438, 2
        %s2259 = smul.u32 %s2258, 24
        %s2260 = scalar_lea.vmem %s405, %s2259
        %v2261 = vld [vmem:[%s2260] sm:$0xff]
        %v2262 = vld [vmem:[%s2260 + $0x8] sm:$0xff]
        %v2263 = vld [vmem:[%s2260 + $0x18] sm:$0xff]
        %v2264 = vld [vmem:[%s2260 + $0x20] sm:$0xff]
        %v2265 = vld [vmem:[%s2260 + $0x30] sm:$0xff]
        %v2266 = vld [vmem:[%s2260 + $0x38] sm:$0xff]
        %v2267 = vld [vmem:[%s2260 + $0x48] sm:$0xff]
        %v2268 = vld [vmem:[%s2260 + $0x50] sm:$0xff]
        %v2269 = vld [vmem:[%s2260 + $0x60] sm:$0xff]
        %v2270 = vld [vmem:[%s2260 + $0x68] sm:$0xff]
        %v2271 = vld [vmem:[%s2260 + $0x78] sm:$0xff]
        %v2272 = vld [vmem:[%s2260 + $0x80] sm:$0xff]
        %v2273 = vld [vmem:[%s2260 + $0x90] sm:$0xff]
        %v2274 = vld [vmem:[%s2260 + $0x98] sm:$0xff]
        %v2275 = vld [vmem:[%s2260 + $0xa8] sm:$0xff]
        %v2276 = vld [vmem:[%s2260 + $0xb0] sm:$0xff]
        %s2277 = scalar_lea.vmem %s2, 24
        %v2278 = vld [vmem:[%s2277] sm:$0xf]
        %v2280 = vsel %vm475, %v2261, 0
        %v2283 = vsel %vm475, %v2262, 0
        %v2286 = vsel %vm475, %v2263, 0
        %v2289 = vsel %vm475, %v2264, 0
        %v2292 = vsel %vm475, %v2265, 0
        %v2295 = vsel %vm475, %v2266, 0
        %v2298 = vsel %vm475, %v2267, 0
        %v2301 = vsel %vm475, %v2268, 0
        %v2304 = vsel %vm475, %v2269, 0
        %v2307 = vsel %vm475, %v2270, 0
        %v2310 = vsel %vm475, %v2271, 0
        %v2313 = vsel %vm475, %v2272, 0
        %v2316 = vsel %vm475, %v2273, 0
        %v2319 = vsel %vm475, %v2274, 0
        %v2322 = vsel %vm475, %v2275, 0
        %v2325 = vsel %vm475, %v2276, 0
        %v2328 = vsel %vm590, %v2278, 0
        %2330 = vmatprep.subr.mxu0 0.0
        %2331 = vmatpush1.msra.mxu0 %v2328
        %2332 = vmatprep.subr.mxu0 0.0
        %2333 = vmatpush1.msra.mxu0 0.0
        %2334 = vmatprep.subr.mxu0 0.0
        %2335 = vmatpush1.msra.mxu0 0.0
        %2336 = vmatprep.subr.mxu0 0.0
        %2337 = vmatpush1.msra.mxu0 0.0
        %2338 = vmatprep.subr.mxu0 0.0
        %2339 = vmatpush1.msra.mxu0 0.0
        %2340 = vmatprep.subr.mxu0 0.0
        %2341 = vmatpush1.msra.mxu0 0.0
        %2342 = vmatprep.subr.mxu0 0.0
        %2343 = vmatpush1.msra.mxu0 0.0
        %2344 = vmatprep.subr.mxu0 0.0
        %2345 = vmatpush1.msra.mxu0 0.0
        %2346 = vmatprep.subr.mxu0 0.0
        %2347 = vmatpush1.msra.mxu0 0.0
        %2348 = vmatprep.subr.mxu0 0.0
        %2349 = vmatpush1.msra.mxu0 0.0
        %2350 = vmatprep.subr.mxu0 0.0
        %2351 = vmatpush1.msra.mxu0 0.0
        %2352 = vmatprep.subr.mxu0 0.0
        %2353 = vmatpush1.msra.mxu0 0.0
        %2354 = vmatprep.subr.mxu0 0.0
        %2355 = vmatpush1.msra.mxu0 0.0
        %2356 = vmatprep.subr.mxu0 0.0
        %2357 = vmatpush1.msra.mxu0 0.0
        %2358 = vmatprep.subr.mxu0 0.0
        %2359 = vmatpush1.msra.mxu0 0.0
        %2360 = vmatprep.subr.mxu0 0.0
        %2361 = vmatpush1.msra.mxu0 0.0
        %2362 = vmatprep.subr.mxu0 0.0
        %2363 = vmatpush1.msra.mxu0 0.0
        %2364 = vmatprep.subr.mxu0 0.0
        %2365 = vmatpush1.msra.mxu0 0.0
        %2366 = vmatprep.subr.mxu0 0.0
        %2367 = vmatpush1.msra.mxu0 0.0
        %2368 = vmatprep.subr.mxu0 0.0
        %2369 = vmatpush1.msra.mxu0 0.0
        %2370 = vmatprep.subr.mxu0 0.0
        %2371 = vmatpush1.msra.mxu0 0.0
        %2372 = vmatprep.subr.mxu0 0.0
        %2373 = vmatpush1.msra.mxu0 0.0
        %2374 = vmatprep.subr.mxu0 0.0
        %2375 = vmatpush1.msra.mxu0 0.0
        %2376 = vmatprep.subr.mxu0 0.0
        %2377 = vmatpush1.msra.mxu0 0.0
        %2378 = vmatprep.subr.mxu0 0.0
        %2379 = vmatpush1.msra.mxu0 0.0
        %2380 = vmatprep.subr.mxu0 0.0
        %2381 = vmatpush1.msra.mxu0 0.0
        %2382 = vmatprep.subr.mxu0 0.0
        %2383 = vmatpush1.msra.mxu0 0.0
        %2384 = vmatprep.subr.mxu0 0.0
        %2385 = vmatpush1.msra.mxu0 0.0
        %2386 = vmatprep.subr.mxu0 0.0
        %2387 = vmatpush1.msra.mxu0 0.0
        %2388 = vmatprep.subr.mxu0 0.0
        %2389 = vmatpush1.msra.mxu0 0.0
        %2390 = vmatprep.subr.mxu0 0.0
        %2391 = vmatpush1.msra.mxu0 0.0
        %2392 = vmatprep.subr.mxu0 0.0
        %2393 = vmatpush1.msra.mxu0 0.0
        %2394 = vmatprep.mubr.f32.mxu0 0.0
        %2395 = vmatmul.mubr.f32.gmra.mrb[0].mxu0 %v2280
        %v2396 = vpop.f32.mrb[0].mxu0
        %v2397 = vadd.f32 0.0, %v2396
        %v2398 = vpop.f32.mrb[0].mxu0
        %2399 = vmatprep.mubr.f32.mxu0 0.0
        %2400 = vmatmul.mubr.f32.gmra.mrb[0].mxu0 %v2283
        %v2401 = vpop.f32.mrb[0].mxu0
        %v2402 = vadd.f32 0.0, %v2401
        %v2403 = vpop.f32.mrb[0].mxu0
        %2404 = vmatprep.mubr.f32.mxu0 0.0
        %2405 = vmatmul.mubr.f32.gmra.mrb[0].mxu0 %v2286
        %v2406 = vpop.f32.mrb[0].mxu0
        %v2407 = vadd.f32 0.0, %v2406
        %v2408 = vpop.f32.mrb[0].mxu0
        %2409 = vmatprep.mubr.f32.mxu0 0.0
        %2410 = vmatmul.mubr.f32.gmra.mrb[0].mxu0 %v2289
        %v2411 = vpop.f32.mrb[0].mxu0
        %v2412 = vadd.f32 0.0, %v2411
        %v2413 = vpop.f32.mrb[0].mxu0
        %2414 = vmatprep.mubr.f32.mxu0 0.0
        %2415 = vmatmul.mubr.f32.gmra.mrb[0].mxu0 %v2292
        %v2416 = vpop.f32.mrb[0].mxu0
        %v2417 = vadd.f32 0.0, %v2416
        %v2418 = vpop.f32.mrb[0].mxu0
        %2419 = vmatprep.mubr.f32.mxu0 0.0
        %2420 = vmatmul.mubr.f32.gmra.mrb[0].mxu0 %v2295
        %v2421 = vpop.f32.mrb[0].mxu0
        %v2422 = vadd.f32 0.0, %v2421
        %v2423 = vpop.f32.mrb[0].mxu0
        %2424 = vmatprep.mubr.f32.mxu0 0.0
        %2425 = vmatmul.mubr.f32.gmra.mrb[0].mxu0 %v2298
        %v2426 = vpop.f32.mrb[0].mxu0
        %v2427 = vadd.f32 0.0, %v2426
        %v2428 = vpop.f32.mrb[0].mxu0
        %2429 = vmatprep.mubr.f32.mxu0 0.0
        %2430 = vmatmul.mubr.f32.gmra.mrb[0].mxu0 %v2301
        %v2431 = vpop.f32.mrb[0].mxu0
        %v2432 = vadd.f32 0.0, %v2431
        %v2433 = vpop.f32.mrb[0].mxu0
        %2434 = vmatprep.mubr.f32.mxu0 0.0
        %2435 = vmatmul.mubr.f32.gmra.mrb[0].mxu0 %v2304
        %v2436 = vpop.f32.mrb[0].mxu0
        %v2437 = vadd.f32 0.0, %v2436
        %v2438 = vpop.f32.mrb[0].mxu0
        %2439 = vmatprep.mubr.f32.mxu0 0.0
        %2440 = vmatmul.mubr.f32.gmra.mrb[0].mxu0 %v2307
        %v2441 = vpop.f32.mrb[0].mxu0
        %v2442 = vadd.f32 0.0, %v2441
        %v2443 = vpop.f32.mrb[0].mxu0
        %2444 = vmatprep.mubr.f32.mxu0 0.0
        %2445 = vmatmul.mubr.f32.gmra.mrb[0].mxu0 %v2310
        %v2446 = vpop.f32.mrb[0].mxu0
        %v2447 = vadd.f32 0.0, %v2446
        %v2448 = vpop.f32.mrb[0].mxu0
        %2449 = vmatprep.mubr.f32.mxu0 0.0
        %2450 = vmatmul.mubr.f32.gmra.mrb[0].mxu0 %v2313
        %v2451 = vpop.f32.mrb[0].mxu0
        %v2452 = vadd.f32 0.0, %v2451
        %v2453 = vpop.f32.mrb[0].mxu0
        %2454 = vmatprep.mubr.f32.mxu0 0.0
        %2455 = vmatmul.mubr.f32.gmra.mrb[0].mxu0 %v2316
        %v2456 = vpop.f32.mrb[0].mxu0
        %v2457 = vadd.f32 0.0, %v2456
        %v2458 = vpop.f32.mrb[0].mxu0
        %2459 = vmatprep.mubr.f32.mxu0 0.0
        %2460 = vmatmul.mubr.f32.gmra.mrb[0].mxu0 %v2319
        %v2461 = vpop.f32.mrb[0].mxu0
        %v2462 = vadd.f32 0.0, %v2461
        %v2463 = vpop.f32.mrb[0].mxu0
        %2464 = vmatprep.mubr.f32.mxu0 0.0
        %2465 = vmatmul.mubr.f32.gmra.mrb[0].mxu0 %v2322
        %v2466 = vpop.f32.mrb[0].mxu0
        %v2467 = vadd.f32 0.0, %v2466
        %v2468 = vpop.f32.mrb[0].mxu0
        %2469 = vmatprep.mubr.f32.mxu0 0.0
        %2470 = vmatmul.mubr.f32.gmra.mrb[0].mxu0 %v2325
        %v2471 = vpop.f32.mrb[0].mxu0
        %v2472 = vadd.f32 0.0, %v2471
        %v2473 = vpop.f32.mrb[0].mxu0
        %2474 = vdwg.mxu0
        %v2475 = vmul.f32 %v2261, %v2261
        %v2476 = vmul.f32 %v2262, %v2262
        %v2477 = vmul.f32 %v2263, %v2263
        %v2478 = vmul.f32 %v2264, %v2264
        %v2479 = vmul.f32 %v2265, %v2265
        %v2480 = vmul.f32 %v2266, %v2266
        %v2481 = vmul.f32 %v2267, %v2267
        %v2482 = vmul.f32 %v2268, %v2268
        %v2483 = vmul.f32 %v2269, %v2269
        %v2484 = vmul.f32 %v2270, %v2270
        %v2485 = vmul.f32 %v2271, %v2271
        %v2486 = vmul.f32 %v2272, %v2272
        %v2487 = vmul.f32 %v2273, %v2273
        %v2488 = vmul.f32 %v2274, %v2274
        %v2489 = vmul.f32 %v2275, %v2275
        %v2490 = vmul.f32 %v2276, %v2276
        %v2491 = vsel %vm475, %v2475, 0.0
        %2492 = vadd.xlane.f32.xlu0 %v2491
        %v2493 = vpop.xlane.xlu0 %2492
        %v2494 = vsel %vm475, %v2476, 0.0
        %2495 = vadd.xlane.f32.xlu0 %v2494
        %v2496 = vpop.xlane.xlu0 %2495
        %v2497 = vsel %vm475, %v2477, 0.0
        %2498 = vadd.xlane.f32.xlu0 %v2497
        %v2499 = vpop.xlane.xlu0 %2498
        %v2500 = vsel %vm475, %v2478, 0.0
        %2501 = vadd.xlane.f32.xlu0 %v2500
        %v2502 = vpop.xlane.xlu0 %2501
        %v2503 = vsel %vm475, %v2479, 0.0
        %2504 = vadd.xlane.f32.xlu0 %v2503
        %v2505 = vpop.xlane.xlu0 %2504
        %v2506 = vsel %vm475, %v2480, 0.0
        %2507 = vadd.xlane.f32.xlu0 %v2506
        %v2508 = vpop.xlane.xlu0 %2507
        %v2509 = vsel %vm475, %v2481, 0.0
        %2510 = vadd.xlane.f32.xlu0 %v2509
        %v2511 = vpop.xlane.xlu0 %2510
        %v2512 = vsel %vm475, %v2482, 0.0
        %2513 = vadd.xlane.f32.xlu0 %v2512
        %v2514 = vpop.xlane.xlu0 %2513
        %v2515 = vsel %vm475, %v2483, 0.0
        %2516 = vadd.xlane.f32.xlu0 %v2515
        %v2517 = vpop.xlane.xlu0 %2516
        %v2518 = vsel %vm475, %v2484, 0.0
        %2519 = vadd.xlane.f32.xlu0 %v2518
        %v2520 = vpop.xlane.xlu0 %2519
        %v2521 = vsel %vm475, %v2485, 0.0
        %2522 = vadd.xlane.f32.xlu0 %v2521
        %v2523 = vpop.xlane.xlu0 %2522
        %v2524 = vsel %vm475, %v2486, 0.0
        %2525 = vadd.xlane.f32.xlu0 %v2524
        %v2526 = vpop.xlane.xlu0 %2525
        %v2527 = vsel %vm475, %v2487, 0.0
        %2528 = vadd.xlane.f32.xlu0 %v2527
        %v2529 = vpop.xlane.xlu0 %2528
        %v2530 = vsel %vm475, %v2488, 0.0
        %2531 = vadd.xlane.f32.xlu0 %v2530
        %v2532 = vpop.xlane.xlu0 %2531
        %v2533 = vsel %vm475, %v2489, 0.0
        %2534 = vadd.xlane.f32.xlu0 %v2533
        %v2535 = vpop.xlane.xlu0 %2534
        %v2536 = vsel %vm475, %v2490, 0.0
        %2537 = vadd.xlane.f32.xlu0 %v2536
        %v2538 = vpop.xlane.xlu0 %2537
        %v2539 = vadd.f32 %v2226, %v2397
        %v2540 = vadd.f32 %v2227, %v2402
        %v2541 = vadd.f32 %v2228, %v2407
        %v2542 = vadd.f32 %v2229, %v2412
        %v2543 = vadd.f32 %v2230, %v2417
        %v2544 = vadd.f32 %v2231, %v2422
        %v2545 = vadd.f32 %v2232, %v2427
        %v2546 = vadd.f32 %v2233, %v2432
        %v2547 = vadd.f32 %v2234, %v2437
        %v2548 = vadd.f32 %v2235, %v2442
        %v2549 = vadd.f32 %v2236, %v2447
        %v2550 = vadd.f32 %v2237, %v2452
        %v2551 = vadd.f32 %v2238, %v2457
        %v2552 = vadd.f32 %v2239, %v2462
        %v2553 = vadd.f32 %v2240, %v2467
        %v2554 = vadd.f32 %v2241, %v2472
        %v2555 = vadd.f32 %v2242, %v2493
        %v2556 = vadd.f32 %v2243, %v2496
        %v2557 = vadd.f32 %v2244, %v2499
        %v2558 = vadd.f32 %v2245, %v2502
        %v2559 = vadd.f32 %v2246, %v2505
        %v2560 = vadd.f32 %v2247, %v2508
        %v2561 = vadd.f32 %v2248, %v2511
        %v2562 = vadd.f32 %v2249, %v2514
        %v2563 = vadd.f32 %v2250, %v2517
        %v2564 = vadd.f32 %v2251, %v2520
        %v2565 = vadd.f32 %v2252, %v2523
        %v2566 = vadd.f32 %v2253, %v2526
        %v2567 = vadd.f32 %v2254, %v2529
        %v2568 = vadd.f32 %v2255, %v2532
        %v2569 = vadd.f32 %v2256, %v2535
        %v2570 = vadd.f32 %v2257, %v2538
        %v2571 = vld [vmem:[%s2260 + $0x1] sm:$0xff]
        %v2572 = vld [vmem:[%s2260 + $0x9] sm:$0xff]
        %v2573 = vld [vmem:[%s2260 + $0x19] sm:$0xff]
        %v2574 = vld [vmem:[%s2260 + $0x21] sm:$0xff]
        %v2575 = vld [vmem:[%s2260 + $0x31] sm:$0xff]
        %v2576 = vld [vmem:[%s2260 + $0x39] sm:$0xff]
        %v2577 = vld [vmem:[%s2260 + $0x49] sm:$0xff]
        %v2578 = vld [vmem:[%s2260 + $0x51] sm:$0xff]
        %v2579 = vld [vmem:[%s2260 + $0x61] sm:$0xff]
        %v2580 = vld [vmem:[%s2260 + $0x69] sm:$0xff]
        %v2581 = vld [vmem:[%s2260 + $0x79] sm:$0xff]
        %v2582 = vld [vmem:[%s2260 + $0x81] sm:$0xff]
        %v2583 = vld [vmem:[%s2260 + $0x91] sm:$0xff]
        %v2584 = vld [vmem:[%s2260 + $0x99] sm:$0xff]
        %v2585 = vld [vmem:[%s2260 + $0xa9] sm:$0xff]
        %v2586 = vld [vmem:[%s2260 + $0xb1] sm:$0xff]
        %s2587 = scalar_lea.vmem %s2, 28
        %v2588 = vld [vmem:[%s2587] sm:$0xf]
        %v2590 = vsel %vm475, %v2571, 0
        %v2593 = vsel %vm475, %v2572, 0
        %v2596 = vsel %vm475, %v2573, 0
        %v2599 = vsel %vm475, %v2574, 0
        %v2602 = vsel %vm475, %v2575, 0
        %v2605 = vsel %vm475, %v2576, 0
        %v2608 = vsel %vm475, %v2577, 0
        %v2611 = vsel %vm475, %v2578, 0
        %v2614 = vsel %vm475, %v2579, 0
        %v2617 = vsel %vm475, %v2580, 0
        %v2620 = vsel %vm475, %v2581, 0
        %v2623 = vsel %vm475, %v2582, 0
        %v2626 = vsel %vm475, %v2583, 0
        %v2629 = vsel %vm475, %v2584, 0
        %v2632 = vsel %vm475, %v2585, 0
        %v2635 = vsel %vm475, %v2586, 0
        %v2638 = vsel %vm590, %v2588, 0
        %2640 = vmatprep.subr.mxu0 0.0
        %2641 = vmatpush1.msra.mxu0 %v2638
        %2642 = vmatprep.subr.mxu0 0.0
        %2643 = vmatpush1.msra.mxu0 0.0
        %2644 = vmatprep.subr.mxu0 0.0
        %2645 = vmatpush1.msra.mxu0 0.0
        %2646 = vmatprep.subr.mxu0 0.0
        %2647 = vmatpush1.msra.mxu0 0.0
        %2648 = vmatprep.subr.mxu0 0.0
        %2649 = vmatpush1.msra.mxu0 0.0
        %2650 = vmatprep.subr.mxu0 0.0
        %2651 = vmatpush1.msra.mxu0 0.0
        %2652 = vmatprep.subr.mxu0 0.0
        %2653 = vmatpush1.msra.mxu0 0.0
        %2654 = vmatprep.subr.mxu0 0.0
        %2655 = vmatpush1.msra.mxu0 0.0
        %2656 = vmatprep.subr.mxu0 0.0
        %2657 = vmatpush1.msra.mxu0 0.0
        %2658 = vmatprep.subr.mxu0 0.0
        %2659 = vmatpush1.msra.mxu0 0.0
        %2660 = vmatprep.subr.mxu0 0.0
        %2661 = vmatpush1.msra.mxu0 0.0
        %2662 = vmatprep.subr.mxu0 0.0
        %2663 = vmatpush1.msra.mxu0 0.0
        %2664 = vmatprep.subr.mxu0 0.0
        %2665 = vmatpush1.msra.mxu0 0.0
        %2666 = vmatprep.subr.mxu0 0.0
        %2667 = vmatpush1.msra.mxu0 0.0
        %2668 = vmatprep.subr.mxu0 0.0
        %2669 = vmatpush1.msra.mxu0 0.0
        %2670 = vmatprep.subr.mxu0 0.0
        %2671 = vmatpush1.msra.mxu0 0.0
        %2672 = vmatprep.subr.mxu0 0.0
        %2673 = vmatpush1.msra.mxu0 0.0
        %2674 = vmatprep.subr.mxu0 0.0
        %2675 = vmatpush1.msra.mxu0 0.0
        %2676 = vmatprep.subr.mxu0 0.0
        %2677 = vmatpush1.msra.mxu0 0.0
        %2678 = vmatprep.subr.mxu0 0.0
        %2679 = vmatpush1.msra.mxu0 0.0
        %2680 = vmatprep.subr.mxu0 0.0
        %2681 = vmatpush1.msra.mxu0 0.0
        %2682 = vmatprep.subr.mxu0 0.0
        %2683 = vmatpush1.msra.mxu0 0.0
        %2684 = vmatprep.subr.mxu0 0.0
        %2685 = vmatpush1.msra.mxu0 0.0
        %2686 = vmatprep.subr.mxu0 0.0
        %2687 = vmatpush1.msra.mxu0 0.0
        %2688 = vmatprep.subr.mxu0 0.0
        %2689 = vmatpush1.msra.mxu0 0.0
        %2690 = vmatprep.subr.mxu0 0.0
        %2691 = vmatpush1.msra.mxu0 0.0
        %2692 = vmatprep.subr.mxu0 0.0
        %2693 = vmatpush1.msra.mxu0 0.0
        %2694 = vmatprep.subr.mxu0 0.0
        %2695 = vmatpush1.msra.mxu0 0.0
        %2696 = vmatprep.subr.mxu0 0.0
        %2697 = vmatpush1.msra.mxu0 0.0
        %2698 = vmatprep.subr.mxu0 0.0
        %2699 = vmatpush1.msra.mxu0 0.0
        %2700 = vmatprep.subr.mxu0 0.0
        %2701 = vmatpush1.msra.mxu0 0.0
        %2702 = vmatprep.subr.mxu0 0.0
        %2703 = vmatpush1.msra.mxu0 0.0
        %2704 = vmatprep.mubr.f32.mxu0 0.0
        %2705 = vmatmul.mubr.f32.gmra.mrb[0].mxu0 %v2590
        %v2706 = vpop.f32.mrb[0].mxu0
        %v2707 = vadd.f32 0.0, %v2706
        %v2708 = vpop.f32.mrb[0].mxu0
        %2709 = vmatprep.mubr.f32.mxu0 0.0
        %2710 = vmatmul.mubr.f32.gmra.mrb[0].mxu0 %v2593
        %v2711 = vpop.f32.mrb[0].mxu0
        %v2712 = vadd.f32 0.0, %v2711
        %v2713 = vpop.f32.mrb[0].mxu0
        %2714 = vmatprep.mubr.f32.mxu0 0.0
        %2715 = vmatmul.mubr.f32.gmra.mrb[0].mxu0 %v2596
        %v2716 = vpop.f32.mrb[0].mxu0
        %v2717 = vadd.f32 0.0, %v2716
        %v2718 = vpop.f32.mrb[0].mxu0
        %2719 = vmatprep.mubr.f32.mxu0 0.0
        %2720 = vmatmul.mubr.f32.gmra.mrb[0].mxu0 %v2599
        %v2721 = vpop.f32.mrb[0].mxu0
        %v2722 = vadd.f32 0.0, %v2721
        %v2723 = vpop.f32.mrb[0].mxu0
        %2724 = vmatprep.mubr.f32.mxu0 0.0
        %2725 = vmatmul.mubr.f32.gmra.mrb[0].mxu0 %v2602
        %v2726 = vpop.f32.mrb[0].mxu0
        %v2727 = vadd.f32 0.0, %v2726
        %v2728 = vpop.f32.mrb[0].mxu0
        %2729 = vmatprep.mubr.f32.mxu0 0.0
        %2730 = vmatmul.mubr.f32.gmra.mrb[0].mxu0 %v2605
        %v2731 = vpop.f32.mrb[0].mxu0
        %v2732 = vadd.f32 0.0, %v2731
        %v2733 = vpop.f32.mrb[0].mxu0
        %2734 = vmatprep.mubr.f32.mxu0 0.0
        %2735 = vmatmul.mubr.f32.gmra.mrb[0].mxu0 %v2608
        %v2736 = vpop.f32.mrb[0].mxu0
        %v2737 = vadd.f32 0.0, %v2736
        %v2738 = vpop.f32.mrb[0].mxu0
        %2739 = vmatprep.mubr.f32.mxu0 0.0
        %2740 = vmatmul.mubr.f32.gmra.mrb[0].mxu0 %v2611
        %v2741 = vpop.f32.mrb[0].mxu0
        %v2742 = vadd.f32 0.0, %v2741
        %v2743 = vpop.f32.mrb[0].mxu0
        %2744 = vmatprep.mubr.f32.mxu0 0.0
        %2745 = vmatmul.mubr.f32.gmra.mrb[0].mxu0 %v2614
        %v2746 = vpop.f32.mrb[0].mxu0
        %v2747 = vadd.f32 0.0, %v2746
        %v2748 = vpop.f32.mrb[0].mxu0
        %2749 = vmatprep.mubr.f32.mxu0 0.0
        %2750 = vmatmul.mubr.f32.gmra.mrb[0].mxu0 %v2617
        %v2751 = vpop.f32.mrb[0].mxu0
        %v2752 = vadd.f32 0.0, %v2751
        %v2753 = vpop.f32.mrb[0].mxu0
        %2754 = vmatprep.mubr.f32.mxu0 0.0
        %2755 = vmatmul.mubr.f32.gmra.mrb[0].mxu0 %v2620
        %v2756 = vpop.f32.mrb[0].mxu0
        %v2757 = vadd.f32 0.0, %v2756
        %v2758 = vpop.f32.mrb[0].mxu0
        %2759 = vmatprep.mubr.f32.mxu0 0.0
        %2760 = vmatmul.mubr.f32.gmra.mrb[0].mxu0 %v2623
        %v2761 = vpop.f32.mrb[0].mxu0
        %v2762 = vadd.f32 0.0, %v2761
        %v2763 = vpop.f32.mrb[0].mxu0
        %2764 = vmatprep.mubr.f32.mxu0 0.0
        %2765 = vmatmul.mubr.f32.gmra.mrb[0].mxu0 %v2626
        %v2766 = vpop.f32.mrb[0].mxu0
        %v2767 = vadd.f32 0.0, %v2766
        %v2768 = vpop.f32.mrb[0].mxu0
        %2769 = vmatprep.mubr.f32.mxu0 0.0
        %2770 = vmatmul.mubr.f32.gmra.mrb[0].mxu0 %v2629
        %v2771 = vpop.f32.mrb[0].mxu0
        %v2772 = vadd.f32 0.0, %v2771
        %v2773 = vpop.f32.mrb[0].mxu0
        %2774 = vmatprep.mubr.f32.mxu0 0.0
        %2775 = vmatmul.mubr.f32.gmra.mrb[0].mxu0 %v2632
        %v2776 = vpop.f32.mrb[0].mxu0
        %v2777 = vadd.f32 0.0, %v2776
        %v2778 = vpop.f32.mrb[0].mxu0
        %2779 = vmatprep.mubr.f32.mxu0 0.0
        %2780 = vmatmul.mubr.f32.gmra.mrb[0].mxu0 %v2635
        %v2781 = vpop.f32.mrb[0].mxu0
        %v2782 = vadd.f32 0.0, %v2781
        %v2783 = vpop.f32.mrb[0].mxu0
        %2784 = vdwg.mxu0
        %v2785 = vmul.f32 %v2571, %v2571
        %v2786 = vmul.f32 %v2572, %v2572
        %v2787 = vmul.f32 %v2573, %v2573
        %v2788 = vmul.f32 %v2574, %v2574
        %v2789 = vmul.f32 %v2575, %v2575
        %v2790 = vmul.f32 %v2576, %v2576
        %v2791 = vmul.f32 %v2577, %v2577
        %v2792 = vmul.f32 %v2578, %v2578
        %v2793 = vmul.f32 %v2579, %v2579
        %v2794 = vmul.f32 %v2580, %v2580
        %v2795 = vmul.f32 %v2581, %v2581
        %v2796 = vmul.f32 %v2582, %v2582
        %v2797 = vmul.f32 %v2583, %v2583
        %v2798 = vmul.f32 %v2584, %v2584
        %v2799 = vmul.f32 %v2585, %v2585
        %v2800 = vmul.f32 %v2586, %v2586
        %v2801 = vsel %vm475, %v2785, 0.0
        %2802 = vadd.xlane.f32.xlu0 %v2801
        %v2803 = vpop.xlane.xlu0 %2802
        %v2804 = vsel %vm475, %v2786, 0.0
        %2805 = vadd.xlane.f32.xlu0 %v2804
        %v2806 = vpop.xlane.xlu0 %2805
        %v2807 = vsel %vm475, %v2787, 0.0
        %2808 = vadd.xlane.f32.xlu0 %v2807
        %v2809 = vpop.xlane.xlu0 %2808
        %v2810 = vsel %vm475, %v2788, 0.0
        %2811 = vadd.xlane.f32.xlu0 %v2810
        %v2812 = vpop.xlane.xlu0 %2811
        %v2813 = vsel %vm475, %v2789, 0.0
        %2814 = vadd.xlane.f32.xlu0 %v2813
        %v2815 = vpop.xlane.xlu0 %2814
        %v2816 = vsel %vm475, %v2790, 0.0
        %2817 = vadd.xlane.f32.xlu0 %v2816
        %v2818 = vpop.xlane.xlu0 %2817
        %v2819 = vsel %vm475, %v2791, 0.0
        %2820 = vadd.xlane.f32.xlu0 %v2819
        %v2821 = vpop.xlane.xlu0 %2820
        %v2822 = vsel %vm475, %v2792, 0.0
        %2823 = vadd.xlane.f32.xlu0 %v2822
        %v2824 = vpop.xlane.xlu0 %2823
        %v2825 = vsel %vm475, %v2793, 0.0
        %2826 = vadd.xlane.f32.xlu0 %v2825
        %v2827 = vpop.xlane.xlu0 %2826
        %v2828 = vsel %vm475, %v2794, 0.0
        %2829 = vadd.xlane.f32.xlu0 %v2828
        %v2830 = vpop.xlane.xlu0 %2829
        %v2831 = vsel %vm475, %v2795, 0.0
        %2832 = vadd.xlane.f32.xlu0 %v2831
        %v2833 = vpop.xlane.xlu0 %2832
        %v2834 = vsel %vm475, %v2796, 0.0
        %2835 = vadd.xlane.f32.xlu0 %v2834
        %v2836 = vpop.xlane.xlu0 %2835
        %v2837 = vsel %vm475, %v2797, 0.0
        %2838 = vadd.xlane.f32.xlu0 %v2837
        %v2839 = vpop.xlane.xlu0 %2838
        %v2840 = vsel %vm475, %v2798, 0.0
        %2841 = vadd.xlane.f32.xlu0 %v2840
        %v2842 = vpop.xlane.xlu0 %2841
        %v2843 = vsel %vm475, %v2799, 0.0
        %2844 = vadd.xlane.f32.xlu0 %v2843
        %v2845 = vpop.xlane.xlu0 %2844
        %v2846 = vsel %vm475, %v2800, 0.0
        %2847 = vadd.xlane.f32.xlu0 %v2846
        %v2848 = vpop.xlane.xlu0 %2847
        %v2849 = vadd.f32 %v2539, %v2707
        %v2850 = vadd.f32 %v2540, %v2712
        %v2851 = vadd.f32 %v2541, %v2717
        %v2852 = vadd.f32 %v2542, %v2722
        %v2853 = vadd.f32 %v2543, %v2727
        %v2854 = vadd.f32 %v2544, %v2732
        %v2855 = vadd.f32 %v2545, %v2737
        %v2856 = vadd.f32 %v2546, %v2742
        %v2857 = vadd.f32 %v2547, %v2747
        %v2858 = vadd.f32 %v2548, %v2752
        %v2859 = vadd.f32 %v2549, %v2757
        %v2860 = vadd.f32 %v2550, %v2762
        %v2861 = vadd.f32 %v2551, %v2767
        %v2862 = vadd.f32 %v2552, %v2772
        %v2863 = vadd.f32 %v2553, %v2777
        %v2864 = vadd.f32 %v2554, %v2782
        %v2865 = vadd.f32 %v2555, %v2803
        %v2866 = vadd.f32 %v2556, %v2806
        %v2867 = vadd.f32 %v2557, %v2809
        %v2868 = vadd.f32 %v2558, %v2812
        %v2869 = vadd.f32 %v2559, %v2815
        %v2870 = vadd.f32 %v2560, %v2818
        %v2871 = vadd.f32 %v2561, %v2821
        %v2872 = vadd.f32 %v2562, %v2824
        %v2873 = vadd.f32 %v2563, %v2827
        %v2874 = vadd.f32 %v2564, %v2830
        %v2875 = vadd.f32 %v2565, %v2833
        %v2876 = vadd.f32 %v2566, %v2836
        %v2877 = vadd.f32 %v2567, %v2839
        %v2878 = vadd.f32 %v2568, %v2842
        %v2879 = vadd.f32 %v2569, %v2845
        %v2880 = vadd.f32 %v2570, %v2848
        %v2881 = vld [vmem:[%s2260 + $0x2] sm:$0xff]
        %v2882 = vld [vmem:[%s2260 + $0xa] sm:$0xff]
        %v2883 = vld [vmem:[%s2260 + $0x1a] sm:$0xff]
        %v2884 = vld [vmem:[%s2260 + $0x22] sm:$0xff]
        %v2885 = vld [vmem:[%s2260 + $0x32] sm:$0xff]
        %v2886 = vld [vmem:[%s2260 + $0x3a] sm:$0xff]
        %v2887 = vld [vmem:[%s2260 + $0x4a] sm:$0xff]
        %v2888 = vld [vmem:[%s2260 + $0x52] sm:$0xff]
        %v2889 = vld [vmem:[%s2260 + $0x62] sm:$0xff]
        %v2890 = vld [vmem:[%s2260 + $0x6a] sm:$0xff]
        %v2891 = vld [vmem:[%s2260 + $0x7a] sm:$0xff]
        %v2892 = vld [vmem:[%s2260 + $0x82] sm:$0xff]
        %v2893 = vld [vmem:[%s2260 + $0x92] sm:$0xff]
        %v2894 = vld [vmem:[%s2260 + $0x9a] sm:$0xff]
        %v2895 = vld [vmem:[%s2260 + $0xaa] sm:$0xff]
        %v2896 = vld [vmem:[%s2260 + $0xb2] sm:$0xff]
        %s2897 = scalar_lea.vmem %s2, 32
        %v2898 = vld [vmem:[%s2897] sm:$0xf]
        %v2900 = vsel %vm475, %v2881, 0
        %v2903 = vsel %vm475, %v2882, 0
        %v2906 = vsel %vm475, %v2883, 0
        %v2909 = vsel %vm475, %v2884, 0
        %v2912 = vsel %vm475, %v2885, 0
        %v2915 = vsel %vm475, %v2886, 0
        %v2918 = vsel %vm475, %v2887, 0
        %v2921 = vsel %vm475, %v2888, 0
        %v2924 = vsel %vm475, %v2889, 0
        %v2927 = vsel %vm475, %v2890, 0
        %v2930 = vsel %vm475, %v2891, 0
        %v2933 = vsel %vm475, %v2892, 0
        %v2936 = vsel %vm475, %v2893, 0
        %v2939 = vsel %vm475, %v2894, 0
        %v2942 = vsel %vm475, %v2895, 0
        %v2945 = vsel %vm475, %v2896, 0
        %v2948 = vsel %vm590, %v2898, 0
        %2950 = vmatprep.subr.mxu0 0.0
        %2951 = vmatpush1.msra.mxu0 %v2948
        %2952 = vmatprep.subr.mxu0 0.0
        %2953 = vmatpush1.msra.mxu0 0.0
        %2954 = vmatprep.subr.mxu0 0.0
        %2955 = vmatpush1.msra.mxu0 0.0
        %2956 = vmatprep.subr.mxu0 0.0
        %2957 = vmatpush1.msra.mxu0 0.0
        %2958 = vmatprep.subr.mxu0 0.0
        %2959 = vmatpush1.msra.mxu0 0.0
        %2960 = vmatprep.subr.mxu0 0.0
        %2961 = vmatpush1.msra.mxu0 0.0
        %2962 = vmatprep.subr.mxu0 0.0
        %2963 = vmatpush1.msra.mxu0 0.0
        %2964 = vmatprep.subr.mxu0 0.0
        %2965 = vmatpush1.msra.mxu0 0.0
        %2966 = vmatprep.subr.mxu0 0.0
        %2967 = vmatpush1.msra.mxu0 0.0
        %2968 = vmatprep.subr.mxu0 0.0
        %2969 = vmatpush1.msra.mxu0 0.0
        %2970 = vmatprep.subr.mxu0 0.0
        %2971 = vmatpush1.msra.mxu0 0.0
        %2972 = vmatprep.subr.mxu0 0.0
        %2973 = vmatpush1.msra.mxu0 0.0
        %2974 = vmatprep.subr.mxu0 0.0
        %2975 = vmatpush1.msra.mxu0 0.0
        %2976 = vmatprep.subr.mxu0 0.0
        %2977 = vmatpush1.msra.mxu0 0.0
        %2978 = vmatprep.subr.mxu0 0.0
        %2979 = vmatpush1.msra.mxu0 0.0
        %2980 = vmatprep.subr.mxu0 0.0
        %2981 = vmatpush1.msra.mxu0 0.0
        %2982 = vmatprep.subr.mxu0 0.0
        %2983 = vmatpush1.msra.mxu0 0.0
        %2984 = vmatprep.subr.mxu0 0.0
        %2985 = vmatpush1.msra.mxu0 0.0
        %2986 = vmatprep.subr.mxu0 0.0
        %2987 = vmatpush1.msra.mxu0 0.0
        %2988 = vmatprep.subr.mxu0 0.0
        %2989 = vmatpush1.msra.mxu0 0.0
        %2990 = vmatprep.subr.mxu0 0.0
        %2991 = vmatpush1.msra.mxu0 0.0
        %2992 = vmatprep.subr.mxu0 0.0
        %2993 = vmatpush1.msra.mxu0 0.0
        %2994 = vmatprep.subr.mxu0 0.0
        %2995 = vmatpush1.msra.mxu0 0.0
        %2996 = vmatprep.subr.mxu0 0.0
        %2997 = vmatpush1.msra.mxu0 0.0
        %2998 = vmatprep.subr.mxu0 0.0
        %2999 = vmatpush1.msra.mxu0 0.0
        %3000 = vmatprep.subr.mxu0 0.0
        %3001 = vmatpush1.msra.mxu0 0.0
        %3002 = vmatprep.subr.mxu0 0.0
        %3003 = vmatpush1.msra.mxu0 0.0
        %3004 = vmatprep.subr.mxu0 0.0
        %3005 = vmatpush1.msra.mxu0 0.0
        %3006 = vmatprep.subr.mxu0 0.0
        %3007 = vmatpush1.msra.mxu0 0.0
        %3008 = vmatprep.subr.mxu0 0.0
        %3009 = vmatpush1.msra.mxu0 0.0
        %3010 = vmatprep.subr.mxu0 0.0
        %3011 = vmatpush1.msra.mxu0 0.0
        %3012 = vmatprep.subr.mxu0 0.0
        %3013 = vmatpush1.msra.mxu0 0.0
        %3014 = vmatprep.mubr.f32.mxu0 0.0
        %3015 = vmatmul.mubr.f32.gmra.mrb[0].mxu0 %v2900
        %v3016 = vpop.f32.mrb[0].mxu0
        %v3017 = vadd.f32 0.0, %v3016
        %v3018 = vpop.f32.mrb[0].mxu0
        %3019 = vmatprep.mubr.f32.mxu0 0.0
        %3020 = vmatmul.mubr.f32.gmra.mrb[0].mxu0 %v2903
        %v3021 = vpop.f32.mrb[0].mxu0
        %v3022 = vadd.f32 0.0, %v3021
        %v3023 = vpop.f32.mrb[0].mxu0
        %3024 = vmatprep.mubr.f32.mxu0 0.0
        %3025 = vmatmul.mubr.f32.gmra.mrb[0].mxu0 %v2906
        %v3026 = vpop.f32.mrb[0].mxu0
        %v3027 = vadd.f32 0.0, %v3026
        %v3028 = vpop.f32.mrb[0].mxu0
        %3029 = vmatprep.mubr.f32.mxu0 0.0
        %3030 = vmatmul.mubr.f32.gmra.mrb[0].mxu0 %v2909
        %v3031 = vpop.f32.mrb[0].mxu0
        %v3032 = vadd.f32 0.0, %v3031
        %v3033 = vpop.f32.mrb[0].mxu0
        %3034 = vmatprep.mubr.f32.mxu0 0.0
        %3035 = vmatmul.mubr.f32.gmra.mrb[0].mxu0 %v2912
        %v3036 = vpop.f32.mrb[0].mxu0
        %v3037 = vadd.f32 0.0, %v3036
        %v3038 = vpop.f32.mrb[0].mxu0
        %3039 = vmatprep.mubr.f32.mxu0 0.0
        %3040 = vmatmul.mubr.f32.gmra.mrb[0].mxu0 %v2915
        %v3041 = vpop.f32.mrb[0].mxu0
        %v3042 = vadd.f32 0.0, %v3041
        %v3043 = vpop.f32.mrb[0].mxu0
        %3044 = vmatprep.mubr.f32.mxu0 0.0
        %3045 = vmatmul.mubr.f32.gmra.mrb[0].mxu0 %v2918
        %v3046 = vpop.f32.mrb[0].mxu0
        %v3047 = vadd.f32 0.0, %v3046
        %v3048 = vpop.f32.mrb[0].mxu0
        %3049 = vmatprep.mubr.f32.mxu0 0.0
        %3050 = vmatmul.mubr.f32.gmra.mrb[0].mxu0 %v2921
        %v3051 = vpop.f32.mrb[0].mxu0
        %v3052 = vadd.f32 0.0, %v3051
        %v3053 = vpop.f32.mrb[0].mxu0
        %3054 = vmatprep.mubr.f32.mxu0 0.0
        %3055 = vmatmul.mubr.f32.gmra.mrb[0].mxu0 %v2924
        %v3056 = vpop.f32.mrb[0].mxu0
        %v3057 = vadd.f32 0.0, %v3056
        %v3058 = vpop.f32.mrb[0].mxu0
        %3059 = vmatprep.mubr.f32.mxu0 0.0
        %3060 = vmatmul.mubr.f32.gmra.mrb[0].mxu0 %v2927
        %v3061 = vpop.f32.mrb[0].mxu0
        %v3062 = vadd.f32 0.0, %v3061
        %v3063 = vpop.f32.mrb[0].mxu0
        %3064 = vmatprep.mubr.f32.mxu0 0.0
        %3065 = vmatmul.mubr.f32.gmra.mrb[0].mxu0 %v2930
        %v3066 = vpop.f32.mrb[0].mxu0
        %v3067 = vadd.f32 0.0, %v3066
        %v3068 = vpop.f32.mrb[0].mxu0
        %3069 = vmatprep.mubr.f32.mxu0 0.0
        %3070 = vmatmul.mubr.f32.gmra.mrb[0].mxu0 %v2933
        %v3071 = vpop.f32.mrb[0].mxu0
        %v3072 = vadd.f32 0.0, %v3071
        %v3073 = vpop.f32.mrb[0].mxu0
        %3074 = vmatprep.mubr.f32.mxu0 0.0
        %3075 = vmatmul.mubr.f32.gmra.mrb[0].mxu0 %v2936
        %v3076 = vpop.f32.mrb[0].mxu0
        %v3077 = vadd.f32 0.0, %v3076
        %v3078 = vpop.f32.mrb[0].mxu0
        %3079 = vmatprep.mubr.f32.mxu0 0.0
        %3080 = vmatmul.mubr.f32.gmra.mrb[0].mxu0 %v2939
        %v3081 = vpop.f32.mrb[0].mxu0
        %v3082 = vadd.f32 0.0, %v3081
        %v3083 = vpop.f32.mrb[0].mxu0
        %3084 = vmatprep.mubr.f32.mxu0 0.0
        %3085 = vmatmul.mubr.f32.gmra.mrb[0].mxu0 %v2942
        %v3086 = vpop.f32.mrb[0].mxu0
        %v3087 = vadd.f32 0.0, %v3086
        %v3088 = vpop.f32.mrb[0].mxu0
        %3089 = vmatprep.mubr.f32.mxu0 0.0
        %3090 = vmatmul.mubr.f32.gmra.mrb[0].mxu0 %v2945
        %v3091 = vpop.f32.mrb[0].mxu0
        %v3092 = vadd.f32 0.0, %v3091
        %v3093 = vpop.f32.mrb[0].mxu0
        %3094 = vdwg.mxu0
        %v3095 = vmul.f32 %v2881, %v2881
        %v3096 = vmul.f32 %v2882, %v2882
        %v3097 = vmul.f32 %v2883, %v2883
        %v3098 = vmul.f32 %v2884, %v2884
        %v3099 = vmul.f32 %v2885, %v2885
        %v3100 = vmul.f32 %v2886, %v2886
        %v3101 = vmul.f32 %v2887, %v2887
        %v3102 = vmul.f32 %v2888, %v2888
        %v3103 = vmul.f32 %v2889, %v2889
        %v3104 = vmul.f32 %v2890, %v2890
        %v3105 = vmul.f32 %v2891, %v2891
        %v3106 = vmul.f32 %v2892, %v2892
        %v3107 = vmul.f32 %v2893, %v2893
        %v3108 = vmul.f32 %v2894, %v2894
        %v3109 = vmul.f32 %v2895, %v2895
        %v3110 = vmul.f32 %v2896, %v2896
        %v3111 = vsel %vm475, %v3095, 0.0
        %3112 = vadd.xlane.f32.xlu0 %v3111
        %v3113 = vpop.xlane.xlu0 %3112
        %v3114 = vsel %vm475, %v3096, 0.0
        %3115 = vadd.xlane.f32.xlu0 %v3114
        %v3116 = vpop.xlane.xlu0 %3115
        %v3117 = vsel %vm475, %v3097, 0.0
        %3118 = vadd.xlane.f32.xlu0 %v3117
        %v3119 = vpop.xlane.xlu0 %3118
        %v3120 = vsel %vm475, %v3098, 0.0
        %3121 = vadd.xlane.f32.xlu0 %v3120
        %v3122 = vpop.xlane.xlu0 %3121
        %v3123 = vsel %vm475, %v3099, 0.0
        %3124 = vadd.xlane.f32.xlu0 %v3123
        %v3125 = vpop.xlane.xlu0 %3124
        %v3126 = vsel %vm475, %v3100, 0.0
        %3127 = vadd.xlane.f32.xlu0 %v3126
        %v3128 = vpop.xlane.xlu0 %3127
        %v3129 = vsel %vm475, %v3101, 0.0
        %3130 = vadd.xlane.f32.xlu0 %v3129
        %v3131 = vpop.xlane.xlu0 %3130
        %v3132 = vsel %vm475, %v3102, 0.0
        %3133 = vadd.xlane.f32.xlu0 %v3132
        %v3134 = vpop.xlane.xlu0 %3133
        %v3135 = vsel %vm475, %v3103, 0.0
        %3136 = vadd.xlane.f32.xlu0 %v3135
        %v3137 = vpop.xlane.xlu0 %3136
        %v3138 = vsel %vm475, %v3104, 0.0
        %3139 = vadd.xlane.f32.xlu0 %v3138
        %v3140 = vpop.xlane.xlu0 %3139
        %v3141 = vsel %vm475, %v3105, 0.0
        %3142 = vadd.xlane.f32.xlu0 %v3141
        %v3143 = vpop.xlane.xlu0 %3142
        %v3144 = vsel %vm475, %v3106, 0.0
        %3145 = vadd.xlane.f32.xlu0 %v3144
        %v3146 = vpop.xlane.xlu0 %3145
        %v3147 = vsel %vm475, %v3107, 0.0
        %3148 = vadd.xlane.f32.xlu0 %v3147
        %v3149 = vpop.xlane.xlu0 %3148
        %v3150 = vsel %vm475, %v3108, 0.0
        %3151 = vadd.xlane.f32.xlu0 %v3150
        %v3152 = vpop.xlane.xlu0 %3151
        %v3153 = vsel %vm475, %v3109, 0.0
        %3154 = vadd.xlane.f32.xlu0 %v3153
        %v3155 = vpop.xlane.xlu0 %3154
        %v3156 = vsel %vm475, %v3110, 0.0
        %3157 = vadd.xlane.f32.xlu0 %v3156
        %v3158 = vpop.xlane.xlu0 %3157
        %v3159 = vadd.f32 %v2849, %v3017
        %v3160 = vadd.f32 %v2850, %v3022
        %v3161 = vadd.f32 %v2851, %v3027
        %v3162 = vadd.f32 %v2852, %v3032
        %v3163 = vadd.f32 %v2853, %v3037
        %v3164 = vadd.f32 %v2854, %v3042
        %v3165 = vadd.f32 %v2855, %v3047
        %v3166 = vadd.f32 %v2856, %v3052
        %v3167 = vadd.f32 %v2857, %v3057
        %v3168 = vadd.f32 %v2858, %v3062
        %v3169 = vadd.f32 %v2859, %v3067
        %v3170 = vadd.f32 %v2860, %v3072
        %v3171 = vadd.f32 %v2861, %v3077
        %v3172 = vadd.f32 %v2862, %v3082
        %v3173 = vadd.f32 %v2863, %v3087
        %v3174 = vadd.f32 %v2864, %v3092
        %v3175 = vadd.f32 %v2865, %v3113
        %v3176 = vadd.f32 %v2866, %v3116
        %v3177 = vadd.f32 %v2867, %v3119
        %v3178 = vadd.f32 %v2868, %v3122
        %v3179 = vadd.f32 %v2869, %v3125
        %v3180 = vadd.f32 %v2870, %v3128
        %v3181 = vadd.f32 %v2871, %v3131
        %v3182 = vadd.f32 %v2872, %v3134
        %v3183 = vadd.f32 %v2873, %v3137
        %v3184 = vadd.f32 %v2874, %v3140
        %v3185 = vadd.f32 %v2875, %v3143
        %v3186 = vadd.f32 %v2876, %v3146
        %v3187 = vadd.f32 %v2877, %v3149
        %v3188 = vadd.f32 %v2878, %v3152
        %v3189 = vadd.f32 %v2879, %v3155
        %v3190 = vadd.f32 %v2880, %v3158
        %v3191 = vstv %s439
        %v3192 = vmul.f32 %v3191, %v3175
        %v3193 = vmul.f32 %v3191, %v3176
        %v3194 = vmul.f32 %v3191, %v3177
        %v3195 = vmul.f32 %v3191, %v3178
        %v3196 = vmul.f32 %v3191, %v3179
        %v3197 = vmul.f32 %v3191, %v3180
        %v3198 = vmul.f32 %v3191, %v3181
        %v3199 = vmul.f32 %v3191, %v3182
        %v3200 = vmul.f32 %v3191, %v3183
        %v3201 = vmul.f32 %v3191, %v3184
        %v3202 = vmul.f32 %v3191, %v3185
        %v3203 = vmul.f32 %v3191, %v3186
        %v3204 = vmul.f32 %v3191, %v3187
        %v3205 = vmul.f32 %v3191, %v3188
        %v3206 = vmul.f32 %v3191, %v3189
        %v3207 = vmul.f32 %v3191, %v3190
        %v3208 = vsub.f32 %v3159, %v3192
        %v3209 = vsub.f32 %v3160, %v3193
        %v3210 = vsub.f32 %v3161, %v3194
        %v3211 = vsub.f32 %v3162, %v3195
        %v3212 = vsub.f32 %v3163, %v3196
        %v3213 = vsub.f32 %v3164, %v3197
        %v3214 = vsub.f32 %v3165, %v3198
        %v3215 = vsub.f32 %v3166, %v3199
        %v3216 = vsub.f32 %v3167, %v3200
        %v3217 = vsub.f32 %v3168, %v3201
        %v3218 = vsub.f32 %v3169, %v3202
        %v3219 = vsub.f32 %v3170, %v3203
        %v3220 = vsub.f32 %v3171, %v3204
        %v3221 = vsub.f32 %v3172, %v3205
        %v3222 = vsub.f32 %v3173, %v3206
        %v3223 = vsub.f32 %v3174, %v3207
        %v3224 = vld [vmem:[%s3] sm:$0x1]
        %v3226 = vlaneseq
        %v3227 = vshrl.u32 %v3226, 7
        %v3228 = vsub.s32 0, %v3227
        %v3229 = vrot.slane %v3224, %v3228
        %v3231 = vadd.f32 %v3208, %v3229
        %v3232 = vadd.f32 %v3209, %v3229
        %v3233 = vadd.f32 %v3210, %v3229
        %v3234 = vadd.f32 %v3211, %v3229
        %v3235 = vadd.f32 %v3212, %v3229
        %v3236 = vadd.f32 %v3213, %v3229
        %v3237 = vadd.f32 %v3214, %v3229
        %v3238 = vadd.f32 %v3215, %v3229
        %v3239 = vadd.f32 %v3216, %v3229
        %v3240 = vadd.f32 %v3217, %v3229
        %v3241 = vadd.f32 %v3218, %v3229
        %v3242 = vadd.f32 %v3219, %v3229
        %v3243 = vadd.f32 %v3220, %v3229
        %v3244 = vadd.f32 %v3221, %v3229
        %v3245 = vadd.f32 %v3222, %v3229
        %v3246 = vadd.f32 %v3223, %v3229
        %v3247 = vmin.f32 %v3231, 0.0
        %v3248 = vmin.f32 %v3232, 0.0
        %v3249 = vmin.f32 %v3233, 0.0
        %v3250 = vmin.f32 %v3234, 0.0
        %v3251 = vmin.f32 %v3235, 0.0
        %v3252 = vmin.f32 %v3236, 0.0
        %v3253 = vmin.f32 %v3237, 0.0
        %v3254 = vmin.f32 %v3238, 0.0
        %v3255 = vmin.f32 %v3239, 0.0
        %v3256 = vmin.f32 %v3240, 0.0
        %v3257 = vmin.f32 %v3241, 0.0
        %v3258 = vmin.f32 %v3242, 0.0
        %v3259 = vmin.f32 %v3243, 0.0
        %v3260 = vmin.f32 %v3244, 0.0
        %v3261 = vmin.f32 %v3245, 0.0
        %v3262 = vmin.f32 %v3246, 0.0
        %v3263 = vmul.f32 %v3247, 1.442695
        %v3264 = vpow.pop %v3263
        %v3265 = vmul.f32 %v3248, 1.442695
        %v3266 = vpow.pop %v3265
        %v3267 = vmul.f32 %v3249, 1.442695
        %v3268 = vpow.pop %v3267
        %v3269 = vmul.f32 %v3250, 1.442695
        %v3270 = vpow.pop %v3269
        %v3271 = vmul.f32 %v3251, 1.442695
        %v3272 = vpow.pop %v3271
        %v3273 = vmul.f32 %v3252, 1.442695
        %v3274 = vpow.pop %v3273
        %v3275 = vmul.f32 %v3253, 1.442695
        %v3276 = vpow.pop %v3275
        %v3277 = vmul.f32 %v3254, 1.442695
        %v3278 = vpow.pop %v3277
        %v3279 = vmul.f32 %v3255, 1.442695
        %v3280 = vpow.pop %v3279
        %v3281 = vmul.f32 %v3256, 1.442695
        %v3282 = vpow.pop %v3281
        %v3283 = vmul.f32 %v3257, 1.442695
        %v3284 = vpow.pop %v3283
        %v3285 = vmul.f32 %v3258, 1.442695
        %v3286 = vpow.pop %v3285
        %v3287 = vmul.f32 %v3259, 1.442695
        %v3288 = vpow.pop %v3287
        %v3289 = vmul.f32 %v3260, 1.442695
        %v3290 = vpow.pop %v3289
        %v3291 = vmul.f32 %v3261, 1.442695
        %v3292 = vpow.pop %v3291
        %v3293 = vmul.f32 %v3262, 1.442695
        %v3294 = vpow.pop %v3293
        %v3295 = vld [vmem:[%s410] sm:$0xff]
        %v3296 = vld [vmem:[%s410 + $0x8] sm:$0xff]
        %v3297 = vld [vmem:[%s410 + $0x10] sm:$0xff]
        %v3298 = vld [vmem:[%s410 + $0x18] sm:$0xff]
        %v3299 = vld [vmem:[%s410 + $0x20] sm:$0xff]
        %v3300 = vld [vmem:[%s410 + $0x28] sm:$0xff]
        %v3301 = vld [vmem:[%s410 + $0x30] sm:$0xff]
        %v3302 = vld [vmem:[%s410 + $0x38] sm:$0xff]
        %v3303 = vld [vmem:[%s410 + $0x40] sm:$0xff]
        %v3304 = vld [vmem:[%s410 + $0x48] sm:$0xff]
        %v3305 = vld [vmem:[%s410 + $0x50] sm:$0xff]
        %v3306 = vld [vmem:[%s410 + $0x58] sm:$0xff]
        %v3307 = vld [vmem:[%s410 + $0x60] sm:$0xff]
        %v3308 = vld [vmem:[%s410 + $0x68] sm:$0xff]
        %v3309 = vld [vmem:[%s410 + $0x70] sm:$0xff]
        %v3310 = vld [vmem:[%s410 + $0x78] sm:$0xff]
        %3312 = vset.pattern.permute.xlu0 0
        %3313 = vperm.xlu0 %3312, %v3295
        %v3314 = vpop.permute.xlu0 %3313
        %3317 = vset.pattern.permute.xlu0 0
        %3318 = vperm.xlu0 %3317, %v3296
        %v3319 = vpop.permute.xlu0 %3318
        %3322 = vset.pattern.permute.xlu0 0
        %3323 = vperm.xlu0 %3322, %v3297
        %v3324 = vpop.permute.xlu0 %3323
        %3327 = vset.pattern.permute.xlu0 0
        %3328 = vperm.xlu0 %3327, %v3298
        %v3329 = vpop.permute.xlu0 %3328
        %3332 = vset.pattern.permute.xlu0 0
        %3333 = vperm.xlu0 %3332, %v3299
        %v3334 = vpop.permute.xlu0 %3333
        %3337 = vset.pattern.permute.xlu0 0
        %3338 = vperm.xlu0 %3337, %v3300
        %v3339 = vpop.permute.xlu0 %3338
        %3342 = vset.pattern.permute.xlu0 0
        %3343 = vperm.xlu0 %3342, %v3301
        %v3344 = vpop.permute.xlu0 %3343
        %3347 = vset.pattern.permute.xlu0 0
        %3348 = vperm.xlu0 %3347, %v3302
        %v3349 = vpop.permute.xlu0 %3348
        %3352 = vset.pattern.permute.xlu0 0
        %3353 = vperm.xlu0 %3352, %v3303
        %v3354 = vpop.permute.xlu0 %3353
        %3357 = vset.pattern.permute.xlu0 0
        %3358 = vperm.xlu0 %3357, %v3304
        %v3359 = vpop.permute.xlu0 %3358
        %3362 = vset.pattern.permute.xlu0 0
        %3363 = vperm.xlu0 %3362, %v3305
        %v3364 = vpop.permute.xlu0 %3363
        %3367 = vset.pattern.permute.xlu0 0
        %3368 = vperm.xlu0 %3367, %v3306
        %v3369 = vpop.permute.xlu0 %3368
        %3372 = vset.pattern.permute.xlu0 0
        %3373 = vperm.xlu0 %3372, %v3307
        %v3374 = vpop.permute.xlu0 %3373
        %3377 = vset.pattern.permute.xlu0 0
        %3378 = vperm.xlu0 %3377, %v3308
        %v3379 = vpop.permute.xlu0 %3378
        %3382 = vset.pattern.permute.xlu0 0
        %3383 = vperm.xlu0 %3382, %v3309
        %v3384 = vpop.permute.xlu0 %3383
        %3387 = vset.pattern.permute.xlu0 0
        %3388 = vperm.xlu0 %3387, %v3310
        %v3389 = vpop.permute.xlu0 %3388
        %v3391 = vmul.f32 %v3264, %v3314
        %v3392 = vmul.f32 %v3266, %v3319
        %v3393 = vmul.f32 %v3268, %v3324
        %v3394 = vmul.f32 %v3270, %v3329
        %v3395 = vmul.f32 %v3272, %v3334
        %v3396 = vmul.f32 %v3274, %v3339
        %v3397 = vmul.f32 %v3276, %v3344
        %v3398 = vmul.f32 %v3278, %v3349
        %v3399 = vmul.f32 %v3280, %v3354
        %v3400 = vmul.f32 %v3282, %v3359
        %v3401 = vmul.f32 %v3284, %v3364
        %v3402 = vmul.f32 %v3286, %v3369
        %v3403 = vmul.f32 %v3288, %v3374
        %v3404 = vmul.f32 %v3290, %v3379
        %v3405 = vmul.f32 %v3292, %v3384
        %v3406 = vmul.f32 %v3294, %v3389
        %3407 = vset.pattern.permute.xlu0 1
        %3408 = vperm.xlu0 %3407, %v3295
        %v3409 = vpop.permute.xlu0 %3408
        %3411 = vset.pattern.permute.xlu0 1
        %3412 = vperm.xlu0 %3411, %v3296
        %v3413 = vpop.permute.xlu0 %3412
        %3415 = vset.pattern.permute.xlu0 1
        %3416 = vperm.xlu0 %3415, %v3297
        %v3417 = vpop.permute.xlu0 %3416
        %3419 = vset.pattern.permute.xlu0 1
        %3420 = vperm.xlu0 %3419, %v3298
        %v3421 = vpop.permute.xlu0 %3420
        %3423 = vset.pattern.permute.xlu0 1
        %3424 = vperm.xlu0 %3423, %v3299
        %v3425 = vpop.permute.xlu0 %3424
        %3427 = vset.pattern.permute.xlu0 1
        %3428 = vperm.xlu0 %3427, %v3300
        %v3429 = vpop.permute.xlu0 %3428
        %3431 = vset.pattern.permute.xlu0 1
        %3432 = vperm.xlu0 %3431, %v3301
        %v3433 = vpop.permute.xlu0 %3432
        %3435 = vset.pattern.permute.xlu0 1
        %3436 = vperm.xlu0 %3435, %v3302
        %v3437 = vpop.permute.xlu0 %3436
        %3439 = vset.pattern.permute.xlu0 1
        %3440 = vperm.xlu0 %3439, %v3303
        %v3441 = vpop.permute.xlu0 %3440
        %3443 = vset.pattern.permute.xlu0 1
        %3444 = vperm.xlu0 %3443, %v3304
        %v3445 = vpop.permute.xlu0 %3444
        %3447 = vset.pattern.permute.xlu0 1
        %3448 = vperm.xlu0 %3447, %v3305
        %v3449 = vpop.permute.xlu0 %3448
        %3451 = vset.pattern.permute.xlu0 1
        %3452 = vperm.xlu0 %3451, %v3306
        %v3453 = vpop.permute.xlu0 %3452
        %3455 = vset.pattern.permute.xlu0 1
        %3456 = vperm.xlu0 %3455, %v3307
        %v3457 = vpop.permute.xlu0 %3456
        %3459 = vset.pattern.permute.xlu0 1
        %3460 = vperm.xlu0 %3459, %v3308
        %v3461 = vpop.permute.xlu0 %3460
        %3463 = vset.pattern.permute.xlu0 1
        %3464 = vperm.xlu0 %3463, %v3309
        %v3465 = vpop.permute.xlu0 %3464
        %3467 = vset.pattern.permute.xlu0 1
        %3468 = vperm.xlu0 %3467, %v3310
        %v3469 = vpop.permute.xlu0 %3468
        %v3471 = vadd.f32 %v3391, %v3409
        %v3472 = vadd.f32 %v3392, %v3413
        %v3473 = vadd.f32 %v3393, %v3417
        %v3474 = vadd.f32 %v3394, %v3421
        %v3475 = vadd.f32 %v3395, %v3425
        %v3476 = vadd.f32 %v3396, %v3429
        %v3477 = vadd.f32 %v3397, %v3433
        %v3478 = vadd.f32 %v3398, %v3437
        %v3479 = vadd.f32 %v3399, %v3441
        %v3480 = vadd.f32 %v3400, %v3445
        %v3481 = vadd.f32 %v3401, %v3449
        %v3482 = vadd.f32 %v3402, %v3453
        %v3483 = vadd.f32 %v3403, %v3457
        %v3484 = vadd.f32 %v3404, %v3461
        %v3485 = vadd.f32 %v3405, %v3465
        %v3486 = vadd.f32 %v3406, %v3469
        %v3487 = vmax.f32 %v3471, 0.0
        %v3488 = vmax.f32 %v3472, 0.0
        %v3489 = vmax.f32 %v3473, 0.0
        %v3490 = vmax.f32 %v3474, 0.0
        %v3491 = vmax.f32 %v3475, 0.0
        %v3492 = vmax.f32 %v3476, 0.0
        %v3493 = vmax.f32 %v3477, 0.0
        %v3494 = vmax.f32 %v3478, 0.0
        %v3495 = vmax.f32 %v3479, 0.0
        %v3496 = vmax.f32 %v3480, 0.0
        %v3497 = vmax.f32 %v3481, 0.0
        %v3498 = vmax.f32 %v3482, 0.0
        %v3499 = vmax.f32 %v3483, 0.0
        %v3500 = vmax.f32 %v3484, 0.0
        %v3501 = vmax.f32 %v3485, 0.0
        %v3502 = vmax.f32 %v3486, 0.0
        %3503 = vst [vmem:[%s426] sm:$0xff] %v3487
        %3504 = vst [vmem:[%s426 + $0x8] sm:$0xff] %v3488
        %3505 = vst [vmem:[%s426 + $0x10] sm:$0xff] %v3489
        %3506 = vst [vmem:[%s426 + $0x18] sm:$0xff] %v3490
        %3507 = vst [vmem:[%s426 + $0x20] sm:$0xff] %v3491
        %3508 = vst [vmem:[%s426 + $0x28] sm:$0xff] %v3492
        %3509 = vst [vmem:[%s426 + $0x30] sm:$0xff] %v3493
        %3510 = vst [vmem:[%s426 + $0x38] sm:$0xff] %v3494
        %3511 = vst [vmem:[%s426 + $0x40] sm:$0xff] %v3495
        %3512 = vst [vmem:[%s426 + $0x48] sm:$0xff] %v3496
        %3513 = vst [vmem:[%s426 + $0x50] sm:$0xff] %v3497
        %3514 = vst [vmem:[%s426 + $0x58] sm:$0xff] %v3498
        %3515 = vst [vmem:[%s426 + $0x60] sm:$0xff] %v3499
        %3516 = vst [vmem:[%s426 + $0x68] sm:$0xff] %v3500
        %3517 = vst [vmem:[%s426 + $0x70] sm:$0xff] %v3501
        %3518 = vst [vmem:[%s426 + $0x78] sm:$0xff] %v3502
        %s3519 = sld [smem:[#allocation2 + $0x1]]
        %v3520 = vld [vmem:[%s5] sm:$0xf]
        %v3522 = vsel %vm590, %v3520, 0
        %3524 = vmatprep.subr.mxu0 0.0
        %3525 = vmatpush1.msra.mxu0 %v3522
        %3526 = vmatprep.subr.mxu0 0.0
        %3527 = vmatpush1.msra.mxu0 0.0
        %3528 = vmatprep.subr.mxu0 0.0
        %3529 = vmatpush1.msra.mxu0 0.0
        %3530 = vmatprep.subr.mxu0 0.0
        %3531 = vmatpush1.msra.mxu0 0.0
        %3532 = vmatprep.subr.mxu0 0.0
        %3533 = vmatpush1.msra.mxu0 0.0
        %3534 = vmatprep.subr.mxu0 0.0
        %3535 = vmatpush1.msra.mxu0 0.0
        %3536 = vmatprep.subr.mxu0 0.0
        %3537 = vmatpush1.msra.mxu0 0.0
        %3538 = vmatprep.subr.mxu0 0.0
        %3539 = vmatpush1.msra.mxu0 0.0
        %3540 = vmatprep.subr.mxu0 0.0
        %3541 = vmatpush1.msra.mxu0 0.0
        %3542 = vmatprep.subr.mxu0 0.0
        %3543 = vmatpush1.msra.mxu0 0.0
        %3544 = vmatprep.subr.mxu0 0.0
        %3545 = vmatpush1.msra.mxu0 0.0
        %3546 = vmatprep.subr.mxu0 0.0
        %3547 = vmatpush1.msra.mxu0 0.0
        %3548 = vmatprep.subr.mxu0 0.0
        %3549 = vmatpush1.msra.mxu0 0.0
        %3550 = vmatprep.subr.mxu0 0.0
        %3551 = vmatpush1.msra.mxu0 0.0
        %3552 = vmatprep.subr.mxu0 0.0
        %3553 = vmatpush1.msra.mxu0 0.0
        %3554 = vmatprep.subr.mxu0 0.0
        %3555 = vmatpush1.msra.mxu0 0.0
        %3556 = vmatprep.subr.mxu0 0.0
        %3557 = vmatpush1.msra.mxu0 0.0
        %3558 = vmatprep.subr.mxu0 0.0
        %3559 = vmatpush1.msra.mxu0 0.0
        %3560 = vmatprep.subr.mxu0 0.0
        %3561 = vmatpush1.msra.mxu0 0.0
        %3562 = vmatprep.subr.mxu0 0.0
        %3563 = vmatpush1.msra.mxu0 0.0
        %3564 = vmatprep.subr.mxu0 0.0
        %3565 = vmatpush1.msra.mxu0 0.0
        %3566 = vmatprep.subr.mxu0 0.0
        %3567 = vmatpush1.msra.mxu0 0.0
        %3568 = vmatprep.subr.mxu0 0.0
        %3569 = vmatpush1.msra.mxu0 0.0
        %3570 = vmatprep.subr.mxu0 0.0
        %3571 = vmatpush1.msra.mxu0 0.0
        %3572 = vmatprep.subr.mxu0 0.0
        %3573 = vmatpush1.msra.mxu0 0.0
        %3574 = vmatprep.subr.mxu0 0.0
        %3575 = vmatpush1.msra.mxu0 0.0
        %3576 = vmatprep.subr.mxu0 0.0
        %3577 = vmatpush1.msra.mxu0 0.0
        %3578 = vmatprep.subr.mxu0 0.0
        %3579 = vmatpush1.msra.mxu0 0.0
        %3580 = vmatprep.subr.mxu0 0.0
        %3581 = vmatpush1.msra.mxu0 0.0
        %3582 = vmatprep.subr.mxu0 0.0
        %3583 = vmatpush1.msra.mxu0 0.0
        %3584 = vmatprep.subr.mxu0 0.0
        %3585 = vmatpush1.msra.mxu0 0.0
        %3586 = vmatprep.subr.mxu0 0.0
        %3587 = vmatpush1.msra.mxu0 0.0
        %3588 = vmatprep.mubr.f32.mxu0 0.0
        %3589 = vmatmul.mubr.f32.gmra.mrb[0].mxu0 %v1657
        %v3590 = vpop.f32.mrb[0].mxu0
        %v3591 = vadd.f32 0.0, %v3590
        %v3592 = vpop.f32.mrb[0].mxu0
        %3593 = vmatprep.mubr.f32.mxu0 0.0
        %3594 = vmatmul.mubr.f32.gmra.mrb[0].mxu0 %v1660
        %v3595 = vpop.f32.mrb[0].mxu0
        %v3596 = vadd.f32 0.0, %v3595
        %v3597 = vpop.f32.mrb[0].mxu0
        %3598 = vmatprep.mubr.f32.mxu0 0.0
        %3599 = vmatmul.mubr.f32.gmra.mrb[0].mxu0 %v1663
        %v3600 = vpop.f32.mrb[0].mxu0
        %v3601 = vadd.f32 0.0, %v3600
        %v3602 = vpop.f32.mrb[0].mxu0
        %3603 = vmatprep.mubr.f32.mxu0 0.0
        %3604 = vmatmul.mubr.f32.gmra.mrb[0].mxu0 %v1666
        %v3605 = vpop.f32.mrb[0].mxu0
        %v3606 = vadd.f32 0.0, %v3605
        %v3607 = vpop.f32.mrb[0].mxu0
        %3608 = vmatprep.mubr.f32.mxu0 0.0
        %3609 = vmatmul.mubr.f32.gmra.mrb[0].mxu0 %v1669
        %v3610 = vpop.f32.mrb[0].mxu0
        %v3611 = vadd.f32 0.0, %v3610
        %v3612 = vpop.f32.mrb[0].mxu0
        %3613 = vmatprep.mubr.f32.mxu0 0.0
        %3614 = vmatmul.mubr.f32.gmra.mrb[0].mxu0 %v1672
        %v3615 = vpop.f32.mrb[0].mxu0
        %v3616 = vadd.f32 0.0, %v3615
        %v3617 = vpop.f32.mrb[0].mxu0
        %3618 = vmatprep.mubr.f32.mxu0 0.0
        %3619 = vmatmul.mubr.f32.gmra.mrb[0].mxu0 %v1675
        %v3620 = vpop.f32.mrb[0].mxu0
        %v3621 = vadd.f32 0.0, %v3620
        %v3622 = vpop.f32.mrb[0].mxu0
        %3623 = vmatprep.mubr.f32.mxu0 0.0
        %3624 = vmatmul.mubr.f32.gmra.mrb[0].mxu0 %v1678
        %v3625 = vpop.f32.mrb[0].mxu0
        %v3626 = vadd.f32 0.0, %v3625
        %v3627 = vpop.f32.mrb[0].mxu0
        %3628 = vmatprep.mubr.f32.mxu0 0.0
        %3629 = vmatmul.mubr.f32.gmra.mrb[0].mxu0 %v1681
        %v3630 = vpop.f32.mrb[0].mxu0
        %v3631 = vadd.f32 0.0, %v3630
        %v3632 = vpop.f32.mrb[0].mxu0
        %3633 = vmatprep.mubr.f32.mxu0 0.0
        %3634 = vmatmul.mubr.f32.gmra.mrb[0].mxu0 %v1684
        %v3635 = vpop.f32.mrb[0].mxu0
        %v3636 = vadd.f32 0.0, %v3635
        %v3637 = vpop.f32.mrb[0].mxu0
        %3638 = vmatprep.mubr.f32.mxu0 0.0
        %3639 = vmatmul.mubr.f32.gmra.mrb[0].mxu0 %v1687
        %v3640 = vpop.f32.mrb[0].mxu0
        %v3641 = vadd.f32 0.0, %v3640
        %v3642 = vpop.f32.mrb[0].mxu0
        %3643 = vmatprep.mubr.f32.mxu0 0.0
        %3644 = vmatmul.mubr.f32.gmra.mrb[0].mxu0 %v1690
        %v3645 = vpop.f32.mrb[0].mxu0
        %v3646 = vadd.f32 0.0, %v3645
        %v3647 = vpop.f32.mrb[0].mxu0
        %3648 = vmatprep.mubr.f32.mxu0 0.0
        %3649 = vmatmul.mubr.f32.gmra.mrb[0].mxu0 %v1693
        %v3650 = vpop.f32.mrb[0].mxu0
        %v3651 = vadd.f32 0.0, %v3650
        %v3652 = vpop.f32.mrb[0].mxu0
        %3653 = vmatprep.mubr.f32.mxu0 0.0
        %3654 = vmatmul.mubr.f32.gmra.mrb[0].mxu0 %v1696
        %v3655 = vpop.f32.mrb[0].mxu0
        %v3656 = vadd.f32 0.0, %v3655
        %v3657 = vpop.f32.mrb[0].mxu0
        %3658 = vmatprep.mubr.f32.mxu0 0.0
        %3659 = vmatmul.mubr.f32.gmra.mrb[0].mxu0 %v1699
        %v3660 = vpop.f32.mrb[0].mxu0
        %v3661 = vadd.f32 0.0, %v3660
        %v3662 = vpop.f32.mrb[0].mxu0
        %3663 = vmatprep.mubr.f32.mxu0 0.0
        %3664 = vmatmul.mubr.f32.gmra.mrb[0].mxu0 %v1702
        %v3665 = vpop.f32.mrb[0].mxu0
        %v3666 = vadd.f32 0.0, %v3665
        %v3667 = vpop.f32.mrb[0].mxu0
        %3668 = vdwg.mxu0
        %v3669 = vstv %s3519
        %v3670 = vmul.f32 %v3669, %v1870
        %v3671 = vmul.f32 %v3669, %v1873
        %v3672 = vmul.f32 %v3669, %v1876
        %v3673 = vmul.f32 %v3669, %v1879
        %v3674 = vmul.f32 %v3669, %v1882
        %v3675 = vmul.f32 %v3669, %v1885
        %v3676 = vmul.f32 %v3669, %v1888
        %v3677 = vmul.f32 %v3669, %v1891
        %v3678 = vmul.f32 %v3669, %v1894
        %v3679 = vmul.f32 %v3669, %v1897
        %v3680 = vmul.f32 %v3669, %v1900
        %v3681 = vmul.f32 %v3669, %v1903
        %v3682 = vmul.f32 %v3669, %v1906
        %v3683 = vmul.f32 %v3669, %v1909
        %v3684 = vmul.f32 %v3669, %v1912
        %v3685 = vmul.f32 %v3669, %v1915
        %v3686 = vsub.f32 %v3591, %v3670
        %v3687 = vsub.f32 %v3596, %v3671
        %v3688 = vsub.f32 %v3601, %v3672
        %v3689 = vsub.f32 %v3606, %v3673
        %v3690 = vsub.f32 %v3611, %v3674
        %v3691 = vsub.f32 %v3616, %v3675
        %v3692 = vsub.f32 %v3621, %v3676
        %v3693 = vsub.f32 %v3626, %v3677
        %v3694 = vsub.f32 %v3631, %v3678
        %v3695 = vsub.f32 %v3636, %v3679
        %v3696 = vsub.f32 %v3641, %v3680
        %v3697 = vsub.f32 %v3646, %v3681
        %v3698 = vsub.f32 %v3651, %v3682
        %v3699 = vsub.f32 %v3656, %v3683
        %v3700 = vsub.f32 %v3661, %v3684
        %v3701 = vsub.f32 %v3666, %v3685
        %v3702 = vld [vmem:[%s6] sm:$0x1]
        %v3704 = vlaneseq
        %v3705 = vshrl.u32 %v3704, 7
        %v3706 = vsub.s32 0, %v3705
        %v3707 = vrot.slane %v3702, %v3706
        %v3709 = vadd.f32 %v3686, %v3707
        %v3710 = vadd.f32 %v3687, %v3707
        %v3711 = vadd.f32 %v3688, %v3707
        %v3712 = vadd.f32 %v3689, %v3707
        %v3713 = vadd.f32 %v3690, %v3707
        %v3714 = vadd.f32 %v3691, %v3707
        %v3715 = vadd.f32 %v3692, %v3707
        %v3716 = vadd.f32 %v3693, %v3707
        %v3717 = vadd.f32 %v3694, %v3707
        %v3718 = vadd.f32 %v3695, %v3707
        %v3719 = vadd.f32 %v3696, %v3707
        %v3720 = vadd.f32 %v3697, %v3707
        %v3721 = vadd.f32 %v3698, %v3707
        %v3722 = vadd.f32 %v3699, %v3707
        %v3723 = vadd.f32 %v3700, %v3707
        %v3724 = vadd.f32 %v3701, %v3707
        %v3725 = vmin.f32 %v3709, 0.0
        %v3726 = vmin.f32 %v3710, 0.0
        %v3727 = vmin.f32 %v3711, 0.0
        %v3728 = vmin.f32 %v3712, 0.0
        %v3729 = vmin.f32 %v3713, 0.0
        %v3730 = vmin.f32 %v3714, 0.0
        %v3731 = vmin.f32 %v3715, 0.0
        %v3732 = vmin.f32 %v3716, 0.0
        %v3733 = vmin.f32 %v3717, 0.0
        %v3734 = vmin.f32 %v3718, 0.0
        %v3735 = vmin.f32 %v3719, 0.0
        %v3736 = vmin.f32 %v3720, 0.0
        %v3737 = vmin.f32 %v3721, 0.0
        %v3738 = vmin.f32 %v3722, 0.0
        %v3739 = vmin.f32 %v3723, 0.0
        %v3740 = vmin.f32 %v3724, 0.0
        %v3741 = vmul.f32 %v3725, 1.442695
        %v3742 = vpow.pop %v3741
        %v3743 = vmul.f32 %v3726, 1.442695
        %v3744 = vpow.pop %v3743
        %v3745 = vmul.f32 %v3727, 1.442695
        %v3746 = vpow.pop %v3745
        %v3747 = vmul.f32 %v3728, 1.442695
        %v3748 = vpow.pop %v3747
        %v3749 = vmul.f32 %v3729, 1.442695
        %v3750 = vpow.pop %v3749
        %v3751 = vmul.f32 %v3730, 1.442695
        %v3752 = vpow.pop %v3751
        %v3753 = vmul.f32 %v3731, 1.442695
        %v3754 = vpow.pop %v3753
        %v3755 = vmul.f32 %v3732, 1.442695
        %v3756 = vpow.pop %v3755
        %v3757 = vmul.f32 %v3733, 1.442695
        %v3758 = vpow.pop %v3757
        %v3759 = vmul.f32 %v3734, 1.442695
        %v3760 = vpow.pop %v3759
        %v3761 = vmul.f32 %v3735, 1.442695
        %v3762 = vpow.pop %v3761
        %v3763 = vmul.f32 %v3736, 1.442695
        %v3764 = vpow.pop %v3763
        %v3765 = vmul.f32 %v3737, 1.442695
        %v3766 = vpow.pop %v3765
        %v3767 = vmul.f32 %v3738, 1.442695
        %v3768 = vpow.pop %v3767
        %v3769 = vmul.f32 %v3739, 1.442695
        %v3770 = vpow.pop %v3769
        %v3771 = vmul.f32 %v3740, 1.442695
        %v3772 = vpow.pop %v3771
        %v3773 = vld [vmem:[%s416] sm:$0xff]
        %v3774 = vld [vmem:[%s416 + $0x8] sm:$0xff]
        %v3775 = vld [vmem:[%s416 + $0x10] sm:$0xff]
        %v3776 = vld [vmem:[%s416 + $0x18] sm:$0xff]
        %v3777 = vld [vmem:[%s416 + $0x20] sm:$0xff]
        %v3778 = vld [vmem:[%s416 + $0x28] sm:$0xff]
        %v3779 = vld [vmem:[%s416 + $0x30] sm:$0xff]
        %v3780 = vld [vmem:[%s416 + $0x38] sm:$0xff]
        %v3781 = vld [vmem:[%s416 + $0x40] sm:$0xff]
        %v3782 = vld [vmem:[%s416 + $0x48] sm:$0xff]
        %v3783 = vld [vmem:[%s416 + $0x50] sm:$0xff]
        %v3784 = vld [vmem:[%s416 + $0x58] sm:$0xff]
        %v3785 = vld [vmem:[%s416 + $0x60] sm:$0xff]
        %v3786 = vld [vmem:[%s416 + $0x68] sm:$0xff]
        %v3787 = vld [vmem:[%s416 + $0x70] sm:$0xff]
        %v3788 = vld [vmem:[%s416 + $0x78] sm:$0xff]
        %3790 = vset.pattern.permute.xlu0 0
        %3791 = vperm.xlu0 %3790, %v3773
        %v3792 = vpop.permute.xlu0 %3791
        %3795 = vset.pattern.permute.xlu0 0
        %3796 = vperm.xlu0 %3795, %v3774
        %v3797 = vpop.permute.xlu0 %3796
        %3800 = vset.pattern.permute.xlu0 0
        %3801 = vperm.xlu0 %3800, %v3775
        %v3802 = vpop.permute.xlu0 %3801
        %3805 = vset.pattern.permute.xlu0 0
        %3806 = vperm.xlu0 %3805, %v3776
        %v3807 = vpop.permute.xlu0 %3806
        %3810 = vset.pattern.permute.xlu0 0
        %3811 = vperm.xlu0 %3810, %v3777
        %v3812 = vpop.permute.xlu0 %3811
        %3815 = vset.pattern.permute.xlu0 0
        %3816 = vperm.xlu0 %3815, %v3778
        %v3817 = vpop.permute.xlu0 %3816
        %3820 = vset.pattern.permute.xlu0 0
        %3821 = vperm.xlu0 %3820, %v3779
        %v3822 = vpop.permute.xlu0 %3821
        %3825 = vset.pattern.permute.xlu0 0
        %3826 = vperm.xlu0 %3825, %v3780
        %v3827 = vpop.permute.xlu0 %3826
        %3830 = vset.pattern.permute.xlu0 0
        %3831 = vperm.xlu0 %3830, %v3781
        %v3832 = vpop.permute.xlu0 %3831
        %3835 = vset.pattern.permute.xlu0 0
        %3836 = vperm.xlu0 %3835, %v3782
        %v3837 = vpop.permute.xlu0 %3836
        %3840 = vset.pattern.permute.xlu0 0
        %3841 = vperm.xlu0 %3840, %v3783
        %v3842 = vpop.permute.xlu0 %3841
        %3845 = vset.pattern.permute.xlu0 0
        %3846 = vperm.xlu0 %3845, %v3784
        %v3847 = vpop.permute.xlu0 %3846
        %3850 = vset.pattern.permute.xlu0 0
        %3851 = vperm.xlu0 %3850, %v3785
        %v3852 = vpop.permute.xlu0 %3851
        %3855 = vset.pattern.permute.xlu0 0
        %3856 = vperm.xlu0 %3855, %v3786
        %v3857 = vpop.permute.xlu0 %3856
        %3860 = vset.pattern.permute.xlu0 0
        %3861 = vperm.xlu0 %3860, %v3787
        %v3862 = vpop.permute.xlu0 %3861
        %3865 = vset.pattern.permute.xlu0 0
        %3866 = vperm.xlu0 %3865, %v3788
        %v3867 = vpop.permute.xlu0 %3866
        %v3869 = vmul.f32 %v3742, %v3792
        %v3870 = vmul.f32 %v3744, %v3797
        %v3871 = vmul.f32 %v3746, %v3802
        %v3872 = vmul.f32 %v3748, %v3807
        %v3873 = vmul.f32 %v3750, %v3812
        %v3874 = vmul.f32 %v3752, %v3817
        %v3875 = vmul.f32 %v3754, %v3822
        %v3876 = vmul.f32 %v3756, %v3827
        %v3877 = vmul.f32 %v3758, %v3832
        %v3878 = vmul.f32 %v3760, %v3837
        %v3879 = vmul.f32 %v3762, %v3842
        %v3880 = vmul.f32 %v3764, %v3847
        %v3881 = vmul.f32 %v3766, %v3852
        %v3882 = vmul.f32 %v3768, %v3857
        %v3883 = vmul.f32 %v3770, %v3862
        %v3884 = vmul.f32 %v3772, %v3867
        %3885 = vset.pattern.permute.xlu0 1
        %3886 = vperm.xlu0 %3885, %v3773
        %v3887 = vpop.permute.xlu0 %3886
        %3889 = vset.pattern.permute.xlu0 1
        %3890 = vperm.xlu0 %3889, %v3774
        %v3891 = vpop.permute.xlu0 %3890
        %3893 = vset.pattern.permute.xlu0 1
        %3894 = vperm.xlu0 %3893, %v3775
        %v3895 = vpop.permute.xlu0 %3894
        %3897 = vset.pattern.permute.xlu0 1
        %3898 = vperm.xlu0 %3897, %v3776
        %v3899 = vpop.permute.xlu0 %3898
        %3901 = vset.pattern.permute.xlu0 1
        %3902 = vperm.xlu0 %3901, %v3777
        %v3903 = vpop.permute.xlu0 %3902
        %3905 = vset.pattern.permute.xlu0 1
        %3906 = vperm.xlu0 %3905, %v3778
        %v3907 = vpop.permute.xlu0 %3906
        %3909 = vset.pattern.permute.xlu0 1
        %3910 = vperm.xlu0 %3909, %v3779
        %v3911 = vpop.permute.xlu0 %3910
        %3913 = vset.pattern.permute.xlu0 1
        %3914 = vperm.xlu0 %3913, %v3780
        %v3915 = vpop.permute.xlu0 %3914
        %3917 = vset.pattern.permute.xlu0 1
        %3918 = vperm.xlu0 %3917, %v3781
        %v3919 = vpop.permute.xlu0 %3918
        %3921 = vset.pattern.permute.xlu0 1
        %3922 = vperm.xlu0 %3921, %v3782
        %v3923 = vpop.permute.xlu0 %3922
        %3925 = vset.pattern.permute.xlu0 1
        %3926 = vperm.xlu0 %3925, %v3783
        %v3927 = vpop.permute.xlu0 %3926
        %3929 = vset.pattern.permute.xlu0 1
        %3930 = vperm.xlu0 %3929, %v3784
        %v3931 = vpop.permute.xlu0 %3930
        %3933 = vset.pattern.permute.xlu0 1
        %3934 = vperm.xlu0 %3933, %v3785
        %v3935 = vpop.permute.xlu0 %3934
        %3937 = vset.pattern.permute.xlu0 1
        %3938 = vperm.xlu0 %3937, %v3786
        %v3939 = vpop.permute.xlu0 %3938
        %3941 = vset.pattern.permute.xlu0 1
        %3942 = vperm.xlu0 %3941, %v3787
        %v3943 = vpop.permute.xlu0 %3942
        %3945 = vset.pattern.permute.xlu0 1
        %3946 = vperm.xlu0 %3945, %v3788
        %v3947 = vpop.permute.xlu0 %3946
        %v3949 = vadd.f32 %v3869, %v3887
        %v3950 = vadd.f32 %v3870, %v3891
        %v3951 = vadd.f32 %v3871, %v3895
        %v3952 = vadd.f32 %v3872, %v3899
        %v3953 = vadd.f32 %v3873, %v3903
        %v3954 = vadd.f32 %v3874, %v3907
        %v3955 = vadd.f32 %v3875, %v3911
        %v3956 = vadd.f32 %v3876, %v3915
        %v3957 = vadd.f32 %v3877, %v3919
        %v3958 = vadd.f32 %v3878, %v3923
        %v3959 = vadd.f32 %v3879, %v3927
        %v3960 = vadd.f32 %v3880, %v3931
        %v3961 = vadd.f32 %v3881, %v3935
        %v3962 = vadd.f32 %v3882, %v3939
        %v3963 = vadd.f32 %v3883, %v3943
        %v3964 = vadd.f32 %v3884, %v3947
        %3965 = vst [vmem:[%s436] sm:$0xff] %v3949
        %3966 = vst [vmem:[%s436 + $0x8] sm:$0xff] %v3950
        %3967 = vst [vmem:[%s436 + $0x10] sm:$0xff] %v3951
        %3968 = vst [vmem:[%s436 + $0x18] sm:$0xff] %v3952
        %3969 = vst [vmem:[%s436 + $0x20] sm:$0xff] %v3953
        %3970 = vst [vmem:[%s436 + $0x28] sm:$0xff] %v3954
        %3971 = vst [vmem:[%s436 + $0x30] sm:$0xff] %v3955
        %3972 = vst [vmem:[%s436 + $0x38] sm:$0xff] %v3956
        %3973 = vst [vmem:[%s436 + $0x40] sm:$0xff] %v3957
        %3974 = vst [vmem:[%s436 + $0x48] sm:$0xff] %v3958
        %3975 = vst [vmem:[%s436 + $0x50] sm:$0xff] %v3959
        %3976 = vst [vmem:[%s436 + $0x58] sm:$0xff] %v3960
        %3977 = vst [vmem:[%s436 + $0x60] sm:$0xff] %v3961
        %3978 = vst [vmem:[%s436 + $0x68] sm:$0xff] %v3962
        %3979 = vst [vmem:[%s436 + $0x70] sm:$0xff] %v3963
        %3980 = vst [vmem:[%s436 + $0x78] sm:$0xff] %v3964
        %s3981 = smul.u32 16, %s27
        %p3982 = scmp.lt.s32.totalorder %s26, 1
        %s3983 = scalar_select %p3982, %s26, 1
        %p3984 = scmp.lt.s32.totalorder %s3981, 31
        %s3985 = scalar_select %p3984, %s3981, 31
        %s3986 = smul.addr %s3983, 32
        %s3987 = sadd.s32 %s3985, %s3986
        %s3988 = smul.addr %s3987, 8
        %s3989 = scalar_lea.vmem %s8, %s3988
        %s3990 = smul.u32 16, %s27
        %p3991 = scmp.lt.s32.totalorder %s26, 1
        %s3992 = scalar_select %p3991, %s26, 1
        %p3993 = scmp.lt.s32.totalorder %s3990, 31
        %s3994 = scalar_select %p3993, %s3990, 31
        %s3995 = smul.addr %s3992, 32
        %s3996 = sadd.s32 %s3994, %s3995
        %s3997 = smul.addr %s3996, 8
        %s3998 = scalar_lea.vmem %s9, %s3997
        // Predicated region
        $region57: #{basic_block_forward.2} parent=51 // pred_check
          %p3999 = pneg %p237
        $region58: #{basic_block_forward.2} parent=51 // pred_check_branch
          %4001 = sbr.rel (%p3999) target = $region60
        $region59: #{basic_block_forward.2} parent=51 // pred_region
          %s4002 = smul.u32 16, %s27
        $region60: #{basic_block_forward.2} parent=51 // pred_fallthru
          _
        // Predicated region
        $region61: #{basic_block_forward.2} parent=51 // pred_check
          %p4003 = pneg %p265
        $region62: #{basic_block_forward.2} parent=51 // pred_check_branch
          %4005 = sbr.rel (%p4003) target = $region64
        $region63: #{basic_block_forward.2} parent=51 // pred_region
          %s4006 = smul.u32 16, %s27
        $region64: #{basic_block_forward.2} parent=51 // pred_fallthru
          _
      $region52: #{basic_block_forward.2} parent=5 // pred_fallthru
        _
      %p4007 = scmp.le.s32.totalorder 2, %s17
      // Predicated region
      $region65: #{basic_block_forward.2} parent=5 // pred_check
        %p4008 = pneg %p4007
      $region66: #{basic_block_forward.2} parent=5 // pred_check_branch
        %4010 = sbr.rel (%p4008) target = $region68
      $region67: #{basic_block_forward.2} parent=5 // pred_region
        %s4011 = ssub.s32 %s17, 2
        // Predicated region
        $region69: #{basic_block_forward.2} parent=67 // pred_check
          %p4012 = pneg %p243
        $region70: #{basic_block_forward.2} parent=67 // pred_check_branch
          %4014 = sbr.rel (%p4012) target = $region72
        $region71: #{basic_block_forward.2} parent=67 // pred_region
          %s4015 = smul.u32 16, %s29
          %p4016 = scmp.lt.s32.totalorder %s28, 1
          %s4017 = scalar_select %p4016, %s28, 1
          %p4018 = scmp.lt.s32.totalorder %s4015, 31
          %s4019 = scalar_select %p4018, %s4015, 31
          %s4020 = smul.addr %s4017, 32
          %s4021 = sadd.s32 %s4019, %s4020
          %s4022 = smul.addr %s4021, 8
          %s4023 = scalar_lea.vmem %s8, %s4022
        $region72: #{basic_block_forward.2} parent=67 // pred_fallthru
          _
        // Predicated region
        $region73: #{basic_block_forward.2} parent=67 // pred_check
          %p4024 = pneg %p271
        $region74: #{basic_block_forward.2} parent=67 // pred_check_branch
          %4026 = sbr.rel (%p4024) target = $region76
        $region75: #{basic_block_forward.2} parent=67 // pred_region
          %s4027 = smul.u32 16, %s29
          %p4028 = scmp.lt.s32.totalorder %s28, 1
          %s4029 = scalar_select %p4028, %s28, 1
          %p4030 = scmp.lt.s32.totalorder %s4027, 31
          %s4031 = scalar_select %p4030, %s4027, 31
          %s4032 = smul.addr %s4029, 32
          %s4033 = sadd.s32 %s4031, %s4032
          %s4034 = smul.addr %s4033, 8
          %s4035 = scalar_lea.vmem %s9, %s4034
        $region76: #{basic_block_forward.2} parent=67 // pred_fallthru
          _
      $region68: #{basic_block_forward.2} parent=5 // pred_fallthru
        _
    $region6: #{basic_block_forward.2} parent=1 // loop_footer
      %s21 = sadd.s32 1, %s17
    $region7: #{basic_block_forward.2} parent=1 // loop_footer_branch
      %16 = sbr.rel target = $region3
    $region8: #{basic_block_forward.2} parent=1 // loop_exit
      _
    %4036 = vsyncpa [#allocation3], 1
    %s4037 = scalar_lea.sflag [#allocation3], 1
    %4038 = vsyncpa %s4037, 1

// kernel: basic_block_forward.3
$region0: #{basic_block_forward.3}
  #allocation0 [shape = 'u32[]', space=smem, size = 0x4, offset = 0x4, fixed_abs, tag = 'smem constant byte address 0x4 - core index']
  #allocation1 [shape = 'u32[144,128]{1,0:T(1,128)}', space=vmem, size = 0x12000, scoped, tag = 'internal scratch']
  %s0 = inlined_call_operand.vmem [shape: f32[2], index: 0, kind: input, shape index: {}]
  %s1 = inlined_call_operand.vmem [shape: f32[2,18,18,8], index: 1, kind: input, shape index: {}]
  %s2 = inlined_call_operand.vmem [shape: f32[9,8,128], index: 2, kind: input, shape index: {}]
  %s3 = inlined_call_operand.vmem [shape: f32[1,128], index: 3, kind: input, shape index: {}]
  %s4 = inlined_call_operand.vmem [shape: f32[256,2], index: 4, kind: input, shape index: {}]
  %s5 = inlined_call_operand.vmem [shape: f32[2,256,128], index: 5, kind: input, shape index: {}]
  %s6 = inlined_call_operand.vmem [shape: f32[2,256,128], index: 6, kind: output, shape index: {}]
  %s7 = sld [smem:[#allocation0]]
  $region61: #{basic_block_forward.3} parent=0
    _
  %s9 = ssub.s32 1, %s7
  %s10 = scalar_select 0, %s9, %s7
  $region1: #{basic_block_forward.3} parent=0
    #allocation2 [shape = 'u8[512]{0}', space=smem, size = 0x200, scoped, tag = 'input window, operand 0, single buffered']
    #allocation3 [shape = 's32[2]{0}', space=sflag, size = 0x8, scoped, tag = 'scoped memory for basic_block_forward.3']
    %11 = vsyncpa [#allocation3], 0
    loop: start=0, step=1, limit=6
    $region2: #{basic_block_forward.3} parent=1 // loop_pre_header
      _
    $region3: #{basic_block_forward.3} parent=1 // loop_header
      %s13 = sphi 0, %s17
      %p14 = scmp.ge.s32.totalorder %s13, 6
      %s20 = sphi 0, %s32
      %s21 = sphi 0, %s28
      %s22 = sphi 0, %s20
      %s23 = sphi 0, %s21
      %s24 = sphi 0, %s22
      %s25 = sphi 0, %s23
      %s33 = sphi 0, %s33
      %s35 = sphi 0, %s33
      %s36 = sphi 0, %s35
      %s50 = sphi 0, %s36
      %s56 = sphi 0, %s58
      %s59 = sphi 0, %s56
      %s60 = sphi 0, %s59
      %s76 = sphi 0, %s60
      %s80 = sphi 0, %s80
      %s82 = sphi 0, %s80
      %s83 = sphi 0, %s82
      %s97 = sphi 0, %s83
      %s101 = sphi 0, %s101
      %s103 = sphi 0, %s101
      %s104 = sphi 0, %s103
      %s118 = sphi 0, %s104
      %s124 = sphi 0, %s126
      %s127 = sphi 0, %s124
      %s128 = sphi 0, %s127
      %s144 = sphi 0, %s128
      %s152 = sphi 0, %s154
      %s155 = sphi 0, %s152
      %s156 = sphi 0, %s155
      %s172 = sphi 0, %s156
      %s180 = sphi 0, %s182
      %s183 = sphi 0, %s180
      %s184 = sphi 0, %s183
      %s200 = sphi 0, %s184
    $region4: #{basic_block_forward.3} parent=1 // loop_header_branch
      %16 = sbr.rel (%p14) target = $region8
    $region5: #{basic_block_forward.3} parent=1 // loop_body
      %s18 = ssub.s32 %s13, 1
      %s19 = ssub.s32 %s13, 2
      %s26 = sadd.s32 1, %s21
      %p27 = scmp.ge.s32.totalorder %s26, 2
      %s28 = scalar_select %p27, 0, %s26
      %s29 = sadd.s32 1, %s20
      %s30 = scalar_select %p27, %s29, %s20
      %p31 = scmp.ge.s32.totalorder %s30, 2
      %s32 = scalar_select %p31, 0, %s30
      %s34 = sadd.s32 %s33, 1
      %p37 = scmp.eq.s32.totalorder %s13, 3
      %p38 = scmp.ne.s32.totalorder %s33, %s35
      %p39 = scmp.eq.s32.totalorder %s13, 0
      %p40 = por %p38, %p39
      %p41 = scmp.ne.s32.totalorder %s33, %s35
      %p42 = scmp.eq.s32.totalorder %s18, 3
      %p43 = por %p41, %p42
      %p44 = scmp.ne.s32.totalorder %s35, %s36
      %p45 = scmp.eq.s32.totalorder %s18, 0
      %p46 = por %p44, %p45
      %p47 = scmp.ne.s32.totalorder %s35, %s36
      %p48 = scmp.eq.s32.totalorder %s19, 3
      %p49 = por %p47, %p48
      %p51 = scmp.ne.s32.totalorder %s36, %s50
      %p52 = scmp.eq.s32.totalorder %s19, 0
      %p53 = por %p51, %p52
      %s54 = ssub.s32 %s20, %s32
      %p55 = scmp.eq.s32.totalorder %s54, 0
      %s57 = sadd.s32 %s56, 1
      %s58 = scalar_select %p55, %s56, %s57
      %p61 = pneg %p55
      %p62 = scmp.eq.s32.totalorder %s13, 3
      %p63 = por %p61, %p62
      %p64 = scmp.ne.s32.totalorder %s56, %s59
      %p65 = scmp.eq.s32.totalorder %s13, 0
      %p66 = por %p64, %p65
      %p67 = scmp.ne.s32.totalorder %s56, %s59
      %p68 = scmp.eq.s32.totalorder %s18, 3
      %p69 = por %p67, %p68
      %p70 = scmp.ne.s32.totalorder %s59, %s60
      %p71 = scmp.eq.s32.totalorder %s18, 0
      %p72 = por %p70, %p71
      %p73 = scmp.ne.s32.totalorder %s59, %s60
      %p74 = scmp.eq.s32.totalorder %s19, 3
      %p75 = por %p73, %p74
      %p77 = scmp.ne.s32.totalorder %s60, %s76
      %p78 = scmp.eq.s32.totalorder %s19, 0
      %p79 = por %p77, %p78
      %s81 = sadd.s32 %s80, 1
      %p84 = scmp.eq.s32.totalorder %s13, 3
      %p85 = scmp.ne.s32.totalorder %s80, %s82
      %p86 = scmp.eq.s32.totalorder %s13, 0
      %p87 = por %p85, %p86
      %p88 = scmp.ne.s32.totalorder %s80, %s82
      %p89 = scmp.eq.s32.totalorder %s18, 3
      %p90 = por %p88, %p89
      %p91 = scmp.ne.s32.totalorder %s82, %s83
      %p92 = scmp.eq.s32.totalorder %s18, 0
      %p93 = por %p91, %p92
      %p94 = scmp.ne.s32.totalorder %s82, %s83
      %p95 = scmp.eq.s32.totalorder %s19, 3
      %p96 = por %p94, %p95
      %p98 = scmp.ne.s32.totalorder %s83, %s97
      %p99 = scmp.eq.s32.totalorder %s19, 0
      %p100 = por %p98, %p99
      %s102 = sadd.s32 %s101, 1
      %p105 = scmp.eq.s32.totalorder %s13, 3
      %p106 = scmp.ne.s32.totalorder %s101, %s103
      %p107 = scmp.eq.s32.totalorder %s13, 0
      %p108 = por %p106, %p107
      %p109 = scmp.ne.s32.totalorder %s101, %s103
      %p110 = scmp.eq.s32.totalorder %s18, 3
      %p111 = por %p109, %p110
      %p112 = scmp.ne.s32.totalorder %s103, %s104
      %p113 = scmp.eq.s32.totalorder %s18, 0
      %p114 = por %p112, %p113
      %p115 = scmp.ne.s32.totalorder %s103, %s104
      %p116 = scmp.eq.s32.totalorder %s19, 3
      %p117 = por %p115, %p116
      %p119 = scmp.ne.s32.totalorder %s104, %s118
      %p120 = scmp.eq.s32.totalorder %s19, 0
      %p121 = por %p119, %p120
      %s122 = ssub.s32 %s21, %s28
      %p123 = scmp.eq.s32.totalorder %s122, 0
      %s125 = sadd.s32 %s124, 1
      %s126 = scalar_select %p123, %s124, %s125
      %p129 = pneg %p123
      %p130 = scmp.eq.s32.totalorder %s13, 3
      %p131 = por %p129, %p130
      %p132 = scmp.ne.s32.totalorder %s124, %s127
      %p133 = scmp.eq.s32.totalorder %s13, 0
      %p134 = por %p132, %p133
      %p135 = scmp.ne.s32.totalorder %s124, %s127
      %p136 = scmp.eq.s32.totalorder %s18, 3
      %p137 = por %p135, %p136
      %p138 = scmp.ne.s32.totalorder %s127, %s128
      %p139 = scmp.eq.s32.totalorder %s18, 0
      %p140 = por %p138, %p139
      %p141 = scmp.ne.s32.totalorder %s127, %s128
      %p142 = scmp.eq.s32.totalorder %s19, 3
      %p143 = por %p141, %p142
      %p145 = scmp.ne.s32.totalorder %s128, %s144
      %p146 = scmp.eq.s32.totalorder %s19, 0
      %p147 = por %p145, %p146
      %s148 = ssub.s32 %s20, %s32
      %s149 = ssub.s32 %s21, %s28
      %s150 = sor.u32 %s148, %s149
      %p151 = scmp.eq.s32.totalorder %s150, 0
      %s153 = sadd.s32 %s152, 1
      %s154 = scalar_select %p151, %s152, %s153
      %p157 = pneg %p151
      %p158 = scmp.eq.s32.totalorder %s13, 3
      %p159 = por %p157, %p158
      %p160 = scmp.ne.s32.totalorder %s152, %s155
      %p161 = scmp.eq.s32.totalorder %s13, 0
      %p162 = por %p160, %p161
      %p163 = scmp.ne.s32.totalorder %s152, %s155
      %p164 = scmp.eq.s32.totalorder %s18, 3
      %p165 = por %p163, %p164
      %p166 = scmp.ne.s32.totalorder %s155, %s156
      %p167 = scmp.eq.s32.totalorder %s18, 0
      %p168 = por %p166, %p167
      %p169 = scmp.ne.s32.totalorder %s155, %s156
      %p170 = scmp.eq.s32.totalorder %s19, 3
      %p171 = por %p169, %p170
      %p173 = scmp.ne.s32.totalorder %s156, %s172
      %p174 = scmp.eq.s32.totalorder %s19, 0
      %p175 = por %p173, %p174
      %s176 = ssub.s32 %s20, %s32
      %s177 = ssub.s32 %s21, %s28
      %s178 = sor.u32 %s176, %s177
      %p179 = scmp.eq.s32.totalorder %s178, 0
      %s181 = sadd.s32 %s180, 1
      %s182 = scalar_select %p179, %s180, %s181
      %p185 = pneg %p179
      %p186 = scmp.eq.s32.totalorder %s13, 3
      %p187 = por %p185, %p186
      %p188 = scmp.ne.s32.totalorder %s180, %s183
      %p189 = scmp.eq.s32.totalorder %s13, 0
      %p190 = por %p188, %p189
      %p191 = scmp.ne.s32.totalorder %s180, %s183
      %p192 = scmp.eq.s32.totalorder %s18, 3
      %p193 = por %p191, %p192
      %p194 = scmp.ne.s32.totalorder %s183, %s184
      %p195 = scmp.eq.s32.totalorder %s18, 0
      %p196 = por %p194, %p195
      %p197 = scmp.ne.s32.totalorder %s183, %s184
      %p198 = scmp.eq.s32.totalorder %s19, 3
      %p199 = por %p197, %p198
      %p201 = scmp.ne.s32.totalorder %s184, %s200
      %p202 = scmp.eq.s32.totalorder %s19, 0
      %p203 = por %p201, %p202
      %p204 = scmp.le.s32.totalorder 1, %s13
      %p205 = scmp.lt.s32.totalorder %s13, 5
      %p206 = pnand %p204, %p205
      %p207 = pneg %p206
      // Predicated region
      $region9: #{basic_block_forward.3} parent=5 // pred_check
        _
      $region10: #{basic_block_forward.3} parent=5 // pred_check_branch
        %209 = sbr.rel (%p206) target = $region12
      $region11: #{basic_block_forward.3} parent=5 // pred_region
        %s210 = ssub.s32 %s13, 1
        // Predicated region
        $region13: #{basic_block_forward.3} parent=11 // pred_check
          %p211 = pneg %p46
        $region14: #{basic_block_forward.3} parent=11 // pred_check_branch
          %213 = sbr.rel (%p211) target = $region16
        $region15: #{basic_block_forward.3} parent=11 // pred_region
          %s215 = ssub.s32 16, 16
          %216 = vsyncadd [#allocation3], %s215
          %s218 = sshll.u32 %s0, 4
          %s219 = int_to_ptr.vmem [resolvable:$true] %s218
          %221 = dma.vmem_to_smem %s219, 16, [#allocation2], [#allocation3]
        $region16: #{basic_block_forward.3} parent=11 // pred_fallthru
          _
        // Predicated region
        $region17: #{basic_block_forward.3} parent=11 // pred_check
          %p222 = pneg %p93
        $region18: #{basic_block_forward.3} parent=11 // pred_check_branch
          %224 = sbr.rel (%p222) target = $region20
        $region19: #{basic_block_forward.3} parent=11 // pred_region
          _
        $region20: #{basic_block_forward.3} parent=11 // pred_fallthru
          _
        // Predicated region
        $region21: #{basic_block_forward.3} parent=11 // pred_check
          %p225 = pneg %p114
        $region22: #{basic_block_forward.3} parent=11 // pred_check_branch
          %227 = sbr.rel (%p225) target = $region24
        $region23: #{basic_block_forward.3} parent=11 // pred_region
          _
        $region24: #{basic_block_forward.3} parent=11 // pred_fallthru
          _
      $region12: #{basic_block_forward.3} parent=5 // pred_fallthru
        _
      %p228 = scmp.lt.s32.totalorder %s13, 4
      // Predicated region
      $region25: #{basic_block_forward.3} parent=5 // pred_check
        %p229 = pneg %p228
      $region26: #{basic_block_forward.3} parent=5 // pred_check_branch
        %231 = sbr.rel (%p229) target = $region28
      $region27: #{basic_block_forward.3} parent=5 // pred_region
        // Predicated region
        $region29: #{basic_block_forward.3} parent=27 // pred_check
          %p232 = pneg %p66
        $region30: #{basic_block_forward.3} parent=27 // pred_check_branch
          %234 = sbr.rel (%p232) target = $region32
        $region31: #{basic_block_forward.3} parent=27 // pred_region
          %p235 = scmp.lt.s32.totalorder %s20, 1
          %s236 = scalar_select %p235, %s20, 1
          %s237 = smul.addr %s236, 54
          %s238 = smul.addr %s237, 8
          %s239 = scalar_lea.vmem %s1, %s238
        $region32: #{basic_block_forward.3} parent=27 // pred_fallthru
          _
        // Predicated region
        $region33: #{basic_block_forward.3} parent=27 // pred_check
          %p240 = pneg %p134
        $region34: #{basic_block_forward.3} parent=27 // pred_check_branch
          %242 = sbr.rel (%p240) target = $region36
        $region35: #{basic_block_forward.3} parent=27 // pred_region
          %s243 = smul.u32 16, %s21
          %p244 = scmp.lt.s32.totalorder %s243, 31
          %s245 = scalar_select %p244, %s243, 31
          %s246 = smul.addr %s245, 8
          %s247 = scalar_lea.vmem %s4, %s246
          %s248 = smul.u32 16, %s21
        $region36: #{basic_block_forward.3} parent=27 // pred_fallthru
          _
        // Predicated region
        $region37: #{basic_block_forward.3} parent=27 // pred_check
          %p249 = pneg %p162
        $region38: #{basic_block_forward.3} parent=27 // pred_check_branch
          %251 = sbr.rel (%p249) target = $region40
        $region39: #{basic_block_forward.3} parent=27 // pred_region
          %s252 = smul.u32 16, %s21
          %p253 = scmp.lt.s32.totalorder %s20, 1
          %s254 = scalar_select %p253, %s20, 1
          %p255 = scmp.lt.s32.totalorder %s252, 31
          %s256 = scalar_select %p255, %s252, 31
          %s257 = smul.addr %s254, 32
          %s258 = sadd.s32 %s256, %s257
          %s259 = smul.addr %s258, 8
          %s260 = scalar_lea.vmem %s5, %s259
          %s261 = smul.u32 16, %s21
        $region40: #{basic_block_forward.3} parent=27 // pred_fallthru
          _
      $region28: #{basic_block_forward.3} parent=5 // pred_fallthru
        _
      %p262 = scmp.le.s32.totalorder 1, %s13
      %p263 = scmp.lt.s32.totalorder %s13, 5
      %p264 = pnand %p262, %p263
      %p265 = pneg %p264
      // Predicated region
      $region41: #{basic_block_forward.3} parent=5 // pred_check
        _
      $region42: #{basic_block_forward.3} parent=5 // pred_check_branch
        %267 = sbr.rel (%p264) target = $region44
      $region43: #{basic_block_forward.3} parent=5 // pred_region
        %s268 = ssub.s32 %s13, 1
        // Predicated region
        $region45: #{basic_block_forward.3} parent=43 // pred_check
          %p269 = pneg %p46
        $region46: #{basic_block_forward.3} parent=43 // pred_check_branch
          %271 = sbr.rel (%p269) target = $region48
        $region47: #{basic_block_forward.3} parent=43 // pred_region
          %272 = dma.done [#allocation3], 16
        $region48: #{basic_block_forward.3} parent=43 // pred_fallthru
          _
        %273 = sfence
        %p274 = pneg %p46
        %p275 = pneg %p43
        %p276 = scmp.lt.s32.totalorder %s22, 1
        %s277 = scalar_select %p276, %s22, 1
        %s278 = smul.addr %s277, 54
        %s279 = smul.addr %s278, 8
        %s280 = scalar_lea.vmem %s1, %s279
        %p281 = pneg %p72
        %p282 = pneg %p69
        %p283 = pneg %p93
        %p284 = pneg %p90
        %p285 = pneg %p114
        %p286 = pneg %p111
        %s287 = smul.u32 16, %s23
        %p288 = scmp.lt.s32.totalorder %s287, 31
        %s289 = scalar_select %p288, %s287, 31
        %s290 = smul.addr %s289, 8
        %s291 = scalar_lea.vmem %s4, %s290
        %p292 = pneg %p140
        %p293 = pneg %p137
        %s294 = smul.u32 16, %s23
        %p295 = scmp.lt.s32.totalorder %s22, 1
        %s296 = scalar_select %p295, %s22, 1
        %p297 = scmp.lt.s32.totalorder %s294, 31
        %s298 = scalar_select %p297, %s294, 31
        %s299 = smul.addr %s296, 32
        %s300 = sadd.s32 %s298, %s299
        %s301 = smul.addr %s300, 8
        %s302 = scalar_lea.vmem %s5, %s301
        %p303 = pneg %p168
        %p304 = pneg %p165
        %p305 = pneg %p196
        %p306 = pneg %p193
        %s307 = smul.u32 16, %s23
        %p308 = scmp.lt.s32.totalorder %s22, 1
        %s309 = scalar_select %p308, %s22, 1
        %p310 = scmp.lt.s32.totalorder %s307, 31
        %s311 = scalar_select %p310, %s307, 31
        %s312 = smul.addr %s309, 32
        %s313 = sadd.s32 %s311, %s312
        %s314 = smul.addr %s313, 8
        %s315 = scalar_lea.vmem %s6, %s314
        %p316 = scmp.lt.s32.totalorder %s22, 1
        %s317 = scalar_select %p316, %s22, 1
        %s318 = smul.addr %s317, 54
        %s319 = smul.addr %s318, 8
        %s320 = scalar_lea.vmem %s1, %s319
        %s321 = smul.u32 16, %s23
        %p322 = scmp.lt.s32.totalorder %s321, 31
        %s323 = scalar_select %p322, %s321, 31
        %s324 = smul.addr %s323, 8
        %s325 = scalar_lea.vmem %s4, %s324
        %s326 = smul.u32 16, %s23
        %s327 = smul.u32 16, %s23
        %p328 = scmp.lt.s32.totalorder %s22, 1
        %s329 = scalar_select %p328, %s22, 1
        %p330 = scmp.lt.s32.totalorder %s327, 31
        %s331 = scalar_select %p330, %s327, 31
        %s332 = smul.addr %s329, 32
        %s333 = sadd.s32 %s331, %s332
        %s334 = smul.addr %s333, 8
        %s335 = scalar_lea.vmem %s5, %s334
        %s336 = smul.u32 16, %s23
        %s337 = smul.u32 16, %s23
        %p338 = scmp.lt.s32.totalorder %s22, 1
        %s339 = scalar_select %p338, %s22, 1
        %p340 = scmp.lt.s32.totalorder %s337, 31
        %s341 = scalar_select %p340, %s337, 31
        %s342 = smul.addr %s339, 32
        %s343 = sadd.s32 %s341, %s342
        %s344 = smul.addr %s343, 8
        %s345 = scalar_lea.vmem %s6, %s344
        %s346 = smul.u32 16, %s23
        %s347 = smul.u32 %s23, 8
        %s348 = sld [smem:[#allocation2]]
        %s349 = smul.u32 %s347, 24
        %s350 = scalar_lea.vmem %s320, %s349
        %v351 = vld [vmem:[%s350] sm:$0xff]
        %v352 = vld [vmem:[%s350 + $0x8] sm:$0xff]
        %v353 = vld [vmem:[%s350 + $0x18] sm:$0xff]
        %v354 = vld [vmem:[%s350 + $0x20] sm:$0xff]
        %v355 = vld [vmem:[%s350 + $0x30] sm:$0xff]
        %v356 = vld [vmem:[%s350 + $0x38] sm:$0xff]
        %v357 = vld [vmem:[%s350 + $0x48] sm:$0xff]
        %v358 = vld [vmem:[%s350 + $0x50] sm:$0xff]
        %v359 = vld [vmem:[%s350 + $0x60] sm:$0xff]
        %v360 = vld [vmem:[%s350 + $0x68] sm:$0xff]
        %v361 = vld [vmem:[%s350 + $0x78] sm:$0xff]
        %v362 = vld [vmem:[%s350 + $0x80] sm:$0xff]
        %v363 = vld [vmem:[%s350 + $0x90] sm:$0xff]
        %v364 = vld [vmem:[%s350 + $0x98] sm:$0xff]
        %v365 = vld [vmem:[%s350 + $0xa8] sm:$0xff]
        %v366 = vld [vmem:[%s350 + $0xb0] sm:$0xff]
        %v367 = vld [vmem:[%s2] sm:$0xff]
        %v368 = vmul.f32 %v351, %v351
        %v369 = vmul.f32 %v352, %v352
        %v370 = vmul.f32 %v353, %v353
        %v371 = vmul.f32 %v354, %v354
        %v372 = vmul.f32 %v355, %v355
        %v373 = vmul.f32 %v356, %v356
        %v374 = vmul.f32 %v357, %v357
        %v375 = vmul.f32 %v358, %v358
        %v376 = vmul.f32 %v359, %v359
        %v377 = vmul.f32 %v360, %v360
        %v378 = vmul.f32 %v361, %v361
        %v379 = vmul.f32 %v362, %v362
        %v380 = vmul.f32 %v363, %v363
        %v381 = vmul.f32 %v364, %v364
        %v382 = vmul.f32 %v365, %v365
        %v383 = vmul.f32 %v366, %v366
        %vm384 = vcmask 64512
        %v385 = vsel %vm384, %v368, 0.0
        %386 = vadd.xlane.f32.xlu0 %v385
        %v387 = vpop.xlane.xlu0 %386
        %v388 = vsel %vm384, %v369, 0.0
        %389 = vadd.xlane.f32.xlu0 %v388
        %v390 = vpop.xlane.xlu0 %389
        %v391 = vsel %vm384, %v370, 0.0
        %392 = vadd.xlane.f32.xlu0 %v391
        %v393 = vpop.xlane.xlu0 %392
        %v394 = vsel %vm384, %v371, 0.0
        %395 = vadd.xlane.f32.xlu0 %v394
        %v396 = vpop.xlane.xlu0 %395
        %v397 = vsel %vm384, %v372, 0.0
        %398 = vadd.xlane.f32.xlu0 %v397
        %v399 = vpop.xlane.xlu0 %398
        %v400 = vsel %vm384, %v373, 0.0
        %401 = vadd.xlane.f32.xlu0 %v400
        %v402 = vpop.xlane.xlu0 %401
        %v403 = vsel %vm384, %v374, 0.0
        %404 = vadd.xlane.f32.xlu0 %v403
        %v405 = vpop.xlane.xlu0 %404
        %v406 = vsel %vm384, %v375, 0.0
        %407 = vadd.xlane.f32.xlu0 %v406
        %v408 = vpop.xlane.xlu0 %407
        %v409 = vsel %vm384, %v376, 0.0
        %410 = vadd.xlane.f32.xlu0 %v409
        %v411 = vpop.xlane.xlu0 %410
        %v412 = vsel %vm384, %v377, 0.0
        %413 = vadd.xlane.f32.xlu0 %v412
        %v414 = vpop.xlane.xlu0 %413
        %v415 = vsel %vm384, %v378, 0.0
        %416 = vadd.xlane.f32.xlu0 %v415
        %v417 = vpop.xlane.xlu0 %416
        %v418 = vsel %vm384, %v379, 0.0
        %419 = vadd.xlane.f32.xlu0 %v418
        %v420 = vpop.xlane.xlu0 %419
        %v421 = vsel %vm384, %v380, 0.0
        %422 = vadd.xlane.f32.xlu0 %v421
        %v423 = vpop.xlane.xlu0 %422
        %v424 = vsel %vm384, %v381, 0.0
        %425 = vadd.xlane.f32.xlu0 %v424
        %v426 = vpop.xlane.xlu0 %425
        %v427 = vsel %vm384, %v382, 0.0
        %428 = vadd.xlane.f32.xlu0 %v427
        %v429 = vpop.xlane.xlu0 %428
        %v430 = vsel %vm384, %v383, 0.0
        %431 = vadd.xlane.f32.xlu0 %v430
        %v432 = vpop.xlane.xlu0 %431
        %v433 = vld [vmem:[%s350 + $0x1] sm:$0xff]
        %v434 = vld [vmem:[%s350 + $0x9] sm:$0xff]
        %v435 = vld [vmem:[%s350 + $0x19] sm:$0xff]
        %v436 = vld [vmem:[%s350 + $0x21] sm:$0xff]
        %v437 = vld [vmem:[%s350 + $0x31] sm:$0xff]
        %v438 = vld [vmem:[%s350 + $0x39] sm:$0xff]
        %v439 = vld [vmem:[%s350 + $0x49] sm:$0xff]
        %v440 = vld [vmem:[%s350 + $0x51] sm:$0xff]
        %v441 = vld [vmem:[%s350 + $0x61] sm:$0xff]
        %v442 = vld [vmem:[%s350 + $0x69] sm:$0xff]
        %v443 = vld [vmem:[%s350 + $0x79] sm:$0xff]
        %v444 = vld [vmem:[%s350 + $0x81] sm:$0xff]
        %v445 = vld [vmem:[%s350 + $0x91] sm:$0xff]
        %v446 = vld [vmem:[%s350 + $0x99] sm:$0xff]
        %v447 = vld [vmem:[%s350 + $0xa9] sm:$0xff]
        %v448 = vld [vmem:[%s350 + $0xb1] sm:$0xff]
        %s449 = scalar_lea.vmem %s2, 8
        %v450 = vld [vmem:[%s449] sm:$0xff]
        %v452 = vsel %vm384, %v433, 0
        %v455 = vsel %vm384, %v434, 0
        %v458 = vsel %vm384, %v435, 0
        %v461 = vsel %vm384, %v436, 0
        %v464 = vsel %vm384, %v437, 0
        %v467 = vsel %vm384, %v438, 0
        %v470 = vsel %vm384, %v439, 0
        %v473 = vsel %vm384, %v440, 0
        %v476 = vsel %vm384, %v441, 0
        %v479 = vsel %vm384, %v442, 0
        %v482 = vsel %vm384, %v443, 0
        %v485 = vsel %vm384, %v444, 0
        %v488 = vsel %vm384, %v445, 0
        %v491 = vsel %vm384, %v446, 0
        %v494 = vsel %vm384, %v447, 0
        %v497 = vsel %vm384, %v448, 0
        %499 = vmatprep.subr.mxu0 0.0
        %500 = vmatpush1.msra.mxu0 %v450
        %501 = vmatprep.subr.mxu0 0.0
        %502 = vmatpush1.msra.mxu0 0.0
        %503 = vmatprep.subr.mxu0 0.0
        %504 = vmatpush1.msra.mxu0 0.0
        %505 = vmatprep.subr.mxu0 0.0
        %506 = vmatpush1.msra.mxu0 0.0
        %507 = vmatprep.subr.mxu0 0.0
        %508 = vmatpush1.msra.mxu0 0.0
        %509 = vmatprep.subr.mxu0 0.0
        %510 = vmatpush1.msra.mxu0 0.0
        %511 = vmatprep.subr.mxu0 0.0
        %512 = vmatpush1.msra.mxu0 0.0
        %513 = vmatprep.subr.mxu0 0.0
        %514 = vmatpush1.msra.mxu0 0.0
        %515 = vmatprep.subr.mxu0 0.0
        %516 = vmatpush1.msra.mxu0 0.0
        %517 = vmatprep.subr.mxu0 0.0
        %518 = vmatpush1.msra.mxu0 0.0
        %519 = vmatprep.subr.mxu0 0.0
        %520 = vmatpush1.msra.mxu0 0.0
        %521 = vmatprep.subr.mxu0 0.0
        %522 = vmatpush1.msra.mxu0 0.0
        %523 = vmatprep.subr.mxu0 0.0
        %524 = vmatpush1.msra.mxu0 0.0
        %525 = vmatprep.subr.mxu0 0.0
        %526 = vmatpush1.msra.mxu0 0.0
        %527 = vmatprep.subr.mxu0 0.0
        %528 = vmatpush1.msra.mxu0 0.0
        %529 = vmatprep.subr.mxu0 0.0
        %530 = vmatpush1.msra.mxu0 0.0
        %531 = vmatprep.subr.mxu0 0.0
        %532 = vmatpush1.msra.mxu0 0.0
        %533 = vmatprep.subr.mxu0 0.0
        %534 = vmatpush1.msra.mxu0 0.0
        %535 = vmatprep.subr.mxu0 0.0
        %536 = vmatpush1.msra.mxu0 0.0
        %537 = vmatprep.subr.mxu0 0.0
        %538 = vmatpush1.msra.mxu0 0.0
        %539 = vmatprep.subr.mxu0 0.0
        %540 = vmatpush1.msra.mxu0 0.0
        %541 = vmatprep.subr.mxu0 0.0
        %542 = vmatpush1.msra.mxu0 0.0
        %543 = vmatprep.subr.mxu0 0.0
        %544 = vmatpush1.msra.mxu0 0.0
        %545 = vmatprep.subr.mxu0 0.0
        %546 = vmatpush1.msra.mxu0 0.0
        %547 = vmatprep.subr.mxu0 0.0
        %548 = vmatpush1.msra.mxu0 0.0
        %549 = vmatprep.subr.mxu0 0.0
        %550 = vmatpush1.msra.mxu0 0.0
        %551 = vmatprep.subr.mxu0 0.0
        %552 = vmatpush1.msra.mxu0 0.0
        %553 = vmatprep.subr.mxu0 0.0
        %554 = vmatpush1.msra.mxu0 0.0
        %555 = vmatprep.subr.mxu0 0.0
        %556 = vmatpush1.msra.mxu0 0.0
        %557 = vmatprep.subr.mxu0 0.0
        %558 = vmatpush1.msra.mxu0 0.0
        %559 = vmatprep.subr.mxu0 0.0
        %560 = vmatpush1.msra.mxu0 0.0
        %561 = vmatprep.subr.mxu0 0.0
        %562 = vmatpush1.msra.mxu0 0.0
        %563 = vmatprep.mubr.f32.mxu0 0.0
        %564 = vmatmul.mubr.f32.gmra.mrb[0].mxu0 %v452
        %v565 = vpop.f32.mrb[0].mxu0
        %v566 = vadd.f32 0.0, %v565
        %v567 = vpop.f32.mrb[0].mxu0
        %568 = vmatprep.mubr.f32.mxu0 0.0
        %569 = vmatmul.mubr.f32.gmra.mrb[0].mxu0 %v455
        %v570 = vpop.f32.mrb[0].mxu0
        %v571 = vadd.f32 0.0, %v570
        %v572 = vpop.f32.mrb[0].mxu0
        %573 = vmatprep.mubr.f32.mxu0 0.0
        %574 = vmatmul.mubr.f32.gmra.mrb[0].mxu0 %v458
        %v575 = vpop.f32.mrb[0].mxu0
        %v576 = vadd.f32 0.0, %v575
        %v577 = vpop.f32.mrb[0].mxu0
        %578 = vmatprep.mubr.f32.mxu0 0.0
        %579 = vmatmul.mubr.f32.gmra.mrb[0].mxu0 %v461
        %v580 = vpop.f32.mrb[0].mxu0
        %v581 = vadd.f32 0.0, %v580
        %v582 = vpop.f32.mrb[0].mxu0
        %583 = vmatprep.mubr.f32.mxu0 0.0
        %584 = vmatmul.mubr.f32.gmra.mrb[0].mxu0 %v464
        %v585 = vpop.f32.mrb[0].mxu0
        %v586 = vadd.f32 0.0, %v585
        %v587 = vpop.f32.mrb[0].mxu0
        %588 = vmatprep.mubr.f32.mxu0 0.0
        %589 = vmatmul.mubr.f32.gmra.mrb[0].mxu0 %v467
        %v590 = vpop.f32.mrb[0].mxu0
        %v591 = vadd.f32 0.0, %v590
        %v592 = vpop.f32.mrb[0].mxu0
        %593 = vmatprep.mubr.f32.mxu0 0.0
        %594 = vmatmul.mubr.f32.gmra.mrb[0].mxu0 %v470
        %v595 = vpop.f32.mrb[0].mxu0
        %v596 = vadd.f32 0.0, %v595
        %v597 = vpop.f32.mrb[0].mxu0
        %598 = vmatprep.mubr.f32.mxu0 0.0
        %599 = vmatmul.mubr.f32.gmra.mrb[0].mxu0 %v473
        %v600 = vpop.f32.mrb[0].mxu0
        %v601 = vadd.f32 0.0, %v600
        %v602 = vpop.f32.mrb[0].mxu0
        %603 = vmatprep.mubr.f32.mxu0 0.0
        %604 = vmatmul.mubr.f32.gmra.mrb[0].mxu0 %v476
        %v605 = vpop.f32.mrb[0].mxu0
        %v606 = vadd.f32 0.0, %v605
        %v607 = vpop.f32.mrb[0].mxu0
        %608 = vmatprep.mubr.f32.mxu0 0.0
        %609 = vmatmul.mubr.f32.gmra.mrb[0].mxu0 %v479
        %v610 = vpop.f32.mrb[0].mxu0
        %v611 = vadd.f32 0.0, %v610
        %v612 = vpop.f32.mrb[0].mxu0
        %613 = vmatprep.mubr.f32.mxu0 0.0
        %614 = vmatmul.mubr.f32.gmra.mrb[0].mxu0 %v482
        %v615 = vpop.f32.mrb[0].mxu0
        %v616 = vadd.f32 0.0, %v615
        %v617 = vpop.f32.mrb[0].mxu0
        %618 = vmatprep.mubr.f32.mxu0 0.0
        %619 = vmatmul.mubr.f32.gmra.mrb[0].mxu0 %v485
        %v620 = vpop.f32.mrb[0].mxu0
        %v621 = vadd.f32 0.0, %v620
        %v622 = vpop.f32.mrb[0].mxu0
        %623 = vmatprep.mubr.f32.mxu0 0.0
        %624 = vmatmul.mubr.f32.gmra.mrb[0].mxu0 %v488
        %v625 = vpop.f32.mrb[0].mxu0
        %v626 = vadd.f32 0.0, %v625
        %v627 = vpop.f32.mrb[0].mxu0
        %628 = vmatprep.mubr.f32.mxu0 0.0
        %629 = vmatmul.mubr.f32.gmra.mrb[0].mxu0 %v491
        %v630 = vpop.f32.mrb[0].mxu0
        %v631 = vadd.f32 0.0, %v630
        %v632 = vpop.f32.mrb[0].mxu0
        %633 = vmatprep.mubr.f32.mxu0 0.0
        %634 = vmatmul.mubr.f32.gmra.mrb[0].mxu0 %v494
        %v635 = vpop.f32.mrb[0].mxu0
        %v636 = vadd.f32 0.0, %v635
        %v637 = vpop.f32.mrb[0].mxu0
        %638 = vmatprep.mubr.f32.mxu0 0.0
        %639 = vmatmul.mubr.f32.gmra.mrb[0].mxu0 %v497
        %v640 = vpop.f32.mrb[0].mxu0
        %v641 = vadd.f32 0.0, %v640
        %v642 = vpop.f32.mrb[0].mxu0
        %643 = vdwg.mxu0
        %v644 = vmul.f32 %v433, %v433
        %v645 = vmul.f32 %v434, %v434
        %v646 = vmul.f32 %v435, %v435
        %v647 = vmul.f32 %v436, %v436
        %v648 = vmul.f32 %v437, %v437
        %v649 = vmul.f32 %v438, %v438
        %v650 = vmul.f32 %v439, %v439
        %v651 = vmul.f32 %v440, %v440
        %v652 = vmul.f32 %v441, %v441
        %v653 = vmul.f32 %v442, %v442
        %v654 = vmul.f32 %v443, %v443
        %v655 = vmul.f32 %v444, %v444
        %v656 = vmul.f32 %v445, %v445
        %v657 = vmul.f32 %v446, %v446
        %v658 = vmul.f32 %v447, %v447
        %v659 = vmul.f32 %v448, %v448
        %v660 = vsel %vm384, %v644, 0.0
        %661 = vadd.xlane.f32.xlu0 %v660
        %v662 = vpop.xlane.xlu0 %661
        %v663 = vsel %vm384, %v645, 0.0
        %664 = vadd.xlane.f32.xlu0 %v663
        %v665 = vpop.xlane.xlu0 %664
        %v666 = vsel %vm384, %v646, 0.0
        %667 = vadd.xlane.f32.xlu0 %v666
        %v668 = vpop.xlane.xlu0 %667
        %v669 = vsel %vm384, %v647, 0.0
        %670 = vadd.xlane.f32.xlu0 %v669
        %v671 = vpop.xlane.xlu0 %670
        %v672 = vsel %vm384, %v648, 0.0
        %673 = vadd.xlane.f32.xlu0 %v672
        %v674 = vpop.xlane.xlu0 %673
        %v675 = vsel %vm384, %v649, 0.0
        %676 = vadd.xlane.f32.xlu0 %v675
        %v677 = vpop.xlane.xlu0 %676
        %v678 = vsel %vm384, %v650, 0.0
        %679 = vadd.xlane.f32.xlu0 %v678
        %v680 = vpop.xlane.xlu0 %679
        %v681 = vsel %vm384, %v651, 0.0
        %682 = vadd.xlane.f32.xlu0 %v681
        %v683 = vpop.xlane.xlu0 %682
        %v684 = vsel %vm384, %v652, 0.0
        %685 = vadd.xlane.f32.xlu0 %v684
        %v686 = vpop.xlane.xlu0 %685
        %v687 = vsel %vm384, %v653, 0.0
        %688 = vadd.xlane.f32.xlu0 %v687
        %v689 = vpop.xlane.xlu0 %688
        %v690 = vsel %vm384, %v654, 0.0
        %691 = vadd.xlane.f32.xlu0 %v690
        %v692 = vpop.xlane.xlu0 %691
        %v693 = vsel %vm384, %v655, 0.0
        %694 = vadd.xlane.f32.xlu0 %v693
        %v695 = vpop.xlane.xlu0 %694
        %v696 = vsel %vm384, %v656, 0.0
        %697 = vadd.xlane.f32.xlu0 %v696
        %v698 = vpop.xlane.xlu0 %697
        %v699 = vsel %vm384, %v657, 0.0
        %700 = vadd.xlane.f32.xlu0 %v699
        %v701 = vpop.xlane.xlu0 %700
        %v702 = vsel %vm384, %v658, 0.0
        %703 = vadd.xlane.f32.xlu0 %v702
        %v704 = vpop.xlane.xlu0 %703
        %v705 = vsel %vm384, %v659, 0.0
        %706 = vadd.xlane.f32.xlu0 %v705
        %v707 = vpop.xlane.xlu0 %706
        %v709 = vsel %vm384, %v351, 0
        %v712 = vsel %vm384, %v352, 0
        %v715 = vsel %vm384, %v353, 0
        %v718 = vsel %vm384, %v354, 0
        %v721 = vsel %vm384, %v355, 0
        %v724 = vsel %vm384, %v356, 0
        %v727 = vsel %vm384, %v357, 0
        %v730 = vsel %vm384, %v358, 0
        %v733 = vsel %vm384, %v359, 0
        %v736 = vsel %vm384, %v360, 0
        %v739 = vsel %vm384, %v361, 0
        %v742 = vsel %vm384, %v362, 0
        %v745 = vsel %vm384, %v363, 0
        %v748 = vsel %vm384, %v364, 0
        %v751 = vsel %vm384, %v365, 0
        %v754 = vsel %vm384, %v366, 0
        %756 = vmatprep.subr.mxu0 0.0
        %757 = vmatpush1.msra.mxu0 %v367
        %758 = vmatprep.subr.mxu0 0.0
        %759 = vmatpush1.msra.mxu0 0.0
        %760 = vmatprep.subr.mxu0 0.0
        %761 = vmatpush1.msra.mxu0 0.0
        %762 = vmatprep.subr.mxu0 0.0
        %763 = vmatpush1.msra.mxu0 0.0
        %764 = vmatprep.subr.mxu0 0.0
        %765 = vmatpush1.msra.mxu0 0.0
        %766 = vmatprep.subr.mxu0 0.0
        %767 = vmatpush1.msra.mxu0 0.0
        %768 = vmatprep.subr.mxu0 0.0
        %769 = vmatpush1.msra.mxu0 0.0
        %770 = vmatprep.subr.mxu0 0.0
        %771 = vmatpush1.msra.mxu0 0.0
        %772 = vmatprep.subr.mxu0 0.0
        %773 = vmatpush1.msra.mxu0 0.0
        %774 = vmatprep.subr.mxu0 0.0
        %775 = vmatpush1.msra.mxu0 0.0
        %776 = vmatprep.subr.mxu0 0.0
        %777 = vmatpush1.msra.mxu0 0.0
        %778 = vmatprep.subr.mxu0 0.0
        %779 = vmatpush1.msra.mxu0 0.0
        %780 = vmatprep.subr.mxu0 0.0
        %781 = vmatpush1.msra.mxu0 0.0
        %782 = vmatprep.subr.mxu0 0.0
        %783 = vmatpush1.msra.mxu0 0.0
        %784 = vmatprep.subr.mxu0 0.0
        %785 = vmatpush1.msra.mxu0 0.0
        %786 = vmatprep.subr.mxu0 0.0
        %787 = vmatpush1.msra.mxu0 0.0
        %788 = vmatprep.subr.mxu0 0.0
        %789 = vmatpush1.msra.mxu0 0.0
        %790 = vmatprep.subr.mxu0 0.0
        %791 = vmatpush1.msra.mxu0 0.0
        %792 = vmatprep.subr.mxu0 0.0
        %793 = vmatpush1.msra.mxu0 0.0
        %794 = vmatprep.subr.mxu0 0.0
        %795 = vmatpush1.msra.mxu0 0.0
        %796 = vmatprep.subr.mxu0 0.0
        %797 = vmatpush1.msra.mxu0 0.0
        %798 = vmatprep.subr.mxu0 0.0
        %799 = vmatpush1.msra.mxu0 0.0
        %800 = vmatprep.subr.mxu0 0.0
        %801 = vmatpush1.msra.mxu0 0.0
        %802 = vmatprep.subr.mxu0 0.0
        %803 = vmatpush1.msra.mxu0 0.0
        %804 = vmatprep.subr.mxu0 0.0
        %805 = vmatpush1.msra.mxu0 0.0
        %806 = vmatprep.subr.mxu0 0.0
        %807 = vmatpush1.msra.mxu0 0.0
        %808 = vmatprep.subr.mxu0 0.0
        %809 = vmatpush1.msra.mxu0 0.0
        %810 = vmatprep.subr.mxu0 0.0
        %811 = vmatpush1.msra.mxu0 0.0
        %812 = vmatprep.subr.mxu0 0.0
        %813 = vmatpush1.msra.mxu0 0.0
        %814 = vmatprep.subr.mxu0 0.0
        %815 = vmatpush1.msra.mxu0 0.0
        %816 = vmatprep.subr.mxu0 0.0
        %817 = vmatpush1.msra.mxu0 0.0
        %818 = vmatprep.subr.mxu0 0.0
        %819 = vmatpush1.msra.mxu0 0.0
        %820 = vmatprep.mubr.f32.mxu0 0.0
        %821 = vmatmul.mubr.f32.gmra.mrb[0].mxu0 %v709
        %v822 = vpop.f32.mrb[0].mxu0
        %v823 = vadd.f32 %v566, %v822
        %v824 = vpop.f32.mrb[0].mxu0
        %825 = vmatprep.mubr.f32.mxu0 0.0
        %826 = vmatmul.mubr.f32.gmra.mrb[0].mxu0 %v712
        %v827 = vpop.f32.mrb[0].mxu0
        %v828 = vadd.f32 %v571, %v827
        %v829 = vpop.f32.mrb[0].mxu0
        %830 = vmatprep.mubr.f32.mxu0 0.0
        %831 = vmatmul.mubr.f32.gmra.mrb[0].mxu0 %v715
        %v832 = vpop.f32.mrb[0].mxu0
        %v833 = vadd.f32 %v576, %v832
        %v834 = vpop.f32.mrb[0].mxu0
        %835 = vmatprep.mubr.f32.mxu0 0.0
        %836 = vmatmul.mubr.f32.gmra.mrb[0].mxu0 %v718
        %v837 = vpop.f32.mrb[0].mxu0
        %v838 = vadd.f32 %v581, %v837
        %v839 = vpop.f32.mrb[0].mxu0
        %840 = vmatprep.mubr.f32.mxu0 0.0
        %841 = vmatmul.mubr.f32.gmra.mrb[0].mxu0 %v721
        %v842 = vpop.f32.mrb[0].mxu0
        %v843 = vadd.f32 %v586, %v842
        %v844 = vpop.f32.mrb[0].mxu0
        %845 = vmatprep.mubr.f32.mxu0 0.0
        %846 = vmatmul.mubr.f32.gmra.mrb[0].mxu0 %v724
        %v847 = vpop.f32.mrb[0].mxu0
        %v848 = vadd.f32 %v591, %v847
        %v849 = vpop.f32.mrb[0].mxu0
        %850 = vmatprep.mubr.f32.mxu0 0.0
        %851 = vmatmul.mubr.f32.gmra.mrb[0].mxu0 %v727
        %v852 = vpop.f32.mrb[0].mxu0
        %v853 = vadd.f32 %v596, %v852
        %v854 = vpop.f32.mrb[0].mxu0
        %855 = vmatprep.mubr.f32.mxu0 0.0
        %856 = vmatmul.mubr.f32.gmra.mrb[0].mxu0 %v730
        %v857 = vpop.f32.mrb[0].mxu0
        %v858 = vadd.f32 %v601, %v857
        %v859 = vpop.f32.mrb[0].mxu0
        %860 = vmatprep.mubr.f32.mxu0 0.0
        %861 = vmatmul.mubr.f32.gmra.mrb[0].mxu0 %v733
        %v862 = vpop.f32.mrb[0].mxu0
        %v863 = vadd.f32 %v606, %v862
        %v864 = vpop.f32.mrb[0].mxu0
        %865 = vmatprep.mubr.f32.mxu0 0.0
        %866 = vmatmul.mubr.f32.gmra.mrb[0].mxu0 %v736
        %v867 = vpop.f32.mrb[0].mxu0
        %v868 = vadd.f32 %v611, %v867
        %v869 = vpop.f32.mrb[0].mxu0
        %870 = vmatprep.mubr.f32.mxu0 0.0
        %871 = vmatmul.mubr.f32.gmra.mrb[0].mxu0 %v739
        %v872 = vpop.f32.mrb[0].mxu0
        %v873 = vadd.f32 %v616, %v872
        %v874 = vpop.f32.mrb[0].mxu0
        %875 = vmatprep.mubr.f32.mxu0 0.0
        %876 = vmatmul.mubr.f32.gmra.mrb[0].mxu0 %v742
        %v877 = vpop.f32.mrb[0].mxu0
        %v878 = vadd.f32 %v621, %v877
        %v879 = vpop.f32.mrb[0].mxu0
        %880 = vmatprep.mubr.f32.mxu0 0.0
        %881 = vmatmul.mubr.f32.gmra.mrb[0].mxu0 %v745
        %v882 = vpop.f32.mrb[0].mxu0
        %v883 = vadd.f32 %v626, %v882
        %v884 = vpop.f32.mrb[0].mxu0
        %885 = vmatprep.mubr.f32.mxu0 0.0
        %886 = vmatmul.mubr.f32.gmra.mrb[0].mxu0 %v748
        %v887 = vpop.f32.mrb[0].mxu0
        %v888 = vadd.f32 %v631, %v887
        %v889 = vpop.f32.mrb[0].mxu0
        %890 = vmatprep.mubr.f32.mxu0 0.0
        %891 = vmatmul.mubr.f32.gmra.mrb[0].mxu0 %v751
        %v892 = vpop.f32.mrb[0].mxu0
        %v893 = vadd.f32 %v636, %v892
        %v894 = vpop.f32.mrb[0].mxu0
        %895 = vmatprep.mubr.f32.mxu0 0.0
        %896 = vmatmul.mubr.f32.gmra.mrb[0].mxu0 %v754
        %v897 = vpop.f32.mrb[0].mxu0
        %v898 = vadd.f32 %v641, %v897
        %v899 = vpop.f32.mrb[0].mxu0
        %900 = vdwg.mxu0
        %v901 = vadd.f32 %v387, %v662
        %v902 = vadd.f32 %v390, %v665
        %v903 = vadd.f32 %v393, %v668
        %v904 = vadd.f32 %v396, %v671
        %v905 = vadd.f32 %v399, %v674
        %v906 = vadd.f32 %v402, %v677
        %v907 = vadd.f32 %v405, %v680
        %v908 = vadd.f32 %v408, %v683
        %v909 = vadd.f32 %v411, %v686
        %v910 = vadd.f32 %v414, %v689
        %v911 = vadd.f32 %v417, %v692
        %v912 = vadd.f32 %v420, %v695
        %v913 = vadd.f32 %v423, %v698
        %v914 = vadd.f32 %v426, %v701
        %v915 = vadd.f32 %v429, %v704
        %v916 = vadd.f32 %v432, %v707
        %v917 = vld [vmem:[%s350 + $0x2] sm:$0xff]
        %v918 = vld [vmem:[%s350 + $0xa] sm:$0xff]
        %v919 = vld [vmem:[%s350 + $0x1a] sm:$0xff]
        %v920 = vld [vmem:[%s350 + $0x22] sm:$0xff]
        %v921 = vld [vmem:[%s350 + $0x32] sm:$0xff]
        %v922 = vld [vmem:[%s350 + $0x3a] sm:$0xff]
        %v923 = vld [vmem:[%s350 + $0x4a] sm:$0xff]
        %v924 = vld [vmem:[%s350 + $0x52] sm:$0xff]
        %v925 = vld [vmem:[%s350 + $0x62] sm:$0xff]
        %v926 = vld [vmem:[%s350 + $0x6a] sm:$0xff]
        %v927 = vld [vmem:[%s350 + $0x7a] sm:$0xff]
        %v928 = vld [vmem:[%s350 + $0x82] sm:$0xff]
        %v929 = vld [vmem:[%s350 + $0x92] sm:$0xff]
        %v930 = vld [vmem:[%s350 + $0x9a] sm:$0xff]
        %v931 = vld [vmem:[%s350 + $0xaa] sm:$0xff]
        %v932 = vld [vmem:[%s350 + $0xb2] sm:$0xff]
        %s933 = scalar_lea.vmem %s2, 16
        %v934 = vld [vmem:[%s933] sm:$0xff]
        %v936 = vsel %vm384, %v917, 0
        %v939 = vsel %vm384, %v918, 0
        %v942 = vsel %vm384, %v919, 0
        %v945 = vsel %vm384, %v920, 0
        %v948 = vsel %vm384, %v921, 0
        %v951 = vsel %vm384, %v922, 0
        %v954 = vsel %vm384, %v923, 0
        %v957 = vsel %vm384, %v924, 0
        %v960 = vsel %vm384, %v925, 0
        %v963 = vsel %vm384, %v926, 0
        %v966 = vsel %vm384, %v927, 0
        %v969 = vsel %vm384, %v928, 0
        %v972 = vsel %vm384, %v929, 0
        %v975 = vsel %vm384, %v930, 0
        %v978 = vsel %vm384, %v931, 0
        %v981 = vsel %vm384, %v932, 0
        %983 = vmatprep.subr.mxu0 0.0
        %984 = vmatpush1.msra.mxu0 %v934
        %985 = vmatprep.subr.mxu0 0.0
        %986 = vmatpush1.msra.mxu0 0.0
        %987 = vmatprep.subr.mxu0 0.0
        %988 = vmatpush1.msra.mxu0 0.0
        %989 = vmatprep.subr.mxu0 0.0
        %990 = vmatpush1.msra.mxu0 0.0
        %991 = vmatprep.subr.mxu0 0.0
        %992 = vmatpush1.msra.mxu0 0.0
        %993 = vmatprep.subr.mxu0 0.0
        %994 = vmatpush1.msra.mxu0 0.0
        %995 = vmatprep.subr.mxu0 0.0
        %996 = vmatpush1.msra.mxu0 0.0
        %997 = vmatprep.subr.mxu0 0.0
        %998 = vmatpush1.msra.mxu0 0.0
        %999 = vmatprep.subr.mxu0 0.0
        %1000 = vmatpush1.msra.mxu0 0.0
        %1001 = vmatprep.subr.mxu0 0.0
        %1002 = vmatpush1.msra.mxu0 0.0
        %1003 = vmatprep.subr.mxu0 0.0
        %1004 = vmatpush1.msra.mxu0 0.0
        %1005 = vmatprep.subr.mxu0 0.0
        %1006 = vmatpush1.msra.mxu0 0.0
        %1007 = vmatprep.subr.mxu0 0.0
        %1008 = vmatpush1.msra.mxu0 0.0
        %1009 = vmatprep.subr.mxu0 0.0
        %1010 = vmatpush1.msra.mxu0 0.0
        %1011 = vmatprep.subr.mxu0 0.0
        %1012 = vmatpush1.msra.mxu0 0.0
        %1013 = vmatprep.subr.mxu0 0.0
        %1014 = vmatpush1.msra.mxu0 0.0
        %1015 = vmatprep.subr.mxu0 0.0
        %1016 = vmatpush1.msra.mxu0 0.0
        %1017 = vmatprep.subr.mxu0 0.0
        %1018 = vmatpush1.msra.mxu0 0.0
        %1019 = vmatprep.subr.mxu0 0.0
        %1020 = vmatpush1.msra.mxu0 0.0
        %1021 = vmatprep.subr.mxu0 0.0
        %1022 = vmatpush1.msra.mxu0 0.0
        %1023 = vmatprep.subr.mxu0 0.0
        %1024 = vmatpush1.msra.mxu0 0.0
        %1025 = vmatprep.subr.mxu0 0.0
        %1026 = vmatpush1.msra.mxu0 0.0
        %1027 = vmatprep.subr.mxu0 0.0
        %1028 = vmatpush1.msra.mxu0 0.0
        %1029 = vmatprep.subr.mxu0 0.0
        %1030 = vmatpush1.msra.mxu0 0.0
        %1031 = vmatprep.subr.mxu0 0.0
        %1032 = vmatpush1.msra.mxu0 0.0
        %1033 = vmatprep.subr.mxu0 0.0
        %1034 = vmatpush1.msra.mxu0 0.0
        %1035 = vmatprep.subr.mxu0 0.0
        %1036 = vmatpush1.msra.mxu0 0.0
        %1037 = vmatprep.subr.mxu0 0.0
        %1038 = vmatpush1.msra.mxu0 0.0
        %1039 = vmatprep.subr.mxu0 0.0
        %1040 = vmatpush1.msra.mxu0 0.0
        %1041 = vmatprep.subr.mxu0 0.0
        %1042 = vmatpush1.msra.mxu0 0.0
        %1043 = vmatprep.subr.mxu0 0.0
        %1044 = vmatpush1.msra.mxu0 0.0
        %1045 = vmatprep.subr.mxu0 0.0
        %1046 = vmatpush1.msra.mxu0 0.0
        %1047 = vmatprep.mubr.f32.mxu0 0.0
        %1048 = vmatmul.mubr.f32.gmra.mrb[0].mxu0 %v936
        %v1049 = vpop.f32.mrb[0].mxu0
        %v1050 = vadd.f32 0.0, %v1049
        %v1051 = vpop.f32.mrb[0].mxu0
        %1052 = vmatprep.mubr.f32.mxu0 0.0
        %1053 = vmatmul.mubr.f32.gmra.mrb[0].mxu0 %v939
        %v1054 = vpop.f32.mrb[0].mxu0
        %v1055 = vadd.f32 0.0, %v1054
        %v1056 = vpop.f32.mrb[0].mxu0
        %1057 = vmatprep.mubr.f32.mxu0 0.0
        %1058 = vmatmul.mubr.f32.gmra.mrb[0].mxu0 %v942
        %v1059 = vpop.f32.mrb[0].mxu0
        %v1060 = vadd.f32 0.0, %v1059
        %v1061 = vpop.f32.mrb[0].mxu0
        %1062 = vmatprep.mubr.f32.mxu0 0.0
        %1063 = vmatmul.mubr.f32.gmra.mrb[0].mxu0 %v945
        %v1064 = vpop.f32.mrb[0].mxu0
        %v1065 = vadd.f32 0.0, %v1064
        %v1066 = vpop.f32.mrb[0].mxu0
        %1067 = vmatprep.mubr.f32.mxu0 0.0
        %1068 = vmatmul.mubr.f32.gmra.mrb[0].mxu0 %v948
        %v1069 = vpop.f32.mrb[0].mxu0
        %v1070 = vadd.f32 0.0, %v1069
        %v1071 = vpop.f32.mrb[0].mxu0
        %1072 = vmatprep.mubr.f32.mxu0 0.0
        %1073 = vmatmul.mubr.f32.gmra.mrb[0].mxu0 %v951
        %v1074 = vpop.f32.mrb[0].mxu0
        %v1075 = vadd.f32 0.0, %v1074
        %v1076 = vpop.f32.mrb[0].mxu0
        %1077 = vmatprep.mubr.f32.mxu0 0.0
        %1078 = vmatmul.mubr.f32.gmra.mrb[0].mxu0 %v954
        %v1079 = vpop.f32.mrb[0].mxu0
        %v1080 = vadd.f32 0.0, %v1079
        %v1081 = vpop.f32.mrb[0].mxu0
        %1082 = vmatprep.mubr.f32.mxu0 0.0
        %1083 = vmatmul.mubr.f32.gmra.mrb[0].mxu0 %v957
        %v1084 = vpop.f32.mrb[0].mxu0
        %v1085 = vadd.f32 0.0, %v1084
        %v1086 = vpop.f32.mrb[0].mxu0
        %1087 = vmatprep.mubr.f32.mxu0 0.0
        %1088 = vmatmul.mubr.f32.gmra.mrb[0].mxu0 %v960
        %v1089 = vpop.f32.mrb[0].mxu0
        %v1090 = vadd.f32 0.0, %v1089
        %v1091 = vpop.f32.mrb[0].mxu0
        %1092 = vmatprep.mubr.f32.mxu0 0.0
        %1093 = vmatmul.mubr.f32.gmra.mrb[0].mxu0 %v963
        %v1094 = vpop.f32.mrb[0].mxu0
        %v1095 = vadd.f32 0.0, %v1094
        %v1096 = vpop.f32.mrb[0].mxu0
        %1097 = vmatprep.mubr.f32.mxu0 0.0
        %1098 = vmatmul.mubr.f32.gmra.mrb[0].mxu0 %v966
        %v1099 = vpop.f32.mrb[0].mxu0
        %v1100 = vadd.f32 0.0, %v1099
        %v1101 = vpop.f32.mrb[0].mxu0
        %1102 = vmatprep.mubr.f32.mxu0 0.0
        %1103 = vmatmul.mubr.f32.gmra.mrb[0].mxu0 %v969
        %v1104 = vpop.f32.mrb[0].mxu0
        %v1105 = vadd.f32 0.0, %v1104
        %v1106 = vpop.f32.mrb[0].mxu0
        %1107 = vmatprep.mubr.f32.mxu0 0.0
        %1108 = vmatmul.mubr.f32.gmra.mrb[0].mxu0 %v972
        %v1109 = vpop.f32.mrb[0].mxu0
        %v1110 = vadd.f32 0.0, %v1109
        %v1111 = vpop.f32.mrb[0].mxu0
        %1112 = vmatprep.mubr.f32.mxu0 0.0
        %1113 = vmatmul.mubr.f32.gmra.mrb[0].mxu0 %v975
        %v1114 = vpop.f32.mrb[0].mxu0
        %v1115 = vadd.f32 0.0, %v1114
        %v1116 = vpop.f32.mrb[0].mxu0
        %1117 = vmatprep.mubr.f32.mxu0 0.0
        %1118 = vmatmul.mubr.f32.gmra.mrb[0].mxu0 %v978
        %v1119 = vpop.f32.mrb[0].mxu0
        %v1120 = vadd.f32 0.0, %v1119
        %v1121 = vpop.f32.mrb[0].mxu0
        %1122 = vmatprep.mubr.f32.mxu0 0.0
        %1123 = vmatmul.mubr.f32.gmra.mrb[0].mxu0 %v981
        %v1124 = vpop.f32.mrb[0].mxu0
        %v1125 = vadd.f32 0.0, %v1124
        %v1126 = vpop.f32.mrb[0].mxu0
        %1127 = vdwg.mxu0
        %v1128 = vmul.f32 %v917, %v917
        %v1129 = vmul.f32 %v918, %v918
        %v1130 = vmul.f32 %v919, %v919
        %v1131 = vmul.f32 %v920, %v920
        %v1132 = vmul.f32 %v921, %v921
        %v1133 = vmul.f32 %v922, %v922
        %v1134 = vmul.f32 %v923, %v923
        %v1135 = vmul.f32 %v924, %v924
        %v1136 = vmul.f32 %v925, %v925
        %v1137 = vmul.f32 %v926, %v926
        %v1138 = vmul.f32 %v927, %v927
        %v1139 = vmul.f32 %v928, %v928
        %v1140 = vmul.f32 %v929, %v929
        %v1141 = vmul.f32 %v930, %v930
        %v1142 = vmul.f32 %v931, %v931
        %v1143 = vmul.f32 %v932, %v932
        %v1144 = vsel %vm384, %v1128, 0.0
        %1145 = vadd.xlane.f32.xlu0 %v1144
        %v1146 = vpop.xlane.xlu0 %1145
        %v1147 = vsel %vm384, %v1129, 0.0
        %1148 = vadd.xlane.f32.xlu0 %v1147
        %v1149 = vpop.xlane.xlu0 %1148
        %v1150 = vsel %vm384, %v1130, 0.0
        %1151 = vadd.xlane.f32.xlu0 %v1150
        %v1152 = vpop.xlane.xlu0 %1151
        %v1153 = vsel %vm384, %v1131, 0.0
        %1154 = vadd.xlane.f32.xlu0 %v1153
        %v1155 = vpop.xlane.xlu0 %1154
        %v1156 = vsel %vm384, %v1132, 0.0
        %1157 = vadd.xlane.f32.xlu0 %v1156
        %v1158 = vpop.xlane.xlu0 %1157
        %v1159 = vsel %vm384, %v1133, 0.0
        %1160 = vadd.xlane.f32.xlu0 %v1159
        %v1161 = vpop.xlane.xlu0 %1160
        %v1162 = vsel %vm384, %v1134, 0.0
        %1163 = vadd.xlane.f32.xlu0 %v1162
        %v1164 = vpop.xlane.xlu0 %1163
        %v1165 = vsel %vm384, %v1135, 0.0
        %1166 = vadd.xlane.f32.xlu0 %v1165
        %v1167 = vpop.xlane.xlu0 %1166
        %v1168 = vsel %vm384, %v1136, 0.0
        %1169 = vadd.xlane.f32.xlu0 %v1168
        %v1170 = vpop.xlane.xlu0 %1169
        %v1171 = vsel %vm384, %v1137, 0.0
        %1172 = vadd.xlane.f32.xlu0 %v1171
        %v1173 = vpop.xlane.xlu0 %1172
        %v1174 = vsel %vm384, %v1138, 0.0
        %1175 = vadd.xlane.f32.xlu0 %v1174
        %v1176 = vpop.xlane.xlu0 %1175
        %v1177 = vsel %vm384, %v1139, 0.0
        %1178 = vadd.xlane.f32.xlu0 %v1177
        %v1179 = vpop.xlane.xlu0 %1178
        %v1180 = vsel %vm384, %v1140, 0.0
        %1181 = vadd.xlane.f32.xlu0 %v1180
        %v1182 = vpop.xlane.xlu0 %1181
        %v1183 = vsel %vm384, %v1141, 0.0
        %1184 = vadd.xlane.f32.xlu0 %v1183
        %v1185 = vpop.xlane.xlu0 %1184
        %v1186 = vsel %vm384, %v1142, 0.0
        %1187 = vadd.xlane.f32.xlu0 %v1186
        %v1188 = vpop.xlane.xlu0 %1187
        %v1189 = vsel %vm384, %v1143, 0.0
        %1190 = vadd.xlane.f32.xlu0 %v1189
        %v1191 = vpop.xlane.xlu0 %1190
        %v1192 = vadd.f32 %v823, %v1050
        %v1193 = vadd.f32 %v828, %v1055
        %v1194 = vadd.f32 %v833, %v1060
        %v1195 = vadd.f32 %v838, %v1065
        %v1196 = vadd.f32 %v843, %v1070
        %v1197 = vadd.f32 %v848, %v1075
        %v1198 = vadd.f32 %v853, %v1080
        %v1199 = vadd.f32 %v858, %v1085
        %v1200 = vadd.f32 %v863, %v1090
        %v1201 = vadd.f32 %v868, %v1095
        %v1202 = vadd.f32 %v873, %v1100
        %v1203 = vadd.f32 %v878, %v1105
        %v1204 = vadd.f32 %v883, %v1110
        %v1205 = vadd.f32 %v888, %v1115
        %v1206 = vadd.f32 %v893, %v1120
        %v1207 = vadd.f32 %v898, %v1125
        %v1208 = vadd.f32 %v901, %v1146
        %v1209 = vadd.f32 %v902, %v1149
        %v1210 = vadd.f32 %v903, %v1152
        %v1211 = vadd.f32 %v904, %v1155
        %v1212 = vadd.f32 %v905, %v1158
        %v1213 = vadd.f32 %v906, %v1161
        %v1214 = vadd.f32 %v907, %v1164
        %v1215 = vadd.f32 %v908, %v1167
        %v1216 = vadd.f32 %v909, %v1170
        %v1217 = vadd.f32 %v910, %v1173
        %v1218 = vadd.f32 %v911, %v1176
        %v1219 = vadd.f32 %v912, %v1179
        %v1220 = vadd.f32 %v913, %v1182
        %v1221 = vadd.f32 %v914, %v1185
        %v1222 = vadd.f32 %v915, %v1188
        %v1223 = vadd.f32 %v916, %v1191
        %s1224 = sadd.s32 %s347, 1
        %s1225 = smul.u32 %s1224, 24
        %s1226 = scalar_lea.vmem %s320, %s1225
        %v1227 = vld [vmem:[%s1226] sm:$0xff]
        %v1228 = vld [vmem:[%s1226 + $0x8] sm:$0xff]
        %v1229 = vld [vmem:[%s1226 + $0x18] sm:$0xff]
        %v1230 = vld [vmem:[%s1226 + $0x20] sm:$0xff]
        %v1231 = vld [vmem:[%s1226 + $0x30] sm:$0xff]
        %v1232 = vld [vmem:[%s1226 + $0x38] sm:$0xff]
        %v1233 = vld [vmem:[%s1226 + $0x48] sm:$0xff]
        %v1234 = vld [vmem:[%s1226 + $0x50] sm:$0xff]
        %v1235 = vld [vmem:[%s1226 + $0x60] sm:$0xff]
        %v1236 = vld [vmem:[%s1226 + $0x68] sm:$0xff]
        %v1237 = vld [vmem:[%s1226 + $0x78] sm:$0xff]
        %v1238 = vld [vmem:[%s1226 + $0x80] sm:$0xff]
        %v1239 = vld [vmem:[%s1226 + $0x90] sm:$0xff]
        %v1240 = vld [vmem:[%s1226 + $0x98] sm:$0xff]
        %v1241 = vld [vmem:[%s1226 + $0xa8] sm:$0xff]
        %v1242 = vld [vmem:[%s1226 + $0xb0] sm:$0xff]
        %s1243 = scalar_lea.vmem %s2, 24
        %v1244 = vld [vmem:[%s1243] sm:$0xff]
        %v1246 = vsel %vm384, %v1227, 0
        %v1249 = vsel %vm384, %v1228, 0
        %v1252 = vsel %vm384, %v1229, 0
        %v1255 = vsel %vm384, %v1230, 0
        %v1258 = vsel %vm384, %v1231, 0
        %v1261 = vsel %vm384, %v1232, 0
        %v1264 = vsel %vm384, %v1233, 0
        %v1267 = vsel %vm384, %v1234, 0
        %v1270 = vsel %vm384, %v1235, 0
        %v1273 = vsel %vm384, %v1236, 0
        %v1276 = vsel %vm384, %v1237, 0
        %v1279 = vsel %vm384, %v1238, 0
        %v1282 = vsel %vm384, %v1239, 0
        %v1285 = vsel %vm384, %v1240, 0
        %v1288 = vsel %vm384, %v1241, 0
        %v1291 = vsel %vm384, %v1242, 0
        %1293 = vmatprep.subr.mxu0 0.0
        %1294 = vmatpush1.msra.mxu0 %v1244
        %1295 = vmatprep.subr.mxu0 0.0
        %1296 = vmatpush1.msra.mxu0 0.0
        %1297 = vmatprep.subr.mxu0 0.0
        %1298 = vmatpush1.msra.mxu0 0.0
        %1299 = vmatprep.subr.mxu0 0.0
        %1300 = vmatpush1.msra.mxu0 0.0
        %1301 = vmatprep.subr.mxu0 0.0
        %1302 = vmatpush1.msra.mxu0 0.0
        %1303 = vmatprep.subr.mxu0 0.0
        %1304 = vmatpush1.msra.mxu0 0.0
        %1305 = vmatprep.subr.mxu0 0.0
        %1306 = vmatpush1.msra.mxu0 0.0
        %1307 = vmatprep.subr.mxu0 0.0
        %1308 = vmatpush1.msra.mxu0 0.0
        %1309 = vmatprep.subr.mxu0 0.0
        %1310 = vmatpush1.msra.mxu0 0.0
        %1311 = vmatprep.subr.mxu0 0.0
        %1312 = vmatpush1.msra.mxu0 0.0
        %1313 = vmatprep.subr.mxu0 0.0
        %1314 = vmatpush1.msra.mxu0 0.0
        %1315 = vmatprep.subr.mxu0 0.0
        %1316 = vmatpush1.msra.mxu0 0.0
        %1317 = vmatprep.subr.mxu0 0.0
        %1318 = vmatpush1.msra.mxu0 0.0
        %1319 = vmatprep.subr.mxu0 0.0
        %1320 = vmatpush1.msra.mxu0 0.0
        %1321 = vmatprep.subr.mxu0 0.0
        %1322 = vmatpush1.msra.mxu0 0.0
        %1323 = vmatprep.subr.mxu0 0.0
        %1324 = vmatpush1.msra.mxu0 0.0
        %1325 = vmatprep.subr.mxu0 0.0
        %1326 = vmatpush1.msra.mxu0 0.0
        %1327 = vmatprep.subr.mxu0 0.0
        %1328 = vmatpush1.msra.mxu0 0.0
        %1329 = vmatprep.subr.mxu0 0.0
        %1330 = vmatpush1.msra.mxu0 0.0
        %1331 = vmatprep.subr.mxu0 0.0
        %1332 = vmatpush1.msra.mxu0 0.0
        %1333 = vmatprep.subr.mxu0 0.0
        %1334 = vmatpush1.msra.mxu0 0.0
        %1335 = vmatprep.subr.mxu0 0.0
        %1336 = vmatpush1.msra.mxu0 0.0
        %1337 = vmatprep.subr.mxu0 0.0
        %1338 = vmatpush1.msra.mxu0 0.0
        %1339 = vmatprep.subr.mxu0 0.0
        %1340 = vmatpush1.msra.mxu0 0.0
        %1341 = vmatprep.subr.mxu0 0.0
        %1342 = vmatpush1.msra.mxu0 0.0
        %1343 = vmatprep.subr.mxu0 0.0
        %1344 = vmatpush1.msra.mxu0 0.0
        %1345 = vmatprep.subr.mxu0 0.0
        %1346 = vmatpush1.msra.mxu0 0.0
        %1347 = vmatprep.subr.mxu0 0.0
        %1348 = vmatpush1.msra.mxu0 0.0
        %1349 = vmatprep.subr.mxu0 0.0
        %1350 = vmatpush1.msra.mxu0 0.0
        %1351 = vmatprep.subr.mxu0 0.0
        %1352 = vmatpush1.msra.mxu0 0.0
        %1353 = vmatprep.subr.mxu0 0.0
        %1354 = vmatpush1.msra.mxu0 0.0
        %1355 = vmatprep.subr.mxu0 0.0
        %1356 = vmatpush1.msra.mxu0 0.0
        %1357 = vmatprep.mubr.f32.mxu0 0.0
        %1358 = vmatmul.mubr.f32.gmra.mrb[0].mxu0 %v1246
        %v1359 = vpop.f32.mrb[0].mxu0
        %v1360 = vadd.f32 0.0, %v1359
        %v1361 = vpop.f32.mrb[0].mxu0
        %1362 = vmatprep.mubr.f32.mxu0 0.0
        %1363 = vmatmul.mubr.f32.gmra.mrb[0].mxu0 %v1249
        %v1364 = vpop.f32.mrb[0].mxu0
        %v1365 = vadd.f32 0.0, %v1364
        %v1366 = vpop.f32.mrb[0].mxu0
        %1367 = vmatprep.mubr.f32.mxu0 0.0
        %1368 = vmatmul.mubr.f32.gmra.mrb[0].mxu0 %v1252
        %v1369 = vpop.f32.mrb[0].mxu0
        %v1370 = vadd.f32 0.0, %v1369
        %v1371 = vpop.f32.mrb[0].mxu0
        %1372 = vmatprep.mubr.f32.mxu0 0.0
        %1373 = vmatmul.mubr.f32.gmra.mrb[0].mxu0 %v1255
        %v1374 = vpop.f32.mrb[0].mxu0
        %v1375 = vadd.f32 0.0, %v1374
        %v1376 = vpop.f32.mrb[0].mxu0
        %1377 = vmatprep.mubr.f32.mxu0 0.0
        %1378 = vmatmul.mubr.f32.gmra.mrb[0].mxu0 %v1258
        %v1379 = vpop.f32.mrb[0].mxu0
        %v1380 = vadd.f32 0.0, %v1379
        %v1381 = vpop.f32.mrb[0].mxu0
        %1382 = vmatprep.mubr.f32.mxu0 0.0
        %1383 = vmatmul.mubr.f32.gmra.mrb[0].mxu0 %v1261
        %v1384 = vpop.f32.mrb[0].mxu0
        %v1385 = vadd.f32 0.0, %v1384
        %v1386 = vpop.f32.mrb[0].mxu0
        %1387 = vmatprep.mubr.f32.mxu0 0.0
        %1388 = vmatmul.mubr.f32.gmra.mrb[0].mxu0 %v1264
        %v1389 = vpop.f32.mrb[0].mxu0
        %v1390 = vadd.f32 0.0, %v1389
        %v1391 = vpop.f32.mrb[0].mxu0
        %1392 = vmatprep.mubr.f32.mxu0 0.0
        %1393 = vmatmul.mubr.f32.gmra.mrb[0].mxu0 %v1267
        %v1394 = vpop.f32.mrb[0].mxu0
        %v1395 = vadd.f32 0.0, %v1394
        %v1396 = vpop.f32.mrb[0].mxu0
        %1397 = vmatprep.mubr.f32.mxu0 0.0
        %1398 = vmatmul.mubr.f32.gmra.mrb[0].mxu0 %v1270
        %v1399 = vpop.f32.mrb[0].mxu0
        %v1400 = vadd.f32 0.0, %v1399
        %v1401 = vpop.f32.mrb[0].mxu0
        %1402 = vmatprep.mubr.f32.mxu0 0.0
        %1403 = vmatmul.mubr.f32.gmra.mrb[0].mxu0 %v1273
        %v1404 = vpop.f32.mrb[0].mxu0
        %v1405 = vadd.f32 0.0, %v1404
        %v1406 = vpop.f32.mrb[0].mxu0
        %1407 = vmatprep.mubr.f32.mxu0 0.0
        %1408 = vmatmul.mubr.f32.gmra.mrb[0].mxu0 %v1276
        %v1409 = vpop.f32.mrb[0].mxu0
        %v1410 = vadd.f32 0.0, %v1409
        %v1411 = vpop.f32.mrb[0].mxu0
        %1412 = vmatprep.mubr.f32.mxu0 0.0
        %1413 = vmatmul.mubr.f32.gmra.mrb[0].mxu0 %v1279
        %v1414 = vpop.f32.mrb[0].mxu0
        %v1415 = vadd.f32 0.0, %v1414
        %v1416 = vpop.f32.mrb[0].mxu0
        %1417 = vmatprep.mubr.f32.mxu0 0.0
        %1418 = vmatmul.mubr.f32.gmra.mrb[0].mxu0 %v1282
        %v1419 = vpop.f32.mrb[0].mxu0
        %v1420 = vadd.f32 0.0, %v1419
        %v1421 = vpop.f32.mrb[0].mxu0
        %1422 = vmatprep.mubr.f32.mxu0 0.0
        %1423 = vmatmul.mubr.f32.gmra.mrb[0].mxu0 %v1285
        %v1424 = vpop.f32.mrb[0].mxu0
        %v1425 = vadd.f32 0.0, %v1424
        %v1426 = vpop.f32.mrb[0].mxu0
        %1427 = vmatprep.mubr.f32.mxu0 0.0
        %1428 = vmatmul.mubr.f32.gmra.mrb[0].mxu0 %v1288
        %v1429 = vpop.f32.mrb[0].mxu0
        %v1430 = vadd.f32 0.0, %v1429
        %v1431 = vpop.f32.mrb[0].mxu0
        %1432 = vmatprep.mubr.f32.mxu0 0.0
        %1433 = vmatmul.mubr.f32.gmra.mrb[0].mxu0 %v1291
        %v1434 = vpop.f32.mrb[0].mxu0
        %v1435 = vadd.f32 0.0, %v1434
        %v1436 = vpop.f32.mrb[0].mxu0
        %1437 = vdwg.mxu0
        %v1438 = vmul.f32 %v1227, %v1227
        %v1439 = vmul.f32 %v1228, %v1228
        %v1440 = vmul.f32 %v1229, %v1229
        %v1441 = vmul.f32 %v1230, %v1230
        %v1442 = vmul.f32 %v1231, %v1231
        %v1443 = vmul.f32 %v1232, %v1232
        %v1444 = vmul.f32 %v1233, %v1233
        %v1445 = vmul.f32 %v1234, %v1234
        %v1446 = vmul.f32 %v1235, %v1235
        %v1447 = vmul.f32 %v1236, %v1236
        %v1448 = vmul.f32 %v1237, %v1237
        %v1449 = vmul.f32 %v1238, %v1238
        %v1450 = vmul.f32 %v1239, %v1239
        %v1451 = vmul.f32 %v1240, %v1240
        %v1452 = vmul.f32 %v1241, %v1241
        %v1453 = vmul.f32 %v1242, %v1242
        %v1454 = vsel %vm384, %v1438, 0.0
        %1455 = vadd.xlane.f32.xlu0 %v1454
        %v1456 = vpop.xlane.xlu0 %1455
        %v1457 = vsel %vm384, %v1439, 0.0
        %1458 = vadd.xlane.f32.xlu0 %v1457
        %v1459 = vpop.xlane.xlu0 %1458
        %v1460 = vsel %vm384, %v1440, 0.0
        %1461 = vadd.xlane.f32.xlu0 %v1460
        %v1462 = vpop.xlane.xlu0 %1461
        %v1463 = vsel %vm384, %v1441, 0.0
        %1464 = vadd.xlane.f32.xlu0 %v1463
        %v1465 = vpop.xlane.xlu0 %1464
        %v1466 = vsel %vm384, %v1442, 0.0
        %1467 = vadd.xlane.f32.xlu0 %v1466
        %v1468 = vpop.xlane.xlu0 %1467
        %v1469 = vsel %vm384, %v1443, 0.0
        %1470 = vadd.xlane.f32.xlu0 %v1469
        %v1471 = vpop.xlane.xlu0 %1470
        %v1472 = vsel %vm384, %v1444, 0.0
        %1473 = vadd.xlane.f32.xlu0 %v1472
        %v1474 = vpop.xlane.xlu0 %1473
        %v1475 = vsel %vm384, %v1445, 0.0
        %1476 = vadd.xlane.f32.xlu0 %v1475
        %v1477 = vpop.xlane.xlu0 %1476
        %v1478 = vsel %vm384, %v1446, 0.0
        %1479 = vadd.xlane.f32.xlu0 %v1478
        %v1480 = vpop.xlane.xlu0 %1479
        %v1481 = vsel %vm384, %v1447, 0.0
        %1482 = vadd.xlane.f32.xlu0 %v1481
        %v1483 = vpop.xlane.xlu0 %1482
        %v1484 = vsel %vm384, %v1448, 0.0
        %1485 = vadd.xlane.f32.xlu0 %v1484
        %v1486 = vpop.xlane.xlu0 %1485
        %v1487 = vsel %vm384, %v1449, 0.0
        %1488 = vadd.xlane.f32.xlu0 %v1487
        %v1489 = vpop.xlane.xlu0 %1488
        %v1490 = vsel %vm384, %v1450, 0.0
        %1491 = vadd.xlane.f32.xlu0 %v1490
        %v1492 = vpop.xlane.xlu0 %1491
        %v1493 = vsel %vm384, %v1451, 0.0
        %1494 = vadd.xlane.f32.xlu0 %v1493
        %v1495 = vpop.xlane.xlu0 %1494
        %v1496 = vsel %vm384, %v1452, 0.0
        %1497 = vadd.xlane.f32.xlu0 %v1496
        %v1498 = vpop.xlane.xlu0 %1497
        %v1499 = vsel %vm384, %v1453, 0.0
        %1500 = vadd.xlane.f32.xlu0 %v1499
        %v1501 = vpop.xlane.xlu0 %1500
        %v1502 = vadd.f32 %v1192, %v1360
        %v1503 = vadd.f32 %v1193, %v1365
        %v1504 = vadd.f32 %v1194, %v1370
        %v1505 = vadd.f32 %v1195, %v1375
        %v1506 = vadd.f32 %v1196, %v1380
        %v1507 = vadd.f32 %v1197, %v1385
        %v1508 = vadd.f32 %v1198, %v1390
        %v1509 = vadd.f32 %v1199, %v1395
        %v1510 = vadd.f32 %v1200, %v1400
        %v1511 = vadd.f32 %v1201, %v1405
        %v1512 = vadd.f32 %v1202, %v1410
        %v1513 = vadd.f32 %v1203, %v1415
        %v1514 = vadd.f32 %v1204, %v1420
        %v1515 = vadd.f32 %v1205, %v1425
        %v1516 = vadd.f32 %v1206, %v1430
        %v1517 = vadd.f32 %v1207, %v1435
        %v1518 = vadd.f32 %v1208, %v1456
        %v1519 = vadd.f32 %v1209, %v1459
        %v1520 = vadd.f32 %v1210, %v1462
        %v1521 = vadd.f32 %v1211, %v1465
        %v1522 = vadd.f32 %v1212, %v1468
        %v1523 = vadd.f32 %v1213, %v1471
        %v1524 = vadd.f32 %v1214, %v1474
        %v1525 = vadd.f32 %v1215, %v1477
        %v1526 = vadd.f32 %v1216, %v1480
        %v1527 = vadd.f32 %v1217, %v1483
        %v1528 = vadd.f32 %v1218, %v1486
        %v1529 = vadd.f32 %v1219, %v1489
        %v1530 = vadd.f32 %v1220, %v1492
        %v1531 = vadd.f32 %v1221, %v1495
        %v1532 = vadd.f32 %v1222, %v1498
        %v1533 = vadd.f32 %v1223, %v1501
        %v1534 = vld [vmem:[%s1226 + $0x1] sm:$0xff]
        %v1535 = vld [vmem:[%s1226 + $0x9] sm:$0xff]
        %v1536 = vld [vmem:[%s1226 + $0x19] sm:$0xff]
        %v1537 = vld [vmem:[%s1226 + $0x21] sm:$0xff]
        %v1538 = vld [vmem:[%s1226 + $0x31] sm:$0xff]
        %v1539 = vld [vmem:[%s1226 + $0x39] sm:$0xff]
        %v1540 = vld [vmem:[%s1226 + $0x49] sm:$0xff]
        %v1541 = vld [vmem:[%s1226 + $0x51] sm:$0xff]
        %v1542 = vld [vmem:[%s1226 + $0x61] sm:$0xff]
        %v1543 = vld [vmem:[%s1226 + $0x69] sm:$0xff]
        %v1544 = vld [vmem:[%s1226 + $0x79] sm:$0xff]
        %v1545 = vld [vmem:[%s1226 + $0x81] sm:$0xff]
        %v1546 = vld [vmem:[%s1226 + $0x91] sm:$0xff]
        %v1547 = vld [vmem:[%s1226 + $0x99] sm:$0xff]
        %v1548 = vld [vmem:[%s1226 + $0xa9] sm:$0xff]
        %v1549 = vld [vmem:[%s1226 + $0xb1] sm:$0xff]
        %s1550 = scalar_lea.vmem %s2, 32
        %v1551 = vld [vmem:[%s1550] sm:$0xff]
        %v1553 = vsel %vm384, %v1534, 0
        %v1556 = vsel %vm384, %v1535, 0
        %v1559 = vsel %vm384, %v1536, 0
        %v1562 = vsel %vm384, %v1537, 0
        %v1565 = vsel %vm384, %v1538, 0
        %v1568 = vsel %vm384, %v1539, 0
        %v1571 = vsel %vm384, %v1540, 0
        %v1574 = vsel %vm384, %v1541, 0
        %v1577 = vsel %vm384, %v1542, 0
        %v1580 = vsel %vm384, %v1543, 0
        %v1583 = vsel %vm384, %v1544, 0
        %v1586 = vsel %vm384, %v1545, 0
        %v1589 = vsel %vm384, %v1546, 0
        %v1592 = vsel %vm384, %v1547, 0
        %v1595 = vsel %vm384, %v1548, 0
        %v1598 = vsel %vm384, %v1549, 0
        %1600 = vmatprep.subr.mxu0 0.0
        %1601 = vmatpush1.msra.mxu0 %v1551
        %1602 = vmatprep.subr.mxu0 0.0
        %1603 = vmatpush1.msra.mxu0 0.0
        %1604 = vmatprep.subr.mxu0 0.0
        %1605 = vmatpush1.msra.mxu0 0.0
        %1606 = vmatprep.subr.mxu0 0.0
        %1607 = vmatpush1.msra.mxu0 0.0
        %1608 = vmatprep.subr.mxu0 0.0
        %1609 = vmatpush1.msra.mxu0 0.0
        %1610 = vmatprep.subr.mxu0 0.0
        %1611 = vmatpush1.msra.mxu0 0.0
        %1612 = vmatprep.subr.mxu0 0.0
        %1613 = vmatpush1.msra.mxu0 0.0
        %1614 = vmatprep.subr.mxu0 0.0
        %1615 = vmatpush1.msra.mxu0 0.0
        %1616 = vmatprep.subr.mxu0 0.0
        %1617 = vmatpush1.msra.mxu0 0.0
        %1618 = vmatprep.subr.mxu0 0.0
        %1619 = vmatpush1.msra.mxu0 0.0
        %1620 = vmatprep.subr.mxu0 0.0
        %1621 = vmatpush1.msra.mxu0 0.0
        %1622 = vmatprep.subr.mxu0 0.0
        %1623 = vmatpush1.msra.mxu0 0.0
        %1624 = vmatprep.subr.mxu0 0.0
        %1625 = vmatpush1.msra.mxu0 0.0
        %1626 = vmatprep.subr.mxu0 0.0
        %1627 = vmatpush1.msra.mxu0 0.0
        %1628 = vmatprep.subr.mxu0 0.0
        %1629 = vmatpush1.msra.mxu0 0.0
        %1630 = vmatprep.subr.mxu0 0.0
        %1631 = vmatpush1.msra.mxu0 0.0
        %1632 = vmatprep.subr.mxu0 0.0
        %1633 = vmatpush1.msra.mxu0 0.0
        %1634 = vmatprep.subr.mxu0 0.0
        %1635 = vmatpush1.msra.mxu0 0.0
        %1636 = vmatprep.subr.mxu0 0.0
        %1637 = vmatpush1.msra.mxu0 0.0
        %1638 = vmatprep.subr.mxu0 0.0
        %1639 = vmatpush1.msra.mxu0 0.0
        %1640 = vmatprep.subr.mxu0 0.0
        %1641 = vmatpush1.msra.mxu0 0.0
        %1642 = vmatprep.subr.mxu0 0.0
        %1643 = vmatpush1.msra.mxu0 0.0
        %1644 = vmatprep.subr.mxu0 0.0
        %1645 = vmatpush1.msra.mxu0 0.0
        %1646 = vmatprep.subr.mxu0 0.0
        %1647 = vmatpush1.msra.mxu0 0.0
        %1648 = vmatprep.subr.mxu0 0.0
        %1649 = vmatpush1.msra.mxu0 0.0
        %1650 = vmatprep.subr.mxu0 0.0
        %1651 = vmatpush1.msra.mxu0 0.0
        %1652 = vmatprep.subr.mxu0 0.0
        %1653 = vmatpush1.msra.mxu0 0.0
        %1654 = vmatprep.subr.mxu0 0.0
        %1655 = vmatpush1.msra.mxu0 0.0
        %1656 = vmatprep.subr.mxu0 0.0
        %1657 = vmatpush1.msra.mxu0 0.0
        %1658 = vmatprep.subr.mxu0 0.0
        %1659 = vmatpush1.msra.mxu0 0.0
        %1660 = vmatprep.subr.mxu0 0.0
        %1661 = vmatpush1.msra.mxu0 0.0
        %1662 = vmatprep.subr.mxu0 0.0
        %1663 = vmatpush1.msra.mxu0 0.0
        %1664 = vmatprep.mubr.f32.mxu0 0.0
        %1665 = vmatmul.mubr.f32.gmra.mrb[0].mxu0 %v1553
        %v1666 = vpop.f32.mrb[0].mxu0
        %v1667 = vadd.f32 0.0, %v1666
        %v1668 = vpop.f32.mrb[0].mxu0
        %1669 = vmatprep.mubr.f32.mxu0 0.0
        %1670 = vmatmul.mubr.f32.gmra.mrb[0].mxu0 %v1556
        %v1671 = vpop.f32.mrb[0].mxu0
        %v1672 = vadd.f32 0.0, %v1671
        %v1673 = vpop.f32.mrb[0].mxu0
        %1674 = vmatprep.mubr.f32.mxu0 0.0
        %1675 = vmatmul.mubr.f32.gmra.mrb[0].mxu0 %v1559
        %v1676 = vpop.f32.mrb[0].mxu0
        %v1677 = vadd.f32 0.0, %v1676
        %v1678 = vpop.f32.mrb[0].mxu0
        %1679 = vmatprep.mubr.f32.mxu0 0.0
        %1680 = vmatmul.mubr.f32.gmra.mrb[0].mxu0 %v1562
        %v1681 = vpop.f32.mrb[0].mxu0
        %v1682 = vadd.f32 0.0, %v1681
        %v1683 = vpop.f32.mrb[0].mxu0
        %1684 = vmatprep.mubr.f32.mxu0 0.0
        %1685 = vmatmul.mubr.f32.gmra.mrb[0].mxu0 %v1565
        %v1686 = vpop.f32.mrb[0].mxu0
        %v1687 = vadd.f32 0.0, %v1686
        %v1688 = vpop.f32.mrb[0].mxu0
        %1689 = vmatprep.mubr.f32.mxu0 0.0
        %1690 = vmatmul.mubr.f32.gmra.mrb[0].mxu0 %v1568
        %v1691 = vpop.f32.mrb[0].mxu0
        %v1692 = vadd.f32 0.0, %v1691
        %v1693 = vpop.f32.mrb[0].mxu0
        %1694 = vmatprep.mubr.f32.mxu0 0.0
        %1695 = vmatmul.mubr.f32.gmra.mrb[0].mxu0 %v1571
        %v1696 = vpop.f32.mrb[0].mxu0
        %v1697 = vadd.f32 0.0, %v1696
        %v1698 = vpop.f32.mrb[0].mxu0
        %1699 = vmatprep.mubr.f32.mxu0 0.0
        %1700 = vmatmul.mubr.f32.gmra.mrb[0].mxu0 %v1574
        %v1701 = vpop.f32.mrb[0].mxu0
        %v1702 = vadd.f32 0.0, %v1701
        %v1703 = vpop.f32.mrb[0].mxu0
        %1704 = vmatprep.mubr.f32.mxu0 0.0
        %1705 = vmatmul.mubr.f32.gmra.mrb[0].mxu0 %v1577
        %v1706 = vpop.f32.mrb[0].mxu0
        %v1707 = vadd.f32 0.0, %v1706
        %v1708 = vpop.f32.mrb[0].mxu0
        %1709 = vmatprep.mubr.f32.mxu0 0.0
        %1710 = vmatmul.mubr.f32.gmra.mrb[0].mxu0 %v1580
        %v1711 = vpop.f32.mrb[0].mxu0
        %v1712 = vadd.f32 0.0, %v1711
        %v1713 = vpop.f32.mrb[0].mxu0
        %1714 = vmatprep.mubr.f32.mxu0 0.0
        %1715 = vmatmul.mubr.f32.gmra.mrb[0].mxu0 %v1583
        %v1716 = vpop.f32.mrb[0].mxu0
        %v1717 = vadd.f32 0.0, %v1716
        %v1718 = vpop.f32.mrb[0].mxu0
        %1719 = vmatprep.mubr.f32.mxu0 0.0
        %1720 = vmatmul.mubr.f32.gmra.mrb[0].mxu0 %v1586
        %v1721 = vpop.f32.mrb[0].mxu0
        %v1722 = vadd.f32 0.0, %v1721
        %v1723 = vpop.f32.mrb[0].mxu0
        %1724 = vmatprep.mubr.f32.mxu0 0.0
        %1725 = vmatmul.mubr.f32.gmra.mrb[0].mxu0 %v1589
        %v1726 = vpop.f32.mrb[0].mxu0
        %v1727 = vadd.f32 0.0, %v1726
        %v1728 = vpop.f32.mrb[0].mxu0
        %1729 = vmatprep.mubr.f32.mxu0 0.0
        %1730 = vmatmul.mubr.f32.gmra.mrb[0].mxu0 %v1592
        %v1731 = vpop.f32.mrb[0].mxu0
        %v1732 = vadd.f32 0.0, %v1731
        %v1733 = vpop.f32.mrb[0].mxu0
        %1734 = vmatprep.mubr.f32.mxu0 0.0
        %1735 = vmatmul.mubr.f32.gmra.mrb[0].mxu0 %v1595
        %v1736 = vpop.f32.mrb[0].mxu0
        %v1737 = vadd.f32 0.0, %v1736
        %v1738 = vpop.f32.mrb[0].mxu0
        %1739 = vmatprep.mubr.f32.mxu0 0.0
        %1740 = vmatmul.mubr.f32.gmra.mrb[0].mxu0 %v1598
        %v1741 = vpop.f32.mrb[0].mxu0
        %v1742 = vadd.f32 0.0, %v1741
        %v1743 = vpop.f32.mrb[0].mxu0
        %1744 = vdwg.mxu0
        %v1745 = vmul.f32 %v1534, %v1534
        %v1746 = vmul.f32 %v1535, %v1535
        %v1747 = vmul.f32 %v1536, %v1536
        %v1748 = vmul.f32 %v1537, %v1537
        %v1749 = vmul.f32 %v1538, %v1538
        %v1750 = vmul.f32 %v1539, %v1539
        %v1751 = vmul.f32 %v1540, %v1540
        %v1752 = vmul.f32 %v1541, %v1541
        %v1753 = vmul.f32 %v1542, %v1542
        %v1754 = vmul.f32 %v1543, %v1543
        %v1755 = vmul.f32 %v1544, %v1544
        %v1756 = vmul.f32 %v1545, %v1545
        %v1757 = vmul.f32 %v1546, %v1546
        %v1758 = vmul.f32 %v1547, %v1547
        %v1759 = vmul.f32 %v1548, %v1548
        %v1760 = vmul.f32 %v1549, %v1549
        %v1761 = vsel %vm384, %v1745, 0.0
        %1762 = vadd.xlane.f32.xlu0 %v1761
        %v1763 = vpop.xlane.xlu0 %1762
        %v1764 = vsel %vm384, %v1746, 0.0
        %1765 = vadd.xlane.f32.xlu0 %v1764
        %v1766 = vpop.xlane.xlu0 %1765
        %v1767 = vsel %vm384, %v1747, 0.0
        %1768 = vadd.xlane.f32.xlu0 %v1767
        %v1769 = vpop.xlane.xlu0 %1768
        %v1770 = vsel %vm384, %v1748, 0.0
        %1771 = vadd.xlane.f32.xlu0 %v1770
        %v1772 = vpop.xlane.xlu0 %1771
        %v1773 = vsel %vm384, %v1749, 0.0
        %1774 = vadd.xlane.f32.xlu0 %v1773
        %v1775 = vpop.xlane.xlu0 %1774
        %v1776 = vsel %vm384, %v1750, 0.0
        %1777 = vadd.xlane.f32.xlu0 %v1776
        %v1778 = vpop.xlane.xlu0 %1777
        %v1779 = vsel %vm384, %v1751, 0.0
        %1780 = vadd.xlane.f32.xlu0 %v1779
        %v1781 = vpop.xlane.xlu0 %1780
        %v1782 = vsel %vm384, %v1752, 0.0
        %1783 = vadd.xlane.f32.xlu0 %v1782
        %v1784 = vpop.xlane.xlu0 %1783
        %v1785 = vsel %vm384, %v1753, 0.0
        %1786 = vadd.xlane.f32.xlu0 %v1785
        %v1787 = vpop.xlane.xlu0 %1786
        %v1788 = vsel %vm384, %v1754, 0.0
        %1789 = vadd.xlane.f32.xlu0 %v1788
        %v1790 = vpop.xlane.xlu0 %1789
        %v1791 = vsel %vm384, %v1755, 0.0
        %1792 = vadd.xlane.f32.xlu0 %v1791
        %v1793 = vpop.xlane.xlu0 %1792
        %v1794 = vsel %vm384, %v1756, 0.0
        %1795 = vadd.xlane.f32.xlu0 %v1794
        %v1796 = vpop.xlane.xlu0 %1795
        %v1797 = vsel %vm384, %v1757, 0.0
        %1798 = vadd.xlane.f32.xlu0 %v1797
        %v1799 = vpop.xlane.xlu0 %1798
        %v1800 = vsel %vm384, %v1758, 0.0
        %1801 = vadd.xlane.f32.xlu0 %v1800
        %v1802 = vpop.xlane.xlu0 %1801
        %v1803 = vsel %vm384, %v1759, 0.0
        %1804 = vadd.xlane.f32.xlu0 %v1803
        %v1805 = vpop.xlane.xlu0 %1804
        %v1806 = vsel %vm384, %v1760, 0.0
        %1807 = vadd.xlane.f32.xlu0 %v1806
        %v1808 = vpop.xlane.xlu0 %1807
        %v1809 = vadd.f32 %v1502, %v1667
        %v1810 = vadd.f32 %v1503, %v1672
        %v1811 = vadd.f32 %v1504, %v1677
        %v1812 = vadd.f32 %v1505, %v1682
        %v1813 = vadd.f32 %v1506, %v1687
        %v1814 = vadd.f32 %v1507, %v1692
        %v1815 = vadd.f32 %v1508, %v1697
        %v1816 = vadd.f32 %v1509, %v1702
        %v1817 = vadd.f32 %v1510, %v1707
        %v1818 = vadd.f32 %v1511, %v1712
        %v1819 = vadd.f32 %v1512, %v1717
        %v1820 = vadd.f32 %v1513, %v1722
        %v1821 = vadd.f32 %v1514, %v1727
        %v1822 = vadd.f32 %v1515, %v1732
        %v1823 = vadd.f32 %v1516, %v1737
        %v1824 = vadd.f32 %v1517, %v1742
        %v1825 = vadd.f32 %v1518, %v1763
        %v1826 = vadd.f32 %v1519, %v1766
        %v1827 = vadd.f32 %v1520, %v1769
        %v1828 = vadd.f32 %v1521, %v1772
        %v1829 = vadd.f32 %v1522, %v1775
        %v1830 = vadd.f32 %v1523, %v1778
        %v1831 = vadd.f32 %v1524, %v1781
        %v1832 = vadd.f32 %v1525, %v1784
        %v1833 = vadd.f32 %v1526, %v1787
        %v1834 = vadd.f32 %v1527, %v1790
        %v1835 = vadd.f32 %v1528, %v1793
        %v1836 = vadd.f32 %v1529, %v1796
        %v1837 = vadd.f32 %v1530, %v1799
        %v1838 = vadd.f32 %v1531, %v1802
        %v1839 = vadd.f32 %v1532, %v1805
        %v1840 = vadd.f32 %v1533, %v1808
        %v1841 = vld [vmem:[%s1226 + $0x2] sm:$0xff]
        %v1842 = vld [vmem:[%s1226 + $0xa] sm:$0xff]
        %v1843 = vld [vmem:[%s1226 + $0x1a] sm:$0xff]
        %v1844 = vld [vmem:[%s1226 + $0x22] sm:$0xff]
        %v1845 = vld [vmem:[%s1226 + $0x32] sm:$0xff]
        %v1846 = vld [vmem:[%s1226 + $0x3a] sm:$0xff]
        %v1847 = vld [vmem:[%s1226 + $0x4a] sm:$0xff]
        %v1848 = vld [vmem:[%s1226 + $0x52] sm:$0xff]
        %v1849 = vld [vmem:[%s1226 + $0x62] sm:$0xff]
        %v1850 = vld [vmem:[%s1226 + $0x6a] sm:$0xff]
        %v1851 = vld [vmem:[%s1226 + $0x7a] sm:$0xff]
        %v1852 = vld [vmem:[%s1226 + $0x82] sm:$0xff]
        %v1853 = vld [vmem:[%s1226 + $0x92] sm:$0xff]
        %v1854 = vld [vmem:[%s1226 + $0x9a] sm:$0xff]
        %v1855 = vld [vmem:[%s1226 + $0xaa] sm:$0xff]
        %v1856 = vld [vmem:[%s1226 + $0xb2] sm:$0xff]
        %s1857 = scalar_lea.vmem %s2, 40
        %v1858 = vld [vmem:[%s1857] sm:$0xff]
        %v1860 = vsel %vm384, %v1841, 0
        %v1863 = vsel %vm384, %v1842, 0
        %v1866 = vsel %vm384, %v1843, 0
        %v1869 = vsel %vm384, %v1844, 0
        %v1872 = vsel %vm384, %v1845, 0
        %v1875 = vsel %vm384, %v1846, 0
        %v1878 = vsel %vm384, %v1847, 0
        %v1881 = vsel %vm384, %v1848, 0
        %v1884 = vsel %vm384, %v1849, 0
        %v1887 = vsel %vm384, %v1850, 0
        %v1890 = vsel %vm384, %v1851, 0
        %v1893 = vsel %vm384, %v1852, 0
        %v1896 = vsel %vm384, %v1853, 0
        %v1899 = vsel %vm384, %v1854, 0
        %v1902 = vsel %vm384, %v1855, 0
        %v1905 = vsel %vm384, %v1856, 0
        %1907 = vmatprep.subr.mxu0 0.0
        %1908 = vmatpush1.msra.mxu0 %v1858
        %1909 = vmatprep.subr.mxu0 0.0
        %1910 = vmatpush1.msra.mxu0 0.0
        %1911 = vmatprep.subr.mxu0 0.0
        %1912 = vmatpush1.msra.mxu0 0.0
        %1913 = vmatprep.subr.mxu0 0.0
        %1914 = vmatpush1.msra.mxu0 0.0
        %1915 = vmatprep.subr.mxu0 0.0
        %1916 = vmatpush1.msra.mxu0 0.0
        %1917 = vmatprep.subr.mxu0 0.0
        %1918 = vmatpush1.msra.mxu0 0.0
        %1919 = vmatprep.subr.mxu0 0.0
        %1920 = vmatpush1.msra.mxu0 0.0
        %1921 = vmatprep.subr.mxu0 0.0
        %1922 = vmatpush1.msra.mxu0 0.0
        %1923 = vmatprep.subr.mxu0 0.0
        %1924 = vmatpush1.msra.mxu0 0.0
        %1925 = vmatprep.subr.mxu0 0.0
        %1926 = vmatpush1.msra.mxu0 0.0
        %1927 = vmatprep.subr.mxu0 0.0
        %1928 = vmatpush1.msra.mxu0 0.0
        %1929 = vmatprep.subr.mxu0 0.0
        %1930 = vmatpush1.msra.mxu0 0.0
        %1931 = vmatprep.subr.mxu0 0.0
        %1932 = vmatpush1.msra.mxu0 0.0
        %1933 = vmatprep.subr.mxu0 0.0
        %1934 = vmatpush1.msra.mxu0 0.0
        %1935 = vmatprep.subr.mxu0 0.0
        %1936 = vmatpush1.msra.mxu0 0.0
        %1937 = vmatprep.subr.mxu0 0.0
        %1938 = vmatpush1.msra.mxu0 0.0
        %1939 = vmatprep.subr.mxu0 0.0
        %1940 = vmatpush1.msra.mxu0 0.0
        %1941 = vmatprep.subr.mxu0 0.0
        %1942 = vmatpush1.msra.mxu0 0.0
        %1943 = vmatprep.subr.mxu0 0.0
        %1944 = vmatpush1.msra.mxu0 0.0
        %1945 = vmatprep.subr.mxu0 0.0
        %1946 = vmatpush1.msra.mxu0 0.0
        %1947 = vmatprep.subr.mxu0 0.0
        %1948 = vmatpush1.msra.mxu0 0.0
        %1949 = vmatprep.subr.mxu0 0.0
        %1950 = vmatpush1.msra.mxu0 0.0
        %1951 = vmatprep.subr.mxu0 0.0
        %1952 = vmatpush1.msra.mxu0 0.0
        %1953 = vmatprep.subr.mxu0 0.0
        %1954 = vmatpush1.msra.mxu0 0.0
        %1955 = vmatprep.subr.mxu0 0.0
        %1956 = vmatpush1.msra.mxu0 0.0
        %1957 = vmatprep.subr.mxu0 0.0
        %1958 = vmatpush1.msra.mxu0 0.0
        %1959 = vmatprep.subr.mxu0 0.0
        %1960 = vmatpush1.msra.mxu0 0.0
        %1961 = vmatprep.subr.mxu0 0.0
        %1962 = vmatpush1.msra.mxu0 0.0
        %1963 = vmatprep.subr.mxu0 0.0
        %1964 = vmatpush1.msra.mxu0 0.0
        %1965 = vmatprep.subr.mxu0 0.0
        %1966 = vmatpush1.msra.mxu0 0.0
        %1967 = vmatprep.subr.mxu0 0.0
        %1968 = vmatpush1.msra.mxu0 0.0
        %1969 = vmatprep.subr.mxu0 0.0
        %1970 = vmatpush1.msra.mxu0 0.0
        %1971 = vmatprep.mubr.f32.mxu0 0.0
        %1972 = vmatmul.mubr.f32.gmra.mrb[0].mxu0 %v1860
        %v1973 = vpop.f32.mrb[0].mxu0
        %v1974 = vadd.f32 0.0, %v1973
        %v1975 = vpop.f32.mrb[0].mxu0
        %1976 = vmatprep.mubr.f32.mxu0 0.0
        %1977 = vmatmul.mubr.f32.gmra.mrb[0].mxu0 %v1863
        %v1978 = vpop.f32.mrb[0].mxu0
        %v1979 = vadd.f32 0.0, %v1978
        %v1980 = vpop.f32.mrb[0].mxu0
        %1981 = vmatprep.mubr.f32.mxu0 0.0
        %1982 = vmatmul.mubr.f32.gmra.mrb[0].mxu0 %v1866
        %v1983 = vpop.f32.mrb[0].mxu0
        %v1984 = vadd.f32 0.0, %v1983
        %v1985 = vpop.f32.mrb[0].mxu0
        %1986 = vmatprep.mubr.f32.mxu0 0.0
        %1987 = vmatmul.mubr.f32.gmra.mrb[0].mxu0 %v1869
        %v1988 = vpop.f32.mrb[0].mxu0
        %v1989 = vadd.f32 0.0, %v1988
        %v1990 = vpop.f32.mrb[0].mxu0
        %1991 = vmatprep.mubr.f32.mxu0 0.0
        %1992 = vmatmul.mubr.f32.gmra.mrb[0].mxu0 %v1872
        %v1993 = vpop.f32.mrb[0].mxu0
        %v1994 = vadd.f32 0.0, %v1993
        %v1995 = vpop.f32.mrb[0].mxu0
        %1996 = vmatprep.mubr.f32.mxu0 0.0
        %1997 = vmatmul.mubr.f32.gmra.mrb[0].mxu0 %v1875
        %v1998 = vpop.f32.mrb[0].mxu0
        %v1999 = vadd.f32 0.0, %v1998
        %v2000 = vpop.f32.mrb[0].mxu0
        %2001 = vmatprep.mubr.f32.mxu0 0.0
        %2002 = vmatmul.mubr.f32.gmra.mrb[0].mxu0 %v1878
        %v2003 = vpop.f32.mrb[0].mxu0
        %v2004 = vadd.f32 0.0, %v2003
        %v2005 = vpop.f32.mrb[0].mxu0
        %2006 = vmatprep.mubr.f32.mxu0 0.0
        %2007 = vmatmul.mubr.f32.gmra.mrb[0].mxu0 %v1881
        %v2008 = vpop.f32.mrb[0].mxu0
        %v2009 = vadd.f32 0.0, %v2008
        %v2010 = vpop.f32.mrb[0].mxu0
        %2011 = vmatprep.mubr.f32.mxu0 0.0
        %2012 = vmatmul.mubr.f32.gmra.mrb[0].mxu0 %v1884
        %v2013 = vpop.f32.mrb[0].mxu0
        %v2014 = vadd.f32 0.0, %v2013
        %v2015 = vpop.f32.mrb[0].mxu0
        %2016 = vmatprep.mubr.f32.mxu0 0.0
        %2017 = vmatmul.mubr.f32.gmra.mrb[0].mxu0 %v1887
        %v2018 = vpop.f32.mrb[0].mxu0
        %v2019 = vadd.f32 0.0, %v2018
        %v2020 = vpop.f32.mrb[0].mxu0
        %2021 = vmatprep.mubr.f32.mxu0 0.0
        %2022 = vmatmul.mubr.f32.gmra.mrb[0].mxu0 %v1890
        %v2023 = vpop.f32.mrb[0].mxu0
        %v2024 = vadd.f32 0.0, %v2023
        %v2025 = vpop.f32.mrb[0].mxu0
        %2026 = vmatprep.mubr.f32.mxu0 0.0
        %2027 = vmatmul.mubr.f32.gmra.mrb[0].mxu0 %v1893
        %v2028 = vpop.f32.mrb[0].mxu0
        %v2029 = vadd.f32 0.0, %v2028
        %v2030 = vpop.f32.mrb[0].mxu0
        %2031 = vmatprep.mubr.f32.mxu0 0.0
        %2032 = vmatmul.mubr.f32.gmra.mrb[0].mxu0 %v1896
        %v2033 = vpop.f32.mrb[0].mxu0
        %v2034 = vadd.f32 0.0, %v2033
        %v2035 = vpop.f32.mrb[0].mxu0
        %2036 = vmatprep.mubr.f32.mxu0 0.0
        %2037 = vmatmul.mubr.f32.gmra.mrb[0].mxu0 %v1899
        %v2038 = vpop.f32.mrb[0].mxu0
        %v2039 = vadd.f32 0.0, %v2038
        %v2040 = vpop.f32.mrb[0].mxu0
        %2041 = vmatprep.mubr.f32.mxu0 0.0
        %2042 = vmatmul.mubr.f32.gmra.mrb[0].mxu0 %v1902
        %v2043 = vpop.f32.mrb[0].mxu0
        %v2044 = vadd.f32 0.0, %v2043
        %v2045 = vpop.f32.mrb[0].mxu0
        %2046 = vmatprep.mubr.f32.mxu0 0.0
        %2047 = vmatmul.mubr.f32.gmra.mrb[0].mxu0 %v1905
        %v2048 = vpop.f32.mrb[0].mxu0
        %v2049 = vadd.f32 0.0, %v2048
        %v2050 = vpop.f32.mrb[0].mxu0
        %2051 = vdwg.mxu0
        %v2052 = vmul.f32 %v1841, %v1841
        %v2053 = vmul.f32 %v1842, %v1842
        %v2054 = vmul.f32 %v1843, %v1843
        %v2055 = vmul.f32 %v1844, %v1844
        %v2056 = vmul.f32 %v1845, %v1845
        %v2057 = vmul.f32 %v1846, %v1846
        %v2058 = vmul.f32 %v1847, %v1847
        %v2059 = vmul.f32 %v1848, %v1848
        %v2060 = vmul.f32 %v1849, %v1849
        %v2061 = vmul.f32 %v1850, %v1850
        %v2062 = vmul.f32 %v1851, %v1851
        %v2063 = vmul.f32 %v1852, %v1852
        %v2064 = vmul.f32 %v1853, %v1853
        %v2065 = vmul.f32 %v1854, %v1854
        %v2066 = vmul.f32 %v1855, %v1855
        %v2067 = vmul.f32 %v1856, %v1856
        %v2068 = vsel %vm384, %v2052, 0.0
        %2069 = vadd.xlane.f32.xlu0 %v2068
        %v2070 = vpop.xlane.xlu0 %2069
        %v2071 = vsel %vm384, %v2053, 0.0
        %2072 = vadd.xlane.f32.xlu0 %v2071
        %v2073 = vpop.xlane.xlu0 %2072
        %v2074 = vsel %vm384, %v2054, 0.0
        %2075 = vadd.xlane.f32.xlu0 %v2074
        %v2076 = vpop.xlane.xlu0 %2075
        %v2077 = vsel %vm384, %v2055, 0.0
        %2078 = vadd.xlane.f32.xlu0 %v2077
        %v2079 = vpop.xlane.xlu0 %2078
        %v2080 = vsel %vm384, %v2056, 0.0
        %2081 = vadd.xlane.f32.xlu0 %v2080
        %v2082 = vpop.xlane.xlu0 %2081
        %v2083 = vsel %vm384, %v2057, 0.0
        %2084 = vadd.xlane.f32.xlu0 %v2083
        %v2085 = vpop.xlane.xlu0 %2084
        %v2086 = vsel %vm384, %v2058, 0.0
        %2087 = vadd.xlane.f32.xlu0 %v2086
        %v2088 = vpop.xlane.xlu0 %2087
        %v2089 = vsel %vm384, %v2059, 0.0
        %2090 = vadd.xlane.f32.xlu0 %v2089
        %v2091 = vpop.xlane.xlu0 %2090
        %v2092 = vsel %vm384, %v2060, 0.0
        %2093 = vadd.xlane.f32.xlu0 %v2092
        %v2094 = vpop.xlane.xlu0 %2093
        %v2095 = vsel %vm384, %v2061, 0.0
        %2096 = vadd.xlane.f32.xlu0 %v2095
        %v2097 = vpop.xlane.xlu0 %2096
        %v2098 = vsel %vm384, %v2062, 0.0
        %2099 = vadd.xlane.f32.xlu0 %v2098
        %v2100 = vpop.xlane.xlu0 %2099
        %v2101 = vsel %vm384, %v2063, 0.0
        %2102 = vadd.xlane.f32.xlu0 %v2101
        %v2103 = vpop.xlane.xlu0 %2102
        %v2104 = vsel %vm384, %v2064, 0.0
        %2105 = vadd.xlane.f32.xlu0 %v2104
        %v2106 = vpop.xlane.xlu0 %2105
        %v2107 = vsel %vm384, %v2065, 0.0
        %2108 = vadd.xlane.f32.xlu0 %v2107
        %v2109 = vpop.xlane.xlu0 %2108
        %v2110 = vsel %vm384, %v2066, 0.0
        %2111 = vadd.xlane.f32.xlu0 %v2110
        %v2112 = vpop.xlane.xlu0 %2111
        %v2113 = vsel %vm384, %v2067, 0.0
        %2114 = vadd.xlane.f32.xlu0 %v2113
        %v2115 = vpop.xlane.xlu0 %2114
        %v2116 = vadd.f32 %v1809, %v1974
        %v2117 = vadd.f32 %v1810, %v1979
        %v2118 = vadd.f32 %v1811, %v1984
        %v2119 = vadd.f32 %v1812, %v1989
        %v2120 = vadd.f32 %v1813, %v1994
        %v2121 = vadd.f32 %v1814, %v1999
        %v2122 = vadd.f32 %v1815, %v2004
        %v2123 = vadd.f32 %v1816, %v2009
        %v2124 = vadd.f32 %v1817, %v2014
        %v2125 = vadd.f32 %v1818, %v2019
        %v2126 = vadd.f32 %v1819, %v2024
        %v2127 = vadd.f32 %v1820, %v2029
        %v2128 = vadd.f32 %v1821, %v2034
        %v2129 = vadd.f32 %v1822, %v2039
        %v2130 = vadd.f32 %v1823, %v2044
        %v2131 = vadd.f32 %v1824, %v2049
        %v2132 = vadd.f32 %v1825, %v2070
        %v2133 = vadd.f32 %v1826, %v2073
        %v2134 = vadd.f32 %v1827, %v2076
        %v2135 = vadd.f32 %v1828, %v2079
        %v2136 = vadd.f32 %v1829, %v2082
        %v2137 = vadd.f32 %v1830, %v2085
        %v2138 = vadd.f32 %v1831, %v2088
        %v2139 = vadd.f32 %v1832, %v2091
        %v2140 = vadd.f32 %v1833, %v2094
        %v2141 = vadd.f32 %v1834, %v2097
        %v2142 = vadd.f32 %v1835, %v2100
        %v2143 = vadd.f32 %v1836, %v2103
        %v2144 = vadd.f32 %v1837, %v2106
        %v2145 = vadd.f32 %v1838, %v2109
        %v2146 = vadd.f32 %v1839, %v2112
        %v2147 = vadd.f32 %v1840, %v2115
        %s2148 = sadd.s32 %s347, 2
        %s2149 = smul.u32 %s2148, 24
        %s2150 = scalar_lea.vmem %s320, %s2149
        %v2151 = vld [vmem:[%s2150] sm:$0xff]
        %v2152 = vld [vmem:[%s2150 + $0x8] sm:$0xff]
        %v2153 = vld [vmem:[%s2150 + $0x18] sm:$0xff]
        %v2154 = vld [vmem:[%s2150 + $0x20] sm:$0xff]
        %v2155 = vld [vmem:[%s2150 + $0x30] sm:$0xff]
        %v2156 = vld [vmem:[%s2150 + $0x38] sm:$0xff]
        %v2157 = vld [vmem:[%s2150 + $0x48] sm:$0xff]
        %v2158 = vld [vmem:[%s2150 + $0x50] sm:$0xff]
        %v2159 = vld [vmem:[%s2150 + $0x60] sm:$0xff]
        %v2160 = vld [vmem:[%s2150 + $0x68] sm:$0xff]
        %v2161 = vld [vmem:[%s2150 + $0x78] sm:$0xff]
        %v2162 = vld [vmem:[%s2150 + $0x80] sm:$0xff]
        %v2163 = vld [vmem:[%s2150 + $0x90] sm:$0xff]
        %v2164 = vld [vmem:[%s2150 + $0x98] sm:$0xff]
        %v2165 = vld [vmem:[%s2150 + $0xa8] sm:$0xff]
        %v2166 = vld [vmem:[%s2150 + $0xb0] sm:$0xff]
        %s2167 = scalar_lea.vmem %s2, 48
        %v2168 = vld [vmem:[%s2167] sm:$0xff]
        %v2170 = vsel %vm384, %v2151, 0
        %v2173 = vsel %vm384, %v2152, 0
        %v2176 = vsel %vm384, %v2153, 0
        %v2179 = vsel %vm384, %v2154, 0
        %v2182 = vsel %vm384, %v2155, 0
        %v2185 = vsel %vm384, %v2156, 0
        %v2188 = vsel %vm384, %v2157, 0
        %v2191 = vsel %vm384, %v2158, 0
        %v2194 = vsel %vm384, %v2159, 0
        %v2197 = vsel %vm384, %v2160, 0
        %v2200 = vsel %vm384, %v2161, 0
        %v2203 = vsel %vm384, %v2162, 0
        %v2206 = vsel %vm384, %v2163, 0
        %v2209 = vsel %vm384, %v2164, 0
        %v2212 = vsel %vm384, %v2165, 0
        %v2215 = vsel %vm384, %v2166, 0
        %2217 = vmatprep.subr.mxu0 0.0
        %2218 = vmatpush1.msra.mxu0 %v2168
        %2219 = vmatprep.subr.mxu0 0.0
        %2220 = vmatpush1.msra.mxu0 0.0
        %2221 = vmatprep.subr.mxu0 0.0
        %2222 = vmatpush1.msra.mxu0 0.0
        %2223 = vmatprep.subr.mxu0 0.0
        %2224 = vmatpush1.msra.mxu0 0.0
        %2225 = vmatprep.subr.mxu0 0.0
        %2226 = vmatpush1.msra.mxu0 0.0
        %2227 = vmatprep.subr.mxu0 0.0
        %2228 = vmatpush1.msra.mxu0 0.0
        %2229 = vmatprep.subr.mxu0 0.0
        %2230 = vmatpush1.msra.mxu0 0.0
        %2231 = vmatprep.subr.mxu0 0.0
        %2232 = vmatpush1.msra.mxu0 0.0
        %2233 = vmatprep.subr.mxu0 0.0
        %2234 = vmatpush1.msra.mxu0 0.0
        %2235 = vmatprep.subr.mxu0 0.0
        %2236 = vmatpush1.msra.mxu0 0.0
        %2237 = vmatprep.subr.mxu0 0.0
        %2238 = vmatpush1.msra.mxu0 0.0
        %2239 = vmatprep.subr.mxu0 0.0
        %2240 = vmatpush1.msra.mxu0 0.0
        %2241 = vmatprep.subr.mxu0 0.0
        %2242 = vmatpush1.msra.mxu0 0.0
        %2243 = vmatprep.subr.mxu0 0.0
        %2244 = vmatpush1.msra.mxu0 0.0
        %2245 = vmatprep.subr.mxu0 0.0
        %2246 = vmatpush1.msra.mxu0 0.0
        %2247 = vmatprep.subr.mxu0 0.0
        %2248 = vmatpush1.msra.mxu0 0.0
        %2249 = vmatprep.subr.mxu0 0.0
        %2250 = vmatpush1.msra.mxu0 0.0
        %2251 = vmatprep.subr.mxu0 0.0
        %2252 = vmatpush1.msra.mxu0 0.0
        %2253 = vmatprep.subr.mxu0 0.0
        %2254 = vmatpush1.msra.mxu0 0.0
        %2255 = vmatprep.subr.mxu0 0.0
        %2256 = vmatpush1.msra.mxu0 0.0
        %2257 = vmatprep.subr.mxu0 0.0
        %2258 = vmatpush1.msra.mxu0 0.0
        %2259 = vmatprep.subr.mxu0 0.0
        %2260 = vmatpush1.msra.mxu0 0.0
        %2261 = vmatprep.subr.mxu0 0.0
        %2262 = vmatpush1.msra.mxu0 0.0
        %2263 = vmatprep.subr.mxu0 0.0
        %2264 = vmatpush1.msra.mxu0 0.0
        %2265 = vmatprep.subr.mxu0 0.0
        %2266 = vmatpush1.msra.mxu0 0.0
        %2267 = vmatprep.subr.mxu0 0.0
        %2268 = vmatpush1.msra.mxu0 0.0
        %2269 = vmatprep.subr.mxu0 0.0
        %2270 = vmatpush1.msra.mxu0 0.0
        %2271 = vmatprep.subr.mxu0 0.0
        %2272 = vmatpush1.msra.mxu0 0.0
        %2273 = vmatprep.subr.mxu0 0.0
        %2274 = vmatpush1.msra.mxu0 0.0
        %2275 = vmatprep.subr.mxu0 0.0
        %2276 = vmatpush1.msra.mxu0 0.0
        %2277 = vmatprep.subr.mxu0 0.0
        %2278 = vmatpush1.msra.mxu0 0.0
        %2279 = vmatprep.subr.mxu0 0.0
        %2280 = vmatpush1.msra.mxu0 0.0
        %2281 = vmatprep.mubr.f32.mxu0 0.0
        %2282 = vmatmul.mubr.f32.gmra.mrb[0].mxu0 %v2170
        %v2283 = vpop.f32.mrb[0].mxu0
        %v2284 = vadd.f32 0.0, %v2283
        %v2285 = vpop.f32.mrb[0].mxu0
        %2286 = vmatprep.mubr.f32.mxu0 0.0
        %2287 = vmatmul.mubr.f32.gmra.mrb[0].mxu0 %v2173
        %v2288 = vpop.f32.mrb[0].mxu0
        %v2289 = vadd.f32 0.0, %v2288
        %v2290 = vpop.f32.mrb[0].mxu0
        %2291 = vmatprep.mubr.f32.mxu0 0.0
        %2292 = vmatmul.mubr.f32.gmra.mrb[0].mxu0 %v2176
        %v2293 = vpop.f32.mrb[0].mxu0
        %v2294 = vadd.f32 0.0, %v2293
        %v2295 = vpop.f32.mrb[0].mxu0
        %2296 = vmatprep.mubr.f32.mxu0 0.0
        %2297 = vmatmul.mubr.f32.gmra.mrb[0].mxu0 %v2179
        %v2298 = vpop.f32.mrb[0].mxu0
        %v2299 = vadd.f32 0.0, %v2298
        %v2300 = vpop.f32.mrb[0].mxu0
        %2301 = vmatprep.mubr.f32.mxu0 0.0
        %2302 = vmatmul.mubr.f32.gmra.mrb[0].mxu0 %v2182
        %v2303 = vpop.f32.mrb[0].mxu0
        %v2304 = vadd.f32 0.0, %v2303
        %v2305 = vpop.f32.mrb[0].mxu0
        %2306 = vmatprep.mubr.f32.mxu0 0.0
        %2307 = vmatmul.mubr.f32.gmra.mrb[0].mxu0 %v2185
        %v2308 = vpop.f32.mrb[0].mxu0
        %v2309 = vadd.f32 0.0, %v2308
        %v2310 = vpop.f32.mrb[0].mxu0
        %2311 = vmatprep.mubr.f32.mxu0 0.0
        %2312 = vmatmul.mubr.f32.gmra.mrb[0].mxu0 %v2188
        %v2313 = vpop.f32.mrb[0].mxu0
        %v2314 = vadd.f32 0.0, %v2313
        %v2315 = vpop.f32.mrb[0].mxu0
        %2316 = vmatprep.mubr.f32.mxu0 0.0
        %2317 = vmatmul.mubr.f32.gmra.mrb[0].mxu0 %v2191
        %v2318 = vpop.f32.mrb[0].mxu0
        %v2319 = vadd.f32 0.0, %v2318
        %v2320 = vpop.f32.mrb[0].mxu0
        %2321 = vmatprep.mubr.f32.mxu0 0.0
        %2322 = vmatmul.mubr.f32.gmra.mrb[0].mxu0 %v2194
        %v2323 = vpop.f32.mrb[0].mxu0
        %v2324 = vadd.f32 0.0, %v2323
        %v2325 = vpop.f32.mrb[0].mxu0
        %2326 = vmatprep.mubr.f32.mxu0 0.0
        %2327 = vmatmul.mubr.f32.gmra.mrb[0].mxu0 %v2197
        %v2328 = vpop.f32.mrb[0].mxu0
        %v2329 = vadd.f32 0.0, %v2328
        %v2330 = vpop.f32.mrb[0].mxu0
        %2331 = vmatprep.mubr.f32.mxu0 0.0
        %2332 = vmatmul.mubr.f32.gmra.mrb[0].mxu0 %v2200
        %v2333 = vpop.f32.mrb[0].mxu0
        %v2334 = vadd.f32 0.0, %v2333
        %v2335 = vpop.f32.mrb[0].mxu0
        %2336 = vmatprep.mubr.f32.mxu0 0.0
        %2337 = vmatmul.mubr.f32.gmra.mrb[0].mxu0 %v2203
        %v2338 = vpop.f32.mrb[0].mxu0
        %v2339 = vadd.f32 0.0, %v2338
        %v2340 = vpop.f32.mrb[0].mxu0
        %2341 = vmatprep.mubr.f32.mxu0 0.0
        %2342 = vmatmul.mubr.f32.gmra.mrb[0].mxu0 %v2206
        %v2343 = vpop.f32.mrb[0].mxu0
        %v2344 = vadd.f32 0.0, %v2343
        %v2345 = vpop.f32.mrb[0].mxu0
        %2346 = vmatprep.mubr.f32.mxu0 0.0
        %2347 = vmatmul.mubr.f32.gmra.mrb[0].mxu0 %v2209
        %v2348 = vpop.f32.mrb[0].mxu0
        %v2349 = vadd.f32 0.0, %v2348
        %v2350 = vpop.f32.mrb[0].mxu0
        %2351 = vmatprep.mubr.f32.mxu0 0.0
        %2352 = vmatmul.mubr.f32.gmra.mrb[0].mxu0 %v2212
        %v2353 = vpop.f32.mrb[0].mxu0
        %v2354 = vadd.f32 0.0, %v2353
        %v2355 = vpop.f32.mrb[0].mxu0
        %2356 = vmatprep.mubr.f32.mxu0 0.0
        %2357 = vmatmul.mubr.f32.gmra.mrb[0].mxu0 %v2215
        %v2358 = vpop.f32.mrb[0].mxu0
        %v2359 = vadd.f32 0.0, %v2358
        %v2360 = vpop.f32.mrb[0].mxu0
        %2361 = vdwg.mxu0
        %v2362 = vmul.f32 %v2151, %v2151
        %v2363 = vmul.f32 %v2152, %v2152
        %v2364 = vmul.f32 %v2153, %v2153
        %v2365 = vmul.f32 %v2154, %v2154
        %v2366 = vmul.f32 %v2155, %v2155
        %v2367 = vmul.f32 %v2156, %v2156
        %v2368 = vmul.f32 %v2157, %v2157
        %v2369 = vmul.f32 %v2158, %v2158
        %v2370 = vmul.f32 %v2159, %v2159
        %v2371 = vmul.f32 %v2160, %v2160
        %v2372 = vmul.f32 %v2161, %v2161
        %v2373 = vmul.f32 %v2162, %v2162
        %v2374 = vmul.f32 %v2163, %v2163
        %v2375 = vmul.f32 %v2164, %v2164
        %v2376 = vmul.f32 %v2165, %v2165
        %v2377 = vmul.f32 %v2166, %v2166
        %v2378 = vsel %vm384, %v2362, 0.0
        %2379 = vadd.xlane.f32.xlu0 %v2378
        %v2380 = vpop.xlane.xlu0 %2379
        %v2381 = vsel %vm384, %v2363, 0.0
        %2382 = vadd.xlane.f32.xlu0 %v2381
        %v2383 = vpop.xlane.xlu0 %2382
        %v2384 = vsel %vm384, %v2364, 0.0
        %2385 = vadd.xlane.f32.xlu0 %v2384
        %v2386 = vpop.xlane.xlu0 %2385
        %v2387 = vsel %vm384, %v2365, 0.0
        %2388 = vadd.xlane.f32.xlu0 %v2387
        %v2389 = vpop.xlane.xlu0 %2388
        %v2390 = vsel %vm384, %v2366, 0.0
        %2391 = vadd.xlane.f32.xlu0 %v2390
        %v2392 = vpop.xlane.xlu0 %2391
        %v2393 = vsel %vm384, %v2367, 0.0
        %2394 = vadd.xlane.f32.xlu0 %v2393
        %v2395 = vpop.xlane.xlu0 %2394
        %v2396 = vsel %vm384, %v2368, 0.0
        %2397 = vadd.xlane.f32.xlu0 %v2396
        %v2398 = vpop.xlane.xlu0 %2397
        %v2399 = vsel %vm384, %v2369, 0.0
        %2400 = vadd.xlane.f32.xlu0 %v2399
        %v2401 = vpop.xlane.xlu0 %2400
        %v2402 = vsel %vm384, %v2370, 0.0
        %2403 = vadd.xlane.f32.xlu0 %v2402
        %v2404 = vpop.xlane.xlu0 %2403
        %v2405 = vsel %vm384, %v2371, 0.0
        %2406 = vadd.xlane.f32.xlu0 %v2405
        %v2407 = vpop.xlane.xlu0 %2406
        %v2408 = vsel %vm384, %v2372, 0.0
        %2409 = vadd.xlane.f32.xlu0 %v2408
        %v2410 = vpop.xlane.xlu0 %2409
        %v2411 = vsel %vm384, %v2373, 0.0
        %2412 = vadd.xlane.f32.xlu0 %v2411
        %v2413 = vpop.xlane.xlu0 %2412
        %v2414 = vsel %vm384, %v2374, 0.0
        %2415 = vadd.xlane.f32.xlu0 %v2414
        %v2416 = vpop.xlane.xlu0 %2415
        %v2417 = vsel %vm384, %v2375, 0.0
        %2418 = vadd.xlane.f32.xlu0 %v2417
        %v2419 = vpop.xlane.xlu0 %2418
        %v2420 = vsel %vm384, %v2376, 0.0
        %2421 = vadd.xlane.f32.xlu0 %v2420
        %v2422 = vpop.xlane.xlu0 %2421
        %v2423 = vsel %vm384, %v2377, 0.0
        %2424 = vadd.xlane.f32.xlu0 %v2423
        %v2425 = vpop.xlane.xlu0 %2424
        %v2426 = vadd.f32 %v2116, %v2284
        %v2427 = vadd.f32 %v2117, %v2289
        %v2428 = vadd.f32 %v2118, %v2294
        %v2429 = vadd.f32 %v2119, %v2299
        %v2430 = vadd.f32 %v2120, %v2304
        %v2431 = vadd.f32 %v2121, %v2309
        %v2432 = vadd.f32 %v2122, %v2314
        %v2433 = vadd.f32 %v2123, %v2319
        %v2434 = vadd.f32 %v2124, %v2324
        %v2435 = vadd.f32 %v2125, %v2329
        %v2436 = vadd.f32 %v2126, %v2334
        %v2437 = vadd.f32 %v2127, %v2339
        %v2438 = vadd.f32 %v2128, %v2344
        %v2439 = vadd.f32 %v2129, %v2349
        %v2440 = vadd.f32 %v2130, %v2354
        %v2441 = vadd.f32 %v2131, %v2359
        %v2442 = vadd.f32 %v2132, %v2380
        %v2443 = vadd.f32 %v2133, %v2383
        %v2444 = vadd.f32 %v2134, %v2386
        %v2445 = vadd.f32 %v2135, %v2389
        %v2446 = vadd.f32 %v2136, %v2392
        %v2447 = vadd.f32 %v2137, %v2395
        %v2448 = vadd.f32 %v2138, %v2398
        %v2449 = vadd.f32 %v2139, %v2401
        %v2450 = vadd.f32 %v2140, %v2404
        %v2451 = vadd.f32 %v2141, %v2407
        %v2452 = vadd.f32 %v2142, %v2410
        %v2453 = vadd.f32 %v2143, %v2413
        %v2454 = vadd.f32 %v2144, %v2416
        %v2455 = vadd.f32 %v2145, %v2419
        %v2456 = vadd.f32 %v2146, %v2422
        %v2457 = vadd.f32 %v2147, %v2425
        %v2458 = vld [vmem:[%s2150 + $0x1] sm:$0xff]
        %v2459 = vld [vmem:[%s2150 + $0x9] sm:$0xff]
        %v2460 = vld [vmem:[%s2150 + $0x19] sm:$0xff]
        %v2461 = vld [vmem:[%s2150 + $0x21] sm:$0xff]
        %v2462 = vld [vmem:[%s2150 + $0x31] sm:$0xff]
        %v2463 = vld [vmem:[%s2150 + $0x39] sm:$0xff]
        %v2464 = vld [vmem:[%s2150 + $0x49] sm:$0xff]
        %v2465 = vld [vmem:[%s2150 + $0x51] sm:$0xff]
        %v2466 = vld [vmem:[%s2150 + $0x61] sm:$0xff]
        %v2467 = vld [vmem:[%s2150 + $0x69] sm:$0xff]
        %v2468 = vld [vmem:[%s2150 + $0x79] sm:$0xff]
        %v2469 = vld [vmem:[%s2150 + $0x81] sm:$0xff]
        %v2470 = vld [vmem:[%s2150 + $0x91] sm:$0xff]
        %v2471 = vld [vmem:[%s2150 + $0x99] sm:$0xff]
        %v2472 = vld [vmem:[%s2150 + $0xa9] sm:$0xff]
        %v2473 = vld [vmem:[%s2150 + $0xb1] sm:$0xff]
        %s2474 = scalar_lea.vmem %s2, 56
        %v2475 = vld [vmem:[%s2474] sm:$0xff]
        %v2477 = vsel %vm384, %v2458, 0
        %v2480 = vsel %vm384, %v2459, 0
        %v2483 = vsel %vm384, %v2460, 0
        %v2486 = vsel %vm384, %v2461, 0
        %v2489 = vsel %vm384, %v2462, 0
        %v2492 = vsel %vm384, %v2463, 0
        %v2495 = vsel %vm384, %v2464, 0
        %v2498 = vsel %vm384, %v2465, 0
        %v2501 = vsel %vm384, %v2466, 0
        %v2504 = vsel %vm384, %v2467, 0
        %v2507 = vsel %vm384, %v2468, 0
        %v2510 = vsel %vm384, %v2469, 0
        %v2513 = vsel %vm384, %v2470, 0
        %v2516 = vsel %vm384, %v2471, 0
        %v2519 = vsel %vm384, %v2472, 0
        %v2522 = vsel %vm384, %v2473, 0
        %2524 = vmatprep.subr.mxu0 0.0
        %2525 = vmatpush1.msra.mxu0 %v2475
        %2526 = vmatprep.subr.mxu0 0.0
        %2527 = vmatpush1.msra.mxu0 0.0
        %2528 = vmatprep.subr.mxu0 0.0
        %2529 = vmatpush1.msra.mxu0 0.0
        %2530 = vmatprep.subr.mxu0 0.0
        %2531 = vmatpush1.msra.mxu0 0.0
        %2532 = vmatprep.subr.mxu0 0.0
        %2533 = vmatpush1.msra.mxu0 0.0
        %2534 = vmatprep.subr.mxu0 0.0
        %2535 = vmatpush1.msra.mxu0 0.0
        %2536 = vmatprep.subr.mxu0 0.0
        %2537 = vmatpush1.msra.mxu0 0.0
        %2538 = vmatprep.subr.mxu0 0.0
        %2539 = vmatpush1.msra.mxu0 0.0
        %2540 = vmatprep.subr.mxu0 0.0
        %2541 = vmatpush1.msra.mxu0 0.0
        %2542 = vmatprep.subr.mxu0 0.0
        %2543 = vmatpush1.msra.mxu0 0.0
        %2544 = vmatprep.subr.mxu0 0.0
        %2545 = vmatpush1.msra.mxu0 0.0
        %2546 = vmatprep.subr.mxu0 0.0
        %2547 = vmatpush1.msra.mxu0 0.0
        %2548 = vmatprep.subr.mxu0 0.0
        %2549 = vmatpush1.msra.mxu0 0.0
        %2550 = vmatprep.subr.mxu0 0.0
        %2551 = vmatpush1.msra.mxu0 0.0
        %2552 = vmatprep.subr.mxu0 0.0
        %2553 = vmatpush1.msra.mxu0 0.0
        %2554 = vmatprep.subr.mxu0 0.0
        %2555 = vmatpush1.msra.mxu0 0.0
        %2556 = vmatprep.subr.mxu0 0.0
        %2557 = vmatpush1.msra.mxu0 0.0
        %2558 = vmatprep.subr.mxu0 0.0
        %2559 = vmatpush1.msra.mxu0 0.0
        %2560 = vmatprep.subr.mxu0 0.0
        %2561 = vmatpush1.msra.mxu0 0.0
        %2562 = vmatprep.subr.mxu0 0.0
        %2563 = vmatpush1.msra.mxu0 0.0
        %2564 = vmatprep.subr.mxu0 0.0
        %2565 = vmatpush1.msra.mxu0 0.0
        %2566 = vmatprep.subr.mxu0 0.0
        %2567 = vmatpush1.msra.mxu0 0.0
        %2568 = vmatprep.subr.mxu0 0.0
        %2569 = vmatpush1.msra.mxu0 0.0
        %2570 = vmatprep.subr.mxu0 0.0
        %2571 = vmatpush1.msra.mxu0 0.0
        %2572 = vmatprep.subr.mxu0 0.0
        %2573 = vmatpush1.msra.mxu0 0.0
        %2574 = vmatprep.subr.mxu0 0.0
        %2575 = vmatpush1.msra.mxu0 0.0
        %2576 = vmatprep.subr.mxu0 0.0
        %2577 = vmatpush1.msra.mxu0 0.0
        %2578 = vmatprep.subr.mxu0 0.0
        %2579 = vmatpush1.msra.mxu0 0.0
        %2580 = vmatprep.subr.mxu0 0.0
        %2581 = vmatpush1.msra.mxu0 0.0
        %2582 = vmatprep.subr.mxu0 0.0
        %2583 = vmatpush1.msra.mxu0 0.0
        %2584 = vmatprep.subr.mxu0 0.0
        %2585 = vmatpush1.msra.mxu0 0.0
        %2586 = vmatprep.subr.mxu0 0.0
        %2587 = vmatpush1.msra.mxu0 0.0
        %2588 = vmatprep.mubr.f32.mxu0 0.0
        %2589 = vmatmul.mubr.f32.gmra.mrb[0].mxu0 %v2477
        %v2590 = vpop.f32.mrb[0].mxu0
        %v2591 = vadd.f32 0.0, %v2590
        %v2592 = vpop.f32.mrb[0].mxu0
        %2593 = vmatprep.mubr.f32.mxu0 0.0
        %2594 = vmatmul.mubr.f32.gmra.mrb[0].mxu0 %v2480
        %v2595 = vpop.f32.mrb[0].mxu0
        %v2596 = vadd.f32 0.0, %v2595
        %v2597 = vpop.f32.mrb[0].mxu0
        %2598 = vmatprep.mubr.f32.mxu0 0.0
        %2599 = vmatmul.mubr.f32.gmra.mrb[0].mxu0 %v2483
        %v2600 = vpop.f32.mrb[0].mxu0
        %v2601 = vadd.f32 0.0, %v2600
        %v2602 = vpop.f32.mrb[0].mxu0
        %2603 = vmatprep.mubr.f32.mxu0 0.0
        %2604 = vmatmul.mubr.f32.gmra.mrb[0].mxu0 %v2486
        %v2605 = vpop.f32.mrb[0].mxu0
        %v2606 = vadd.f32 0.0, %v2605
        %v2607 = vpop.f32.mrb[0].mxu0
        %2608 = vmatprep.mubr.f32.mxu0 0.0
        %2609 = vmatmul.mubr.f32.gmra.mrb[0].mxu0 %v2489
        %v2610 = vpop.f32.mrb[0].mxu0
        %v2611 = vadd.f32 0.0, %v2610
        %v2612 = vpop.f32.mrb[0].mxu0
        %2613 = vmatprep.mubr.f32.mxu0 0.0
        %2614 = vmatmul.mubr.f32.gmra.mrb[0].mxu0 %v2492
        %v2615 = vpop.f32.mrb[0].mxu0
        %v2616 = vadd.f32 0.0, %v2615
        %v2617 = vpop.f32.mrb[0].mxu0
        %2618 = vmatprep.mubr.f32.mxu0 0.0
        %2619 = vmatmul.mubr.f32.gmra.mrb[0].mxu0 %v2495
        %v2620 = vpop.f32.mrb[0].mxu0
        %v2621 = vadd.f32 0.0, %v2620
        %v2622 = vpop.f32.mrb[0].mxu0
        %2623 = vmatprep.mubr.f32.mxu0 0.0
        %2624 = vmatmul.mubr.f32.gmra.mrb[0].mxu0 %v2498
        %v2625 = vpop.f32.mrb[0].mxu0
        %v2626 = vadd.f32 0.0, %v2625
        %v2627 = vpop.f32.mrb[0].mxu0
        %2628 = vmatprep.mubr.f32.mxu0 0.0
        %2629 = vmatmul.mubr.f32.gmra.mrb[0].mxu0 %v2501
        %v2630 = vpop.f32.mrb[0].mxu0
        %v2631 = vadd.f32 0.0, %v2630
        %v2632 = vpop.f32.mrb[0].mxu0
        %2633 = vmatprep.mubr.f32.mxu0 0.0
        %2634 = vmatmul.mubr.f32.gmra.mrb[0].mxu0 %v2504
        %v2635 = vpop.f32.mrb[0].mxu0
        %v2636 = vadd.f32 0.0, %v2635
        %v2637 = vpop.f32.mrb[0].mxu0
        %2638 = vmatprep.mubr.f32.mxu0 0.0
        %2639 = vmatmul.mubr.f32.gmra.mrb[0].mxu0 %v2507
        %v2640 = vpop.f32.mrb[0].mxu0
        %v2641 = vadd.f32 0.0, %v2640
        %v2642 = vpop.f32.mrb[0].mxu0
        %2643 = vmatprep.mubr.f32.mxu0 0.0
        %2644 = vmatmul.mubr.f32.gmra.mrb[0].mxu0 %v2510
        %v2645 = vpop.f32.mrb[0].mxu0
        %v2646 = vadd.f32 0.0, %v2645
        %v2647 = vpop.f32.mrb[0].mxu0
        %2648 = vmatprep.mubr.f32.mxu0 0.0
        %2649 = vmatmul.mubr.f32.gmra.mrb[0].mxu0 %v2513
        %v2650 = vpop.f32.mrb[0].mxu0
        %v2651 = vadd.f32 0.0, %v2650
        %v2652 = vpop.f32.mrb[0].mxu0
        %2653 = vmatprep.mubr.f32.mxu0 0.0
        %2654 = vmatmul.mubr.f32.gmra.mrb[0].mxu0 %v2516
        %v2655 = vpop.f32.mrb[0].mxu0
        %v2656 = vadd.f32 0.0, %v2655
        %v2657 = vpop.f32.mrb[0].mxu0
        %2658 = vmatprep.mubr.f32.mxu0 0.0
        %2659 = vmatmul.mubr.f32.gmra.mrb[0].mxu0 %v2519
        %v2660 = vpop.f32.mrb[0].mxu0
        %v2661 = vadd.f32 0.0, %v2660
        %v2662 = vpop.f32.mrb[0].mxu0
        %2663 = vmatprep.mubr.f32.mxu0 0.0
        %2664 = vmatmul.mubr.f32.gmra.mrb[0].mxu0 %v2522
        %v2665 = vpop.f32.mrb[0].mxu0
        %v2666 = vadd.f32 0.0, %v2665
        %v2667 = vpop.f32.mrb[0].mxu0
        %2668 = vdwg.mxu0
        %v2669 = vmul.f32 %v2458, %v2458
        %v2670 = vmul.f32 %v2459, %v2459
        %v2671 = vmul.f32 %v2460, %v2460
        %v2672 = vmul.f32 %v2461, %v2461
        %v2673 = vmul.f32 %v2462, %v2462
        %v2674 = vmul.f32 %v2463, %v2463
        %v2675 = vmul.f32 %v2464, %v2464
        %v2676 = vmul.f32 %v2465, %v2465
        %v2677 = vmul.f32 %v2466, %v2466
        %v2678 = vmul.f32 %v2467, %v2467
        %v2679 = vmul.f32 %v2468, %v2468
        %v2680 = vmul.f32 %v2469, %v2469
        %v2681 = vmul.f32 %v2470, %v2470
        %v2682 = vmul.f32 %v2471, %v2471
        %v2683 = vmul.f32 %v2472, %v2472
        %v2684 = vmul.f32 %v2473, %v2473
        %v2685 = vsel %vm384, %v2669, 0.0
        %2686 = vadd.xlane.f32.xlu0 %v2685
        %v2687 = vpop.xlane.xlu0 %2686
        %v2688 = vsel %vm384, %v2670, 0.0
        %2689 = vadd.xlane.f32.xlu0 %v2688
        %v2690 = vpop.xlane.xlu0 %2689
        %v2691 = vsel %vm384, %v2671, 0.0
        %2692 = vadd.xlane.f32.xlu0 %v2691
        %v2693 = vpop.xlane.xlu0 %2692
        %v2694 = vsel %vm384, %v2672, 0.0
        %2695 = vadd.xlane.f32.xlu0 %v2694
        %v2696 = vpop.xlane.xlu0 %2695
        %v2697 = vsel %vm384, %v2673, 0.0
        %2698 = vadd.xlane.f32.xlu0 %v2697
        %v2699 = vpop.xlane.xlu0 %2698
        %v2700 = vsel %vm384, %v2674, 0.0
        %2701 = vadd.xlane.f32.xlu0 %v2700
        %v2702 = vpop.xlane.xlu0 %2701
        %v2703 = vsel %vm384, %v2675, 0.0
        %2704 = vadd.xlane.f32.xlu0 %v2703
        %v2705 = vpop.xlane.xlu0 %2704
        %v2706 = vsel %vm384, %v2676, 0.0
        %2707 = vadd.xlane.f32.xlu0 %v2706
        %v2708 = vpop.xlane.xlu0 %2707
        %v2709 = vsel %vm384, %v2677, 0.0
        %2710 = vadd.xlane.f32.xlu0 %v2709
        %v2711 = vpop.xlane.xlu0 %2710
        %v2712 = vsel %vm384, %v2678, 0.0
        %2713 = vadd.xlane.f32.xlu0 %v2712
        %v2714 = vpop.xlane.xlu0 %2713
        %v2715 = vsel %vm384, %v2679, 0.0
        %2716 = vadd.xlane.f32.xlu0 %v2715
        %v2717 = vpop.xlane.xlu0 %2716
        %v2718 = vsel %vm384, %v2680, 0.0
        %2719 = vadd.xlane.f32.xlu0 %v2718
        %v2720 = vpop.xlane.xlu0 %2719
        %v2721 = vsel %vm384, %v2681, 0.0
        %2722 = vadd.xlane.f32.xlu0 %v2721
        %v2723 = vpop.xlane.xlu0 %2722
        %v2724 = vsel %vm384, %v2682, 0.0
        %2725 = vadd.xlane.f32.xlu0 %v2724
        %v2726 = vpop.xlane.xlu0 %2725
        %v2727 = vsel %vm384, %v2683, 0.0
        %2728 = vadd.xlane.f32.xlu0 %v2727
        %v2729 = vpop.xlane.xlu0 %2728
        %v2730 = vsel %vm384, %v2684, 0.0
        %2731 = vadd.xlane.f32.xlu0 %v2730
        %v2732 = vpop.xlane.xlu0 %2731
        %v2733 = vadd.f32 %v2426, %v2591
        %v2734 = vadd.f32 %v2427, %v2596
        %v2735 = vadd.f32 %v2428, %v2601
        %v2736 = vadd.f32 %v2429, %v2606
        %v2737 = vadd.f32 %v2430, %v2611
        %v2738 = vadd.f32 %v2431, %v2616
        %v2739 = vadd.f32 %v2432, %v2621
        %v2740 = vadd.f32 %v2433, %v2626
        %v2741 = vadd.f32 %v2434, %v2631
        %v2742 = vadd.f32 %v2435, %v2636
        %v2743 = vadd.f32 %v2436, %v2641
        %v2744 = vadd.f32 %v2437, %v2646
        %v2745 = vadd.f32 %v2438, %v2651
        %v2746 = vadd.f32 %v2439, %v2656
        %v2747 = vadd.f32 %v2440, %v2661
        %v2748 = vadd.f32 %v2441, %v2666
        %v2749 = vadd.f32 %v2442, %v2687
        %v2750 = vadd.f32 %v2443, %v2690
        %v2751 = vadd.f32 %v2444, %v2693
        %v2752 = vadd.f32 %v2445, %v2696
        %v2753 = vadd.f32 %v2446, %v2699
        %v2754 = vadd.f32 %v2447, %v2702
        %v2755 = vadd.f32 %v2448, %v2705
        %v2756 = vadd.f32 %v2449, %v2708
        %v2757 = vadd.f32 %v2450, %v2711
        %v2758 = vadd.f32 %v2451, %v2714
        %v2759 = vadd.f32 %v2452, %v2717
        %v2760 = vadd.f32 %v2453, %v2720
        %v2761 = vadd.f32 %v2454, %v2723
        %v2762 = vadd.f32 %v2455, %v2726
        %v2763 = vadd.f32 %v2456, %v2729
        %v2764 = vadd.f32 %v2457, %v2732
        %v2765 = vld [vmem:[%s2150 + $0x2] sm:$0xff]
        %v2766 = vld [vmem:[%s2150 + $0xa] sm:$0xff]
        %v2767 = vld [vmem:[%s2150 + $0x1a] sm:$0xff]
        %v2768 = vld [vmem:[%s2150 + $0x22] sm:$0xff]
        %v2769 = vld [vmem:[%s2150 + $0x32] sm:$0xff]
        %v2770 = vld [vmem:[%s2150 + $0x3a] sm:$0xff]
        %v2771 = vld [vmem:[%s2150 + $0x4a] sm:$0xff]
        %v2772 = vld [vmem:[%s2150 + $0x52] sm:$0xff]
        %v2773 = vld [vmem:[%s2150 + $0x62] sm:$0xff]
        %v2774 = vld [vmem:[%s2150 + $0x6a] sm:$0xff]
        %v2775 = vld [vmem:[%s2150 + $0x7a] sm:$0xff]
        %v2776 = vld [vmem:[%s2150 + $0x82] sm:$0xff]
        %v2777 = vld [vmem:[%s2150 + $0x92] sm:$0xff]
        %v2778 = vld [vmem:[%s2150 + $0x9a] sm:$0xff]
        %v2779 = vld [vmem:[%s2150 + $0xaa] sm:$0xff]
        %v2780 = vld [vmem:[%s2150 + $0xb2] sm:$0xff]
        %s2781 = scalar_lea.vmem %s2, 64
        %v2782 = vld [vmem:[%s2781] sm:$0xff]
        %v2784 = vsel %vm384, %v2765, 0
        %v2787 = vsel %vm384, %v2766, 0
        %v2790 = vsel %vm384, %v2767, 0
        %v2793 = vsel %vm384, %v2768, 0
        %v2796 = vsel %vm384, %v2769, 0
        %v2799 = vsel %vm384, %v2770, 0
        %v2802 = vsel %vm384, %v2771, 0
        %v2805 = vsel %vm384, %v2772, 0
        %v2808 = vsel %vm384, %v2773, 0
        %v2811 = vsel %vm384, %v2774, 0
        %v2814 = vsel %vm384, %v2775, 0
        %v2817 = vsel %vm384, %v2776, 0
        %v2820 = vsel %vm384, %v2777, 0
        %v2823 = vsel %vm384, %v2778, 0
        %v2826 = vsel %vm384, %v2779, 0
        %v2829 = vsel %vm384, %v2780, 0
        %2831 = vmatprep.subr.mxu0 0.0
        %2832 = vmatpush1.msra.mxu0 %v2782
        %2833 = vmatprep.subr.mxu0 0.0
        %2834 = vmatpush1.msra.mxu0 0.0
        %2835 = vmatprep.subr.mxu0 0.0
        %2836 = vmatpush1.msra.mxu0 0.0
        %2837 = vmatprep.subr.mxu0 0.0
        %2838 = vmatpush1.msra.mxu0 0.0
        %2839 = vmatprep.subr.mxu0 0.0
        %2840 = vmatpush1.msra.mxu0 0.0
        %2841 = vmatprep.subr.mxu0 0.0
        %2842 = vmatpush1.msra.mxu0 0.0
        %2843 = vmatprep.subr.mxu0 0.0
        %2844 = vmatpush1.msra.mxu0 0.0
        %2845 = vmatprep.subr.mxu0 0.0
        %2846 = vmatpush1.msra.mxu0 0.0
        %2847 = vmatprep.subr.mxu0 0.0
        %2848 = vmatpush1.msra.mxu0 0.0
        %2849 = vmatprep.subr.mxu0 0.0
        %2850 = vmatpush1.msra.mxu0 0.0
        %2851 = vmatprep.subr.mxu0 0.0
        %2852 = vmatpush1.msra.mxu0 0.0
        %2853 = vmatprep.subr.mxu0 0.0
        %2854 = vmatpush1.msra.mxu0 0.0
        %2855 = vmatprep.subr.mxu0 0.0
        %2856 = vmatpush1.msra.mxu0 0.0
        %2857 = vmatprep.subr.mxu0 0.0
        %2858 = vmatpush1.msra.mxu0 0.0
        %2859 = vmatprep.subr.mxu0 0.0
        %2860 = vmatpush1.msra.mxu0 0.0
        %2861 = vmatprep.subr.mxu0 0.0
        %2862 = vmatpush1.msra.mxu0 0.0
        %2863 = vmatprep.subr.mxu0 0.0
        %2864 = vmatpush1.msra.mxu0 0.0
        %2865 = vmatprep.subr.mxu0 0.0
        %2866 = vmatpush1.msra.mxu0 0.0
        %2867 = vmatprep.subr.mxu0 0.0
        %2868 = vmatpush1.msra.mxu0 0.0
        %2869 = vmatprep.subr.mxu0 0.0
        %2870 = vmatpush1.msra.mxu0 0.0
        %2871 = vmatprep.subr.mxu0 0.0
        %2872 = vmatpush1.msra.mxu0 0.0
        %2873 = vmatprep.subr.mxu0 0.0
        %2874 = vmatpush1.msra.mxu0 0.0
        %2875 = vmatprep.subr.mxu0 0.0
        %2876 = vmatpush1.msra.mxu0 0.0
        %2877 = vmatprep.subr.mxu0 0.0
        %2878 = vmatpush1.msra.mxu0 0.0
        %2879 = vmatprep.subr.mxu0 0.0
        %2880 = vmatpush1.msra.mxu0 0.0
        %2881 = vmatprep.subr.mxu0 0.0
        %2882 = vmatpush1.msra.mxu0 0.0
        %2883 = vmatprep.subr.mxu0 0.0
        %2884 = vmatpush1.msra.mxu0 0.0
        %2885 = vmatprep.subr.mxu0 0.0
        %2886 = vmatpush1.msra.mxu0 0.0
        %2887 = vmatprep.subr.mxu0 0.0
        %2888 = vmatpush1.msra.mxu0 0.0
        %2889 = vmatprep.subr.mxu0 0.0
        %2890 = vmatpush1.msra.mxu0 0.0
        %2891 = vmatprep.subr.mxu0 0.0
        %2892 = vmatpush1.msra.mxu0 0.0
        %2893 = vmatprep.subr.mxu0 0.0
        %2894 = vmatpush1.msra.mxu0 0.0
        %2895 = vmatprep.mubr.f32.mxu0 0.0
        %2896 = vmatmul.mubr.f32.gmra.mrb[0].mxu0 %v2784
        %v2897 = vpop.f32.mrb[0].mxu0
        %v2898 = vadd.f32 0.0, %v2897
        %v2899 = vpop.f32.mrb[0].mxu0
        %2900 = vmatprep.mubr.f32.mxu0 0.0
        %2901 = vmatmul.mubr.f32.gmra.mrb[0].mxu0 %v2787
        %v2902 = vpop.f32.mrb[0].mxu0
        %v2903 = vadd.f32 0.0, %v2902
        %v2904 = vpop.f32.mrb[0].mxu0
        %2905 = vmatprep.mubr.f32.mxu0 0.0
        %2906 = vmatmul.mubr.f32.gmra.mrb[0].mxu0 %v2790
        %v2907 = vpop.f32.mrb[0].mxu0
        %v2908 = vadd.f32 0.0, %v2907
        %v2909 = vpop.f32.mrb[0].mxu0
        %2910 = vmatprep.mubr.f32.mxu0 0.0
        %2911 = vmatmul.mubr.f32.gmra.mrb[0].mxu0 %v2793
        %v2912 = vpop.f32.mrb[0].mxu0
        %v2913 = vadd.f32 0.0, %v2912
        %v2914 = vpop.f32.mrb[0].mxu0
        %2915 = vmatprep.mubr.f32.mxu0 0.0
        %2916 = vmatmul.mubr.f32.gmra.mrb[0].mxu0 %v2796
        %v2917 = vpop.f32.mrb[0].mxu0
        %v2918 = vadd.f32 0.0, %v2917
        %v2919 = vpop.f32.mrb[0].mxu0
        %2920 = vmatprep.mubr.f32.mxu0 0.0
        %2921 = vmatmul.mubr.f32.gmra.mrb[0].mxu0 %v2799
        %v2922 = vpop.f32.mrb[0].mxu0
        %v2923 = vadd.f32 0.0, %v2922
        %v2924 = vpop.f32.mrb[0].mxu0
        %2925 = vmatprep.mubr.f32.mxu0 0.0
        %2926 = vmatmul.mubr.f32.gmra.mrb[0].mxu0 %v2802
        %v2927 = vpop.f32.mrb[0].mxu0
        %v2928 = vadd.f32 0.0, %v2927
        %v2929 = vpop.f32.mrb[0].mxu0
        %2930 = vmatprep.mubr.f32.mxu0 0.0
        %2931 = vmatmul.mubr.f32.gmra.mrb[0].mxu0 %v2805
        %v2932 = vpop.f32.mrb[0].mxu0
        %v2933 = vadd.f32 0.0, %v2932
        %v2934 = vpop.f32.mrb[0].mxu0
        %2935 = vmatprep.mubr.f32.mxu0 0.0
        %2936 = vmatmul.mubr.f32.gmra.mrb[0].mxu0 %v2808
        %v2937 = vpop.f32.mrb[0].mxu0
        %v2938 = vadd.f32 0.0, %v2937
        %v2939 = vpop.f32.mrb[0].mxu0
        %2940 = vmatprep.mubr.f32.mxu0 0.0
        %2941 = vmatmul.mubr.f32.gmra.mrb[0].mxu0 %v2811
        %v2942 = vpop.f32.mrb[0].mxu0
        %v2943 = vadd.f32 0.0, %v2942
        %v2944 = vpop.f32.mrb[0].mxu0
        %2945 = vmatprep.mubr.f32.mxu0 0.0
        %2946 = vmatmul.mubr.f32.gmra.mrb[0].mxu0 %v2814
        %v2947 = vpop.f32.mrb[0].mxu0
        %v2948 = vadd.f32 0.0, %v2947
        %v2949 = vpop.f32.mrb[0].mxu0
        %2950 = vmatprep.mubr.f32.mxu0 0.0
        %2951 = vmatmul.mubr.f32.gmra.mrb[0].mxu0 %v2817
        %v2952 = vpop.f32.mrb[0].mxu0
        %v2953 = vadd.f32 0.0, %v2952
        %v2954 = vpop.f32.mrb[0].mxu0
        %2955 = vmatprep.mubr.f32.mxu0 0.0
        %2956 = vmatmul.mubr.f32.gmra.mrb[0].mxu0 %v2820
        %v2957 = vpop.f32.mrb[0].mxu0
        %v2958 = vadd.f32 0.0, %v2957
        %v2959 = vpop.f32.mrb[0].mxu0
        %2960 = vmatprep.mubr.f32.mxu0 0.0
        %2961 = vmatmul.mubr.f32.gmra.mrb[0].mxu0 %v2823
        %v2962 = vpop.f32.mrb[0].mxu0
        %v2963 = vadd.f32 0.0, %v2962
        %v2964 = vpop.f32.mrb[0].mxu0
        %2965 = vmatprep.mubr.f32.mxu0 0.0
        %2966 = vmatmul.mubr.f32.gmra.mrb[0].mxu0 %v2826
        %v2967 = vpop.f32.mrb[0].mxu0
        %v2968 = vadd.f32 0.0, %v2967
        %v2969 = vpop.f32.mrb[0].mxu0
        %2970 = vmatprep.mubr.f32.mxu0 0.0
        %2971 = vmatmul.mubr.f32.gmra.mrb[0].mxu0 %v2829
        %v2972 = vpop.f32.mrb[0].mxu0
        %v2973 = vadd.f32 0.0, %v2972
        %v2974 = vpop.f32.mrb[0].mxu0
        %2975 = vdwg.mxu0
        %v2976 = vmul.f32 %v2765, %v2765
        %v2977 = vmul.f32 %v2766, %v2766
        %v2978 = vmul.f32 %v2767, %v2767
        %v2979 = vmul.f32 %v2768, %v2768
        %v2980 = vmul.f32 %v2769, %v2769
        %v2981 = vmul.f32 %v2770, %v2770
        %v2982 = vmul.f32 %v2771, %v2771
        %v2983 = vmul.f32 %v2772, %v2772
        %v2984 = vmul.f32 %v2773, %v2773
        %v2985 = vmul.f32 %v2774, %v2774
        %v2986 = vmul.f32 %v2775, %v2775
        %v2987 = vmul.f32 %v2776, %v2776
        %v2988 = vmul.f32 %v2777, %v2777
        %v2989 = vmul.f32 %v2778, %v2778
        %v2990 = vmul.f32 %v2779, %v2779
        %v2991 = vmul.f32 %v2780, %v2780
        %v2992 = vsel %vm384, %v2976, 0.0
        %2993 = vadd.xlane.f32.xlu0 %v2992
        %v2994 = vpop.xlane.xlu0 %2993
        %v2995 = vsel %vm384, %v2977, 0.0
        %2996 = vadd.xlane.f32.xlu0 %v2995
        %v2997 = vpop.xlane.xlu0 %2996
        %v2998 = vsel %vm384, %v2978, 0.0
        %2999 = vadd.xlane.f32.xlu0 %v2998
        %v3000 = vpop.xlane.xlu0 %2999
        %v3001 = vsel %vm384, %v2979, 0.0
        %3002 = vadd.xlane.f32.xlu0 %v3001
        %v3003 = vpop.xlane.xlu0 %3002
        %v3004 = vsel %vm384, %v2980, 0.0
        %3005 = vadd.xlane.f32.xlu0 %v3004
        %v3006 = vpop.xlane.xlu0 %3005
        %v3007 = vsel %vm384, %v2981, 0.0
        %3008 = vadd.xlane.f32.xlu0 %v3007
        %v3009 = vpop.xlane.xlu0 %3008
        %v3010 = vsel %vm384, %v2982, 0.0
        %3011 = vadd.xlane.f32.xlu0 %v3010
        %v3012 = vpop.xlane.xlu0 %3011
        %v3013 = vsel %vm384, %v2983, 0.0
        %3014 = vadd.xlane.f32.xlu0 %v3013
        %v3015 = vpop.xlane.xlu0 %3014
        %v3016 = vsel %vm384, %v2984, 0.0
        %3017 = vadd.xlane.f32.xlu0 %v3016
        %v3018 = vpop.xlane.xlu0 %3017
        %v3019 = vsel %vm384, %v2985, 0.0
        %3020 = vadd.xlane.f32.xlu0 %v3019
        %v3021 = vpop.xlane.xlu0 %3020
        %v3022 = vsel %vm384, %v2986, 0.0
        %3023 = vadd.xlane.f32.xlu0 %v3022
        %v3024 = vpop.xlane.xlu0 %3023
        %v3025 = vsel %vm384, %v2987, 0.0
        %3026 = vadd.xlane.f32.xlu0 %v3025
        %v3027 = vpop.xlane.xlu0 %3026
        %v3028 = vsel %vm384, %v2988, 0.0
        %3029 = vadd.xlane.f32.xlu0 %v3028
        %v3030 = vpop.xlane.xlu0 %3029
        %v3031 = vsel %vm384, %v2989, 0.0
        %3032 = vadd.xlane.f32.xlu0 %v3031
        %v3033 = vpop.xlane.xlu0 %3032
        %v3034 = vsel %vm384, %v2990, 0.0
        %3035 = vadd.xlane.f32.xlu0 %v3034
        %v3036 = vpop.xlane.xlu0 %3035
        %v3037 = vsel %vm384, %v2991, 0.0
        %3038 = vadd.xlane.f32.xlu0 %v3037
        %v3039 = vpop.xlane.xlu0 %3038
        %v3040 = vadd.f32 %v2733, %v2898
        %v3041 = vadd.f32 %v2734, %v2903
        %v3042 = vadd.f32 %v2735, %v2908
        %v3043 = vadd.f32 %v2736, %v2913
        %v3044 = vadd.f32 %v2737, %v2918
        %v3045 = vadd.f32 %v2738, %v2923
        %v3046 = vadd.f32 %v2739, %v2928
        %v3047 = vadd.f32 %v2740, %v2933
        %v3048 = vadd.f32 %v2741, %v2938
        %v3049 = vadd.f32 %v2742, %v2943
        %v3050 = vadd.f32 %v2743, %v2948
        %v3051 = vadd.f32 %v2744, %v2953
        %v3052 = vadd.f32 %v2745, %v2958
        %v3053 = vadd.f32 %v2746, %v2963
        %v3054 = vadd.f32 %v2747, %v2968
        %v3055 = vadd.f32 %v2748, %v2973
        %v3056 = vadd.f32 %v2749, %v2994
        %v3057 = vadd.f32 %v2750, %v2997
        %v3058 = vadd.f32 %v2751, %v3000
        %v3059 = vadd.f32 %v2752, %v3003
        %v3060 = vadd.f32 %v2753, %v3006
        %v3061 = vadd.f32 %v2754, %v3009
        %v3062 = vadd.f32 %v2755, %v3012
        %v3063 = vadd.f32 %v2756, %v3015
        %v3064 = vadd.f32 %v2757, %v3018
        %v3065 = vadd.f32 %v2758, %v3021
        %v3066 = vadd.f32 %v2759, %v3024
        %v3067 = vadd.f32 %v2760, %v3027
        %v3068 = vadd.f32 %v2761, %v3030
        %v3069 = vadd.f32 %v2762, %v3033
        %v3070 = vadd.f32 %v2763, %v3036
        %v3071 = vadd.f32 %v2764, %v3039
        %v3072 = vstv %s348
        %v3073 = vmul.f32 %v3072, %v3056
        %v3074 = vmul.f32 %v3072, %v3057
        %v3075 = vmul.f32 %v3072, %v3058
        %v3076 = vmul.f32 %v3072, %v3059
        %v3077 = vmul.f32 %v3072, %v3060
        %v3078 = vmul.f32 %v3072, %v3061
        %v3079 = vmul.f32 %v3072, %v3062
        %v3080 = vmul.f32 %v3072, %v3063
        %v3081 = vmul.f32 %v3072, %v3064
        %v3082 = vmul.f32 %v3072, %v3065
        %v3083 = vmul.f32 %v3072, %v3066
        %v3084 = vmul.f32 %v3072, %v3067
        %v3085 = vmul.f32 %v3072, %v3068
        %v3086 = vmul.f32 %v3072, %v3069
        %v3087 = vmul.f32 %v3072, %v3070
        %v3088 = vmul.f32 %v3072, %v3071
        %v3089 = vsub.f32 %v3040, %v3073
        %v3090 = vsub.f32 %v3041, %v3074
        %v3091 = vsub.f32 %v3042, %v3075
        %v3092 = vsub.f32 %v3043, %v3076
        %v3093 = vsub.f32 %v3044, %v3077
        %v3094 = vsub.f32 %v3045, %v3078
        %v3095 = vsub.f32 %v3046, %v3079
        %v3096 = vsub.f32 %v3047, %v3080
        %v3097 = vsub.f32 %v3048, %v3081
        %v3098 = vsub.f32 %v3049, %v3082
        %v3099 = vsub.f32 %v3050, %v3083
        %v3100 = vsub.f32 %v3051, %v3084
        %v3101 = vsub.f32 %v3052, %v3085
        %v3102 = vsub.f32 %v3053, %v3086
        %v3103 = vsub.f32 %v3054, %v3087
        %v3104 = vsub.f32 %v3055, %v3088
        %v3105 = vld [vmem:[%s3] sm:$0x1]
        %v3107 = vlaneseq
        %v3108 = vshrl.u32 %v3107, 7
        %v3109 = vsub.s32 0, %v3108
        %v3110 = vrot.slane %v3105, %v3109
        %v3112 = vadd.f32 %v3089, %v3110
        %v3113 = vadd.f32 %v3090, %v3110
        %v3114 = vadd.f32 %v3091, %v3110
        %v3115 = vadd.f32 %v3092, %v3110
        %v3116 = vadd.f32 %v3093, %v3110
        %v3117 = vadd.f32 %v3094, %v3110
        %v3118 = vadd.f32 %v3095, %v3110
        %v3119 = vadd.f32 %v3096, %v3110
        %v3120 = vadd.f32 %v3097, %v3110
        %v3121 = vadd.f32 %v3098, %v3110
        %v3122 = vadd.f32 %v3099, %v3110
        %v3123 = vadd.f32 %v3100, %v3110
        %v3124 = vadd.f32 %v3101, %v3110
        %v3125 = vadd.f32 %v3102, %v3110
        %v3126 = vadd.f32 %v3103, %v3110
        %v3127 = vadd.f32 %v3104, %v3110
        %v3128 = vmin.f32 %v3112, 0.0
        %v3129 = vmin.f32 %v3113, 0.0
        %v3130 = vmin.f32 %v3114, 0.0
        %v3131 = vmin.f32 %v3115, 0.0
        %v3132 = vmin.f32 %v3116, 0.0
        %v3133 = vmin.f32 %v3117, 0.0
        %v3134 = vmin.f32 %v3118, 0.0
        %v3135 = vmin.f32 %v3119, 0.0
        %v3136 = vmin.f32 %v3120, 0.0
        %v3137 = vmin.f32 %v3121, 0.0
        %v3138 = vmin.f32 %v3122, 0.0
        %v3139 = vmin.f32 %v3123, 0.0
        %v3140 = vmin.f32 %v3124, 0.0
        %v3141 = vmin.f32 %v3125, 0.0
        %v3142 = vmin.f32 %v3126, 0.0
        %v3143 = vmin.f32 %v3127, 0.0
        %v3144 = vmul.f32 %v3128, 1.442695
        %v3145 = vpow.pop %v3144
        %v3146 = vmul.f32 %v3129, 1.442695
        %v3147 = vpow.pop %v3146
        %v3148 = vmul.f32 %v3130, 1.442695
        %v3149 = vpow.pop %v3148
        %v3150 = vmul.f32 %v3131, 1.442695
        %v3151 = vpow.pop %v3150
        %v3152 = vmul.f32 %v3132, 1.442695
        %v3153 = vpow.pop %v3152
        %v3154 = vmul.f32 %v3133, 1.442695
        %v3155 = vpow.pop %v3154
        %v3156 = vmul.f32 %v3134, 1.442695
        %v3157 = vpow.pop %v3156
        %v3158 = vmul.f32 %v3135, 1.442695
        %v3159 = vpow.pop %v3158
        %v3160 = vmul.f32 %v3136, 1.442695
        %v3161 = vpow.pop %v3160
        %v3162 = vmul.f32 %v3137, 1.442695
        %v3163 = vpow.pop %v3162
        %v3164 = vmul.f32 %v3138, 1.442695
        %v3165 = vpow.pop %v3164
        %v3166 = vmul.f32 %v3139, 1.442695
        %v3167 = vpow.pop %v3166
        %v3168 = vmul.f32 %v3140, 1.442695
        %v3169 = vpow.pop %v3168
        %v3170 = vmul.f32 %v3141, 1.442695
        %v3171 = vpow.pop %v3170
        %v3172 = vmul.f32 %v3142, 1.442695
        %v3173 = vpow.pop %v3172
        %v3174 = vmul.f32 %v3143, 1.442695
        %v3175 = vpow.pop %v3174
        %v3176 = vld [vmem:[%s325] sm:$0xff]
        %v3177 = vld [vmem:[%s325 + $0x8] sm:$0xff]
        %v3178 = vld [vmem:[%s325 + $0x10] sm:$0xff]
        %v3179 = vld [vmem:[%s325 + $0x18] sm:$0xff]
        %v3180 = vld [vmem:[%s325 + $0x20] sm:$0xff]
        %v3181 = vld [vmem:[%s325 + $0x28] sm:$0xff]
        %v3182 = vld [vmem:[%s325 + $0x30] sm:$0xff]
        %v3183 = vld [vmem:[%s325 + $0x38] sm:$0xff]
        %v3184 = vld [vmem:[%s325 + $0x40] sm:$0xff]
        %v3185 = vld [vmem:[%s325 + $0x48] sm:$0xff]
        %v3186 = vld [vmem:[%s325 + $0x50] sm:$0xff]
        %v3187 = vld [vmem:[%s325 + $0x58] sm:$0xff]
        %v3188 = vld [vmem:[%s325 + $0x60] sm:$0xff]
        %v3189 = vld [vmem:[%s325 + $0x68] sm:$0xff]
        %v3190 = vld [vmem:[%s325 + $0x70] sm:$0xff]
        %v3191 = vld [vmem:[%s325 + $0x78] sm:$0xff]
        %3193 = vset.pattern.permute.xlu0 0
        %3194 = vperm.xlu0 %3193, %v3176
        %v3195 = vpop.permute.xlu0 %3194
        %3198 = vset.pattern.permute.xlu0 0
        %3199 = vperm.xlu0 %3198, %v3177
        %v3200 = vpop.permute.xlu0 %3199
        %3203 = vset.pattern.permute.xlu0 0
        %3204 = vperm.xlu0 %3203, %v3178
        %v3205 = vpop.permute.xlu0 %3204
        %3208 = vset.pattern.permute.xlu0 0
        %3209 = vperm.xlu0 %3208, %v3179
        %v3210 = vpop.permute.xlu0 %3209
        %3213 = vset.pattern.permute.xlu0 0
        %3214 = vperm.xlu0 %3213, %v3180
        %v3215 = vpop.permute.xlu0 %3214
        %3218 = vset.pattern.permute.xlu0 0
        %3219 = vperm.xlu0 %3218, %v3181
        %v3220 = vpop.permute.xlu0 %3219
        %3223 = vset.pattern.permute.xlu0 0
        %3224 = vperm.xlu0 %3223, %v3182
        %v3225 = vpop.permute.xlu0 %3224
        %3228 = vset.pattern.permute.xlu0 0
        %3229 = vperm.xlu0 %3228, %v3183
        %v3230 = vpop.permute.xlu0 %3229
        %3233 = vset.pattern.permute.xlu0 0
        %3234 = vperm.xlu0 %3233, %v3184
        %v3235 = vpop.permute.xlu0 %3234
        %3238 = vset.pattern.permute.xlu0 0
        %3239 = vperm.xlu0 %3238, %v3185
        %v3240 = vpop.permute.xlu0 %3239
        %3243 = vset.pattern.permute.xlu0 0
        %3244 = vperm.xlu0 %3243, %v3186
        %v3245 = vpop.permute.xlu0 %3244
        %3248 = vset.pattern.permute.xlu0 0
        %3249 = vperm.xlu0 %3248, %v3187
        %v3250 = vpop.permute.xlu0 %3249
        %3253 = vset.pattern.permute.xlu0 0
        %3254 = vperm.xlu0 %3253, %v3188
        %v3255 = vpop.permute.xlu0 %3254
        %3258 = vset.pattern.permute.xlu0 0
        %3259 = vperm.xlu0 %3258, %v3189
        %v3260 = vpop.permute.xlu0 %3259
        %3263 = vset.pattern.permute.xlu0 0
        %3264 = vperm.xlu0 %3263, %v3190
        %v3265 = vpop.permute.xlu0 %3264
        %3268 = vset.pattern.permute.xlu0 0
        %3269 = vperm.xlu0 %3268, %v3191
        %v3270 = vpop.permute.xlu0 %3269
        %v3272 = vmul.f32 %v3145, %v3195
        %v3273 = vmul.f32 %v3147, %v3200
        %v3274 = vmul.f32 %v3149, %v3205
        %v3275 = vmul.f32 %v3151, %v3210
        %v3276 = vmul.f32 %v3153, %v3215
        %v3277 = vmul.f32 %v3155, %v3220
        %v3278 = vmul.f32 %v3157, %v3225
        %v3279 = vmul.f32 %v3159, %v3230
        %v3280 = vmul.f32 %v3161, %v3235
        %v3281 = vmul.f32 %v3163, %v3240
        %v3282 = vmul.f32 %v3165, %v3245
        %v3283 = vmul.f32 %v3167, %v3250
        %v3284 = vmul.f32 %v3169, %v3255
        %v3285 = vmul.f32 %v3171, %v3260
        %v3286 = vmul.f32 %v3173, %v3265
        %v3287 = vmul.f32 %v3175, %v3270
        %3288 = vset.pattern.permute.xlu0 1
        %3289 = vperm.xlu0 %3288, %v3176
        %v3290 = vpop.permute.xlu0 %3289
        %3292 = vset.pattern.permute.xlu0 1
        %3293 = vperm.xlu0 %3292, %v3177
        %v3294 = vpop.permute.xlu0 %3293
        %3296 = vset.pattern.permute.xlu0 1
        %3297 = vperm.xlu0 %3296, %v3178
        %v3298 = vpop.permute.xlu0 %3297
        %3300 = vset.pattern.permute.xlu0 1
        %3301 = vperm.xlu0 %3300, %v3179
        %v3302 = vpop.permute.xlu0 %3301
        %3304 = vset.pattern.permute.xlu0 1
        %3305 = vperm.xlu0 %3304, %v3180
        %v3306 = vpop.permute.xlu0 %3305
        %3308 = vset.pattern.permute.xlu0 1
        %3309 = vperm.xlu0 %3308, %v3181
        %v3310 = vpop.permute.xlu0 %3309
        %3312 = vset.pattern.permute.xlu0 1
        %3313 = vperm.xlu0 %3312, %v3182
        %v3314 = vpop.permute.xlu0 %3313
        %3316 = vset.pattern.permute.xlu0 1
        %3317 = vperm.xlu0 %3316, %v3183
        %v3318 = vpop.permute.xlu0 %3317
        %3320 = vset.pattern.permute.xlu0 1
        %3321 = vperm.xlu0 %3320, %v3184
        %v3322 = vpop.permute.xlu0 %3321
        %3324 = vset.pattern.permute.xlu0 1
        %3325 = vperm.xlu0 %3324, %v3185
        %v3326 = vpop.permute.xlu0 %3325
        %3328 = vset.pattern.permute.xlu0 1
        %3329 = vperm.xlu0 %3328, %v3186
        %v3330 = vpop.permute.xlu0 %3329
        %3332 = vset.pattern.permute.xlu0 1
        %3333 = vperm.xlu0 %3332, %v3187
        %v3334 = vpop.permute.xlu0 %3333
        %3336 = vset.pattern.permute.xlu0 1
        %3337 = vperm.xlu0 %3336, %v3188
        %v3338 = vpop.permute.xlu0 %3337
        %3340 = vset.pattern.permute.xlu0 1
        %3341 = vperm.xlu0 %3340, %v3189
        %v3342 = vpop.permute.xlu0 %3341
        %3344 = vset.pattern.permute.xlu0 1
        %3345 = vperm.xlu0 %3344, %v3190
        %v3346 = vpop.permute.xlu0 %3345
        %3348 = vset.pattern.permute.xlu0 1
        %3349 = vperm.xlu0 %3348, %v3191
        %v3350 = vpop.permute.xlu0 %3349
        %v3352 = vadd.f32 %v3272, %v3290
        %v3353 = vadd.f32 %v3273, %v3294
        %v3354 = vadd.f32 %v3274, %v3298
        %v3355 = vadd.f32 %v3275, %v3302
        %v3356 = vadd.f32 %v3276, %v3306
        %v3357 = vadd.f32 %v3277, %v3310
        %v3358 = vadd.f32 %v3278, %v3314
        %v3359 = vadd.f32 %v3279, %v3318
        %v3360 = vadd.f32 %v3280, %v3322
        %v3361 = vadd.f32 %v3281, %v3326
        %v3362 = vadd.f32 %v3282, %v3330
        %v3363 = vadd.f32 %v3283, %v3334
        %v3364 = vadd.f32 %v3284, %v3338
        %v3365 = vadd.f32 %v3285, %v3342
        %v3366 = vadd.f32 %v3286, %v3346
        %v3367 = vadd.f32 %v3287, %v3350
        %v3368 = vld [vmem:[%s335] sm:$0xff]
        %v3369 = vld [vmem:[%s335 + $0x8] sm:$0xff]
        %v3370 = vld [vmem:[%s335 + $0x10] sm:$0xff]
        %v3371 = vld [vmem:[%s335 + $0x18] sm:$0xff]
        %v3372 = vld [vmem:[%s335 + $0x20] sm:$0xff]
        %v3373 = vld [vmem:[%s335 + $0x28] sm:$0xff]
        %v3374 = vld [vmem:[%s335 + $0x30] sm:$0xff]
        %v3375 = vld [vmem:[%s335 + $0x38] sm:$0xff]
        %v3376 = vld [vmem:[%s335 + $0x40] sm:$0xff]
        %v3377 = vld [vmem:[%s335 + $0x48] sm:$0xff]
        %v3378 = vld [vmem:[%s335 + $0x50] sm:$0xff]
        %v3379 = vld [vmem:[%s335 + $0x58] sm:$0xff]
        %v3380 = vld [vmem:[%s335 + $0x60] sm:$0xff]
        %v3381 = vld [vmem:[%s335 + $0x68] sm:$0xff]
        %v3382 = vld [vmem:[%s335 + $0x70] sm:$0xff]
        %v3383 = vld [vmem:[%s335 + $0x78] sm:$0xff]
        %v3384 = vadd.f32 %v3352, %v3368
        %v3385 = vadd.f32 %v3353, %v3369
        %v3386 = vadd.f32 %v3354, %v3370
        %v3387 = vadd.f32 %v3355, %v3371
        %v3388 = vadd.f32 %v3356, %v3372
        %v3389 = vadd.f32 %v3357, %v3373
        %v3390 = vadd.f32 %v3358, %v3374
        %v3391 = vadd.f32 %v3359, %v3375
        %v3392 = vadd.f32 %v3360, %v3376
        %v3393 = vadd.f32 %v3361, %v3377
        %v3394 = vadd.f32 %v3362, %v3378
        %v3395 = vadd.f32 %v3363, %v3379
        %v3396 = vadd.f32 %v3364, %v3380
        %v3397 = vadd.f32 %v3365, %v3381
        %v3398 = vadd.f32 %v3366, %v3382
        %v3399 = vadd.f32 %v3367, %v3383
        %v3400 = vmax.f32 %v3384, 0.0
        %v3401 = vmax.f32 %v3385, 0.0
        %v3402 = vmax.f32 %v3386, 0.0
        %v3403 = vmax.f32 %v3387, 0.0
        %v3404 = vmax.f32 %v3388, 0.0
        %v3405 = vmax.f32 %v3389, 0.0
        %v3406 = vmax.f32 %v3390, 0.0
        %v3407 = vmax.f32 %v3391, 0.0
        %v3408 = vmax.f32 %v3392, 0.0
        %v3409 = vmax.f32 %v3393, 0.0
        %v3410 = vmax.f32 %v3394, 0.0
        %v3411 = vmax.f32 %v3395, 0.0
        %v3412 = vmax.f32 %v3396, 0.0
        %v3413 = vmax.f32 %v3397, 0.0
        %v3414 = vmax.f32 %v3398, 0.0
        %v3415 = vmax.f32 %v3399, 0.0
        %3416 = vst [vmem:[%s345] sm:$0xff] %v3400
        %3417 = vst [vmem:[%s345 + $0x8] sm:$0xff] %v3401
        %3418 = vst [vmem:[%s345 + $0x10] sm:$0xff] %v3402
        %3419 = vst [vmem:[%s345 + $0x18] sm:$0xff] %v3403
        %3420 = vst [vmem:[%s345 + $0x20] sm:$0xff] %v3404
        %3421 = vst [vmem:[%s345 + $0x28] sm:$0xff] %v3405
        %3422 = vst [vmem:[%s345 + $0x30] sm:$0xff] %v3406
        %3423 = vst [vmem:[%s345 + $0x38] sm:$0xff] %v3407
        %3424 = vst [vmem:[%s345 + $0x40] sm:$0xff] %v3408
        %3425 = vst [vmem:[%s345 + $0x48] sm:$0xff] %v3409
        %3426 = vst [vmem:[%s345 + $0x50] sm:$0xff] %v3410
        %3427 = vst [vmem:[%s345 + $0x58] sm:$0xff] %v3411
        %3428 = vst [vmem:[%s345 + $0x60] sm:$0xff] %v3412
        %3429 = vst [vmem:[%s345 + $0x68] sm:$0xff] %v3413
        %3430 = vst [vmem:[%s345 + $0x70] sm:$0xff] %v3414
        %3431 = vst [vmem:[%s345 + $0x78] sm:$0xff] %v3415
        %s3432 = smul.u32 16, %s23
        %p3433 = scmp.lt.s32.totalorder %s22, 1
        %s3434 = scalar_select %p3433, %s22, 1
        %p3435 = scmp.lt.s32.totalorder %s3432, 31
        %s3436 = scalar_select %p3435, %s3432, 31
        %s3437 = smul.addr %s3434, 32
        %s3438 = sadd.s32 %s3436, %s3437
        %s3439 = smul.addr %s3438, 8
        %s3440 = scalar_lea.vmem %s6, %s3439
        // Predicated region
        $region49: #{basic_block_forward.3} parent=43 // pred_check
          %p3441 = pneg %p193
        $region50: #{basic_block_forward.3} parent=43 // pred_check_branch
          %3443 = sbr.rel (%p3441) target = $region52
        $region51: #{basic_block_forward.3} parent=43 // pred_region
          %s3444 = smul.u32 16, %s23
        $region52: #{basic_block_forward.3} parent=43 // pred_fallthru
          _
      $region44: #{basic_block_forward.3} parent=5 // pred_fallthru
        _
      %p3445 = scmp.le.s32.totalorder 2, %s13
      // Predicated region
      $region53: #{basic_block_forward.3} parent=5 // pred_check
        %p3446 = pneg %p3445
      $region54: #{basic_block_forward.3} parent=5 // pred_check_branch
        %3448 = sbr.rel (%p3446) target = $region56
      $region55: #{basic_block_forward.3} parent=5 // pred_region
        %s3449 = ssub.s32 %s13, 2
        // Predicated region
        $region57: #{basic_block_forward.3} parent=55 // pred_check
          %p3450 = pneg %p199
        $region58: #{basic_block_forward.3} parent=55 // pred_check_branch
          %3452 = sbr.rel (%p3450) target = $region60
        $region59: #{basic_block_forward.3} parent=55 // pred_region
          %s3453 = smul.u32 16, %s25
          %p3454 = scmp.lt.s32.totalorder %s24, 1
          %s3455 = scalar_select %p3454, %s24, 1
          %p3456 = scmp.lt.s32.totalorder %s3453, 31
          %s3457 = scalar_select %p3456, %s3453, 31
          %s3458 = smul.addr %s3455, 32
          %s3459 = sadd.s32 %s3457, %s3458
          %s3460 = smul.addr %s3459, 8
          %s3461 = scalar_lea.vmem %s6, %s3460
        $region60: #{basic_block_forward.3} parent=55 // pred_fallthru
          _
      $region56: #{basic_block_forward.3} parent=5 // pred_fallthru
        _
    $region6: #{basic_block_forward.3} parent=1 // loop_footer
      %s17 = sadd.s32 1, %s13
    $region7: #{basic_block_forward.3} parent=1 // loop_footer_branch
      %12 = sbr.rel target = $region3
    $region8: #{basic_block_forward.3} parent=1 // loop_exit
      _
    %3462 = vsyncpa [#allocation3], 1
    %s3463 = scalar_lea.sflag [#allocation3], 1
    %3464 = vsyncpa %s3463, 1

</llo_original>
